<compile_context>
chip_gen: v6e
topology: v6e:2x2x1
jax: 0.10.0
libtpu: 0.0.40
codegen_flags: <defaults>
</compile_context>

<pallas_src>
import functools
import math

import jax
import jax.numpy as jnp
from jax import lax
from jax.experimental import pallas as pl
from jax.experimental.pallas import tpu as pltpu

# ----------------------- small test hyper-parameters (module-consistent) ---------------
KERNEL_SIZES = [6, 9, 12, 15]
OUT_CHANNELS = 32          # per conv block -> 4*32 = 128 total channels (lane dense)
POOL = 3
RNN_HIDDEN = 32
D_MODEL = 32
NHEAD = 4
DFF = 64
N_DECODE = 8
IN_DIM = 4
LN_EPS = 1e-5
BN_EPS = 1e-5


# =====================================================================================
# Fused 4-branch conv encoder: conv1d('same') + BN(eval) + ReLU + maxpool, all branches
# concatenated into a single 128-channel (lane dense) output.
# =====================================================================================
def conv_encoder_kernel(x_ref, w_ref, scale_ref, bias_ref, o_ref, acc_ref, *, L, K, pool):
    # x_ref: (L+K-1, Cin) padded input for one batch element.
    # w_ref: (K, Cin, Ctot) stacked taps of all 4 blocks (zero-padded / 'same'-aligned).
    # scale/bias: (1, Ctot) folded BN; o_ref: (L//pool, Ctot); acc_ref scratch (L, Ctot).
    ctot = o_ref.shape[-1]
    lout = o_ref.shape[0]
    acc = jnp.zeros((L, ctot), jnp.float32)
    for j in range(K):                                   # taps of the stacked kernel
        acc = acc + jnp.dot(x_ref[pl.ds(j, L), :], w_ref[j],
                            preferred_element_type=jnp.float32)
    acc = jnp.maximum(acc * scale_ref[...] + bias_ref[...], 0.0)     # BN(eval) + ReLU
    acc_ref[...] = acc
    pooled = acc_ref[pl.ds(0, lout, stride=pool), :]                 # strided max-pool
    for p in range(1, pool):
        pooled = jnp.maximum(pooled, acc_ref[pl.ds(p, lout, stride=pool), :])
    o_ref[...] = pooled


def conv_encoder(x, w, scale, bias, *, pool=POOL):
    B, L, cin = x.shape
    K, _, ctot = w.shape
    half = (K - 1) // 2
    x_pad = jnp.pad(x, ((0, 0), (half, K - 1 - half), (0, 0)))
    Lp = L + K - 1
    lout = L // pool
    kern = functools.partial(conv_encoder_kernel, L=L, K=K, pool=pool)
    return pl.pallas_call(
        kern,
        out_shape=jax.ShapeDtypeStruct((B, lout, ctot), jnp.float32),
        grid=(B,),
        in_specs=[
            pl.BlockSpec((None, Lp, cin), lambda b: (b, 0, 0)),
            pl.BlockSpec((K, cin, ctot), lambda b: (0, 0, 0)),
            pl.BlockSpec((1, ctot), lambda b: (0, 0)),
            pl.BlockSpec((1, ctot), lambda b: (0, 0)),
        ],
        out_specs=pl.BlockSpec((None, lout, ctot), lambda b: (b, 0, 0)),
        scratch_shapes=[pltpu.VMEM((L, ctot), jnp.float32)],
        compiler_params=pltpu.CompilerParams(dimension_semantics=("parallel",)),
    )(x_pad, w, scale, bias)


# =====================================================================================
# Fused bidirectional GRU: one pallas_call, grid over batch; both directions inside the
# kernel; the 3-gate input projection for ALL timesteps is hoisted out of the recurrence.
# Gate order along the 3H axis: [r, z, n] (PyTorch GRU).
# =====================================================================================
def gru_kernel(x_ref, wi_ref, wh_ref, bi_ref, bh_ref, o_ref, gx_ref, gh_ref, h_ref):
    # x_ref: (T, F); wi: (2, F, 3H); wh: (2, H, 3H); bi/bh: (2, 1, 3H); o_ref: (T, 2H)
    T = x_ref.shape[0]
    H = h_ref.shape[1]
    x = x_ref[...]
    for d in range(2):                                   # 0 = forward, 1 = backward
        # hoisted input projection for every timestep (single MXU matmul)
        gx_ref[...] = jnp.dot(x, wi_ref[d], preferred_element_type=jnp.float32) + bi_ref[d]
        h_ref[...] = jnp.zeros_like(h_ref)
        wh = wh_ref[d]
        bh = bh_ref[d]

        def body(s, carry, _d=d, _wh=wh, _bh=bh):
            tt = s if _d == 0 else T - 1 - s
            h = h_ref[...]
            gh_ref[...] = jnp.dot(h, _wh, preferred_element_type=jnp.float32) + _bh
            r = jax.nn.sigmoid(gx_ref[pl.ds(tt, 1), pl.ds(0, H)] + gh_ref[:, pl.ds(0, H)])
            z = jax.nn.sigmoid(gx_ref[pl.ds(tt, 1), pl.ds(H, H)] + gh_ref[:, pl.ds(H, H)])
            n = jnp.tanh(gx_ref[pl.ds(tt, 1), pl.ds(2 * H, H)] + r * gh_ref[:, pl.ds(2 * H, H)])
            hn = (1.0 - z) * n + z * h
            h_ref[...] = hn
            o_ref[pl.ds(tt, 1), pl.ds(_d * H, H)] = hn
            return carry

        lax.fori_loop(0, T, body, 0)


def bigru(x, wi, wh, bi, bh):
    B, T, F = x.shape
    H = wh.shape[1]
    return pl.pallas_call(
        gru_kernel,
        out_shape=jax.ShapeDtypeStruct((B, T, 2 * H), jnp.float32),
        grid=(B,),
        in_specs=[
            pl.BlockSpec((None, T, F), lambda b: (b, 0, 0)),
            pl.BlockSpec((2, F, 3 * H), lambda b: (0, 0, 0)),
            pl.BlockSpec((2, H, 3 * H), lambda b: (0, 0, 0)),
            pl.BlockSpec((2, 1, 3 * H), lambda b: (0, 0, 0)),
            pl.BlockSpec((2, 1, 3 * H), lambda b: (0, 0, 0)),
        ],
        out_specs=pl.BlockSpec((None, T, 2 * H), lambda b: (b, 0, 0)),
        scratch_shapes=[pltpu.VMEM((T, 3 * H), jnp.float32),
                        pltpu.VMEM((1, 3 * H), jnp.float32),
                        pltpu.VMEM((1, H), jnp.float32)],
        compiler_params=pltpu.CompilerParams(dimension_semantics=("parallel",)),
    )(x, wi, wh, bi, bh)


# =====================================================================================
# Memory prep: fc1 on the RNN output, cross-attention K/V pre-computed once (memory is
# constant over all decode steps), and the initial tgt buffer (embed of (plus, minus)).
# =====================================================================================
def memprep_kernel(rnn_ref, init_ref, fc1_w, fc1_b, wk, bk, wv, bv, emb_w, emb_b,
                   mk_ref, mv_ref, tgt0_ref):
    B = rnn_ref.shape[0]
    TMAX = tgt0_ref.shape[1]
    row0 = lax.broadcasted_iota(jnp.int32, (TMAX, 1), 0) == 0
    for b in range(B):
        rb = rnn_ref[b]                                            # (S, 2H)
        mem = jnp.dot(rb, fc1_w[...], preferred_element_type=jnp.float32) + fc1_b[...]
        mk_ref[b] = jnp.dot(mem, wk[...], preferred_element_type=jnp.float32) + bk[...]
        mv_ref[b] = jnp.dot(mem, wv[...], preferred_element_type=jnp.float32) + bv[...]
        ib = init_ref[pl.ds(b, 1), :]                              # (1, 2)
        e0 = jnp.dot(ib, emb_w[...], preferred_element_type=jnp.float32) + emb_b[...]
        tgt0_ref[b] = jnp.where(row0, e0, 0.0)                     # row 0 = embed, rest 0


def memory_prep(rnn_out, init_level, p):
    B, S, _ = rnn_out.shape
    D = p["fc1_w"].shape[1]
    return pl.pallas_call(
        memprep_kernel,
        out_shape=(jax.ShapeDtypeStruct((B, S, D), jnp.float32),
                   jax.ShapeDtypeStruct((B, S, D), jnp.float32),
                   jax.ShapeDtypeStruct((B, N_DECODE, D), jnp.float32)),
    )(rnn_out, init_level, p["fc1_w"], p["fc1_b"], p["ca_wk"], p["ca_bk"],
      p["ca_wv"], p["ca_bv"], p["emb_w"], p["emb_b"])


# =====================================================================================
# Fully fused transformer-decoder step (post-norm, relu, no tgt mask) + output head +
# next-token embedding, operating on a fixed-size tgt buffer with runtime valid length.
# =====================================================================================
def decoder_step_kernel(len_ref, tgt_ref, mk_ref, mv_ref,
                        sa_wqkv_ref, sa_bqkv_ref, sa_wo_ref, sa_bo_ref,
                        ca_wq_ref, ca_bq_ref, ca_wo_ref, ca_bo_ref,
                        ln1_g_ref, ln1_b_ref, ln2_g_ref, ln2_b_ref, ln3_g_ref, ln3_b_ref,
                        ff_w1_ref, ff_b1_ref, ff_w2_ref, ff_b2_ref,
                        out_w_ref, out_b_ref, emb_w_ref, emb_b_ref,
                        ntgt_ref, out_ref, qkv_s, ao_s):
    B, TMAX, D = tgt_ref.shape
    dh = D // NHEAD
    sm_scale = 1.0 / math.sqrt(dh)

    Lcur = len_ref[...]                                            # (1,1) int32, valid length
    tq_iota = lax.broadcasted_iota(jnp.int32, (TMAX, 1), 0)
    tk_iota = lax.broadcasted_iota(jnp.int32, (1, TMAX), 1)
    key_valid = tk_iota < Lcur                                     # mask unused buffer rows
    last_mask = (tq_iota == (Lcur - 1)).astype(jnp.float32)        # select tgt[-1]
    write_mask = tq_iota == Lcur                                   # where to append embed(out)

    # hoist weight loads out of the batch loop
    w_qkv = sa_wqkv_ref[...]; b_qkv = sa_bqkv_ref[...]
    w_so = sa_wo_ref[...];    b_so = sa_bo_ref[...]
    w_cq = ca_wq_ref[...];    b_cq = ca_bq_ref[...]
    w_co = ca_wo_ref[...];    b_co = ca_bo_ref[...]
    w_f1 = ff_w1_ref[...];    b_f1 = ff_b1_ref[...]
    w_f2 = ff_w2_ref[...];    b_f2 = ff_b2_ref[...]
    w_out = out_w_ref[...];   b_out = out_b_ref[...]
    w_emb = emb_w_ref[...];   b_emb = emb_b_ref[...]
    g1 = ln1_g_ref[...]; be1 = ln1_b_ref[...]
    g2 = ln2_g_ref[...]; be2 = ln2_b_ref[...]
    g3 = ln3_g_ref[...]; be3 = ln3_b_ref[...]

    def layer_norm(v, g, bt):
        mu = jnp.mean(v, axis=-1, keepdims=True)
        var = jnp.mean(jnp.square(v - mu), axis=-1, keepdims=True)
        return (v - mu) * lax.rsqrt(var + LN_EPS) * g + bt

    def softmax(s):
        s = s - jnp.max(s, axis=-1, keepdims=True)
        p = jnp.exp(s)
        return p * pl.reciprocal(jnp.sum(p, axis=-1, keepdims=True), approx=True)

    for b in range(B):
        x0 = tgt_ref[b]                                            # (TMAX, D)

        # ---------------- self attention (no causal mask, matches reference) ----------
        qkv_s[...] = jnp.dot(x0, w_qkv, preferred_element_type=jnp.float32) + b_qkv
        for h in range(NHEAD):
            qh = qkv_s[:, pl.ds(h * dh, dh)]
            kh = qkv_s[:, pl.ds(D + h * dh, dh)]
            vh = qkv_s[:, pl.ds(2 * D + h * dh, dh)]
            s = lax.dot_general(qh, kh, (((1,), (1,)), ((), ())),
                                preferred_element_type=jnp.float32) * sm_scale
            s = jnp.where(key_valid, s, -1e30)                     # hide unused buffer rows
            p = softmax(s)
            ao_s[:, pl.ds(h * dh, dh)] = jnp.dot(p, vh, preferred_element_type=jnp.float32)
        sa = jnp.dot(ao_s[...], w_so, preferred_element_type=jnp.float32) + b_so
        x1 = layer_norm(x0 + sa, g1, be1)

        # ---------------- cross attention (memory K/V precomputed) --------------------
        qkv_s[:, pl.ds(0, D)] = (jnp.dot(x1, w_cq, preferred_element_type=jnp.float32)
                                 + b_cq)
        for h in range(NHEAD):
            qh = qkv_s[:, pl.ds(h * dh, dh)]
            kh = mk_ref[b, :, pl.ds(h * dh, dh)]                   # (S, dh)
            vh = mv_ref[b, :, pl.ds(h * dh, dh)]
            s = lax.dot_general(qh, kh, (((1,), (1,)), ((), ())),
                                preferred_element_type=jnp.float32) * sm_scale
            p = softmax(s)
            ao_s[:, pl.ds(h * dh, dh)] = jnp.dot(p, vh, preferred_element_type=jnp.float32)
        ca = jnp.dot(ao_s[...], w_co, preferred_element_type=jnp.float32) + b_co
        x2 = layer_norm(x1 + ca, g2, be2)

        # ---------------- feed forward -------------------------------------------------
        f1 = jnp.maximum(jnp.dot(x2, w_f1, preferred_element_type=jnp.float32) + b_f1, 0.0)
        f2 = jnp.dot(f1, w_f2, preferred_element_type=jnp.float32) + b_f2
        x3 = layer_norm(x2 + f2, g3, be3)                          # decoder output (TMAX, D)

        # ---------------- output head + next-token embedding --------------------------
        last = jnp.sum(x3 * last_mask, axis=0, keepdims=True)      # (1, D) == tgt[-1]
        ob = jnp.dot(last, w_out, preferred_element_type=jnp.float32) + b_out   # (1, 2)
        out_ref[pl.ds(b, 1), :] = ob
        nxt = jnp.dot(ob, w_emb, preferred_element_type=jnp.float32) + b_emb    # (1, D)
        ntgt_ref[b] = jnp.where(write_mask, nxt, x3)               # append embed at row Lcur


def decoder_step(len_arr, tgt, mem_k, mem_v, w):
    B, TMAX, D = tgt.shape
    return pl.pallas_call(
        decoder_step_kernel,
        out_shape=(jax.ShapeDtypeStruct((B, TMAX, D), jnp.float32),
                   jax.ShapeDtypeStruct((B, 2), jnp.float32)),
        scratch_shapes=[pltpu.VMEM((TMAX, 3 * D), jnp.float32),
                        pltpu.VMEM((TMAX, D), jnp.float32)],
    )(len_arr, tgt, mem_k, mem_v,
      w["sa_wqkv"], w["sa_bqkv"], w["sa_wo"], w["sa_bo"],
      w["ca_wq"], w["ca_bq"], w["ca_wo"], w["ca_bo"],
      w["ln1_g"], w["ln1_b"], w["ln2_g"], w["ln2_b"], w["ln3_g"], w["ln3_b"],
      w["ff_w1"], w["ff_b1"], w["ff_w2"], w["ff_b2"],
      w["out_w"], w["out_b"], w["emb_w"], w["emb_b"])


# =====================================================================================
# Full forward
# =====================================================================================
def forward(params, x, plus_init, minus_init):
    B = x.shape[0]
    # encoder: 4 conv branches fused into one kernel, output already concatenated (B,T,128)
    enc = conv_encoder(x, params["conv_w"], params["conv_scale"], params["conv_bias"])
    # fused bidirectional GRU -> (B, T, 2H)
    rnn_out = bigru(enc, params["gru_wi"], params["gru_wh"], params["gru_bi"], params["gru_bh"])
    # fc1 + precomputed cross-attn K/V + initial tgt buffer
    init_level = jnp.stack([plus_init, minus_init], axis=1)                 # (B, 2)
    mem_k, mem_v, tgt0 = memory_prep(rnn_out, init_level, params)
    dec = params["dec"]

    outs0 = jnp.zeros((B, N_DECODE, 2), jnp.float32)

    def step(i, carry):
        tgt, outs = carry
        len_arr = jnp.reshape(i + 1, (1, 1)).astype(jnp.int32)              # valid tgt length
        ntgt, out = decoder_step(len_arr, tgt, mem_k, mem_v, dec)
        outs = lax.dynamic_update_slice(outs, out[:, None, :], (0, i, 0))
        return (ntgt, outs)

    _, outs = lax.fori_loop(0, N_DECODE, step, (tgt0, outs0))
    return jnp.concatenate([outs[:, :, 0], outs[:, :, 1]], axis=1)          # (B, 16)


# =====================================================================================
# Deterministic parameter init (eval-mode BN folded into scale/bias)
# =====================================================================================
def init_params(key):
    keys = iter(jax.random.split(key, 64))

    def nrm(shape, s=0.1):
        return s * jax.random.normal(next(keys), shape, jnp.float32)

    C = OUT_CHANNELS
    KMAX = max(KERNEL_SIZES)
    CTOT = C * len(KERNEL_SIZES)

    conv_w = jnp.zeros((KMAX, IN_DIM, CTOT), jnp.float32)
    scales, biases = [], []
    for i, k in enumerate(KERNEL_SIZES):
        w = nrm((k, IN_DIM, C))
        left = (k - 1) // 2                              # PyTorch padding='same'
        off = (KMAX - 1) // 2 - left                     # align within the stacked taps
        conv_w = conv_w.at[off:off + k, :, i * C:(i + 1) * C].set(w)
        conv_bias = nrm((1, C))
        gamma = 1.0 + nrm((1, C))
        beta = nrm((1, C))
        run_mean = jnp.zeros((1, C), jnp.float32)
        run_var = jnp.ones((1, C), jnp.float32)
        scale = gamma / jnp.sqrt(run_var + BN_EPS)       # eval-mode BN folding
        bias = (conv_bias - run_mean) * scale + beta
        scales.append(scale)
        biases.append(bias)

    params = {
        "conv_w": conv_w,
        "conv_scale": jnp.concatenate(scales, axis=-1),
        "conv_bias": jnp.concatenate(biases, axis=-1),
    }

    F = CTOT
    H = RNN_HIDDEN
    params["gru_wi"] = nrm((2, F, 3 * H))                # gate order [r, z, n]
    params["gru_wh"] = nrm((2, H, 3 * H))
    params["gru_bi"] = nrm((2, 1, 3 * H))
    params["gru_bh"] = nrm((2, 1, 3 * H))

    params["fc1_w"] = nrm((2 * H, D_MODEL))
    params["fc1_b"] = nrm((1, D_MODEL))
    params["emb_w"] = nrm((2, D_MODEL))
    params["emb_b"] = nrm((1, D_MODEL))
    params["out_w"] = nrm((D_MODEL, 2))
    params["out_b"] = nrm((1, 2))
    # cross-attention K / V projections (pre-applied to the decoder memory once)
    params["ca_wk"] = nrm((D_MODEL, D_MODEL)); params["ca_bk"] = nrm((1, D_MODEL))
    params["ca_wv"] = nrm((D_MODEL, D_MODEL)); params["ca_bv"] = nrm((1, D_MODEL))

    params["dec"] = {
        "sa_wqkv": nrm((D_MODEL, 3 * D_MODEL)), "sa_bqkv": nrm((1, 3 * D_MODEL)),
        "sa_wo": nrm((D_MODEL, D_MODEL)), "sa_bo": nrm((1, D_MODEL)),
        "ca_wq": nrm((D_MODEL, D_MODEL)), "ca_bq": nrm((1, D_MODEL)),
        "ca_wo": nrm((D_MODEL, D_MODEL)), "ca_bo": nrm((1, D_MODEL)),
        "ln1_g": jnp.ones((1, D_MODEL), jnp.float32), "ln1_b": jnp.zeros((1, D_MODEL), jnp.float32),
        "ln2_g": jnp.ones((1, D_MODEL), jnp.float32), "ln2_b": jnp.zeros((1, D_MODEL), jnp.float32),
        "ln3_g": jnp.ones((1, D_MODEL), jnp.float32), "ln3_b": jnp.zeros((1, D_MODEL), jnp.float32),
        "ff_w1": nrm((D_MODEL, DFF)), "ff_b1": nrm((1, DFF)),
        "ff_w2": nrm((DFF, D_MODEL)), "ff_b2": nrm((1, D_MODEL)),
        "out_w": params["out_w"], "out_b": params["out_b"],
        "emb_w": params["emb_w"], "emb_b": params["emb_b"],
    }
    return params


if __name__ == "__main__":
    key = jax.random.PRNGKey(0)
    kp, kx, kpl, kmn = jax.random.split(key, 4)
    params = init_params(kp)

    B, L = 2, 48                                         # L divisible by pool=3 -> T=16
    x = jax.random.normal(kx, (B, L, IN_DIM), jnp.float32)      # (batch, length, 4)
    plus_init = jax.random.normal(kpl, (B,), jnp.float32)
    minus_init = jax.random.normal(kmn, (B,), jnp.float32)

    fwd = jax.jit(forward)
    y = fwd(params, x, plus_init, minus_init)
    jax.block_until_ready(y)
    assert y.shape == (B, 2 * N_DECODE)
    assert bool(jnp.all(jnp.isfinite(y)))
    print("KERNEL_OK")
</pallas_src>

<mosaic_0001>
module attributes {stable_mosaic.version = 11 : i64} {
  func.func @conv_encoder_kernel(%arg0: i32, %arg1: memref<1x62x4xf32, #tpu.memory_space<vmem>>, %arg2: memref<15x4x128xf32, #tpu.memory_space<vmem>>, %arg3: memref<1x128xf32, #tpu.memory_space<vmem>>, %arg4: memref<1x128xf32, #tpu.memory_space<vmem>>, %arg5: memref<1x16x128xf32, #tpu.memory_space<vmem>>, %arg6: memref<48x128xf32, #tpu.memory_space<vmem>>) attributes {dimension_semantics = [#tpu.dimension_semantics<parallel>], iteration_bounds = array<i64: 2>, scalar_prefetch = 0 : i64, scratch_operands = 1 : i64, tpu.core_type = #tpu.core_type<tc>, window_params = [{transform_indices = @transform_0, window_bounds = array<i64: 1, 62, 4>}, {pipeline_mode = #tpu.pipeline_mode<synchronous>, transform_indices = @transform_1, window_bounds = array<i64: 15, 4, 128>}, {pipeline_mode = #tpu.pipeline_mode<synchronous>, transform_indices = @transform_2, window_bounds = array<i64: 1, 128>}, {pipeline_mode = #tpu.pipeline_mode<synchronous>, transform_indices = @transform_3, window_bounds = array<i64: 1, 128>}, {transform_indices = @transform_4, window_bounds = array<i64: 1, 16, 128>}]} {
    %cst = arith.constant 0.000000e+00 : f32
    %0 = vector.broadcast %cst : f32 to vector<48x128xf32>
    %c0 = arith.constant 0 : index
    %c0_0 = arith.constant 0 : index
    %c0_1 = arith.constant 0 : index
    %1 = vector.load %arg1[%c0, %c0_0, %c0_1] : memref<1x62x4xf32, #tpu.memory_space<vmem>>, vector<1x48x4xf32>
    %2 = vector.shape_cast %1 : vector<1x48x4xf32> to vector<48x4xf32>
    %c0_2 = arith.constant 0 : index
    %c0_3 = arith.constant 0 : index
    %c0_4 = arith.constant 0 : index
    %3 = vector.load %arg2[%c0_2, %c0_3, %c0_4] : memref<15x4x128xf32, #tpu.memory_space<vmem>>, vector<1x4x128xf32>
    %4 = vector.shape_cast %3 : vector<1x4x128xf32> to vector<4x128xf32>
    %cst_5 = arith.constant dense<0.000000e+00> : vector<48x128xf32>
    %5 = tpu.matmul %2, %4, %cst_5 {dimension_numbers = #tpu.dot_dimension_numbers<[1], [0], [0], [1], [0, 0, 1, 1], [], []>} : vector<48x4xf32>, vector<4x128xf32>, vector<48x128xf32> -> vector<48x128xf32>
    %6 = arith.addf %0, %5 : vector<48x128xf32>
    %c0_6 = arith.constant 0 : index
    %c1 = arith.constant 1 : index
    %c0_7 = arith.constant 0 : index
    %7 = vector.load %arg1[%c0_6, %c1, %c0_7] : memref<1x62x4xf32, #tpu.memory_space<vmem>>, vector<1x48x4xf32>
    %8 = vector.shape_cast %7 : vector<1x48x4xf32> to vector<48x4xf32>
    %c1_8 = arith.constant 1 : index
    %c0_9 = arith.constant 0 : index
    %c0_10 = arith.constant 0 : index
    %9 = vector.load %arg2[%c1_8, %c0_9, %c0_10] : memref<15x4x128xf32, #tpu.memory_space<vmem>>, vector<1x4x128xf32>
    %10 = vector.shape_cast %9 : vector<1x4x128xf32> to vector<4x128xf32>
    %cst_11 = arith.constant dense<0.000000e+00> : vector<48x128xf32>
    %11 = tpu.matmul %8, %10, %cst_11 {dimension_numbers = #tpu.dot_dimension_numbers<[1], [0], [0], [1], [0, 0, 1, 1], [], []>} : vector<48x4xf32>, vector<4x128xf32>, vector<48x128xf32> -> vector<48x128xf32>
    %12 = arith.addf %6, %11 : vector<48x128xf32>
    %c0_12 = arith.constant 0 : index
    %c2 = arith.constant 2 : index
    %c0_13 = arith.constant 0 : index
    %13 = vector.load %arg1[%c0_12, %c2, %c0_13] : memref<1x62x4xf32, #tpu.memory_space<vmem>>, vector<1x48x4xf32>
    %14 = vector.shape_cast %13 : vector<1x48x4xf32> to vector<48x4xf32>
    %c2_14 = arith.constant 2 : index
    %c0_15 = arith.constant 0 : index
    %c0_16 = arith.constant 0 : index
    %15 = vector.load %arg2[%c2_14, %c0_15, %c0_16] : memref<15x4x128xf32, #tpu.memory_space<vmem>>, vector<1x4x128xf32>
    %16 = vector.shape_cast %15 : vector<1x4x128xf32> to vector<4x128xf32>
    %cst_17 = arith.constant dense<0.000000e+00> : vector<48x128xf32>
    %17 = tpu.matmul %14, %16, %cst_17 {dimension_numbers = #tpu.dot_dimension_numbers<[1], [0], [0], [1], [0, 0, 1, 1], [], []>} : vector<48x4xf32>, vector<4x128xf32>, vector<48x128xf32> -> vector<48x128xf32>
    %18 = arith.addf %12, %17 : vector<48x128xf32>
    %c0_18 = arith.constant 0 : index
    %c3 = arith.constant 3 : index
    %c0_19 = arith.constant 0 : index
    %19 = vector.load %arg1[%c0_18, %c3, %c0_19] : memref<1x62x4xf32, #tpu.memory_space<vmem>>, vector<1x48x4xf32>
    %20 = vector.shape_cast %19 : vector<1x48x4xf32> to vector<48x4xf32>
    %c3_20 = arith.constant 3 : index
    %c0_21 = arith.constant 0 : index
    %c0_22 = arith.constant 0 : index
    %21 = vector.load %arg2[%c3_20, %c0_21, %c0_22] : memref<15x4x128xf32, #tpu.memory_space<vmem>>, vector<1x4x128xf32>
    %22 = vector.shape_cast %21 : vector<1x4x128xf32> to vector<4x128xf32>
    %cst_23 = arith.constant dense<0.000000e+00> : vector<48x128xf32>
    %23 = tpu.matmul %20, %22, %cst_23 {dimension_numbers = #tpu.dot_dimension_numbers<[1], [0], [0], [1], [0, 0, 1, 1], [], []>} : vector<48x4xf32>, vector<4x128xf32>, vector<48x128xf32> -> vector<48x128xf32>
    %24 = arith.addf %18, %23 : vector<48x128xf32>
    %c0_24 = arith.constant 0 : index
    %c4 = arith.constant 4 : index
    %c0_25 = arith.constant 0 : index
    %25 = vector.load %arg1[%c0_24, %c4, %c0_25] : memref<1x62x4xf32, #tpu.memory_space<vmem>>, vector<1x48x4xf32>
    %26 = vector.shape_cast %25 : vector<1x48x4xf32> to vector<48x4xf32>
    %c4_26 = arith.constant 4 : index
    %c0_27 = arith.constant 0 : index
    %c0_28 = arith.constant 0 : index
    %27 = vector.load %arg2[%c4_26, %c0_27, %c0_28] : memref<15x4x128xf32, #tpu.memory_space<vmem>>, vector<1x4x128xf32>
    %28 = vector.shape_cast %27 : vector<1x4x128xf32> to vector<4x128xf32>
    %cst_29 = arith.constant dense<0.000000e+00> : vector<48x128xf32>
    %29 = tpu.matmul %26, %28, %cst_29 {dimension_numbers = #tpu.dot_dimension_numbers<[1], [0], [0], [1], [0, 0, 1, 1], [], []>} : vector<48x4xf32>, vector<4x128xf32>, vector<48x128xf32> -> vector<48x128xf32>
    %30 = arith.addf %24, %29 : vector<48x128xf32>
    %c0_30 = arith.constant 0 : index
    %c5 = arith.constant 5 : index
    %c0_31 = arith.constant 0 : index
    %31 = vector.load %arg1[%c0_30, %c5, %c0_31] : memref<1x62x4xf32, #tpu.memory_space<vmem>>, vector<1x48x4xf32>
    %32 = vector.shape_cast %31 : vector<1x48x4xf32> to vector<48x4xf32>
    %c5_32 = arith.constant 5 : index
    %c0_33 = arith.constant 0 : index
    %c0_34 = arith.constant 0 : index
    %33 = vector.load %arg2[%c5_32, %c0_33, %c0_34] : memref<15x4x128xf32, #tpu.memory_space<vmem>>, vector<1x4x128xf32>
    %34 = vector.shape_cast %33 : vector<1x4x128xf32> to vector<4x128xf32>
    %cst_35 = arith.constant dense<0.000000e+00> : vector<48x128xf32>
    %35 = tpu.matmul %32, %34, %cst_35 {dimension_numbers = #tpu.dot_dimension_numbers<[1], [0], [0], [1], [0, 0, 1, 1], [], []>} : vector<48x4xf32>, vector<4x128xf32>, vector<48x128xf32> -> vector<48x128xf32>
    %36 = arith.addf %30, %35 : vector<48x128xf32>
    %c0_36 = arith.constant 0 : index
    %c6 = arith.constant 6 : index
    %c0_37 = arith.constant 0 : index
    %37 = vector.load %arg1[%c0_36, %c6, %c0_37] : memref<1x62x4xf32, #tpu.memory_space<vmem>>, vector<1x48x4xf32>
    %38 = vector.shape_cast %37 : vector<1x48x4xf32> to vector<48x4xf32>
    %c6_38 = arith.constant 6 : index
    %c0_39 = arith.constant 0 : index
    %c0_40 = arith.constant 0 : index
    %39 = vector.load %arg2[%c6_38, %c0_39, %c0_40] : memref<15x4x128xf32, #tpu.memory_space<vmem>>, vector<1x4x128xf32>
    %40 = vector.shape_cast %39 : vector<1x4x128xf32> to vector<4x128xf32>
    %cst_41 = arith.constant dense<0.000000e+00> : vector<48x128xf32>
    %41 = tpu.matmul %38, %40, %cst_41 {dimension_numbers = #tpu.dot_dimension_numbers<[1], [0], [0], [1], [0, 0, 1, 1], [], []>} : vector<48x4xf32>, vector<4x128xf32>, vector<48x128xf32> -> vector<48x128xf32>
    %42 = arith.addf %36, %41 : vector<48x128xf32>
    %c0_42 = arith.constant 0 : index
    %c7 = arith.constant 7 : index
    %c0_43 = arith.constant 0 : index
    %43 = vector.load %arg1[%c0_42, %c7, %c0_43] : memref<1x62x4xf32, #tpu.memory_space<vmem>>, vector<1x48x4xf32>
    %44 = vector.shape_cast %43 : vector<1x48x4xf32> to vector<48x4xf32>
    %c7_44 = arith.constant 7 : index
    %c0_45 = arith.constant 0 : index
    %c0_46 = arith.constant 0 : index
    %45 = vector.load %arg2[%c7_44, %c0_45, %c0_46] : memref<15x4x128xf32, #tpu.memory_space<vmem>>, vector<1x4x128xf32>
    %46 = vector.shape_cast %45 : vector<1x4x128xf32> to vector<4x128xf32>
    %cst_47 = arith.constant dense<0.000000e+00> : vector<48x128xf32>
    %47 = tpu.matmul %44, %46, %cst_47 {dimension_numbers = #tpu.dot_dimension_numbers<[1], [0], [0], [1], [0, 0, 1, 1], [], []>} : vector<48x4xf32>, vector<4x128xf32>, vector<48x128xf32> -> vector<48x128xf32>
    %48 = arith.addf %42, %47 : vector<48x128xf32>
    %c0_48 = arith.constant 0 : index
    %c8 = arith.constant 8 : index
    %c0_49 = arith.constant 0 : index
    %49 = vector.load %arg1[%c0_48, %c8, %c0_49] : memref<1x62x4xf32, #tpu.memory_space<vmem>>, vector<1x48x4xf32>
    %50 = vector.shape_cast %49 : vector<1x48x4xf32> to vector<48x4xf32>
    %c8_50 = arith.constant 8 : index
    %c0_51 = arith.constant 0 : index
    %c0_52 = arith.constant 0 : index
    %51 = vector.load %arg2[%c8_50, %c0_51, %c0_52] : memref<15x4x128xf32, #tpu.memory_space<vmem>>, vector<1x4x128xf32>
    %52 = vector.shape_cast %51 : vector<1x4x128xf32> to vector<4x128xf32>
    %cst_53 = arith.constant dense<0.000000e+00> : vector<48x128xf32>
    %53 = tpu.matmul %50, %52, %cst_53 {dimension_numbers = #tpu.dot_dimension_numbers<[1], [0], [0], [1], [0, 0, 1, 1], [], []>} : vector<48x4xf32>, vector<4x128xf32>, vector<48x128xf32> -> vector<48x128xf32>
    %54 = arith.addf %48, %53 : vector<48x128xf32>
    %c0_54 = arith.constant 0 : index
    %c9 = arith.constant 9 : index
    %c0_55 = arith.constant 0 : index
    %55 = vector.load %arg1[%c0_54, %c9, %c0_55] : memref<1x62x4xf32, #tpu.memory_space<vmem>>, vector<1x48x4xf32>
    %56 = vector.shape_cast %55 : vector<1x48x4xf32> to vector<48x4xf32>
    %c9_56 = arith.constant 9 : index
    %c0_57 = arith.constant 0 : index
    %c0_58 = arith.constant 0 : index
    %57 = vector.load %arg2[%c9_56, %c0_57, %c0_58] : memref<15x4x128xf32, #tpu.memory_space<vmem>>, vector<1x4x128xf32>
    %58 = vector.shape_cast %57 : vector<1x4x128xf32> to vector<4x128xf32>
    %cst_59 = arith.constant dense<0.000000e+00> : vector<48x128xf32>
    %59 = tpu.matmul %56, %58, %cst_59 {dimension_numbers = #tpu.dot_dimension_numbers<[1], [0], [0], [1], [0, 0, 1, 1], [], []>} : vector<48x4xf32>, vector<4x128xf32>, vector<48x128xf32> -> vector<48x128xf32>
    %60 = arith.addf %54, %59 : vector<48x128xf32>
    %c0_60 = arith.constant 0 : index
    %c10 = arith.constant 10 : index
    %c0_61 = arith.constant 0 : index
    %61 = vector.load %arg1[%c0_60, %c10, %c0_61] : memref<1x62x4xf32, #tpu.memory_space<vmem>>, vector<1x48x4xf32>
    %62 = vector.shape_cast %61 : vector<1x48x4xf32> to vector<48x4xf32>
    %c10_62 = arith.constant 10 : index
    %c0_63 = arith.constant 0 : index
    %c0_64 = arith.constant 0 : index
    %63 = vector.load %arg2[%c10_62, %c0_63, %c0_64] : memref<15x4x128xf32, #tpu.memory_space<vmem>>, vector<1x4x128xf32>
    %64 = vector.shape_cast %63 : vector<1x4x128xf32> to vector<4x128xf32>
    %cst_65 = arith.constant dense<0.000000e+00> : vector<48x128xf32>
    %65 = tpu.matmul %62, %64, %cst_65 {dimension_numbers = #tpu.dot_dimension_numbers<[1], [0], [0], [1], [0, 0, 1, 1], [], []>} : vector<48x4xf32>, vector<4x128xf32>, vector<48x128xf32> -> vector<48x128xf32>
    %66 = arith.addf %60, %65 : vector<48x128xf32>
    %c0_66 = arith.constant 0 : index
    %c11 = arith.constant 11 : index
    %c0_67 = arith.constant 0 : index
    %67 = vector.load %arg1[%c0_66, %c11, %c0_67] : memref<1x62x4xf32, #tpu.memory_space<vmem>>, vector<1x48x4xf32>
    %68 = vector.shape_cast %67 : vector<1x48x4xf32> to vector<48x4xf32>
    %c11_68 = arith.constant 11 : index
    %c0_69 = arith.constant 0 : index
    %c0_70 = arith.constant 0 : index
    %69 = vector.load %arg2[%c11_68, %c0_69, %c0_70] : memref<15x4x128xf32, #tpu.memory_space<vmem>>, vector<1x4x128xf32>
    %70 = vector.shape_cast %69 : vector<1x4x128xf32> to vector<4x128xf32>
    %cst_71 = arith.constant dense<0.000000e+00> : vector<48x128xf32>
    %71 = tpu.matmul %68, %70, %cst_71 {dimension_numbers = #tpu.dot_dimension_numbers<[1], [0], [0], [1], [0, 0, 1, 1], [], []>} : vector<48x4xf32>, vector<4x128xf32>, vector<48x128xf32> -> vector<48x128xf32>
    %72 = arith.addf %66, %71 : vector<48x128xf32>
    %c0_72 = arith.constant 0 : index
    %c12 = arith.constant 12 : index
    %c0_73 = arith.constant 0 : index
    %73 = vector.load %arg1[%c0_72, %c12, %c0_73] : memref<1x62x4xf32, #tpu.memory_space<vmem>>, vector<1x48x4xf32>
    %74 = vector.shape_cast %73 : vector<1x48x4xf32> to vector<48x4xf32>
    %c12_74 = arith.constant 12 : index
    %c0_75 = arith.constant 0 : index
    %c0_76 = arith.constant 0 : index
    %75 = vector.load %arg2[%c12_74, %c0_75, %c0_76] : memref<15x4x128xf32, #tpu.memory_space<vmem>>, vector<1x4x128xf32>
    %76 = vector.shape_cast %75 : vector<1x4x128xf32> to vector<4x128xf32>
    %cst_77 = arith.constant dense<0.000000e+00> : vector<48x128xf32>
    %77 = tpu.matmul %74, %76, %cst_77 {dimension_numbers = #tpu.dot_dimension_numbers<[1], [0], [0], [1], [0, 0, 1, 1], [], []>} : vector<48x4xf32>, vector<4x128xf32>, vector<48x128xf32> -> vector<48x128xf32>
    %78 = arith.addf %72, %77 : vector<48x128xf32>
    %c0_78 = arith.constant 0 : index
    %c13 = arith.constant 13 : index
    %c0_79 = arith.constant 0 : index
    %79 = vector.load %arg1[%c0_78, %c13, %c0_79] : memref<1x62x4xf32, #tpu.memory_space<vmem>>, vector<1x48x4xf32>
    %80 = vector.shape_cast %79 : vector<1x48x4xf32> to vector<48x4xf32>
    %c13_80 = arith.constant 13 : index
    %c0_81 = arith.constant 0 : index
    %c0_82 = arith.constant 0 : index
    %81 = vector.load %arg2[%c13_80, %c0_81, %c0_82] : memref<15x4x128xf32, #tpu.memory_space<vmem>>, vector<1x4x128xf32>
    %82 = vector.shape_cast %81 : vector<1x4x128xf32> to vector<4x128xf32>
    %cst_83 = arith.constant dense<0.000000e+00> : vector<48x128xf32>
    %83 = tpu.matmul %80, %82, %cst_83 {dimension_numbers = #tpu.dot_dimension_numbers<[1], [0], [0], [1], [0, 0, 1, 1], [], []>} : vector<48x4xf32>, vector<4x128xf32>, vector<48x128xf32> -> vector<48x128xf32>
    %84 = arith.addf %78, %83 : vector<48x128xf32>
    %c0_84 = arith.constant 0 : index
    %c14 = arith.constant 14 : index
    %c0_85 = arith.constant 0 : index
    %85 = vector.load %arg1[%c0_84, %c14, %c0_85] : memref<1x62x4xf32, #tpu.memory_space<vmem>>, vector<1x48x4xf32>
    %86 = vector.shape_cast %85 : vector<1x48x4xf32> to vector<48x4xf32>
    %c14_86 = arith.constant 14 : index
    %c0_87 = arith.constant 0 : index
    %c0_88 = arith.constant 0 : index
    %87 = vector.load %arg2[%c14_86, %c0_87, %c0_88] : memref<15x4x128xf32, #tpu.memory_space<vmem>>, vector<1x4x128xf32>
    %88 = vector.shape_cast %87 : vector<1x4x128xf32> to vector<4x128xf32>
    %cst_89 = arith.constant dense<0.000000e+00> : vector<48x128xf32>
    %89 = tpu.matmul %86, %88, %cst_89 {dimension_numbers = #tpu.dot_dimension_numbers<[1], [0], [0], [1], [0, 0, 1, 1], [], []>} : vector<48x4xf32>, vector<4x128xf32>, vector<48x128xf32> -> vector<48x128xf32>
    %90 = arith.addf %84, %89 : vector<48x128xf32>
    %c0_90 = arith.constant 0 : index
    %c0_91 = arith.constant 0 : index
    %91 = vector.load %arg3[%c0_90, %c0_91] : memref<1x128xf32, #tpu.memory_space<vmem>>, vector<1x128xf32>
    %92 = vector.broadcast %91 : vector<1x128xf32> to vector<48x128xf32>
    %93 = arith.mulf %90, %92 : vector<48x128xf32>
    %c0_92 = arith.constant 0 : index
    %c0_93 = arith.constant 0 : index
    %94 = vector.load %arg4[%c0_92, %c0_93] : memref<1x128xf32, #tpu.memory_space<vmem>>, vector<1x128xf32>
    %95 = vector.broadcast %94 : vector<1x128xf32> to vector<48x128xf32>
    %96 = arith.addf %93, %95 : vector<48x128xf32>
    %cst_94 = arith.constant 0.000000e+00 : f32
    %97 = vector.broadcast %cst_94 : f32 to vector<48x128xf32>
    %98 = arith.maximumf %96, %97 : vector<48x128xf32>
    %c0_95 = arith.constant 0 : index
    %c0_96 = arith.constant 0 : index
    %99 = vector.load %arg6[%c0_95, %c0_96] : memref<48x128xf32, #tpu.memory_space<vmem>>, vector<48x128xf32>
    tpu.vector_store %arg6[%c0_95, %c0_96], %98 {strides = array<i32>} : memref<48x128xf32, #tpu.memory_space<vmem>>, vector<48x128xf32>,
    %c0_97 = arith.constant 0 : index
    %c0_98 = arith.constant 0 : index
    %100 = tpu.strided_load %arg6[%c0_97, %c0_98] {strides = array<i32: 3, 1>} : memref<48x128xf32, #tpu.memory_space<vmem>>, vector<16x128xf32>
    %c1_99 = arith.constant 1 : index
    %c0_100 = arith.constant 0 : index
    %101 = tpu.strided_load %arg6[%c1_99, %c0_100] {strides = array<i32: 3, 1>} : memref<48x128xf32, #tpu.memory_space<vmem>>, vector<16x128xf32>
    %102 = arith.maximumf %100, %101 : vector<16x128xf32>
    %c2_101 = arith.constant 2 : index
    %c0_102 = arith.constant 0 : index
    %103 = tpu.strided_load %arg6[%c2_101, %c0_102] {strides = array<i32: 3, 1>} : memref<48x128xf32, #tpu.memory_space<vmem>>, vector<16x128xf32>
    %104 = arith.maximumf %102, %103 : vector<16x128xf32>
    %c0_103 = arith.constant 0 : index
    %c0_104 = arith.constant 0 : index
    %c0_105 = arith.constant 0 : index
    %105 = vector.load %arg5[%c0_103, %c0_104, %c0_105] : memref<1x16x128xf32, #tpu.memory_space<vmem>>, vector<1x16x128xf32>
    %106 = vector.shape_cast %105 : vector<1x16x128xf32> to vector<16x128xf32>
    %107 = vector.shape_cast %104 : vector<16x128xf32> to vector<1x16x128xf32>
    tpu.vector_store %arg5[%c0_103, %c0_104, %c0_105], %107 {strides = array<i32>} : memref<1x16x128xf32, #tpu.memory_space<vmem>>, vector<1x16x128xf32>,
    return
  }
  func.func @transform_0(%arg0: i32) -> (i32, i32, i32) {
    %c0_i32 = arith.constant 0 : i32
    %c0_i32_0 = arith.constant 0 : i32
    %c0_i32_1 = arith.constant 0 : i32
    return %arg0, %c0_i32, %c0_i32_0 : i32, i32, i32
  }
  func.func @transform_1(%arg0: i32) -> (i32, i32, i32) {
    %c0_i32 = arith.constant 0 : i32
    %c0_i32_0 = arith.constant 0 : i32
    %c0_i32_1 = arith.constant 0 : i32
    %c0_i32_2 = arith.constant 0 : i32
    return %c0_i32, %c0_i32_0, %c0_i32_1 : i32, i32, i32
  }
  func.func @transform_2(%arg0: i32) -> (i32, i32) {
    %c0_i32 = arith.constant 0 : i32
    %c0_i32_0 = arith.constant 0 : i32
    %c0_i32_1 = arith.constant 0 : i32
    return %c0_i32, %c0_i32_0 : i32, i32
  }
  func.func @transform_3(%arg0: i32) -> (i32, i32) {
    %c0_i32 = arith.constant 0 : i32
    %c0_i32_0 = arith.constant 0 : i32
    %c0_i32_1 = arith.constant 0 : i32
    return %c0_i32, %c0_i32_0 : i32, i32
  }
  func.func @transform_4(%arg0: i32) -> (i32, i32, i32) {
    %c0_i32 = arith.constant 0 : i32
    %c0_i32_0 = arith.constant 0 : i32
    %c0_i32_1 = arith.constant 0 : i32
    return %arg0, %c0_i32, %c0_i32_0 : i32, i32, i32
  }
}

module attributes {stable_mosaic.version = 11 : i64} {
  func.func @gru_kernel(%arg0: i32, %arg1: memref<1x16x128xf32, #tpu.memory_space<vmem>>, %arg2: memref<2x128x96xf32, #tpu.memory_space<vmem>>, %arg3: memref<2x32x96xf32, #tpu.memory_space<vmem>>, %arg4: memref<2x1x96xf32, #tpu.memory_space<vmem>>, %arg5: memref<2x1x96xf32, #tpu.memory_space<vmem>>, %arg6: memref<1x16x64xf32, #tpu.memory_space<vmem>>, %arg7: memref<16x96xf32, #tpu.memory_space<vmem>>, %arg8: memref<1x96xf32, #tpu.memory_space<vmem>>, %arg9: memref<1x32xf32, #tpu.memory_space<vmem>>) attributes {dimension_semantics = [#tpu.dimension_semantics<parallel>], iteration_bounds = array<i64: 2>, scalar_prefetch = 0 : i64, scratch_operands = 3 : i64, tpu.core_type = #tpu.core_type<tc>, window_params = [{transform_indices = @transform_0, window_bounds = array<i64: 1, 16, 128>}, {pipeline_mode = #tpu.pipeline_mode<synchronous>, transform_indices = @transform_1, window_bounds = array<i64: 2, 128, 96>}, {pipeline_mode = #tpu.pipeline_mode<synchronous>, transform_indices = @transform_2, window_bounds = array<i64: 2, 32, 96>}, {pipeline_mode = #tpu.pipeline_mode<synchronous>, transform_indices = @transform_3, window_bounds = array<i64: 2, 1, 96>}, {pipeline_mode = #tpu.pipeline_mode<synchronous>, transform_indices = @transform_4, window_bounds = array<i64: 2, 1, 96>}, {transform_indices = @transform_5, window_bounds = array<i64: 1, 16, 64>}]} {
    %c0 = arith.constant 0 : index
    %c0_0 = arith.constant 0 : index
    %c0_1 = arith.constant 0 : index
    %0 = vector.load %arg1[%c0, %c0_0, %c0_1] : memref<1x16x128xf32, #tpu.memory_space<vmem>>, vector<1x16x128xf32>
    %1 = vector.shape_cast %0 : vector<1x16x128xf32> to vector<16x128xf32>
    %c0_2 = arith.constant 0 : index
    %c0_3 = arith.constant 0 : index
    %c0_4 = arith.constant 0 : index
    %2 = vector.load %arg2[%c0_2, %c0_3, %c0_4] : memref<2x128x96xf32, #tpu.memory_space<vmem>>, vector<1x128x96xf32>
    %3 = vector.shape_cast %2 : vector<1x128x96xf32> to vector<128x96xf32>
    %cst = arith.constant dense<0.000000e+00> : vector<16x96xf32>
    %4 = tpu.matmul %1, %3, %cst {dimension_numbers = #tpu.dot_dimension_numbers<[1], [0], [0], [1], [0, 0, 1, 1], [], []>} : vector<16x128xf32>, vector<128x96xf32>, vector<16x96xf32> -> vector<16x96xf32>
    %c0_5 = arith.constant 0 : index
    %c0_6 = arith.constant 0 : index
    %c0_7 = arith.constant 0 : index
    %5 = vector.load %arg4[%c0_5, %c0_6, %c0_7] : memref<2x1x96xf32, #tpu.memory_space<vmem>>, vector<1x1x96xf32>
    %6 = vector.shape_cast %5 : vector<1x1x96xf32> to vector<1x96xf32>
    %7 = vector.broadcast %6 : vector<1x96xf32> to vector<16x96xf32>
    %8 = arith.addf %4, %7 : vector<16x96xf32>
    %c0_8 = arith.constant 0 : index
    %c0_9 = arith.constant 0 : index
    %9 = vector.load %arg7[%c0_8, %c0_9] : memref<16x96xf32, #tpu.memory_space<vmem>>, vector<16x96xf32>
    tpu.vector_store %arg7[%c0_8, %c0_9], %8 {strides = array<i32>} : memref<16x96xf32, #tpu.memory_space<vmem>>, vector<16x96xf32>,
    %cst_10 = arith.constant 0.000000e+00 : f32
    %10 = vector.broadcast %cst_10 : f32 to vector<1x32xf32>
    %c0_11 = arith.constant 0 : index
    %c0_12 = arith.constant 0 : index
    %11 = vector.load %arg9[%c0_11, %c0_12] : memref<1x32xf32, #tpu.memory_space<vmem>>, vector<1x32xf32>
    tpu.vector_store %arg9[%c0_11, %c0_12], %10 {strides = array<i32>} : memref<1x32xf32, #tpu.memory_space<vmem>>, vector<1x32xf32>,
    %c0_13 = arith.constant 0 : index
    %c0_14 = arith.constant 0 : index
    %c0_15 = arith.constant 0 : index
    %12 = vector.load %arg3[%c0_13, %c0_14, %c0_15] : memref<2x32x96xf32, #tpu.memory_space<vmem>>, vector<1x32x96xf32>
    %13 = vector.shape_cast %12 : vector<1x32x96xf32> to vector<32x96xf32>
    %c0_16 = arith.constant 0 : index
    %c0_17 = arith.constant 0 : index
    %c0_18 = arith.constant 0 : index
    %14 = vector.load %arg5[%c0_16, %c0_17, %c0_18] : memref<2x1x96xf32, #tpu.memory_space<vmem>>, vector<1x1x96xf32>
    %15 = vector.shape_cast %14 : vector<1x1x96xf32> to vector<1x96xf32>
    %c0_i32 = arith.constant 0 : i32
    %c16_i32 = arith.constant 16 : i32
    %16 = arith.addi %c0_i32, %c16_i32 : i32
    %c1_i32 = arith.constant 1 : i32
    scf.for %arg10 = %c0_i32 to %16 step %c1_i32  : i32 {
      %c0_41 = arith.constant 0 : index
      %c0_42 = arith.constant 0 : index
      %32 = vector.load %arg9[%c0_41, %c0_42] : memref<1x32xf32, #tpu.memory_space<vmem>>, vector<1x32xf32>
      %cst_43 = arith.constant dense<0.000000e+00> : vector<1x96xf32>
      %33 = tpu.matmul %32, %13, %cst_43 {dimension_numbers = #tpu.dot_dimension_numbers<[1], [0], [0], [1], [0, 0, 1, 1], [], []>} : vector<1x32xf32>, vector<32x96xf32>, vector<1x96xf32> -> vector<1x96xf32>
      %34 = arith.addf %33, %15 : vector<1x96xf32>
      %c0_44 = arith.constant 0 : index
      %c0_45 = arith.constant 0 : index
      %35 = vector.load %arg8[%c0_44, %c0_45] : memref<1x96xf32, #tpu.memory_space<vmem>>, vector<1x96xf32>
      tpu.vector_store %arg8[%c0_44, %c0_45], %34 {strides = array<i32>} : memref<1x96xf32, #tpu.memory_space<vmem>>, vector<1x96xf32>,
      %36 = arith.index_cast %arg10 : i32 to index
      %c0_46 = arith.constant 0 : index
      %37 = vector.load %arg7[%36, %c0_46] : memref<16x96xf32, #tpu.memory_space<vmem>>, vector<1x32xf32>
      %c0_47 = arith.constant 0 : index
      %c0_48 = arith.constant 0 : index
      %38 = vector.load %arg8[%c0_47, %c0_48] : memref<1x96xf32, #tpu.memory_space<vmem>>, vector<1x32xf32>
      %39 = arith.addf %37, %38 : vector<1x32xf32>
      %40 = arith.negf %39 : vector<1x32xf32>
      %41 = math.exp %40 : vector<1x32xf32>
      %cst_49 = arith.constant 1.000000e+00 : f32
      %42 = vector.broadcast %cst_49 : f32 to vector<1x32xf32>
      %43 = arith.addf %42, %41 : vector<1x32xf32>
      %44 = arith.divf %42, %43 : vector<1x32xf32>
      %45 = arith.index_cast %arg10 : i32 to index
      %c32 = arith.constant 32 : index
      %46 = vector.load %arg7[%45, %c32] : memref<16x96xf32, #tpu.memory_space<vmem>>, vector<1x32xf32>
      %c0_50 = arith.constant 0 : index
      %c32_51 = arith.constant 32 : index
      %47 = vector.load %arg8[%c0_50, %c32_51] : memref<1x96xf32, #tpu.memory_space<vmem>>, vector<1x32xf32>
      %48 = arith.addf %46, %47 : vector<1x32xf32>
      %49 = arith.negf %48 : vector<1x32xf32>
      %50 = math.exp %49 : vector<1x32xf32>
      %cst_52 = arith.constant 1.000000e+00 : f32
      %51 = vector.broadcast %cst_52 : f32 to vector<1x32xf32>
      %52 = arith.addf %51, %50 : vector<1x32xf32>
      %53 = arith.divf %51, %52 : vector<1x32xf32>
      %54 = arith.index_cast %arg10 : i32 to index
      %c64 = arith.constant 64 : index
      %55 = vector.load %arg7[%54, %c64] : memref<16x96xf32, #tpu.memory_space<vmem>>, vector<1x32xf32>
      %c0_53 = arith.constant 0 : index
      %c64_54 = arith.constant 64 : index
      %56 = vector.load %arg8[%c0_53, %c64_54] : memref<1x96xf32, #tpu.memory_space<vmem>>, vector<1x32xf32>
      %57 = arith.mulf %44, %56 : vector<1x32xf32>
      %58 = arith.addf %55, %57 : vector<1x32xf32>
      %59 = math.tanh %58 : vector<1x32xf32>
      %cst_55 = arith.constant 1.000000e+00 : f32
      %60 = vector.broadcast %cst_55 : f32 to vector<1x32xf32>
      %61 = arith.subf %60, %53 : vector<1x32xf32>
      %62 = arith.mulf %61, %59 : vector<1x32xf32>
      %63 = arith.mulf %53, %32 : vector<1x32xf32>
      %64 = arith.addf %62, %63 : vector<1x32xf32>
      %c0_56 = arith.constant 0 : index
      %c0_57 = arith.constant 0 : index
      %65 = vector.load %arg9[%c0_56, %c0_57] : memref<1x32xf32, #tpu.memory_space<vmem>>, vector<1x32xf32>
      tpu.vector_store %arg9[%c0_56, %c0_57], %64 {strides = array<i32>} : memref<1x32xf32, #tpu.memory_space<vmem>>, vector<1x32xf32>,
      %c0_58 = arith.constant 0 : index
      %66 = arith.index_cast %arg10 : i32 to index
      %c0_59 = arith.constant 0 : index
      %67 = vector.load %arg6[%c0_58, %66, %c0_59] : memref<1x16x64xf32, #tpu.memory_space<vmem>>, vector<1x1x32xf32>
      %68 = vector.shape_cast %67 : vector<1x1x32xf32> to vector<1x32xf32>
      %69 = vector.shape_cast %64 : vector<1x32xf32> to vector<1x1x32xf32>
      tpu.vector_store %arg6[%c0_58, %66, %c0_59], %69 {strides = array<i32>} : memref<1x16x64xf32, #tpu.memory_space<vmem>>, vector<1x1x32xf32>,
    }
    %c16_i32_19 = arith.constant 16 : i32
    %c1 = arith.constant 1 : index
    %c0_20 = arith.constant 0 : index
    %c0_21 = arith.constant 0 : index
    %17 = vector.load %arg2[%c1, %c0_20, %c0_21] : memref<2x128x96xf32, #tpu.memory_space<vmem>>, vector<1x128x96xf32>
    %18 = vector.shape_cast %17 : vector<1x128x96xf32> to vector<128x96xf32>
    %cst_22 = arith.constant dense<0.000000e+00> : vector<16x96xf32>
    %19 = tpu.matmul %1, %18, %cst_22 {dimension_numbers = #tpu.dot_dimension_numbers<[1], [0], [0], [1], [0, 0, 1, 1], [], []>} : vector<16x128xf32>, vector<128x96xf32>, vector<16x96xf32> -> vector<16x96xf32>
    %c1_23 = arith.constant 1 : index
    %c0_24 = arith.constant 0 : index
    %c0_25 = arith.constant 0 : index
    %20 = vector.load %arg4[%c1_23, %c0_24, %c0_25] : memref<2x1x96xf32, #tpu.memory_space<vmem>>, vector<1x1x96xf32>
    %21 = vector.shape_cast %20 : vector<1x1x96xf32> to vector<1x96xf32>
    %22 = vector.broadcast %21 : vector<1x96xf32> to vector<16x96xf32>
    %23 = arith.addf %19, %22 : vector<16x96xf32>
    %c0_26 = arith.constant 0 : index
    %c0_27 = arith.constant 0 : index
    %24 = vector.load %arg7[%c0_26, %c0_27] : memref<16x96xf32, #tpu.memory_space<vmem>>, vector<16x96xf32>
    tpu.vector_store %arg7[%c0_26, %c0_27], %23 {strides = array<i32>} : memref<16x96xf32, #tpu.memory_space<vmem>>, vector<16x96xf32>,
    %cst_28 = arith.constant 0.000000e+00 : f32
    %25 = vector.broadcast %cst_28 : f32 to vector<1x32xf32>
    %c0_29 = arith.constant 0 : index
    %c0_30 = arith.constant 0 : index
    %26 = vector.load %arg9[%c0_29, %c0_30] : memref<1x32xf32, #tpu.memory_space<vmem>>, vector<1x32xf32>
    tpu.vector_store %arg9[%c0_29, %c0_30], %25 {strides = array<i32>} : memref<1x32xf32, #tpu.memory_space<vmem>>, vector<1x32xf32>,
    %c1_31 = arith.constant 1 : index
    %c0_32 = arith.constant 0 : index
    %c0_33 = arith.constant 0 : index
    %27 = vector.load %arg3[%c1_31, %c0_32, %c0_33] : memref<2x32x96xf32, #tpu.memory_space<vmem>>, vector<1x32x96xf32>
    %28 = vector.shape_cast %27 : vector<1x32x96xf32> to vector<32x96xf32>
    %c1_34 = arith.constant 1 : index
    %c0_35 = arith.constant 0 : index
    %c0_36 = arith.constant 0 : index
    %29 = vector.load %arg5[%c1_34, %c0_35, %c0_36] : memref<2x1x96xf32, #tpu.memory_space<vmem>>, vector<1x1x96xf32>
    %30 = vector.shape_cast %29 : vector<1x1x96xf32> to vector<1x96xf32>
    %c0_i32_37 = arith.constant 0 : i32
    %c16_i32_38 = arith.constant 16 : i32
    %31 = arith.addi %c0_i32_37, %c16_i32_38 : i32
    %c1_i32_39 = arith.constant 1 : i32
    scf.for %arg10 = %c0_i32_37 to %31 step %c1_i32_39  : i32 {
      %c15_i32 = arith.constant 15 : i32
      %32 = arith.subi %c15_i32, %arg10 : i32
      %c0_41 = arith.constant 0 : index
      %c0_42 = arith.constant 0 : index
      %33 = vector.load %arg9[%c0_41, %c0_42] : memref<1x32xf32, #tpu.memory_space<vmem>>, vector<1x32xf32>
      %cst_43 = arith.constant dense<0.000000e+00> : vector<1x96xf32>
      %34 = tpu.matmul %33, %28, %cst_43 {dimension_numbers = #tpu.dot_dimension_numbers<[1], [0], [0], [1], [0, 0, 1, 1], [], []>} : vector<1x32xf32>, vector<32x96xf32>, vector<1x96xf32> -> vector<1x96xf32>
      %35 = arith.addf %34, %30 : vector<1x96xf32>
      %c0_44 = arith.constant 0 : index
      %c0_45 = arith.constant 0 : index
      %36 = vector.load %arg8[%c0_44, %c0_45] : memref<1x96xf32, #tpu.memory_space<vmem>>, vector<1x96xf32>
      tpu.vector_store %arg8[%c0_44, %c0_45], %35 {strides = array<i32>} : memref<1x96xf32, #tpu.memory_space<vmem>>, vector<1x96xf32>,
      %37 = arith.index_cast %32 : i32 to index
      %c0_46 = arith.constant 0 : index
      %38 = vector.load %arg7[%37, %c0_46] : memref<16x96xf32, #tpu.memory_space<vmem>>, vector<1x32xf32>
      %c0_47 = arith.constant 0 : index
      %c0_48 = arith.constant 0 : index
      %39 = vector.load %arg8[%c0_47, %c0_48] : memref<1x96xf32, #tpu.memory_space<vmem>>, vector<1x32xf32>
      %40 = arith.addf %38, %39 : vector<1x32xf32>
      %41 = arith.negf %40 : vector<1x32xf32>
      %42 = math.exp %41 : vector<1x32xf32>
      %cst_49 = arith.constant 1.000000e+00 : f32
      %43 = vector.broadcast %cst_49 : f32 to vector<1x32xf32>
      %44 = arith.addf %43, %42 : vector<1x32xf32>
      %45 = arith.divf %43, %44 : vector<1x32xf32>
      %46 = arith.index_cast %32 : i32 to index
      %c32 = arith.constant 32 : index
      %47 = vector.load %arg7[%46, %c32] : memref<16x96xf32, #tpu.memory_space<vmem>>, vector<1x32xf32>
      %c0_50 = arith.constant 0 : index
      %c32_51 = arith.constant 32 : index
      %48 = vector.load %arg8[%c0_50, %c32_51] : memref<1x96xf32, #tpu.memory_space<vmem>>, vector<1x32xf32>
      %49 = arith.addf %47, %48 : vector<1x32xf32>
      %50 = arith.negf %49 : vector<1x32xf32>
      %51 = math.exp %50 : vector<1x32xf32>
      %cst_52 = arith.constant 1.000000e+00 : f32
      %52 = vector.broadcast %cst_52 : f32 to vector<1x32xf32>
      %53 = arith.addf %52, %51 : vector<1x32xf32>
      %54 = arith.divf %52, %53 : vector<1x32xf32>
      %55 = arith.index_cast %32 : i32 to index
      %c64 = arith.constant 64 : index
      %56 = vector.load %arg7[%55, %c64] : memref<16x96xf32, #tpu.memory_space<vmem>>, vector<1x32xf32>
      %c0_53 = arith.constant 0 : index
      %c64_54 = arith.constant 64 : index
      %57 = vector.load %arg8[%c0_53, %c64_54] : memref<1x96xf32, #tpu.memory_space<vmem>>, vector<1x32xf32>
      %58 = arith.mulf %45, %57 : vector<1x32xf32>
      %59 = arith.addf %56, %58 : vector<1x32xf32>
      %60 = math.tanh %59 : vector<1x32xf32>
      %cst_55 = arith.constant 1.000000e+00 : f32
      %61 = vector.broadcast %cst_55 : f32 to vector<1x32xf32>
      %62 = arith.subf %61, %54 : vector<1x32xf32>
      %63 = arith.mulf %62, %60 : vector<1x32xf32>
      %64 = arith.mulf %54, %33 : vector<1x32xf32>
      %65 = arith.addf %63, %64 : vector<1x32xf32>
      %c0_56 = arith.constant 0 : index
      %c0_57 = arith.constant 0 : index
      %66 = vector.load %arg9[%c0_56, %c0_57] : memref<1x32xf32, #tpu.memory_space<vmem>>, vector<1x32xf32>
      tpu.vector_store %arg9[%c0_56, %c0_57], %65 {strides = array<i32>} : memref<1x32xf32, #tpu.memory_space<vmem>>, vector<1x32xf32>,
      %c0_58 = arith.constant 0 : index
      %67 = arith.index_cast %32 : i32 to index
      %c32_59 = arith.constant 32 : index
      %68 = vector.load %arg6[%c0_58, %67, %c32_59] : memref<1x16x64xf32, #tpu.memory_space<vmem>>, vector<1x1x32xf32>
      %69 = vector.shape_cast %68 : vector<1x1x32xf32> to vector<1x32xf32>
      %70 = vector.shape_cast %65 : vector<1x32xf32> to vector<1x1x32xf32>
      tpu.vector_store %arg6[%c0_58, %67, %c32_59], %70 {strides = array<i32>} : memref<1x16x64xf32, #tpu.memory_space<vmem>>, vector<1x1x32xf32>,
    }
    %c16_i32_40 = arith.constant 16 : i32
    return
  }
  func.func @transform_0(%arg0: i32) -> (i32, i32, i32) {
    %c0_i32 = arith.constant 0 : i32
    %c0_i32_0 = arith.constant 0 : i32
    %c0_i32_1 = arith.constant 0 : i32
    return %arg0, %c0_i32, %c0_i32_0 : i32, i32, i32
  }
  func.func @transform_1(%arg0: i32) -> (i32, i32, i32) {
    %c0_i32 = arith.constant 0 : i32
    %c0_i32_0 = arith.constant 0 : i32
    %c0_i32_1 = arith.constant 0 : i32
    %c0_i32_2 = arith.constant 0 : i32
    return %c0_i32, %c0_i32_0, %c0_i32_1 : i32, i32, i32
  }
  func.func @transform_2(%arg0: i32) -> (i32, i32, i32) {
    %c0_i32 = arith.constant 0 : i32
    %c0_i32_0 = arith.constant 0 : i32
    %c0_i32_1 = arith.constant 0 : i32
    %c0_i32_2 = arith.constant 0 : i32
    return %c0_i32, %c0_i32_0, %c0_i32_1 : i32, i32, i32
  }
  func.func @transform_3(%arg0: i32) -> (i32, i32, i32) {
    %c0_i32 = arith.constant 0 : i32
    %c0_i32_0 = arith.constant 0 : i32
    %c0_i32_1 = arith.constant 0 : i32
    %c0_i32_2 = arith.constant 0 : i32
    return %c0_i32, %c0_i32_0, %c0_i32_1 : i32, i32, i32
  }
  func.func @transform_4(%arg0: i32) -> (i32, i32, i32) {
    %c0_i32 = arith.constant 0 : i32
    %c0_i32_0 = arith.constant 0 : i32
    %c0_i32_1 = arith.constant 0 : i32
    %c0_i32_2 = arith.constant 0 : i32
    return %c0_i32, %c0_i32_0, %c0_i32_1 : i32, i32, i32
  }
  func.func @transform_5(%arg0: i32) -> (i32, i32, i32) {
    %c0_i32 = arith.constant 0 : i32
    %c0_i32_0 = arith.constant 0 : i32
    %c0_i32_1 = arith.constant 0 : i32
    return %arg0, %c0_i32, %c0_i32_0 : i32, i32, i32
  }
}

module attributes {stable_mosaic.version = 11 : i64} {
  func.func @memprep_kernel(%arg0: memref<2x16x64xf32, #tpu.memory_space<vmem>>, %arg1: memref<2x2xf32, #tpu.memory_space<vmem>>, %arg2: memref<64x32xf32, #tpu.memory_space<vmem>>, %arg3: memref<1x32xf32, #tpu.memory_space<vmem>>, %arg4: memref<32x32xf32, #tpu.memory_space<vmem>>, %arg5: memref<1x32xf32, #tpu.memory_space<vmem>>, %arg6: memref<32x32xf32, #tpu.memory_space<vmem>>, %arg7: memref<1x32xf32, #tpu.memory_space<vmem>>, %arg8: memref<2x32xf32, #tpu.memory_space<vmem>>, %arg9: memref<1x32xf32, #tpu.memory_space<vmem>>, %arg10: memref<2x16x32xf32, #tpu.memory_space<vmem>>, %arg11: memref<2x16x32xf32, #tpu.memory_space<vmem>>, %arg12: memref<2x8x32xf32, #tpu.memory_space<vmem>>) attributes {dimension_semantics = [], scalar_prefetch = 0 : i64, scratch_operands = 0 : i64, tpu.core_type = #tpu.core_type<tc>} {
    %0 = tpu.iota {dimensions = array<i32: 0>} : vector<8x1xi32>
    %c0_i32 = arith.constant 0 : i32
    %1 = vector.broadcast %c0_i32 : i32 to vector<8x1xi32>
    %2 = arith.cmpi eq, %0, %1 : vector<8x1xi32>
    %c0 = arith.constant 0 : index
    %c0_0 = arith.constant 0 : index
    %c0_1 = arith.constant 0 : index
    %3 = vector.load %arg0[%c0, %c0_0, %c0_1] : memref<2x16x64xf32, #tpu.memory_space<vmem>>, vector<1x16x64xf32>
    %4 = vector.shape_cast %3 : vector<1x16x64xf32> to vector<16x64xf32>
    %c0_2 = arith.constant 0 : index
    %c0_3 = arith.constant 0 : index
    %5 = vector.load %arg2[%c0_2, %c0_3] : memref<64x32xf32, #tpu.memory_space<vmem>>, vector<64x32xf32>
    %cst = arith.constant dense<0.000000e+00> : vector<16x32xf32>
    %6 = tpu.matmul %4, %5, %cst {dimension_numbers = #tpu.dot_dimension_numbers<[1], [0], [0], [1], [0, 0, 1, 1], [], []>} : vector<16x64xf32>, vector<64x32xf32>, vector<16x32xf32> -> vector<16x32xf32>
    %c0_4 = arith.constant 0 : index
    %c0_5 = arith.constant 0 : index
    %7 = vector.load %arg3[%c0_4, %c0_5] : memref<1x32xf32, #tpu.memory_space<vmem>>, vector<1x32xf32>
    %8 = vector.broadcast %7 : vector<1x32xf32> to vector<16x32xf32>
    %9 = arith.addf %6, %8 : vector<16x32xf32>
    %c0_6 = arith.constant 0 : index
    %c0_7 = arith.constant 0 : index
    %10 = vector.load %arg4[%c0_6, %c0_7] : memref<32x32xf32, #tpu.memory_space<vmem>>, vector<32x32xf32>
    %cst_8 = arith.constant dense<0.000000e+00> : vector<16x32xf32>
    %11 = tpu.matmul %9, %10, %cst_8 {dimension_numbers = #tpu.dot_dimension_numbers<[1], [0], [0], [1], [0, 0, 1, 1], [], []>} : vector<16x32xf32>, vector<32x32xf32>, vector<16x32xf32> -> vector<16x32xf32>
    %c0_9 = arith.constant 0 : index
    %c0_10 = arith.constant 0 : index
    %12 = vector.load %arg5[%c0_9, %c0_10] : memref<1x32xf32, #tpu.memory_space<vmem>>, vector<1x32xf32>
    %13 = vector.broadcast %12 : vector<1x32xf32> to vector<16x32xf32>
    %14 = arith.addf %11, %13 : vector<16x32xf32>
    %c0_11 = arith.constant 0 : index
    %c0_12 = arith.constant 0 : index
    %c0_13 = arith.constant 0 : index
    %15 = vector.load %arg10[%c0_11, %c0_12, %c0_13] : memref<2x16x32xf32, #tpu.memory_space<vmem>>, vector<1x16x32xf32>
    %16 = vector.shape_cast %15 : vector<1x16x32xf32> to vector<16x32xf32>
    %17 = vector.shape_cast %14 : vector<16x32xf32> to vector<1x16x32xf32>
    tpu.vector_store %arg10[%c0_11, %c0_12, %c0_13], %17 {strides = array<i32>} : memref<2x16x32xf32, #tpu.memory_space<vmem>>, vector<1x16x32xf32>,
    %c0_14 = arith.constant 0 : index
    %c0_15 = arith.constant 0 : index
    %18 = vector.load %arg6[%c0_14, %c0_15] : memref<32x32xf32, #tpu.memory_space<vmem>>, vector<32x32xf32>
    %cst_16 = arith.constant dense<0.000000e+00> : vector<16x32xf32>
    %19 = tpu.matmul %9, %18, %cst_16 {dimension_numbers = #tpu.dot_dimension_numbers<[1], [0], [0], [1], [0, 0, 1, 1], [], []>} : vector<16x32xf32>, vector<32x32xf32>, vector<16x32xf32> -> vector<16x32xf32>
    %c0_17 = arith.constant 0 : index
    %c0_18 = arith.constant 0 : index
    %20 = vector.load %arg7[%c0_17, %c0_18] : memref<1x32xf32, #tpu.memory_space<vmem>>, vector<1x32xf32>
    %21 = vector.broadcast %20 : vector<1x32xf32> to vector<16x32xf32>
    %22 = arith.addf %19, %21 : vector<16x32xf32>
    %c0_19 = arith.constant 0 : index
    %c0_20 = arith.constant 0 : index
    %c0_21 = arith.constant 0 : index
    %23 = vector.load %arg11[%c0_19, %c0_20, %c0_21] : memref<2x16x32xf32, #tpu.memory_space<vmem>>, vector<1x16x32xf32>
    %24 = vector.shape_cast %23 : vector<1x16x32xf32> to vector<16x32xf32>
    %25 = vector.shape_cast %22 : vector<16x32xf32> to vector<1x16x32xf32>
    tpu.vector_store %arg11[%c0_19, %c0_20, %c0_21], %25 {strides = array<i32>} : memref<2x16x32xf32, #tpu.memory_space<vmem>>, vector<1x16x32xf32>,
    %c0_22 = arith.constant 0 : index
    %c0_23 = arith.constant 0 : index
    %26 = vector.load %arg1[%c0_22, %c0_23] : memref<2x2xf32, #tpu.memory_space<vmem>>, vector<1x2xf32>
    %c0_24 = arith.constant 0 : index
    %c0_25 = arith.constant 0 : index
    %27 = vector.load %arg8[%c0_24, %c0_25] : memref<2x32xf32, #tpu.memory_space<vmem>>, vector<2x32xf32>
    %cst_26 = arith.constant dense<0.000000e+00> : vector<1x32xf32>
    %28 = tpu.matmul %26, %27, %cst_26 {dimension_numbers = #tpu.dot_dimension_numbers<[1], [0], [0], [1], [0, 0, 1, 1], [], []>} : vector<1x2xf32>, vector<2x32xf32>, vector<1x32xf32> -> vector<1x32xf32>
    %c0_27 = arith.constant 0 : index
    %c0_28 = arith.constant 0 : index
    %29 = vector.load %arg9[%c0_27, %c0_28] : memref<1x32xf32, #tpu.memory_space<vmem>>, vector<1x32xf32>
    %30 = arith.addf %28, %29 : vector<1x32xf32>
    %cst_29 = arith.constant 0.000000e+00 : f32
    %31 = vector.shape_cast %2 : vector<8x1xi1> to vector<8x1xi1>
    %32 = vector.broadcast %31 : vector<8x1xi1> to vector<8x32xi1>
    %33 = vector.shape_cast %30 : vector<1x32xf32> to vector<1x32xf32>
    %34 = vector.broadcast %33 : vector<1x32xf32> to vector<8x32xf32>
    %35 = vector.broadcast %cst_29 : f32 to vector<8x32xf32>
    %36 = arith.select %32, %34, %35 : vector<8x32xi1>, vector<8x32xf32>
    %c0_30 = arith.constant 0 : index
    %c0_31 = arith.constant 0 : index
    %c0_32 = arith.constant 0 : index
    %37 = vector.load %arg12[%c0_30, %c0_31, %c0_32] : memref<2x8x32xf32, #tpu.memory_space<vmem>>, vector<1x8x32xf32>
    %38 = vector.shape_cast %37 : vector<1x8x32xf32> to vector<8x32xf32>
    %39 = vector.shape_cast %36 : vector<8x32xf32> to vector<1x8x32xf32>
    tpu.vector_store %arg12[%c0_30, %c0_31, %c0_32], %39 {strides = array<i32>} : memref<2x8x32xf32, #tpu.memory_space<vmem>>, vector<1x8x32xf32>,
    %c1 = arith.constant 1 : index
    %c0_33 = arith.constant 0 : index
    %c0_34 = arith.constant 0 : index
    %40 = vector.load %arg0[%c1, %c0_33, %c0_34] : memref<2x16x64xf32, #tpu.memory_space<vmem>>, vector<1x16x64xf32>
    %41 = vector.shape_cast %40 : vector<1x16x64xf32> to vector<16x64xf32>
    %c0_35 = arith.constant 0 : index
    %c0_36 = arith.constant 0 : index
    %42 = vector.load %arg2[%c0_35, %c0_36] : memref<64x32xf32, #tpu.memory_space<vmem>>, vector<64x32xf32>
    %cst_37 = arith.constant dense<0.000000e+00> : vector<16x32xf32>
    %43 = tpu.matmul %41, %42, %cst_37 {dimension_numbers = #tpu.dot_dimension_numbers<[1], [0], [0], [1], [0, 0, 1, 1], [], []>} : vector<16x64xf32>, vector<64x32xf32>, vector<16x32xf32> -> vector<16x32xf32>
    %c0_38 = arith.constant 0 : index
    %c0_39 = arith.constant 0 : index
    %44 = vector.load %arg3[%c0_38, %c0_39] : memref<1x32xf32, #tpu.memory_space<vmem>>, vector<1x32xf32>
    %45 = vector.broadcast %44 : vector<1x32xf32> to vector<16x32xf32>
    %46 = arith.addf %43, %45 : vector<16x32xf32>
    %c0_40 = arith.constant 0 : index
    %c0_41 = arith.constant 0 : index
    %47 = vector.load %arg4[%c0_40, %c0_41] : memref<32x32xf32, #tpu.memory_space<vmem>>, vector<32x32xf32>
    %cst_42 = arith.constant dense<0.000000e+00> : vector<16x32xf32>
    %48 = tpu.matmul %46, %47, %cst_42 {dimension_numbers = #tpu.dot_dimension_numbers<[1], [0], [0], [1], [0, 0, 1, 1], [], []>} : vector<16x32xf32>, vector<32x32xf32>, vector<16x32xf32> -> vector<16x32xf32>
    %c0_43 = arith.constant 0 : index
    %c0_44 = arith.constant 0 : index
    %49 = vector.load %arg5[%c0_43, %c0_44] : memref<1x32xf32, #tpu.memory_space<vmem>>, vector<1x32xf32>
    %50 = vector.broadcast %49 : vector<1x32xf32> to vector<16x32xf32>
    %51 = arith.addf %48, %50 : vector<16x32xf32>
    %c1_45 = arith.constant 1 : index
    %c0_46 = arith.constant 0 : index
    %c0_47 = arith.constant 0 : index
    %52 = vector.load %arg10[%c1_45, %c0_46, %c0_47] : memref<2x16x32xf32, #tpu.memory_space<vmem>>, vector<1x16x32xf32>
    %53 = vector.shape_cast %52 : vector<1x16x32xf32> to vector<16x32xf32>
    %54 = vector.shape_cast %51 : vector<16x32xf32> to vector<1x16x32xf32>
    tpu.vector_store %arg10[%c1_45, %c0_46, %c0_47], %54 {strides = array<i32>} : memref<2x16x32xf32, #tpu.memory_space<vmem>>, vector<1x16x32xf32>,
    %c0_48 = arith.constant 0 : index
    %c0_49 = arith.constant 0 : index
    %55 = vector.load %arg6[%c0_48, %c0_49] : memref<32x32xf32, #tpu.memory_space<vmem>>, vector<32x32xf32>
    %cst_50 = arith.constant dense<0.000000e+00> : vector<16x32xf32>
    %56 = tpu.matmul %46, %55, %cst_50 {dimension_numbers = #tpu.dot_dimension_numbers<[1], [0], [0], [1], [0, 0, 1, 1], [], []>} : vector<16x32xf32>, vector<32x32xf32>, vector<16x32xf32> -> vector<16x32xf32>
    %c0_51 = arith.constant 0 : index
    %c0_52 = arith.constant 0 : index
    %57 = vector.load %arg7[%c0_51, %c0_52] : memref<1x32xf32, #tpu.memory_space<vmem>>, vector<1x32xf32>
    %58 = vector.broadcast %57 : vector<1x32xf32> to vector<16x32xf32>
    %59 = arith.addf %56, %58 : vector<16x32xf32>
    %c1_53 = arith.constant 1 : index
    %c0_54 = arith.constant 0 : index
    %c0_55 = arith.constant 0 : index
    %60 = vector.load %arg11[%c1_53, %c0_54, %c0_55] : memref<2x16x32xf32, #tpu.memory_space<vmem>>, vector<1x16x32xf32>
    %61 = vector.shape_cast %60 : vector<1x16x32xf32> to vector<16x32xf32>
    %62 = vector.shape_cast %59 : vector<16x32xf32> to vector<1x16x32xf32>
    tpu.vector_store %arg11[%c1_53, %c0_54, %c0_55], %62 {strides = array<i32>} : memref<2x16x32xf32, #tpu.memory_space<vmem>>, vector<1x16x32xf32>,
    %c1_56 = arith.constant 1 : index
    %c0_57 = arith.constant 0 : index
    %63 = vector.load %arg1[%c1_56, %c0_57] : memref<2x2xf32, #tpu.memory_space<vmem>>, vector<1x2xf32>
    %c0_58 = arith.constant 0 : index
    %c0_59 = arith.constant 0 : index
    %64 = vector.load %arg8[%c0_58, %c0_59] : memref<2x32xf32, #tpu.memory_space<vmem>>, vector<2x32xf32>
    %cst_60 = arith.constant dense<0.000000e+00> : vector<1x32xf32>
    %65 = tpu.matmul %63, %64, %cst_60 {dimension_numbers = #tpu.dot_dimension_numbers<[1], [0], [0], [1], [0, 0, 1, 1], [], []>} : vector<1x2xf32>, vector<2x32xf32>, vector<1x32xf32> -> vector<1x32xf32>
    %c0_61 = arith.constant 0 : index
    %c0_62 = arith.constant 0 : index
    %66 = vector.load %arg9[%c0_61, %c0_62] : memref<1x32xf32, #tpu.memory_space<vmem>>, vector<1x32xf32>
    %67 = arith.addf %65, %66 : vector<1x32xf32>
    %cst_63 = arith.constant 0.000000e+00 : f32
    %68 = vector.shape_cast %2 : vector<8x1xi1> to vector<8x1xi1>
    %69 = vector.broadcast %68 : vector<8x1xi1> to vector<8x32xi1>
    %70 = vector.shape_cast %67 : vector<1x32xf32> to vector<1x32xf32>
    %71 = vector.broadcast %70 : vector<1x32xf32> to vector<8x32xf32>
    %72 = vector.broadcast %cst_63 : f32 to vector<8x32xf32>
    %73 = arith.select %69, %71, %72 : vector<8x32xi1>, vector<8x32xf32>
    %c1_64 = arith.constant 1 : index
    %c0_65 = arith.constant 0 : index
    %c0_66 = arith.constant 0 : index
    %74 = vector.load %arg12[%c1_64, %c0_65, %c0_66] : memref<2x8x32xf32, #tpu.memory_space<vmem>>, vector<1x8x32xf32>
    %75 = vector.shape_cast %74 : vector<1x8x32xf32> to vector<8x32xf32>
    %76 = vector.shape_cast %73 : vector<8x32xf32> to vector<1x8x32xf32>
    tpu.vector_store %arg12[%c1_64, %c0_65, %c0_66], %76 {strides = array<i32>} : memref<2x8x32xf32, #tpu.memory_space<vmem>>, vector<1x8x32xf32>,
    return
  }
}

module attributes {stable_mosaic.version = 11 : i64} {
  func.func @decoder_step_kernel(%arg0: memref<1x1xi32, #tpu.memory_space<vmem>>, %arg1: memref<2x8x32xf32, #tpu.memory_space<vmem>>, %arg2: memref<2x16x32xf32, #tpu.memory_space<vmem>>, %arg3: memref<2x16x32xf32, #tpu.memory_space<vmem>>, %arg4: memref<32x96xf32, #tpu.memory_space<vmem>>, %arg5: memref<1x96xf32, #tpu.memory_space<vmem>>, %arg6: memref<32x32xf32, #tpu.memory_space<vmem>>, %arg7: memref<1x32xf32, #tpu.memory_space<vmem>>, %arg8: memref<32x32xf32, #tpu.memory_space<vmem>>, %arg9: memref<1x32xf32, #tpu.memory_space<vmem>>, %arg10: memref<32x32xf32, #tpu.memory_space<vmem>>, %arg11: memref<1x32xf32, #tpu.memory_space<vmem>>, %arg12: memref<1x32xf32, #tpu.memory_space<vmem>>, %arg13: memref<1x32xf32, #tpu.memory_space<vmem>>, %arg14: memref<1x32xf32, #tpu.memory_space<vmem>>, %arg15: memref<1x32xf32, #tpu.memory_space<vmem>>, %arg16: memref<1x32xf32, #tpu.memory_space<vmem>>, %arg17: memref<1x32xf32, #tpu.memory_space<vmem>>, %arg18: memref<32x64xf32, #tpu.memory_space<vmem>>, %arg19: memref<1x64xf32, #tpu.memory_space<vmem>>, %arg20: memref<64x32xf32, #tpu.memory_space<vmem>>, %arg21: memref<1x32xf32, #tpu.memory_space<vmem>>, %arg22: memref<32x2xf32, #tpu.memory_space<vmem>>, %arg23: memref<1x2xf32, #tpu.memory_space<vmem>>, %arg24: memref<2x32xf32, #tpu.memory_space<vmem>>, %arg25: memref<1x32xf32, #tpu.memory_space<vmem>>, %arg26: memref<2x8x32xf32, #tpu.memory_space<vmem>>, %arg27: memref<2x2xf32, #tpu.memory_space<vmem>>, %arg28: memref<8x96xf32, #tpu.memory_space<vmem>>, %arg29: memref<8x32xf32, #tpu.memory_space<vmem>>) attributes {dimension_semantics = [], scalar_prefetch = 0 : i64, scratch_operands = 2 : i64, tpu.core_type = #tpu.core_type<tc>} {
    %c0 = arith.constant 0 : index
    %c0_0 = arith.constant 0 : index
    %0 = vector.load %arg0[%c0, %c0_0] : memref<1x1xi32, #tpu.memory_space<vmem>>, vector<1x1xi32>
    %1 = tpu.iota {dimensions = array<i32: 0>} : vector<8x1xi32>
    %2 = tpu.iota {dimensions = array<i32: 1>} : vector<1x8xi32>
    %3 = vector.broadcast %0 : vector<1x1xi32> to vector<1x8xi32>
    %4 = arith.cmpi slt, %2, %3 : vector<1x8xi32>
    %c1_i32 = arith.constant 1 : i32
    %5 = vector.broadcast %c1_i32 : i32 to vector<1x1xi32>
    %6 = arith.subi %0, %5 : vector<1x1xi32>
    %7 = vector.broadcast %6 : vector<1x1xi32> to vector<8x1xi32>
    %8 = arith.cmpi eq, %1, %7 : vector<8x1xi32>
    %9 = arith.extui %8 : vector<8x1xi1> to vector<8x1xi32>
    %10 = arith.sitofp %9 : vector<8x1xi32> to vector<8x1xf32>
    %11 = vector.broadcast %0 : vector<1x1xi32> to vector<8x1xi32>
    %12 = arith.cmpi eq, %1, %11 : vector<8x1xi32>
    %c0_1 = arith.constant 0 : index
    %c0_2 = arith.constant 0 : index
    %13 = vector.load %arg4[%c0_1, %c0_2] : memref<32x96xf32, #tpu.memory_space<vmem>>, vector<32x96xf32>
    %c0_3 = arith.constant 0 : index
    %c0_4 = arith.constant 0 : index
    %14 = vector.load %arg5[%c0_3, %c0_4] : memref<1x96xf32, #tpu.memory_space<vmem>>, vector<1x96xf32>
    %c0_5 = arith.constant 0 : index
    %c0_6 = arith.constant 0 : index
    %15 = vector.load %arg6[%c0_5, %c0_6] : memref<32x32xf32, #tpu.memory_space<vmem>>, vector<32x32xf32>
    %c0_7 = arith.constant 0 : index
    %c0_8 = arith.constant 0 : index
    %16 = vector.load %arg7[%c0_7, %c0_8] : memref<1x32xf32, #tpu.memory_space<vmem>>, vector<1x32xf32>
    %c0_9 = arith.constant 0 : index
    %c0_10 = arith.constant 0 : index
    %17 = vector.load %arg8[%c0_9, %c0_10] : memref<32x32xf32, #tpu.memory_space<vmem>>, vector<32x32xf32>
    %c0_11 = arith.constant 0 : index
    %c0_12 = arith.constant 0 : index
    %18 = vector.load %arg9[%c0_11, %c0_12] : memref<1x32xf32, #tpu.memory_space<vmem>>, vector<1x32xf32>
    %c0_13 = arith.constant 0 : index
    %c0_14 = arith.constant 0 : index
    %19 = vector.load %arg10[%c0_13, %c0_14] : memref<32x32xf32, #tpu.memory_space<vmem>>, vector<32x32xf32>
    %c0_15 = arith.constant 0 : index
    %c0_16 = arith.constant 0 : index
    %20 = vector.load %arg11[%c0_15, %c0_16] : memref<1x32xf32, #tpu.memory_space<vmem>>, vector<1x32xf32>
    %c0_17 = arith.constant 0 : index
    %c0_18 = arith.constant 0 : index
    %21 = vector.load %arg18[%c0_17, %c0_18] : memref<32x64xf32, #tpu.memory_space<vmem>>, vector<32x64xf32>
    %c0_19 = arith.constant 0 : index
    %c0_20 = arith.constant 0 : index
    %22 = vector.load %arg19[%c0_19, %c0_20] : memref<1x64xf32, #tpu.memory_space<vmem>>, vector<1x64xf32>
    %c0_21 = arith.constant 0 : index
    %c0_22 = arith.constant 0 : index
    %23 = vector.load %arg20[%c0_21, %c0_22] : memref<64x32xf32, #tpu.memory_space<vmem>>, vector<64x32xf32>
    %c0_23 = arith.constant 0 : index
    %c0_24 = arith.constant 0 : index
    %24 = vector.load %arg21[%c0_23, %c0_24] : memref<1x32xf32, #tpu.memory_space<vmem>>, vector<1x32xf32>
    %c0_25 = arith.constant 0 : index
    %c0_26 = arith.constant 0 : index
    %25 = vector.load %arg22[%c0_25, %c0_26] : memref<32x2xf32, #tpu.memory_space<vmem>>, vector<32x2xf32>
    %c0_27 = arith.constant 0 : index
    %c0_28 = arith.constant 0 : index
    %26 = vector.load %arg23[%c0_27, %c0_28] : memref<1x2xf32, #tpu.memory_space<vmem>>, vector<1x2xf32>
    %c0_29 = arith.constant 0 : index
    %c0_30 = arith.constant 0 : index
    %27 = vector.load %arg24[%c0_29, %c0_30] : memref<2x32xf32, #tpu.memory_space<vmem>>, vector<2x32xf32>
    %c0_31 = arith.constant 0 : index
    %c0_32 = arith.constant 0 : index
    %28 = vector.load %arg25[%c0_31, %c0_32] : memref<1x32xf32, #tpu.memory_space<vmem>>, vector<1x32xf32>
    %c0_33 = arith.constant 0 : index
    %c0_34 = arith.constant 0 : index
    %29 = vector.load %arg12[%c0_33, %c0_34] : memref<1x32xf32, #tpu.memory_space<vmem>>, vector<1x32xf32>
    %c0_35 = arith.constant 0 : index
    %c0_36 = arith.constant 0 : index
    %30 = vector.load %arg13[%c0_35, %c0_36] : memref<1x32xf32, #tpu.memory_space<vmem>>, vector<1x32xf32>
    %c0_37 = arith.constant 0 : index
    %c0_38 = arith.constant 0 : index
    %31 = vector.load %arg14[%c0_37, %c0_38] : memref<1x32xf32, #tpu.memory_space<vmem>>, vector<1x32xf32>
    %c0_39 = arith.constant 0 : index
    %c0_40 = arith.constant 0 : index
    %32 = vector.load %arg15[%c0_39, %c0_40] : memref<1x32xf32, #tpu.memory_space<vmem>>, vector<1x32xf32>
    %c0_41 = arith.constant 0 : index
    %c0_42 = arith.constant 0 : index
    %33 = vector.load %arg16[%c0_41, %c0_42] : memref<1x32xf32, #tpu.memory_space<vmem>>, vector<1x32xf32>
    %c0_43 = arith.constant 0 : index
    %c0_44 = arith.constant 0 : index
    %34 = vector.load %arg17[%c0_43, %c0_44] : memref<1x32xf32, #tpu.memory_space<vmem>>, vector<1x32xf32>
    %c0_45 = arith.constant 0 : index
    %c0_46 = arith.constant 0 : index
    %c0_47 = arith.constant 0 : index
    %35 = vector.load %arg1[%c0_45, %c0_46, %c0_47] : memref<2x8x32xf32, #tpu.memory_space<vmem>>, vector<1x8x32xf32>
    %36 = vector.shape_cast %35 : vector<1x8x32xf32> to vector<8x32xf32>
    %cst = arith.constant dense<0.000000e+00> : vector<8x96xf32>
    %37 = tpu.matmul %36, %13, %cst {dimension_numbers = #tpu.dot_dimension_numbers<[1], [0], [0], [1], [0, 0, 1, 1], [], []>} : vector<8x32xf32>, vector<32x96xf32>, vector<8x96xf32> -> vector<8x96xf32>
    %38 = vector.broadcast %14 : vector<1x96xf32> to vector<8x96xf32>
    %39 = arith.addf %37, %38 : vector<8x96xf32>
    %c0_48 = arith.constant 0 : index
    %c0_49 = arith.constant 0 : index
    %40 = vector.load %arg28[%c0_48, %c0_49] : memref<8x96xf32, #tpu.memory_space<vmem>>, vector<8x96xf32>
    tpu.vector_store %arg28[%c0_48, %c0_49], %39 {strides = array<i32>} : memref<8x96xf32, #tpu.memory_space<vmem>>, vector<8x96xf32>,
    %c0_50 = arith.constant 0 : index
    %c0_51 = arith.constant 0 : index
    %41 = vector.load %arg28[%c0_50, %c0_51] : memref<8x96xf32, #tpu.memory_space<vmem>>, vector<8x8xf32>
    %c0_52 = arith.constant 0 : index
    %c32 = arith.constant 32 : index
    %42 = vector.load %arg28[%c0_52, %c32] : memref<8x96xf32, #tpu.memory_space<vmem>>, vector<8x8xf32>
    %c0_53 = arith.constant 0 : index
    %c64 = arith.constant 64 : index
    %43 = vector.load %arg28[%c0_53, %c64] : memref<8x96xf32, #tpu.memory_space<vmem>>, vector<8x8xf32>
    %cst_54 = arith.constant dense<0.000000e+00> : vector<8x8xf32>
    %44 = tpu.matmul %41, %42, %cst_54 {dimension_numbers = #tpu.dot_dimension_numbers<[1], [1], [0], [0], [0, 0, 1, 0], [], []>} : vector<8x8xf32>, vector<8x8xf32>, vector<8x8xf32> -> vector<8x8xf32>
    %cst_55 = arith.constant 0.353553385 : f32
    %45 = vector.broadcast %cst_55 : f32 to vector<8x8xf32>
    %46 = arith.mulf %44, %45 : vector<8x8xf32>
    %cst_56 = arith.constant -1.000000e+30 : f32
    %47 = vector.shape_cast %4 : vector<1x8xi1> to vector<1x8xi1>
    %48 = vector.broadcast %47 : vector<1x8xi1> to vector<8x8xi1>
    %49 = vector.broadcast %cst_56 : f32 to vector<8x8xf32>
    %50 = arith.select %48, %46, %49 : vector<8x8xi1>, vector<8x8xf32>
    %cst_57 = arith.constant dense<0xFF800000> : vector<8xf32>
    %51 = vector.multi_reduction <maximumf>, %50, %cst_57 [1] : vector<8x8xf32> to vector<8xf32>
    %52 = vector.shape_cast %51 : vector<8xf32> to vector<8x1xf32>
    %53 = vector.broadcast %52 : vector<8x1xf32> to vector<8x8xf32>
    %54 = arith.subf %50, %53 : vector<8x8xf32>
    %55 = math.exp %54 : vector<8x8xf32>
    %cst_58 = arith.constant dense<0.000000e+00> : vector<8xf32>
    %56 = vector.multi_reduction <add>, %55, %cst_58 [1] : vector<8x8xf32> to vector<8xf32>
    %57 = vector.shape_cast %56 : vector<8xf32> to vector<8x1xf32>
    %58 = tpu.reciprocal %57 {approx = true} : vector<8x1xf32> -> vector<8x1xf32>
    %59 = vector.broadcast %58 : vector<8x1xf32> to vector<8x8xf32>
    %60 = arith.mulf %55, %59 : vector<8x8xf32>
    %cst_59 = arith.constant dense<0.000000e+00> : vector<8x8xf32>
    %61 = tpu.matmul %60, %43, %cst_59 {dimension_numbers = #tpu.dot_dimension_numbers<[1], [0], [0], [1], [0, 0, 1, 1], [], []>} : vector<8x8xf32>, vector<8x8xf32>, vector<8x8xf32> -> vector<8x8xf32>
    %c0_60 = arith.constant 0 : index
    %c0_61 = arith.constant 0 : index
    %62 = vector.load %arg29[%c0_60, %c0_61] : memref<8x32xf32, #tpu.memory_space<vmem>>, vector<8x8xf32>
    tpu.vector_store %arg29[%c0_60, %c0_61], %61 {strides = array<i32>} : memref<8x32xf32, #tpu.memory_space<vmem>>, vector<8x8xf32>,
    %c0_62 = arith.constant 0 : index
    %c8 = arith.constant 8 : index
    %63 = vector.load %arg28[%c0_62, %c8] : memref<8x96xf32, #tpu.memory_space<vmem>>, vector<8x8xf32>
    %c0_63 = arith.constant 0 : index
    %c40 = arith.constant 40 : index
    %64 = vector.load %arg28[%c0_63, %c40] : memref<8x96xf32, #tpu.memory_space<vmem>>, vector<8x8xf32>
    %c0_64 = arith.constant 0 : index
    %c72 = arith.constant 72 : index
    %65 = vector.load %arg28[%c0_64, %c72] : memref<8x96xf32, #tpu.memory_space<vmem>>, vector<8x8xf32>
    %cst_65 = arith.constant dense<0.000000e+00> : vector<8x8xf32>
    %66 = tpu.matmul %63, %64, %cst_65 {dimension_numbers = #tpu.dot_dimension_numbers<[1], [1], [0], [0], [0, 0, 1, 0], [], []>} : vector<8x8xf32>, vector<8x8xf32>, vector<8x8xf32> -> vector<8x8xf32>
    %cst_66 = arith.constant 0.353553385 : f32
    %67 = vector.broadcast %cst_66 : f32 to vector<8x8xf32>
    %68 = arith.mulf %66, %67 : vector<8x8xf32>
    %cst_67 = arith.constant -1.000000e+30 : f32
    %69 = vector.shape_cast %4 : vector<1x8xi1> to vector<1x8xi1>
    %70 = vector.broadcast %69 : vector<1x8xi1> to vector<8x8xi1>
    %71 = vector.broadcast %cst_67 : f32 to vector<8x8xf32>
    %72 = arith.select %70, %68, %71 : vector<8x8xi1>, vector<8x8xf32>
    %cst_68 = arith.constant dense<0xFF800000> : vector<8xf32>
    %73 = vector.multi_reduction <maximumf>, %72, %cst_68 [1] : vector<8x8xf32> to vector<8xf32>
    %74 = vector.shape_cast %73 : vector<8xf32> to vector<8x1xf32>
    %75 = vector.broadcast %74 : vector<8x1xf32> to vector<8x8xf32>
    %76 = arith.subf %72, %75 : vector<8x8xf32>
    %77 = math.exp %76 : vector<8x8xf32>
    %cst_69 = arith.constant dense<0.000000e+00> : vector<8xf32>
    %78 = vector.multi_reduction <add>, %77, %cst_69 [1] : vector<8x8xf32> to vector<8xf32>
    %79 = vector.shape_cast %78 : vector<8xf32> to vector<8x1xf32>
    %80 = tpu.reciprocal %79 {approx = true} : vector<8x1xf32> -> vector<8x1xf32>
    %81 = vector.broadcast %80 : vector<8x1xf32> to vector<8x8xf32>
    %82 = arith.mulf %77, %81 : vector<8x8xf32>
    %cst_70 = arith.constant dense<0.000000e+00> : vector<8x8xf32>
    %83 = tpu.matmul %82, %65, %cst_70 {dimension_numbers = #tpu.dot_dimension_numbers<[1], [0], [0], [1], [0, 0, 1, 1], [], []>} : vector<8x8xf32>, vector<8x8xf32>, vector<8x8xf32> -> vector<8x8xf32>
    %c0_71 = arith.constant 0 : index
    %c8_72 = arith.constant 8 : index
    %84 = vector.load %arg29[%c0_71, %c8_72] : memref<8x32xf32, #tpu.memory_space<vmem>>, vector<8x8xf32>
    tpu.vector_store %arg29[%c0_71, %c8_72], %83 {strides = array<i32>} : memref<8x32xf32, #tpu.memory_space<vmem>>, vector<8x8xf32>,
    %c0_73 = arith.constant 0 : index
    %c16 = arith.constant 16 : index
    %85 = vector.load %arg28[%c0_73, %c16] : memref<8x96xf32, #tpu.memory_space<vmem>>, vector<8x8xf32>
    %c0_74 = arith.constant 0 : index
    %c48 = arith.constant 48 : index
    %86 = vector.load %arg28[%c0_74, %c48] : memref<8x96xf32, #tpu.memory_space<vmem>>, vector<8x8xf32>
    %c0_75 = arith.constant 0 : index
    %c80 = arith.constant 80 : index
    %87 = vector.load %arg28[%c0_75, %c80] : memref<8x96xf32, #tpu.memory_space<vmem>>, vector<8x8xf32>
    %cst_76 = arith.constant dense<0.000000e+00> : vector<8x8xf32>
    %88 = tpu.matmul %85, %86, %cst_76 {dimension_numbers = #tpu.dot_dimension_numbers<[1], [1], [0], [0], [0, 0, 1, 0], [], []>} : vector<8x8xf32>, vector<8x8xf32>, vector<8x8xf32> -> vector<8x8xf32>
    %cst_77 = arith.constant 0.353553385 : f32
    %89 = vector.broadcast %cst_77 : f32 to vector<8x8xf32>
    %90 = arith.mulf %88, %89 : vector<8x8xf32>
    %cst_78 = arith.constant -1.000000e+30 : f32
    %91 = vector.shape_cast %4 : vector<1x8xi1> to vector<1x8xi1>
    %92 = vector.broadcast %91 : vector<1x8xi1> to vector<8x8xi1>
    %93 = vector.broadcast %cst_78 : f32 to vector<8x8xf32>
    %94 = arith.select %92, %90, %93 : vector<8x8xi1>, vector<8x8xf32>
    %cst_79 = arith.constant dense<0xFF800000> : vector<8xf32>
    %95 = vector.multi_reduction <maximumf>, %94, %cst_79 [1] : vector<8x8xf32> to vector<8xf32>
    %96 = vector.shape_cast %95 : vector<8xf32> to vector<8x1xf32>
    %97 = vector.broadcast %96 : vector<8x1xf32> to vector<8x8xf32>
    %98 = arith.subf %94, %97 : vector<8x8xf32>
    %99 = math.exp %98 : vector<8x8xf32>
    %cst_80 = arith.constant dense<0.000000e+00> : vector<8xf32>
    %100 = vector.multi_reduction <add>, %99, %cst_80 [1] : vector<8x8xf32> to vector<8xf32>
    %101 = vector.shape_cast %100 : vector<8xf32> to vector<8x1xf32>
    %102 = tpu.reciprocal %101 {approx = true} : vector<8x1xf32> -> vector<8x1xf32>
    %103 = vector.broadcast %102 : vector<8x1xf32> to vector<8x8xf32>
    %104 = arith.mulf %99, %103 : vector<8x8xf32>
    %cst_81 = arith.constant dense<0.000000e+00> : vector<8x8xf32>
    %105 = tpu.matmul %104, %87, %cst_81 {dimension_numbers = #tpu.dot_dimension_numbers<[1], [0], [0], [1], [0, 0, 1, 1], [], []>} : vector<8x8xf32>, vector<8x8xf32>, vector<8x8xf32> -> vector<8x8xf32>
    %c0_82 = arith.constant 0 : index
    %c16_83 = arith.constant 16 : index
    %106 = vector.load %arg29[%c0_82, %c16_83] : memref<8x32xf32, #tpu.memory_space<vmem>>, vector<8x8xf32>
    tpu.vector_store %arg29[%c0_82, %c16_83], %105 {strides = array<i32>} : memref<8x32xf32, #tpu.memory_space<vmem>>, vector<8x8xf32>,
    %c0_84 = arith.constant 0 : index
    %c24 = arith.constant 24 : index
    %107 = vector.load %arg28[%c0_84, %c24] : memref<8x96xf32, #tpu.memory_space<vmem>>, vector<8x8xf32>
    %c0_85 = arith.constant 0 : index
    %c56 = arith.constant 56 : index
    %108 = vector.load %arg28[%c0_85, %c56] : memref<8x96xf32, #tpu.memory_space<vmem>>, vector<8x8xf32>
    %c0_86 = arith.constant 0 : index
    %c88 = arith.constant 88 : index
    %109 = vector.load %arg28[%c0_86, %c88] : memref<8x96xf32, #tpu.memory_space<vmem>>, vector<8x8xf32>
    %cst_87 = arith.constant dense<0.000000e+00> : vector<8x8xf32>
    %110 = tpu.matmul %107, %108, %cst_87 {dimension_numbers = #tpu.dot_dimension_numbers<[1], [1], [0], [0], [0, 0, 1, 0], [], []>} : vector<8x8xf32>, vector<8x8xf32>, vector<8x8xf32> -> vector<8x8xf32>
    %cst_88 = arith.constant 0.353553385 : f32
    %111 = vector.broadcast %cst_88 : f32 to vector<8x8xf32>
    %112 = arith.mulf %110, %111 : vector<8x8xf32>
    %cst_89 = arith.constant -1.000000e+30 : f32
    %113 = vector.shape_cast %4 : vector<1x8xi1> to vector<1x8xi1>
    %114 = vector.broadcast %113 : vector<1x8xi1> to vector<8x8xi1>
    %115 = vector.broadcast %cst_89 : f32 to vector<8x8xf32>
    %116 = arith.select %114, %112, %115 : vector<8x8xi1>, vector<8x8xf32>
    %cst_90 = arith.constant dense<0xFF800000> : vector<8xf32>
    %117 = vector.multi_reduction <maximumf>, %116, %cst_90 [1] : vector<8x8xf32> to vector<8xf32>
    %118 = vector.shape_cast %117 : vector<8xf32> to vector<8x1xf32>
    %119 = vector.broadcast %118 : vector<8x1xf32> to vector<8x8xf32>
    %120 = arith.subf %116, %119 : vector<8x8xf32>
    %121 = math.exp %120 : vector<8x8xf32>
    %cst_91 = arith.constant dense<0.000000e+00> : vector<8xf32>
    %122 = vector.multi_reduction <add>, %121, %cst_91 [1] : vector<8x8xf32> to vector<8xf32>
    %123 = vector.shape_cast %122 : vector<8xf32> to vector<8x1xf32>
    %124 = tpu.reciprocal %123 {approx = true} : vector<8x1xf32> -> vector<8x1xf32>
    %125 = vector.broadcast %124 : vector<8x1xf32> to vector<8x8xf32>
    %126 = arith.mulf %121, %125 : vector<8x8xf32>
    %cst_92 = arith.constant dense<0.000000e+00> : vector<8x8xf32>
    %127 = tpu.matmul %126, %109, %cst_92 {dimension_numbers = #tpu.dot_dimension_numbers<[1], [0], [0], [1], [0, 0, 1, 1], [], []>} : vector<8x8xf32>, vector<8x8xf32>, vector<8x8xf32> -> vector<8x8xf32>
    %c0_93 = arith.constant 0 : index
    %c24_94 = arith.constant 24 : index
    %128 = vector.load %arg29[%c0_93, %c24_94] : memref<8x32xf32, #tpu.memory_space<vmem>>, vector<8x8xf32>
    tpu.vector_store %arg29[%c0_93, %c24_94], %127 {strides = array<i32>} : memref<8x32xf32, #tpu.memory_space<vmem>>, vector<8x8xf32>,
    %c0_95 = arith.constant 0 : index
    %c0_96 = arith.constant 0 : index
    %129 = vector.load %arg29[%c0_95, %c0_96] : memref<8x32xf32, #tpu.memory_space<vmem>>, vector<8x32xf32>
    %cst_97 = arith.constant dense<0.000000e+00> : vector<8x32xf32>
    %130 = tpu.matmul %129, %15, %cst_97 {dimension_numbers = #tpu.dot_dimension_numbers<[1], [0], [0], [1], [0, 0, 1, 1], [], []>} : vector<8x32xf32>, vector<32x32xf32>, vector<8x32xf32> -> vector<8x32xf32>
    %131 = vector.broadcast %16 : vector<1x32xf32> to vector<8x32xf32>
    %132 = arith.addf %130, %131 : vector<8x32xf32>
    %133 = arith.addf %36, %132 : vector<8x32xf32>
    %cst_98 = arith.constant dense<0.000000e+00> : vector<8xf32>
    %134 = vector.multi_reduction <add>, %133, %cst_98 [1] : vector<8x32xf32> to vector<8xf32>
    %135 = vector.shape_cast %134 : vector<8xf32> to vector<8x1xf32>
    %cst_99 = arith.constant 3.200000e+01 : f32
    %136 = vector.broadcast %cst_99 : f32 to vector<8x1xf32>
    %137 = arith.divf %135, %136 : vector<8x1xf32>
    %138 = vector.broadcast %137 : vector<8x1xf32> to vector<8x32xf32>
    %139 = arith.subf %133, %138 : vector<8x32xf32>
    %140 = arith.mulf %139, %139 : vector<8x32xf32>
    %cst_100 = arith.constant dense<0.000000e+00> : vector<8xf32>
    %141 = vector.multi_reduction <add>, %140, %cst_100 [1] : vector<8x32xf32> to vector<8xf32>
    %142 = vector.shape_cast %141 : vector<8xf32> to vector<8x1xf32>
    %cst_101 = arith.constant 3.200000e+01 : f32
    %143 = vector.broadcast %cst_101 : f32 to vector<8x1xf32>
    %144 = arith.divf %142, %143 : vector<8x1xf32>
    %145 = vector.broadcast %137 : vector<8x1xf32> to vector<8x32xf32>
    %146 = arith.subf %133, %145 : vector<8x32xf32>
    %cst_102 = arith.constant 9.99999974E-6 : f32
    %147 = vector.broadcast %cst_102 : f32 to vector<8x1xf32>
    %148 = arith.addf %144, %147 : vector<8x1xf32>
    %149 = math.rsqrt %148 : vector<8x1xf32>
    %150 = vector.broadcast %149 : vector<8x1xf32> to vector<8x32xf32>
    %151 = arith.mulf %146, %150 : vector<8x32xf32>
    %152 = vector.broadcast %29 : vector<1x32xf32> to vector<8x32xf32>
    %153 = arith.mulf %151, %152 : vector<8x32xf32>
    %154 = vector.broadcast %30 : vector<1x32xf32> to vector<8x32xf32>
    %155 = arith.addf %153, %154 : vector<8x32xf32>
    %cst_103 = arith.constant dense<0.000000e+00> : vector<8x32xf32>
    %156 = tpu.matmul %155, %17, %cst_103 {dimension_numbers = #tpu.dot_dimension_numbers<[1], [0], [0], [1], [0, 0, 1, 1], [], []>} : vector<8x32xf32>, vector<32x32xf32>, vector<8x32xf32> -> vector<8x32xf32>
    %157 = vector.broadcast %18 : vector<1x32xf32> to vector<8x32xf32>
    %158 = arith.addf %156, %157 : vector<8x32xf32>
    %c0_104 = arith.constant 0 : index
    %c0_105 = arith.constant 0 : index
    %159 = vector.load %arg28[%c0_104, %c0_105] : memref<8x96xf32, #tpu.memory_space<vmem>>, vector<8x32xf32>
    tpu.vector_store %arg28[%c0_104, %c0_105], %158 {strides = array<i32>} : memref<8x96xf32, #tpu.memory_space<vmem>>, vector<8x32xf32>,
    %c0_106 = arith.constant 0 : index
    %c0_107 = arith.constant 0 : index
    %160 = vector.load %arg28[%c0_106, %c0_107] : memref<8x96xf32, #tpu.memory_space<vmem>>, vector<8x8xf32>
    %c0_108 = arith.constant 0 : index
    %c0_109 = arith.constant 0 : index
    %c0_110 = arith.constant 0 : index
    %161 = vector.load %arg2[%c0_108, %c0_109, %c0_110] : memref<2x16x32xf32, #tpu.memory_space<vmem>>, vector<1x16x8xf32>
    %162 = vector.shape_cast %161 : vector<1x16x8xf32> to vector<16x8xf32>
    %c0_111 = arith.constant 0 : index
    %c0_112 = arith.constant 0 : index
    %c0_113 = arith.constant 0 : index
    %163 = vector.load %arg3[%c0_111, %c0_112, %c0_113] : memref<2x16x32xf32, #tpu.memory_space<vmem>>, vector<1x16x8xf32>
    %164 = vector.shape_cast %163 : vector<1x16x8xf32> to vector<16x8xf32>
    %cst_114 = arith.constant dense<0.000000e+00> : vector<8x16xf32>
    %165 = tpu.matmul %160, %162, %cst_114 {dimension_numbers = #tpu.dot_dimension_numbers<[1], [1], [0], [0], [0, 0, 1, 0], [], []>} : vector<8x8xf32>, vector<16x8xf32>, vector<8x16xf32> -> vector<8x16xf32>
    %cst_115 = arith.constant 0.353553385 : f32
    %166 = vector.broadcast %cst_115 : f32 to vector<8x16xf32>
    %167 = arith.mulf %165, %166 : vector<8x16xf32>
    %cst_116 = arith.constant dense<0xFF800000> : vector<8xf32>
    %168 = vector.multi_reduction <maximumf>, %167, %cst_116 [1] : vector<8x16xf32> to vector<8xf32>
    %169 = vector.shape_cast %168 : vector<8xf32> to vector<8x1xf32>
    %170 = vector.broadcast %169 : vector<8x1xf32> to vector<8x16xf32>
    %171 = arith.subf %167, %170 : vector<8x16xf32>
    %172 = math.exp %171 : vector<8x16xf32>
    %cst_117 = arith.constant dense<0.000000e+00> : vector<8xf32>
    %173 = vector.multi_reduction <add>, %172, %cst_117 [1] : vector<8x16xf32> to vector<8xf32>
    %174 = vector.shape_cast %173 : vector<8xf32> to vector<8x1xf32>
    %175 = tpu.reciprocal %174 {approx = true} : vector<8x1xf32> -> vector<8x1xf32>
    %176 = vector.broadcast %175 : vector<8x1xf32> to vector<8x16xf32>
    %177 = arith.mulf %172, %176 : vector<8x16xf32>
    %cst_118 = arith.constant dense<0.000000e+00> : vector<8x8xf32>
    %178 = tpu.matmul %177, %164, %cst_118 {dimension_numbers = #tpu.dot_dimension_numbers<[1], [0], [0], [1], [0, 0, 1, 1], [], []>} : vector<8x16xf32>, vector<16x8xf32>, vector<8x8xf32> -> vector<8x8xf32>
    %c0_119 = arith.constant 0 : index
    %c0_120 = arith.constant 0 : index
    %179 = vector.load %arg29[%c0_119, %c0_120] : memref<8x32xf32, #tpu.memory_space<vmem>>, vector<8x8xf32>
    tpu.vector_store %arg29[%c0_119, %c0_120], %178 {strides = array<i32>} : memref<8x32xf32, #tpu.memory_space<vmem>>, vector<8x8xf32>,
    %c0_121 = arith.constant 0 : index
    %c8_122 = arith.constant 8 : index
    %180 = vector.load %arg28[%c0_121, %c8_122] : memref<8x96xf32, #tpu.memory_space<vmem>>, vector<8x8xf32>
    %c0_123 = arith.constant 0 : index
    %c0_124 = arith.constant 0 : index
    %c8_125 = arith.constant 8 : index
    %181 = vector.load %arg2[%c0_123, %c0_124, %c8_125] : memref<2x16x32xf32, #tpu.memory_space<vmem>>, vector<1x16x8xf32>
    %182 = vector.shape_cast %181 : vector<1x16x8xf32> to vector<16x8xf32>
    %c0_126 = arith.constant 0 : index
    %c0_127 = arith.constant 0 : index
    %c8_128 = arith.constant 8 : index
    %183 = vector.load %arg3[%c0_126, %c0_127, %c8_128] : memref<2x16x32xf32, #tpu.memory_space<vmem>>, vector<1x16x8xf32>
    %184 = vector.shape_cast %183 : vector<1x16x8xf32> to vector<16x8xf32>
    %cst_129 = arith.constant dense<0.000000e+00> : vector<8x16xf32>
    %185 = tpu.matmul %180, %182, %cst_129 {dimension_numbers = #tpu.dot_dimension_numbers<[1], [1], [0], [0], [0, 0, 1, 0], [], []>} : vector<8x8xf32>, vector<16x8xf32>, vector<8x16xf32> -> vector<8x16xf32>
    %cst_130 = arith.constant 0.353553385 : f32
    %186 = vector.broadcast %cst_130 : f32 to vector<8x16xf32>
    %187 = arith.mulf %185, %186 : vector<8x16xf32>
    %cst_131 = arith.constant dense<0xFF800000> : vector<8xf32>
    %188 = vector.multi_reduction <maximumf>, %187, %cst_131 [1] : vector<8x16xf32> to vector<8xf32>
    %189 = vector.shape_cast %188 : vector<8xf32> to vector<8x1xf32>
    %190 = vector.broadcast %189 : vector<8x1xf32> to vector<8x16xf32>
    %191 = arith.subf %187, %190 : vector<8x16xf32>
    %192 = math.exp %191 : vector<8x16xf32>
    %cst_132 = arith.constant dense<0.000000e+00> : vector<8xf32>
    %193 = vector.multi_reduction <add>, %192, %cst_132 [1] : vector<8x16xf32> to vector<8xf32>
    %194 = vector.shape_cast %193 : vector<8xf32> to vector<8x1xf32>
    %195 = tpu.reciprocal %194 {approx = true} : vector<8x1xf32> -> vector<8x1xf32>
    %196 = vector.broadcast %195 : vector<8x1xf32> to vector<8x16xf32>
    %197 = arith.mulf %192, %196 : vector<8x16xf32>
    %cst_133 = arith.constant dense<0.000000e+00> : vector<8x8xf32>
    %198 = tpu.matmul %197, %184, %cst_133 {dimension_numbers = #tpu.dot_dimension_numbers<[1], [0], [0], [1], [0, 0, 1, 1], [], []>} : vector<8x16xf32>, vector<16x8xf32>, vector<8x8xf32> -> vector<8x8xf32>
    %c0_134 = arith.constant 0 : index
    %c8_135 = arith.constant 8 : index
    %199 = vector.load %arg29[%c0_134, %c8_135] : memref<8x32xf32, #tpu.memory_space<vmem>>, vector<8x8xf32>
    tpu.vector_store %arg29[%c0_134, %c8_135], %198 {strides = array<i32>} : memref<8x32xf32, #tpu.memory_space<vmem>>, vector<8x8xf32>,
    %c0_136 = arith.constant 0 : index
    %c16_137 = arith.constant 16 : index
    %200 = vector.load %arg28[%c0_136, %c16_137] : memref<8x96xf32, #tpu.memory_space<vmem>>, vector<8x8xf32>
    %c0_138 = arith.constant 0 : index
    %c0_139 = arith.constant 0 : index
    %c16_140 = arith.constant 16 : index
    %201 = vector.load %arg2[%c0_138, %c0_139, %c16_140] : memref<2x16x32xf32, #tpu.memory_space<vmem>>, vector<1x16x8xf32>
    %202 = vector.shape_cast %201 : vector<1x16x8xf32> to vector<16x8xf32>
    %c0_141 = arith.constant 0 : index
    %c0_142 = arith.constant 0 : index
    %c16_143 = arith.constant 16 : index
    %203 = vector.load %arg3[%c0_141, %c0_142, %c16_143] : memref<2x16x32xf32, #tpu.memory_space<vmem>>, vector<1x16x8xf32>
    %204 = vector.shape_cast %203 : vector<1x16x8xf32> to vector<16x8xf32>
    %cst_144 = arith.constant dense<0.000000e+00> : vector<8x16xf32>
    %205 = tpu.matmul %200, %202, %cst_144 {dimension_numbers = #tpu.dot_dimension_numbers<[1], [1], [0], [0], [0, 0, 1, 0], [], []>} : vector<8x8xf32>, vector<16x8xf32>, vector<8x16xf32> -> vector<8x16xf32>
    %cst_145 = arith.constant 0.353553385 : f32
    %206 = vector.broadcast %cst_145 : f32 to vector<8x16xf32>
    %207 = arith.mulf %205, %206 : vector<8x16xf32>
    %cst_146 = arith.constant dense<0xFF800000> : vector<8xf32>
    %208 = vector.multi_reduction <maximumf>, %207, %cst_146 [1] : vector<8x16xf32> to vector<8xf32>
    %209 = vector.shape_cast %208 : vector<8xf32> to vector<8x1xf32>
    %210 = vector.broadcast %209 : vector<8x1xf32> to vector<8x16xf32>
    %211 = arith.subf %207, %210 : vector<8x16xf32>
    %212 = math.exp %211 : vector<8x16xf32>
    %cst_147 = arith.constant dense<0.000000e+00> : vector<8xf32>
    %213 = vector.multi_reduction <add>, %212, %cst_147 [1] : vector<8x16xf32> to vector<8xf32>
    %214 = vector.shape_cast %213 : vector<8xf32> to vector<8x1xf32>
    %215 = tpu.reciprocal %214 {approx = true} : vector<8x1xf32> -> vector<8x1xf32>
    %216 = vector.broadcast %215 : vector<8x1xf32> to vector<8x16xf32>
    %217 = arith.mulf %212, %216 : vector<8x16xf32>
    %cst_148 = arith.constant dense<0.000000e+00> : vector<8x8xf32>
    %218 = tpu.matmul %217, %204, %cst_148 {dimension_numbers = #tpu.dot_dimension_numbers<[1], [0], [0], [1], [0, 0, 1, 1], [], []>} : vector<8x16xf32>, vector<16x8xf32>, vector<8x8xf32> -> vector<8x8xf32>
    %c0_149 = arith.constant 0 : index
    %c16_150 = arith.constant 16 : index
    %219 = vector.load %arg29[%c0_149, %c16_150] : memref<8x32xf32, #tpu.memory_space<vmem>>, vector<8x8xf32>
    tpu.vector_store %arg29[%c0_149, %c16_150], %218 {strides = array<i32>} : memref<8x32xf32, #tpu.memory_space<vmem>>, vector<8x8xf32>,
    %c0_151 = arith.constant 0 : index
    %c24_152 = arith.constant 24 : index
    %220 = vector.load %arg28[%c0_151, %c24_152] : memref<8x96xf32, #tpu.memory_space<vmem>>, vector<8x8xf32>
    %c0_153 = arith.constant 0 : index
    %c0_154 = arith.constant 0 : index
    %c24_155 = arith.constant 24 : index
    %221 = vector.load %arg2[%c0_153, %c0_154, %c24_155] : memref<2x16x32xf32, #tpu.memory_space<vmem>>, vector<1x16x8xf32>
    %222 = vector.shape_cast %221 : vector<1x16x8xf32> to vector<16x8xf32>
    %c0_156 = arith.constant 0 : index
    %c0_157 = arith.constant 0 : index
    %c24_158 = arith.constant 24 : index
    %223 = vector.load %arg3[%c0_156, %c0_157, %c24_158] : memref<2x16x32xf32, #tpu.memory_space<vmem>>, vector<1x16x8xf32>
    %224 = vector.shape_cast %223 : vector<1x16x8xf32> to vector<16x8xf32>
    %cst_159 = arith.constant dense<0.000000e+00> : vector<8x16xf32>
    %225 = tpu.matmul %220, %222, %cst_159 {dimension_numbers = #tpu.dot_dimension_numbers<[1], [1], [0], [0], [0, 0, 1, 0], [], []>} : vector<8x8xf32>, vector<16x8xf32>, vector<8x16xf32> -> vector<8x16xf32>
    %cst_160 = arith.constant 0.353553385 : f32
    %226 = vector.broadcast %cst_160 : f32 to vector<8x16xf32>
    %227 = arith.mulf %225, %226 : vector<8x16xf32>
    %cst_161 = arith.constant dense<0xFF800000> : vector<8xf32>
    %228 = vector.multi_reduction <maximumf>, %227, %cst_161 [1] : vector<8x16xf32> to vector<8xf32>
    %229 = vector.shape_cast %228 : vector<8xf32> to vector<8x1xf32>
    %230 = vector.broadcast %229 : vector<8x1xf32> to vector<8x16xf32>
    %231 = arith.subf %227, %230 : vector<8x16xf32>
    %232 = math.exp %231 : vector<8x16xf32>
    %cst_162 = arith.constant dense<0.000000e+00> : vector<8xf32>
    %233 = vector.multi_reduction <add>, %232, %cst_162 [1] : vector<8x16xf32> to vector<8xf32>
    %234 = vector.shape_cast %233 : vector<8xf32> to vector<8x1xf32>
    %235 = tpu.reciprocal %234 {approx = true} : vector<8x1xf32> -> vector<8x1xf32>
    %236 = vector.broadcast %235 : vector<8x1xf32> to vector<8x16xf32>
    %237 = arith.mulf %232, %236 : vector<8x16xf32>
    %cst_163 = arith.constant dense<0.000000e+00> : vector<8x8xf32>
    %238 = tpu.matmul %237, %224, %cst_163 {dimension_numbers = #tpu.dot_dimension_numbers<[1], [0], [0], [1], [0, 0, 1, 1], [], []>} : vector<8x16xf32>, vector<16x8xf32>, vector<8x8xf32> -> vector<8x8xf32>
    %c0_164 = arith.constant 0 : index
    %c24_165 = arith.constant 24 : index
    %239 = vector.load %arg29[%c0_164, %c24_165] : memref<8x32xf32, #tpu.memory_space<vmem>>, vector<8x8xf32>
    tpu.vector_store %arg29[%c0_164, %c24_165], %238 {strides = array<i32>} : memref<8x32xf32, #tpu.memory_space<vmem>>, vector<8x8xf32>,
    %c0_166 = arith.constant 0 : index
    %c0_167 = arith.constant 0 : index
    %240 = vector.load %arg29[%c0_166, %c0_167] : memref<8x32xf32, #tpu.memory_space<vmem>>, vector<8x32xf32>
    %cst_168 = arith.constant dense<0.000000e+00> : vector<8x32xf32>
    %241 = tpu.matmul %240, %19, %cst_168 {dimension_numbers = #tpu.dot_dimension_numbers<[1], [0], [0], [1], [0, 0, 1, 1], [], []>} : vector<8x32xf32>, vector<32x32xf32>, vector<8x32xf32> -> vector<8x32xf32>
    %242 = vector.broadcast %20 : vector<1x32xf32> to vector<8x32xf32>
    %243 = arith.addf %241, %242 : vector<8x32xf32>
    %244 = arith.addf %155, %243 : vector<8x32xf32>
    %cst_169 = arith.constant dense<0.000000e+00> : vector<8xf32>
    %245 = vector.multi_reduction <add>, %244, %cst_169 [1] : vector<8x32xf32> to vector<8xf32>
    %246 = vector.shape_cast %245 : vector<8xf32> to vector<8x1xf32>
    %cst_170 = arith.constant 3.200000e+01 : f32
    %247 = vector.broadcast %cst_170 : f32 to vector<8x1xf32>
    %248 = arith.divf %246, %247 : vector<8x1xf32>
    %249 = vector.broadcast %248 : vector<8x1xf32> to vector<8x32xf32>
    %250 = arith.subf %244, %249 : vector<8x32xf32>
    %251 = arith.mulf %250, %250 : vector<8x32xf32>
    %cst_171 = arith.constant dense<0.000000e+00> : vector<8xf32>
    %252 = vector.multi_reduction <add>, %251, %cst_171 [1] : vector<8x32xf32> to vector<8xf32>
    %253 = vector.shape_cast %252 : vector<8xf32> to vector<8x1xf32>
    %cst_172 = arith.constant 3.200000e+01 : f32
    %254 = vector.broadcast %cst_172 : f32 to vector<8x1xf32>
    %255 = arith.divf %253, %254 : vector<8x1xf32>
    %256 = vector.broadcast %248 : vector<8x1xf32> to vector<8x32xf32>
    %257 = arith.subf %244, %256 : vector<8x32xf32>
    %cst_173 = arith.constant 9.99999974E-6 : f32
    %258 = vector.broadcast %cst_173 : f32 to vector<8x1xf32>
    %259 = arith.addf %255, %258 : vector<8x1xf32>
    %260 = math.rsqrt %259 : vector<8x1xf32>
    %261 = vector.broadcast %260 : vector<8x1xf32> to vector<8x32xf32>
    %262 = arith.mulf %257, %261 : vector<8x32xf32>
    %263 = vector.broadcast %31 : vector<1x32xf32> to vector<8x32xf32>
    %264 = arith.mulf %262, %263 : vector<8x32xf32>
    %265 = vector.broadcast %32 : vector<1x32xf32> to vector<8x32xf32>
    %266 = arith.addf %264, %265 : vector<8x32xf32>
    %cst_174 = arith.constant dense<0.000000e+00> : vector<8x64xf32>
    %267 = tpu.matmul %266, %21, %cst_174 {dimension_numbers = #tpu.dot_dimension_numbers<[1], [0], [0], [1], [0, 0, 1, 1], [], []>} : vector<8x32xf32>, vector<32x64xf32>, vector<8x64xf32> -> vector<8x64xf32>
    %268 = vector.broadcast %22 : vector<1x64xf32> to vector<8x64xf32>
    %269 = arith.addf %267, %268 : vector<8x64xf32>
    %cst_175 = arith.constant 0.000000e+00 : f32
    %270 = vector.broadcast %cst_175 : f32 to vector<8x64xf32>
    %271 = arith.maximumf %269, %270 : vector<8x64xf32>
    %cst_176 = arith.constant dense<0.000000e+00> : vector<8x32xf32>
    %272 = tpu.matmul %271, %23, %cst_176 {dimension_numbers = #tpu.dot_dimension_numbers<[1], [0], [0], [1], [0, 0, 1, 1], [], []>} : vector<8x64xf32>, vector<64x32xf32>, vector<8x32xf32> -> vector<8x32xf32>
    %273 = vector.broadcast %24 : vector<1x32xf32> to vector<8x32xf32>
    %274 = arith.addf %272, %273 : vector<8x32xf32>
    %275 = arith.addf %266, %274 : vector<8x32xf32>
    %cst_177 = arith.constant dense<0.000000e+00> : vector<8xf32>
    %276 = vector.multi_reduction <add>, %275, %cst_177 [1] : vector<8x32xf32> to vector<8xf32>
    %277 = vector.shape_cast %276 : vector<8xf32> to vector<8x1xf32>
    %cst_178 = arith.constant 3.200000e+01 : f32
    %278 = vector.broadcast %cst_178 : f32 to vector<8x1xf32>
    %279 = arith.divf %277, %278 : vector<8x1xf32>
    %280 = vector.broadcast %279 : vector<8x1xf32> to vector<8x32xf32>
    %281 = arith.subf %275, %280 : vector<8x32xf32>
    %282 = arith.mulf %281, %281 : vector<8x32xf32>
    %cst_179 = arith.constant dense<0.000000e+00> : vector<8xf32>
    %283 = vector.multi_reduction <add>, %282, %cst_179 [1] : vector<8x32xf32> to vector<8xf32>
    %284 = vector.shape_cast %283 : vector<8xf32> to vector<8x1xf32>
    %cst_180 = arith.constant 3.200000e+01 : f32
    %285 = vector.broadcast %cst_180 : f32 to vector<8x1xf32>
    %286 = arith.divf %284, %285 : vector<8x1xf32>
    %287 = vector.broadcast %279 : vector<8x1xf32> to vector<8x32xf32>
    %288 = arith.subf %275, %287 : vector<8x32xf32>
    %cst_181 = arith.constant 9.99999974E-6 : f32
    %289 = vector.broadcast %cst_181 : f32 to vector<8x1xf32>
    %290 = arith.addf %286, %289 : vector<8x1xf32>
    %291 = math.rsqrt %290 : vector<8x1xf32>
    %292 = vector.broadcast %291 : vector<8x1xf32> to vector<8x32xf32>
    %293 = arith.mulf %288, %292 : vector<8x32xf32>
    %294 = vector.broadcast %33 : vector<1x32xf32> to vector<8x32xf32>
    %295 = arith.mulf %293, %294 : vector<8x32xf32>
    %296 = vector.broadcast %34 : vector<1x32xf32> to vector<8x32xf32>
    %297 = arith.addf %295, %296 : vector<8x32xf32>
    %298 = vector.broadcast %10 : vector<8x1xf32> to vector<8x32xf32>
    %299 = arith.mulf %297, %298 : vector<8x32xf32>
    %cst_182 = arith.constant dense<0.000000e+00> : vector<32xf32>
    %300 = vector.multi_reduction <add>, %299, %cst_182 [0] : vector<8x32xf32> to vector<32xf32>
    %301 = vector.shape_cast %300 : vector<32xf32> to vector<1x32xf32>
    %cst_183 = arith.constant dense<0.000000e+00> : vector<1x2xf32>
    %302 = tpu.matmul %301, %25, %cst_183 {dimension_numbers = #tpu.dot_dimension_numbers<[1], [0], [0], [1], [0, 0, 1, 1], [], []>} : vector<1x32xf32>, vector<32x2xf32>, vector<1x2xf32> -> vector<1x2xf32>
    %303 = arith.addf %302, %26 : vector<1x2xf32>
    %c0_184 = arith.constant 0 : index
    %c0_185 = arith.constant 0 : index
    %304 = vector.load %arg27[%c0_184, %c0_185] : memref<2x2xf32, #tpu.memory_space<vmem>>, vector<1x2xf32>
    tpu.vector_store %arg27[%c0_184, %c0_185], %303 {strides = array<i32>} : memref<2x2xf32, #tpu.memory_space<vmem>>, vector<1x2xf32>,
    %cst_186 = arith.constant dense<0.000000e+00> : vector<1x32xf32>
    %305 = tpu.matmul %303, %27, %cst_186 {dimension_numbers = #tpu.dot_dimension_numbers<[1], [0], [0], [1], [0, 0, 1, 1], [], []>} : vector<1x2xf32>, vector<2x32xf32>, vector<1x32xf32> -> vector<1x32xf32>
    %306 = arith.addf %305, %28 : vector<1x32xf32>
    %307 = vector.shape_cast %12 : vector<8x1xi1> to vector<8x1xi1>
    %308 = vector.broadcast %307 : vector<8x1xi1> to vector<8x32xi1>
    %309 = vector.shape_cast %306 : vector<1x32xf32> to vector<1x32xf32>
    %310 = vector.broadcast %309 : vector<1x32xf32> to vector<8x32xf32>
    %311 = arith.select %308, %310, %297 : vector<8x32xi1>, vector<8x32xf32>
    %c0_187 = arith.constant 0 : index
    %c0_188 = arith.constant 0 : index
    %c0_189 = arith.constant 0 : index
    %312 = vector.load %arg26[%c0_187, %c0_188, %c0_189] : memref<2x8x32xf32, #tpu.memory_space<vmem>>, vector<1x8x32xf32>
    %313 = vector.shape_cast %312 : vector<1x8x32xf32> to vector<8x32xf32>
    %314 = vector.shape_cast %311 : vector<8x32xf32> to vector<1x8x32xf32>
    tpu.vector_store %arg26[%c0_187, %c0_188, %c0_189], %314 {strides = array<i32>} : memref<2x8x32xf32, #tpu.memory_space<vmem>>, vector<1x8x32xf32>,
    %c1 = arith.constant 1 : index
    %c0_190 = arith.constant 0 : index
    %c0_191 = arith.constant 0 : index
    %315 = vector.load %arg1[%c1, %c0_190, %c0_191] : memref<2x8x32xf32, #tpu.memory_space<vmem>>, vector<1x8x32xf32>
    %316 = vector.shape_cast %315 : vector<1x8x32xf32> to vector<8x32xf32>
    %cst_192 = arith.constant dense<0.000000e+00> : vector<8x96xf32>
    %317 = tpu.matmul %316, %13, %cst_192 {dimension_numbers = #tpu.dot_dimension_numbers<[1], [0], [0], [1], [0, 0, 1, 1], [], []>} : vector<8x32xf32>, vector<32x96xf32>, vector<8x96xf32> -> vector<8x96xf32>
    %318 = vector.broadcast %14 : vector<1x96xf32> to vector<8x96xf32>
    %319 = arith.addf %317, %318 : vector<8x96xf32>
    %c0_193 = arith.constant 0 : index
    %c0_194 = arith.constant 0 : index
    %320 = vector.load %arg28[%c0_193, %c0_194] : memref<8x96xf32, #tpu.memory_space<vmem>>, vector<8x96xf32>
    tpu.vector_store %arg28[%c0_193, %c0_194], %319 {strides = array<i32>} : memref<8x96xf32, #tpu.memory_space<vmem>>, vector<8x96xf32>,
    %c0_195 = arith.constant 0 : index
    %c0_196 = arith.constant 0 : index
    %321 = vector.load %arg28[%c0_195, %c0_196] : memref<8x96xf32, #tpu.memory_space<vmem>>, vector<8x8xf32>
    %c0_197 = arith.constant 0 : index
    %c32_198 = arith.constant 32 : index
    %322 = vector.load %arg28[%c0_197, %c32_198] : memref<8x96xf32, #tpu.memory_space<vmem>>, vector<8x8xf32>
    %c0_199 = arith.constant 0 : index
    %c64_200 = arith.constant 64 : index
    %323 = vector.load %arg28[%c0_199, %c64_200] : memref<8x96xf32, #tpu.memory_space<vmem>>, vector<8x8xf32>
    %cst_201 = arith.constant dense<0.000000e+00> : vector<8x8xf32>
    %324 = tpu.matmul %321, %322, %cst_201 {dimension_numbers = #tpu.dot_dimension_numbers<[1], [1], [0], [0], [0, 0, 1, 0], [], []>} : vector<8x8xf32>, vector<8x8xf32>, vector<8x8xf32> -> vector<8x8xf32>
    %cst_202 = arith.constant 0.353553385 : f32
    %325 = vector.broadcast %cst_202 : f32 to vector<8x8xf32>
    %326 = arith.mulf %324, %325 : vector<8x8xf32>
    %cst_203 = arith.constant -1.000000e+30 : f32
    %327 = vector.shape_cast %4 : vector<1x8xi1> to vector<1x8xi1>
    %328 = vector.broadcast %327 : vector<1x8xi1> to vector<8x8xi1>
    %329 = vector.broadcast %cst_203 : f32 to vector<8x8xf32>
    %330 = arith.select %328, %326, %329 : vector<8x8xi1>, vector<8x8xf32>
    %cst_204 = arith.constant dense<0xFF800000> : vector<8xf32>
    %331 = vector.multi_reduction <maximumf>, %330, %cst_204 [1] : vector<8x8xf32> to vector<8xf32>
    %332 = vector.shape_cast %331 : vector<8xf32> to vector<8x1xf32>
    %333 = vector.broadcast %332 : vector<8x1xf32> to vector<8x8xf32>
    %334 = arith.subf %330, %333 : vector<8x8xf32>
    %335 = math.exp %334 : vector<8x8xf32>
    %cst_205 = arith.constant dense<0.000000e+00> : vector<8xf32>
    %336 = vector.multi_reduction <add>, %335, %cst_205 [1] : vector<8x8xf32> to vector<8xf32>
    %337 = vector.shape_cast %336 : vector<8xf32> to vector<8x1xf32>
    %338 = tpu.reciprocal %337 {approx = true} : vector<8x1xf32> -> vector<8x1xf32>
    %339 = vector.broadcast %338 : vector<8x1xf32> to vector<8x8xf32>
    %340 = arith.mulf %335, %339 : vector<8x8xf32>
    %cst_206 = arith.constant dense<0.000000e+00> : vector<8x8xf32>
    %341 = tpu.matmul %340, %323, %cst_206 {dimension_numbers = #tpu.dot_dimension_numbers<[1], [0], [0], [1], [0, 0, 1, 1], [], []>} : vector<8x8xf32>, vector<8x8xf32>, vector<8x8xf32> -> vector<8x8xf32>
    %c0_207 = arith.constant 0 : index
    %c0_208 = arith.constant 0 : index
    %342 = vector.load %arg29[%c0_207, %c0_208] : memref<8x32xf32, #tpu.memory_space<vmem>>, vector<8x8xf32>
    tpu.vector_store %arg29[%c0_207, %c0_208], %341 {strides = array<i32>} : memref<8x32xf32, #tpu.memory_space<vmem>>, vector<8x8xf32>,
    %c0_209 = arith.constant 0 : index
    %c8_210 = arith.constant 8 : index
    %343 = vector.load %arg28[%c0_209, %c8_210] : memref<8x96xf32, #tpu.memory_space<vmem>>, vector<8x8xf32>
    %c0_211 = arith.constant 0 : index
    %c40_212 = arith.constant 40 : index
    %344 = vector.load %arg28[%c0_211, %c40_212] : memref<8x96xf32, #tpu.memory_space<vmem>>, vector<8x8xf32>
    %c0_213 = arith.constant 0 : index
    %c72_214 = arith.constant 72 : index
    %345 = vector.load %arg28[%c0_213, %c72_214] : memref<8x96xf32, #tpu.memory_space<vmem>>, vector<8x8xf32>
    %cst_215 = arith.constant dense<0.000000e+00> : vector<8x8xf32>
    %346 = tpu.matmul %343, %344, %cst_215 {dimension_numbers = #tpu.dot_dimension_numbers<[1], [1], [0], [0], [0, 0, 1, 0], [], []>} : vector<8x8xf32>, vector<8x8xf32>, vector<8x8xf32> -> vector<8x8xf32>
    %cst_216 = arith.constant 0.353553385 : f32
    %347 = vector.broadcast %cst_216 : f32 to vector<8x8xf32>
    %348 = arith.mulf %346, %347 : vector<8x8xf32>
    %cst_217 = arith.constant -1.000000e+30 : f32
    %349 = vector.shape_cast %4 : vector<1x8xi1> to vector<1x8xi1>
    %350 = vector.broadcast %349 : vector<1x8xi1> to vector<8x8xi1>
    %351 = vector.broadcast %cst_217 : f32 to vector<8x8xf32>
    %352 = arith.select %350, %348, %351 : vector<8x8xi1>, vector<8x8xf32>
    %cst_218 = arith.constant dense<0xFF800000> : vector<8xf32>
    %353 = vector.multi_reduction <maximumf>, %352, %cst_218 [1] : vector<8x8xf32> to vector<8xf32>
    %354 = vector.shape_cast %353 : vector<8xf32> to vector<8x1xf32>
    %355 = vector.broadcast %354 : vector<8x1xf32> to vector<8x8xf32>
    %356 = arith.subf %352, %355 : vector<8x8xf32>
    %357 = math.exp %356 : vector<8x8xf32>
    %cst_219 = arith.constant dense<0.000000e+00> : vector<8xf32>
    %358 = vector.multi_reduction <add>, %357, %cst_219 [1] : vector<8x8xf32> to vector<8xf32>
    %359 = vector.shape_cast %358 : vector<8xf32> to vector<8x1xf32>
    %360 = tpu.reciprocal %359 {approx = true} : vector<8x1xf32> -> vector<8x1xf32>
    %361 = vector.broadcast %360 : vector<8x1xf32> to vector<8x8xf32>
    %362 = arith.mulf %357, %361 : vector<8x8xf32>
    %cst_220 = arith.constant dense<0.000000e+00> : vector<8x8xf32>
    %363 = tpu.matmul %362, %345, %cst_220 {dimension_numbers = #tpu.dot_dimension_numbers<[1], [0], [0], [1], [0, 0, 1, 1], [], []>} : vector<8x8xf32>, vector<8x8xf32>, vector<8x8xf32> -> vector<8x8xf32>
    %c0_221 = arith.constant 0 : index
    %c8_222 = arith.constant 8 : index
    %364 = vector.load %arg29[%c0_221, %c8_222] : memref<8x32xf32, #tpu.memory_space<vmem>>, vector<8x8xf32>
    tpu.vector_store %arg29[%c0_221, %c8_222], %363 {strides = array<i32>} : memref<8x32xf32, #tpu.memory_space<vmem>>, vector<8x8xf32>,
    %c0_223 = arith.constant 0 : index
    %c16_224 = arith.constant 16 : index
    %365 = vector.load %arg28[%c0_223, %c16_224] : memref<8x96xf32, #tpu.memory_space<vmem>>, vector<8x8xf32>
    %c0_225 = arith.constant 0 : index
    %c48_226 = arith.constant 48 : index
    %366 = vector.load %arg28[%c0_225, %c48_226] : memref<8x96xf32, #tpu.memory_space<vmem>>, vector<8x8xf32>
    %c0_227 = arith.constant 0 : index
    %c80_228 = arith.constant 80 : index
    %367 = vector.load %arg28[%c0_227, %c80_228] : memref<8x96xf32, #tpu.memory_space<vmem>>, vector<8x8xf32>
    %cst_229 = arith.constant dense<0.000000e+00> : vector<8x8xf32>
    %368 = tpu.matmul %365, %366, %cst_229 {dimension_numbers = #tpu.dot_dimension_numbers<[1], [1], [0], [0], [0, 0, 1, 0], [], []>} : vector<8x8xf32>, vector<8x8xf32>, vector<8x8xf32> -> vector<8x8xf32>
    %cst_230 = arith.constant 0.353553385 : f32
    %369 = vector.broadcast %cst_230 : f32 to vector<8x8xf32>
    %370 = arith.mulf %368, %369 : vector<8x8xf32>
    %cst_231 = arith.constant -1.000000e+30 : f32
    %371 = vector.shape_cast %4 : vector<1x8xi1> to vector<1x8xi1>
    %372 = vector.broadcast %371 : vector<1x8xi1> to vector<8x8xi1>
    %373 = vector.broadcast %cst_231 : f32 to vector<8x8xf32>
    %374 = arith.select %372, %370, %373 : vector<8x8xi1>, vector<8x8xf32>
    %cst_232 = arith.constant dense<0xFF800000> : vector<8xf32>
    %375 = vector.multi_reduction <maximumf>, %374, %cst_232 [1] : vector<8x8xf32> to vector<8xf32>
    %376 = vector.shape_cast %375 : vector<8xf32> to vector<8x1xf32>
    %377 = vector.broadcast %376 : vector<8x1xf32> to vector<8x8xf32>
    %378 = arith.subf %374, %377 : vector<8x8xf32>
    %379 = math.exp %378 : vector<8x8xf32>
    %cst_233 = arith.constant dense<0.000000e+00> : vector<8xf32>
    %380 = vector.multi_reduction <add>, %379, %cst_233 [1] : vector<8x8xf32> to vector<8xf32>
    %381 = vector.shape_cast %380 : vector<8xf32> to vector<8x1xf32>
    %382 = tpu.reciprocal %381 {approx = true} : vector<8x1xf32> -> vector<8x1xf32>
    %383 = vector.broadcast %382 : vector<8x1xf32> to vector<8x8xf32>
    %384 = arith.mulf %379, %383 : vector<8x8xf32>
    %cst_234 = arith.constant dense<0.000000e+00> : vector<8x8xf32>
    %385 = tpu.matmul %384, %367, %cst_234 {dimension_numbers = #tpu.dot_dimension_numbers<[1], [0], [0], [1], [0, 0, 1, 1], [], []>} : vector<8x8xf32>, vector<8x8xf32>, vector<8x8xf32> -> vector<8x8xf32>
    %c0_235 = arith.constant 0 : index
    %c16_236 = arith.constant 16 : index
    %386 = vector.load %arg29[%c0_235, %c16_236] : memref<8x32xf32, #tpu.memory_space<vmem>>, vector<8x8xf32>
    tpu.vector_store %arg29[%c0_235, %c16_236], %385 {strides = array<i32>} : memref<8x32xf32, #tpu.memory_space<vmem>>, vector<8x8xf32>,
    %c0_237 = arith.constant 0 : index
    %c24_238 = arith.constant 24 : index
    %387 = vector.load %arg28[%c0_237, %c24_238] : memref<8x96xf32, #tpu.memory_space<vmem>>, vector<8x8xf32>
    %c0_239 = arith.constant 0 : index
    %c56_240 = arith.constant 56 : index
    %388 = vector.load %arg28[%c0_239, %c56_240] : memref<8x96xf32, #tpu.memory_space<vmem>>, vector<8x8xf32>
    %c0_241 = arith.constant 0 : index
    %c88_242 = arith.constant 88 : index
    %389 = vector.load %arg28[%c0_241, %c88_242] : memref<8x96xf32, #tpu.memory_space<vmem>>, vector<8x8xf32>
    %cst_243 = arith.constant dense<0.000000e+00> : vector<8x8xf32>
    %390 = tpu.matmul %387, %388, %cst_243 {dimension_numbers = #tpu.dot_dimension_numbers<[1], [1], [0], [0], [0, 0, 1, 0], [], []>} : vector<8x8xf32>, vector<8x8xf32>, vector<8x8xf32> -> vector<8x8xf32>
    %cst_244 = arith.constant 0.353553385 : f32
    %391 = vector.broadcast %cst_244 : f32 to vector<8x8xf32>
    %392 = arith.mulf %390, %391 : vector<8x8xf32>
    %cst_245 = arith.constant -1.000000e+30 : f32
    %393 = vector.shape_cast %4 : vector<1x8xi1> to vector<1x8xi1>
    %394 = vector.broadcast %393 : vector<1x8xi1> to vector<8x8xi1>
    %395 = vector.broadcast %cst_245 : f32 to vector<8x8xf32>
    %396 = arith.select %394, %392, %395 : vector<8x8xi1>, vector<8x8xf32>
    %cst_246 = arith.constant dense<0xFF800000> : vector<8xf32>
    %397 = vector.multi_reduction <maximumf>, %396, %cst_246 [1] : vector<8x8xf32> to vector<8xf32>
    %398 = vector.shape_cast %397 : vector<8xf32> to vector<8x1xf32>
    %399 = vector.broadcast %398 : vector<8x1xf32> to vector<8x8xf32>
    %400 = arith.subf %396, %399 : vector<8x8xf32>
    %401 = math.exp %400 : vector<8x8xf32>
    %cst_247 = arith.constant dense<0.000000e+00> : vector<8xf32>
    %402 = vector.multi_reduction <add>, %401, %cst_247 [1] : vector<8x8xf32> to vector<8xf32>
    %403 = vector.shape_cast %402 : vector<8xf32> to vector<8x1xf32>
    %404 = tpu.reciprocal %403 {approx = true} : vector<8x1xf32> -> vector<8x1xf32>
    %405 = vector.broadcast %404 : vector<8x1xf32> to vector<8x8xf32>
    %406 = arith.mulf %401, %405 : vector<8x8xf32>
    %cst_248 = arith.constant dense<0.000000e+00> : vector<8x8xf32>
    %407 = tpu.matmul %406, %389, %cst_248 {dimension_numbers = #tpu.dot_dimension_numbers<[1], [0], [0], [1], [0, 0, 1, 1], [], []>} : vector<8x8xf32>, vector<8x8xf32>, vector<8x8xf32> -> vector<8x8xf32>
    %c0_249 = arith.constant 0 : index
    %c24_250 = arith.constant 24 : index
    %408 = vector.load %arg29[%c0_249, %c24_250] : memref<8x32xf32, #tpu.memory_space<vmem>>, vector<8x8xf32>
    tpu.vector_store %arg29[%c0_249, %c24_250], %407 {strides = array<i32>} : memref<8x32xf32, #tpu.memory_space<vmem>>, vector<8x8xf32>,
    %c0_251 = arith.constant 0 : index
    %c0_252 = arith.constant 0 : index
    %409 = vector.load %arg29[%c0_251, %c0_252] : memref<8x32xf32, #tpu.memory_space<vmem>>, vector<8x32xf32>
    %cst_253 = arith.constant dense<0.000000e+00> : vector<8x32xf32>
    %410 = tpu.matmul %409, %15, %cst_253 {dimension_numbers = #tpu.dot_dimension_numbers<[1], [0], [0], [1], [0, 0, 1, 1], [], []>} : vector<8x32xf32>, vector<32x32xf32>, vector<8x32xf32> -> vector<8x32xf32>
    %411 = vector.broadcast %16 : vector<1x32xf32> to vector<8x32xf32>
    %412 = arith.addf %410, %411 : vector<8x32xf32>
    %413 = arith.addf %316, %412 : vector<8x32xf32>
    %cst_254 = arith.constant dense<0.000000e+00> : vector<8xf32>
    %414 = vector.multi_reduction <add>, %413, %cst_254 [1] : vector<8x32xf32> to vector<8xf32>
    %415 = vector.shape_cast %414 : vector<8xf32> to vector<8x1xf32>
    %cst_255 = arith.constant 3.200000e+01 : f32
    %416 = vector.broadcast %cst_255 : f32 to vector<8x1xf32>
    %417 = arith.divf %415, %416 : vector<8x1xf32>
    %418 = vector.broadcast %417 : vector<8x1xf32> to vector<8x32xf32>
    %419 = arith.subf %413, %418 : vector<8x32xf32>
    %420 = arith.mulf %419, %419 : vector<8x32xf32>
    %cst_256 = arith.constant dense<0.000000e+00> : vector<8xf32>
    %421 = vector.multi_reduction <add>, %420, %cst_256 [1] : vector<8x32xf32> to vector<8xf32>
    %422 = vector.shape_cast %421 : vector<8xf32> to vector<8x1xf32>
    %cst_257 = arith.constant 3.200000e+01 : f32
    %423 = vector.broadcast %cst_257 : f32 to vector<8x1xf32>
    %424 = arith.divf %422, %423 : vector<8x1xf32>
    %425 = vector.broadcast %417 : vector<8x1xf32> to vector<8x32xf32>
    %426 = arith.subf %413, %425 : vector<8x32xf32>
    %cst_258 = arith.constant 9.99999974E-6 : f32
    %427 = vector.broadcast %cst_258 : f32 to vector<8x1xf32>
    %428 = arith.addf %424, %427 : vector<8x1xf32>
    %429 = math.rsqrt %428 : vector<8x1xf32>
    %430 = vector.broadcast %429 : vector<8x1xf32> to vector<8x32xf32>
    %431 = arith.mulf %426, %430 : vector<8x32xf32>
    %432 = vector.broadcast %29 : vector<1x32xf32> to vector<8x32xf32>
    %433 = arith.mulf %431, %432 : vector<8x32xf32>
    %434 = vector.broadcast %30 : vector<1x32xf32> to vector<8x32xf32>
    %435 = arith.addf %433, %434 : vector<8x32xf32>
    %cst_259 = arith.constant dense<0.000000e+00> : vector<8x32xf32>
    %436 = tpu.matmul %435, %17, %cst_259 {dimension_numbers = #tpu.dot_dimension_numbers<[1], [0], [0], [1], [0, 0, 1, 1], [], []>} : vector<8x32xf32>, vector<32x32xf32>, vector<8x32xf32> -> vector<8x32xf32>
    %437 = vector.broadcast %18 : vector<1x32xf32> to vector<8x32xf32>
    %438 = arith.addf %436, %437 : vector<8x32xf32>
    %c0_260 = arith.constant 0 : index
    %c0_261 = arith.constant 0 : index
    %439 = vector.load %arg28[%c0_260, %c0_261] : memref<8x96xf32, #tpu.memory_space<vmem>>, vector<8x32xf32>
    tpu.vector_store %arg28[%c0_260, %c0_261], %438 {strides = array<i32>} : memref<8x96xf32, #tpu.memory_space<vmem>>, vector<8x32xf32>,
    %c0_262 = arith.constant 0 : index
    %c0_263 = arith.constant 0 : index
    %440 = vector.load %arg28[%c0_262, %c0_263] : memref<8x96xf32, #tpu.memory_space<vmem>>, vector<8x8xf32>
    %c1_264 = arith.constant 1 : index
    %c0_265 = arith.constant 0 : index
    %c0_266 = arith.constant 0 : index
    %441 = vector.load %arg2[%c1_264, %c0_265, %c0_266] : memref<2x16x32xf32, #tpu.memory_space<vmem>>, vector<1x16x8xf32>
    %442 = vector.shape_cast %441 : vector<1x16x8xf32> to vector<16x8xf32>
    %c1_267 = arith.constant 1 : index
    %c0_268 = arith.constant 0 : index
    %c0_269 = arith.constant 0 : index
    %443 = vector.load %arg3[%c1_267, %c0_268, %c0_269] : memref<2x16x32xf32, #tpu.memory_space<vmem>>, vector<1x16x8xf32>
    %444 = vector.shape_cast %443 : vector<1x16x8xf32> to vector<16x8xf32>
    %cst_270 = arith.constant dense<0.000000e+00> : vector<8x16xf32>
    %445 = tpu.matmul %440, %442, %cst_270 {dimension_numbers = #tpu.dot_dimension_numbers<[1], [1], [0], [0], [0, 0, 1, 0], [], []>} : vector<8x8xf32>, vector<16x8xf32>, vector<8x16xf32> -> vector<8x16xf32>
    %cst_271 = arith.constant 0.353553385 : f32
    %446 = vector.broadcast %cst_271 : f32 to vector<8x16xf32>
    %447 = arith.mulf %445, %446 : vector<8x16xf32>
    %cst_272 = arith.constant dense<0xFF800000> : vector<8xf32>
    %448 = vector.multi_reduction <maximumf>, %447, %cst_272 [1] : vector<8x16xf32> to vector<8xf32>
    %449 = vector.shape_cast %448 : vector<8xf32> to vector<8x1xf32>
    %450 = vector.broadcast %449 : vector<8x1xf32> to vector<8x16xf32>
    %451 = arith.subf %447, %450 : vector<8x16xf32>
    %452 = math.exp %451 : vector<8x16xf32>
    %cst_273 = arith.constant dense<0.000000e+00> : vector<8xf32>
    %453 = vector.multi_reduction <add>, %452, %cst_273 [1] : vector<8x16xf32> to vector<8xf32>
    %454 = vector.shape_cast %453 : vector<8xf32> to vector<8x1xf32>
    %455 = tpu.reciprocal %454 {approx = true} : vector<8x1xf32> -> vector<8x1xf32>
    %456 = vector.broadcast %455 : vector<8x1xf32> to vector<8x16xf32>
    %457 = arith.mulf %452, %456 : vector<8x16xf32>
    %cst_274 = arith.constant dense<0.000000e+00> : vector<8x8xf32>
    %458 = tpu.matmul %457, %444, %cst_274 {dimension_numbers = #tpu.dot_dimension_numbers<[1], [0], [0], [1], [0, 0, 1, 1], [], []>} : vector<8x16xf32>, vector<16x8xf32>, vector<8x8xf32> -> vector<8x8xf32>
    %c0_275 = arith.constant 0 : index
    %c0_276 = arith.constant 0 : index
    %459 = vector.load %arg29[%c0_275, %c0_276] : memref<8x32xf32, #tpu.memory_space<vmem>>, vector<8x8xf32>
    tpu.vector_store %arg29[%c0_275, %c0_276], %458 {strides = array<i32>} : memref<8x32xf32, #tpu.memory_space<vmem>>, vector<8x8xf32>,
    %c0_277 = arith.constant 0 : index
    %c8_278 = arith.constant 8 : index
    %460 = vector.load %arg28[%c0_277, %c8_278] : memref<8x96xf32, #tpu.memory_space<vmem>>, vector<8x8xf32>
    %c1_279 = arith.constant 1 : index
    %c0_280 = arith.constant 0 : index
    %c8_281 = arith.constant 8 : index
    %461 = vector.load %arg2[%c1_279, %c0_280, %c8_281] : memref<2x16x32xf32, #tpu.memory_space<vmem>>, vector<1x16x8xf32>
    %462 = vector.shape_cast %461 : vector<1x16x8xf32> to vector<16x8xf32>
    %c1_282 = arith.constant 1 : index
    %c0_283 = arith.constant 0 : index
    %c8_284 = arith.constant 8 : index
    %463 = vector.load %arg3[%c1_282, %c0_283, %c8_284] : memref<2x16x32xf32, #tpu.memory_space<vmem>>, vector<1x16x8xf32>
    %464 = vector.shape_cast %463 : vector<1x16x8xf32> to vector<16x8xf32>
    %cst_285 = arith.constant dense<0.000000e+00> : vector<8x16xf32>
    %465 = tpu.matmul %460, %462, %cst_285 {dimension_numbers = #tpu.dot_dimension_numbers<[1], [1], [0], [0], [0, 0, 1, 0], [], []>} : vector<8x8xf32>, vector<16x8xf32>, vector<8x16xf32> -> vector<8x16xf32>
    %cst_286 = arith.constant 0.353553385 : f32
    %466 = vector.broadcast %cst_286 : f32 to vector<8x16xf32>
    %467 = arith.mulf %465, %466 : vector<8x16xf32>
    %cst_287 = arith.constant dense<0xFF800000> : vector<8xf32>
    %468 = vector.multi_reduction <maximumf>, %467, %cst_287 [1] : vector<8x16xf32> to vector<8xf32>
    %469 = vector.shape_cast %468 : vector<8xf32> to vector<8x1xf32>
    %470 = vector.broadcast %469 : vector<8x1xf32> to vector<8x16xf32>
    %471 = arith.subf %467, %470 : vector<8x16xf32>
    %472 = math.exp %471 : vector<8x16xf32>
    %cst_288 = arith.constant dense<0.000000e+00> : vector<8xf32>
    %473 = vector.multi_reduction <add>, %472, %cst_288 [1] : vector<8x16xf32> to vector<8xf32>
    %474 = vector.shape_cast %473 : vector<8xf32> to vector<8x1xf32>
    %475 = tpu.reciprocal %474 {approx = true} : vector<8x1xf32> -> vector<8x1xf32>
    %476 = vector.broadcast %475 : vector<8x1xf32> to vector<8x16xf32>
    %477 = arith.mulf %472, %476 : vector<8x16xf32>
    %cst_289 = arith.constant dense<0.000000e+00> : vector<8x8xf32>
    %478 = tpu.matmul %477, %464, %cst_289 {dimension_numbers = #tpu.dot_dimension_numbers<[1], [0], [0], [1], [0, 0, 1, 1], [], []>} : vector<8x16xf32>, vector<16x8xf32>, vector<8x8xf32> -> vector<8x8xf32>
    %c0_290 = arith.constant 0 : index
    %c8_291 = arith.constant 8 : index
    %479 = vector.load %arg29[%c0_290, %c8_291] : memref<8x32xf32, #tpu.memory_space<vmem>>, vector<8x8xf32>
    tpu.vector_store %arg29[%c0_290, %c8_291], %478 {strides = array<i32>} : memref<8x32xf32, #tpu.memory_space<vmem>>, vector<8x8xf32>,
    %c0_292 = arith.constant 0 : index
    %c16_293 = arith.constant 16 : index
    %480 = vector.load %arg28[%c0_292, %c16_293] : memref<8x96xf32, #tpu.memory_space<vmem>>, vector<8x8xf32>
    %c1_294 = arith.constant 1 : index
    %c0_295 = arith.constant 0 : index
    %c16_296 = arith.constant 16 : index
    %481 = vector.load %arg2[%c1_294, %c0_295, %c16_296] : memref<2x16x32xf32, #tpu.memory_space<vmem>>, vector<1x16x8xf32>
    %482 = vector.shape_cast %481 : vector<1x16x8xf32> to vector<16x8xf32>
    %c1_297 = arith.constant 1 : index
    %c0_298 = arith.constant 0 : index
    %c16_299 = arith.constant 16 : index
    %483 = vector.load %arg3[%c1_297, %c0_298, %c16_299] : memref<2x16x32xf32, #tpu.memory_space<vmem>>, vector<1x16x8xf32>
    %484 = vector.shape_cast %483 : vector<1x16x8xf32> to vector<16x8xf32>
    %cst_300 = arith.constant dense<0.000000e+00> : vector<8x16xf32>
    %485 = tpu.matmul %480, %482, %cst_300 {dimension_numbers = #tpu.dot_dimension_numbers<[1], [1], [0], [0], [0, 0, 1, 0], [], []>} : vector<8x8xf32>, vector<16x8xf32>, vector<8x16xf32> -> vector<8x16xf32>
    %cst_301 = arith.constant 0.353553385 : f32
    %486 = vector.broadcast %cst_301 : f32 to vector<8x16xf32>
    %487 = arith.mulf %485, %486 : vector<8x16xf32>
    %cst_302 = arith.constant dense<0xFF800000> : vector<8xf32>
    %488 = vector.multi_reduction <maximumf>, %487, %cst_302 [1] : vector<8x16xf32> to vector<8xf32>
    %489 = vector.shape_cast %488 : vector<8xf32> to vector<8x1xf32>
    %490 = vector.broadcast %489 : vector<8x1xf32> to vector<8x16xf32>
    %491 = arith.subf %487, %490 : vector<8x16xf32>
    %492 = math.exp %491 : vector<8x16xf32>
    %cst_303 = arith.constant dense<0.000000e+00> : vector<8xf32>
    %493 = vector.multi_reduction <add>, %492, %cst_303 [1] : vector<8x16xf32> to vector<8xf32>
    %494 = vector.shape_cast %493 : vector<8xf32> to vector<8x1xf32>
    %495 = tpu.reciprocal %494 {approx = true} : vector<8x1xf32> -> vector<8x1xf32>
    %496 = vector.broadcast %495 : vector<8x1xf32> to vector<8x16xf32>
    %497 = arith.mulf %492, %496 : vector<8x16xf32>
    %cst_304 = arith.constant dense<0.000000e+00> : vector<8x8xf32>
    %498 = tpu.matmul %497, %484, %cst_304 {dimension_numbers = #tpu.dot_dimension_numbers<[1], [0], [0], [1], [0, 0, 1, 1], [], []>} : vector<8x16xf32>, vector<16x8xf32>, vector<8x8xf32> -> vector<8x8xf32>
    %c0_305 = arith.constant 0 : index
    %c16_306 = arith.constant 16 : index
    %499 = vector.load %arg29[%c0_305, %c16_306] : memref<8x32xf32, #tpu.memory_space<vmem>>, vector<8x8xf32>
    tpu.vector_store %arg29[%c0_305, %c16_306], %498 {strides = array<i32>} : memref<8x32xf32, #tpu.memory_space<vmem>>, vector<8x8xf32>,
    %c0_307 = arith.constant 0 : index
    %c24_308 = arith.constant 24 : index
    %500 = vector.load %arg28[%c0_307, %c24_308] : memref<8x96xf32, #tpu.memory_space<vmem>>, vector<8x8xf32>
    %c1_309 = arith.constant 1 : index
    %c0_310 = arith.constant 0 : index
    %c24_311 = arith.constant 24 : index
    %501 = vector.load %arg2[%c1_309, %c0_310, %c24_311] : memref<2x16x32xf32, #tpu.memory_space<vmem>>, vector<1x16x8xf32>
    %502 = vector.shape_cast %501 : vector<1x16x8xf32> to vector<16x8xf32>
    %c1_312 = arith.constant 1 : index
    %c0_313 = arith.constant 0 : index
    %c24_314 = arith.constant 24 : index
    %503 = vector.load %arg3[%c1_312, %c0_313, %c24_314] : memref<2x16x32xf32, #tpu.memory_space<vmem>>, vector<1x16x8xf32>
    %504 = vector.shape_cast %503 : vector<1x16x8xf32> to vector<16x8xf32>
    %cst_315 = arith.constant dense<0.000000e+00> : vector<8x16xf32>
    %505 = tpu.matmul %500, %502, %cst_315 {dimension_numbers = #tpu.dot_dimension_numbers<[1], [1], [0], [0], [0, 0, 1, 0], [], []>} : vector<8x8xf32>, vector<16x8xf32>, vector<8x16xf32> -> vector<8x16xf32>
    %cst_316 = arith.constant 0.353553385 : f32
    %506 = vector.broadcast %cst_316 : f32 to vector<8x16xf32>
    %507 = arith.mulf %505, %506 : vector<8x16xf32>
    %cst_317 = arith.constant dense<0xFF800000> : vector<8xf32>
    %508 = vector.multi_reduction <maximumf>, %507, %cst_317 [1] : vector<8x16xf32> to vector<8xf32>
    %509 = vector.shape_cast %508 : vector<8xf32> to vector<8x1xf32>
    %510 = vector.broadcast %509 : vector<8x1xf32> to vector<8x16xf32>
    %511 = arith.subf %507, %510 : vector<8x16xf32>
    %512 = math.exp %511 : vector<8x16xf32>
    %cst_318 = arith.constant dense<0.000000e+00> : vector<8xf32>
    %513 = vector.multi_reduction <add>, %512, %cst_318 [1] : vector<8x16xf32> to vector<8xf32>
    %514 = vector.shape_cast %513 : vector<8xf32> to vector<8x1xf32>
    %515 = tpu.reciprocal %514 {approx = true} : vector<8x1xf32> -> vector<8x1xf32>
    %516 = vector.broadcast %515 : vector<8x1xf32> to vector<8x16xf32>
    %517 = arith.mulf %512, %516 : vector<8x16xf32>
    %cst_319 = arith.constant dense<0.000000e+00> : vector<8x8xf32>
    %518 = tpu.matmul %517, %504, %cst_319 {dimension_numbers = #tpu.dot_dimension_numbers<[1], [0], [0], [1], [0, 0, 1, 1], [], []>} : vector<8x16xf32>, vector<16x8xf32>, vector<8x8xf32> -> vector<8x8xf32>
    %c0_320 = arith.constant 0 : index
    %c24_321 = arith.constant 24 : index
    %519 = vector.load %arg29[%c0_320, %c24_321] : memref<8x32xf32, #tpu.memory_space<vmem>>, vector<8x8xf32>
    tpu.vector_store %arg29[%c0_320, %c24_321], %518 {strides = array<i32>} : memref<8x32xf32, #tpu.memory_space<vmem>>, vector<8x8xf32>,
    %c0_322 = arith.constant 0 : index
    %c0_323 = arith.constant 0 : index
    %520 = vector.load %arg29[%c0_322, %c0_323] : memref<8x32xf32, #tpu.memory_space<vmem>>, vector<8x32xf32>
    %cst_324 = arith.constant dense<0.000000e+00> : vector<8x32xf32>
    %521 = tpu.matmul %520, %19, %cst_324 {dimension_numbers = #tpu.dot_dimension_numbers<[1], [0], [0], [1], [0, 0, 1, 1], [], []>} : vector<8x32xf32>, vector<32x32xf32>, vector<8x32xf32> -> vector<8x32xf32>
    %522 = vector.broadcast %20 : vector<1x32xf32> to vector<8x32xf32>
    %523 = arith.addf %521, %522 : vector<8x32xf32>
    %524 = arith.addf %435, %523 : vector<8x32xf32>
    %cst_325 = arith.constant dense<0.000000e+00> : vector<8xf32>
    %525 = vector.multi_reduction <add>, %524, %cst_325 [1] : vector<8x32xf32> to vector<8xf32>
    %526 = vector.shape_cast %525 : vector<8xf32> to vector<8x1xf32>
    %cst_326 = arith.constant 3.200000e+01 : f32
    %527 = vector.broadcast %cst_326 : f32 to vector<8x1xf32>
    %528 = arith.divf %526, %527 : vector<8x1xf32>
    %529 = vector.broadcast %528 : vector<8x1xf32> to vector<8x32xf32>
    %530 = arith.subf %524, %529 : vector<8x32xf32>
    %531 = arith.mulf %530, %530 : vector<8x32xf32>
    %cst_327 = arith.constant dense<0.000000e+00> : vector<8xf32>
    %532 = vector.multi_reduction <add>, %531, %cst_327 [1] : vector<8x32xf32> to vector<8xf32>
    %533 = vector.shape_cast %532 : vector<8xf32> to vector<8x1xf32>
    %cst_328 = arith.constant 3.200000e+01 : f32
    %534 = vector.broadcast %cst_328 : f32 to vector<8x1xf32>
    %535 = arith.divf %533, %534 : vector<8x1xf32>
    %536 = vector.broadcast %528 : vector<8x1xf32> to vector<8x32xf32>
    %537 = arith.subf %524, %536 : vector<8x32xf32>
    %cst_329 = arith.constant 9.99999974E-6 : f32
    %538 = vector.broadcast %cst_329 : f32 to vector<8x1xf32>
    %539 = arith.addf %535, %538 : vector<8x1xf32>
    %540 = math.rsqrt %539 : vector<8x1xf32>
    %541 = vector.broadcast %540 : vector<8x1xf32> to vector<8x32xf32>
    %542 = arith.mulf %537, %541 : vector<8x32xf32>
    %543 = vector.broadcast %31 : vector<1x32xf32> to vector<8x32xf32>
    %544 = arith.mulf %542, %543 : vector<8x32xf32>
    %545 = vector.broadcast %32 : vector<1x32xf32> to vector<8x32xf32>
    %546 = arith.addf %544, %545 : vector<8x32xf32>
    %cst_330 = arith.constant dense<0.000000e+00> : vector<8x64xf32>
    %547 = tpu.matmul %546, %21, %cst_330 {dimension_numbers = #tpu.dot_dimension_numbers<[1], [0], [0], [1], [0, 0, 1, 1], [], []>} : vector<8x32xf32>, vector<32x64xf32>, vector<8x64xf32> -> vector<8x64xf32>
    %548 = vector.broadcast %22 : vector<1x64xf32> to vector<8x64xf32>
    %549 = arith.addf %547, %548 : vector<8x64xf32>
    %cst_331 = arith.constant 0.000000e+00 : f32
    %550 = vector.broadcast %cst_331 : f32 to vector<8x64xf32>
    %551 = arith.maximumf %549, %550 : vector<8x64xf32>
    %cst_332 = arith.constant dense<0.000000e+00> : vector<8x32xf32>
    %552 = tpu.matmul %551, %23, %cst_332 {dimension_numbers = #tpu.dot_dimension_numbers<[1], [0], [0], [1], [0, 0, 1, 1], [], []>} : vector<8x64xf32>, vector<64x32xf32>, vector<8x32xf32> -> vector<8x32xf32>
    %553 = vector.broadcast %24 : vector<1x32xf32> to vector<8x32xf32>
    %554 = arith.addf %552, %553 : vector<8x32xf32>
    %555 = arith.addf %546, %554 : vector<8x32xf32>
    %cst_333 = arith.constant dense<0.000000e+00> : vector<8xf32>
    %556 = vector.multi_reduction <add>, %555, %cst_333 [1] : vector<8x32xf32> to vector<8xf32>
    %557 = vector.shape_cast %556 : vector<8xf32> to vector<8x1xf32>
    %cst_334 = arith.constant 3.200000e+01 : f32
    %558 = vector.broadcast %cst_334 : f32 to vector<8x1xf32>
    %559 = arith.divf %557, %558 : vector<8x1xf32>
    %560 = vector.broadcast %559 : vector<8x1xf32> to vector<8x32xf32>
    %561 = arith.subf %555, %560 : vector<8x32xf32>
    %562 = arith.mulf %561, %561 : vector<8x32xf32>
    %cst_335 = arith.constant dense<0.000000e+00> : vector<8xf32>
    %563 = vector.multi_reduction <add>, %562, %cst_335 [1] : vector<8x32xf32> to vector<8xf32>
    %564 = vector.shape_cast %563 : vector<8xf32> to vector<8x1xf32>
    %cst_336 = arith.constant 3.200000e+01 : f32
    %565 = vector.broadcast %cst_336 : f32 to vector<8x1xf32>
    %566 = arith.divf %564, %565 : vector<8x1xf32>
    %567 = vector.broadcast %559 : vector<8x1xf32> to vector<8x32xf32>
    %568 = arith.subf %555, %567 : vector<8x32xf32>
    %cst_337 = arith.constant 9.99999974E-6 : f32
    %569 = vector.broadcast %cst_337 : f32 to vector<8x1xf32>
    %570 = arith.addf %566, %569 : vector<8x1xf32>
    %571 = math.rsqrt %570 : vector<8x1xf32>
    %572 = vector.broadcast %571 : vector<8x1xf32> to vector<8x32xf32>
    %573 = arith.mulf %568, %572 : vector<8x32xf32>
    %574 = vector.broadcast %33 : vector<1x32xf32> to vector<8x32xf32>
    %575 = arith.mulf %573, %574 : vector<8x32xf32>
    %576 = vector.broadcast %34 : vector<1x32xf32> to vector<8x32xf32>
    %577 = arith.addf %575, %576 : vector<8x32xf32>
    %578 = vector.broadcast %10 : vector<8x1xf32> to vector<8x32xf32>
    %579 = arith.mulf %577, %578 : vector<8x32xf32>
    %cst_338 = arith.constant dense<0.000000e+00> : vector<32xf32>
    %580 = vector.multi_reduction <add>, %579, %cst_338 [0] : vector<8x32xf32> to vector<32xf32>
    %581 = vector.shape_cast %580 : vector<32xf32> to vector<1x32xf32>
    %cst_339 = arith.constant dense<0.000000e+00> : vector<1x2xf32>
    %582 = tpu.matmul %581, %25, %cst_339 {dimension_numbers = #tpu.dot_dimension_numbers<[1], [0], [0], [1], [0, 0, 1, 1], [], []>} : vector<1x32xf32>, vector<32x2xf32>, vector<1x2xf32> -> vector<1x2xf32>
    %583 = arith.addf %582, %26 : vector<1x2xf32>
    %c1_340 = arith.constant 1 : index
    %c0_341 = arith.constant 0 : index
    %584 = vector.load %arg27[%c1_340, %c0_341] : memref<2x2xf32, #tpu.memory_space<vmem>>, vector<1x2xf32>
    tpu.vector_store %arg27[%c1_340, %c0_341], %583 {strides = array<i32>} : memref<2x2xf32, #tpu.memory_space<vmem>>, vector<1x2xf32>,
    %cst_342 = arith.constant dense<0.000000e+00> : vector<1x32xf32>
    %585 = tpu.matmul %583, %27, %cst_342 {dimension_numbers = #tpu.dot_dimension_numbers<[1], [0], [0], [1], [0, 0, 1, 1], [], []>} : vector<1x2xf32>, vector<2x32xf32>, vector<1x32xf32> -> vector<1x32xf32>
    %586 = arith.addf %585, %28 : vector<1x32xf32>
    %587 = vector.shape_cast %12 : vector<8x1xi1> to vector<8x1xi1>
    %588 = vector.broadcast %587 : vector<8x1xi1> to vector<8x32xi1>
    %589 = vector.shape_cast %586 : vector<1x32xf32> to vector<1x32xf32>
    %590 = vector.broadcast %589 : vector<1x32xf32> to vector<8x32xf32>
    %591 = arith.select %588, %590, %577 : vector<8x32xi1>, vector<8x32xf32>
    %c1_343 = arith.constant 1 : index
    %c0_344 = arith.constant 0 : index
    %c0_345 = arith.constant 0 : index
    %592 = vector.load %arg26[%c1_343, %c0_344, %c0_345] : memref<2x8x32xf32, #tpu.memory_space<vmem>>, vector<1x8x32xf32>
    %593 = vector.shape_cast %592 : vector<1x8x32xf32> to vector<8x32xf32>
    %594 = vector.shape_cast %591 : vector<8x32xf32> to vector<1x8x32xf32>
    tpu.vector_store %arg26[%c1_343, %c0_344, %c0_345], %594 {strides = array<i32>} : memref<2x8x32xf32, #tpu.memory_space<vmem>>, vector<1x8x32xf32>,
    return
  }
}

</mosaic_0001>

<llo_original>
// kernel: custom-call
$region0: #{custom-call}
  %s0 = inlined_call_operand.vmem [shape: f32[2,8,2], index: 0, kind: output, shape index: {}]

// kernel: forward.5
$region0: #{forward.5}
  #allocation0 [shape = 'u32[]', space=smem, size = 0x4, offset = 0x4, fixed_abs, tag = 'smem constant byte address 0x4 - core index']
  #allocation1 [shape = 'u32[144,128]{1,0:T(1,128)}', space=vmem, size = 0x12000, scoped, tag = 'internal scratch']
  %s0 = inlined_call_operand.vmem [shape: f32[2,16,64], index: 0, kind: input, shape index: {}]
  %s1 = inlined_call_operand.vmem [shape: f32[2,2], index: 1, kind: input, shape index: {}]
  %s2 = inlined_call_operand.vmem [shape: f32[64,32], index: 2, kind: input, shape index: {}]
  %s3 = inlined_call_operand.vmem [shape: f32[1,32], index: 3, kind: input, shape index: {}]
  %s4 = inlined_call_operand.vmem [shape: f32[32,32], index: 4, kind: input, shape index: {}]
  %s5 = inlined_call_operand.vmem [shape: f32[1,32], index: 5, kind: input, shape index: {}]
  %s6 = inlined_call_operand.vmem [shape: f32[32,32], index: 6, kind: input, shape index: {}]
  %s7 = inlined_call_operand.vmem [shape: f32[1,32], index: 7, kind: input, shape index: {}]
  %s8 = inlined_call_operand.vmem [shape: f32[2,32], index: 8, kind: input, shape index: {}]
  %s9 = inlined_call_operand.vmem [shape: f32[1,32], index: 9, kind: input, shape index: {}]
  %s10 = inlined_call_operand.vmem [shape: f32[2,16,32], index: 10, kind: output, shape index: {0}]
  %s11 = inlined_call_operand.vmem [shape: f32[2,16,32], index: 11, kind: output, shape index: {1}]
  %s12 = inlined_call_operand.vmem [shape: f32[2,8,32], index: 12, kind: output, shape index: {2}]
  %13 = xla_tuple %s10, %s11, %s12
  %s14 = sld [smem:[#allocation0]]
  $region66: #{forward.5} parent=0
    _
  %s16 = ssub.s32 1, %s14
  %s17 = scalar_select 0, %s16, %s14
  // Predicated region
  $region2: #{forward.5} parent=0 // pred_check
    _
  $region3: #{forward.5} parent=0 // pred_check_branch
    %19 = sbr.rel (0) target = $region5
  $region4: #{forward.5} parent=0 // pred_region
    _
  $region5: #{forward.5} parent=0 // pred_fallthru
    _
  // Predicated region
  $region6: #{forward.5} parent=0 // pred_check
    _
  $region7: #{forward.5} parent=0 // pred_check_branch
    %21 = sbr.rel (0) target = $region9
  $region8: #{forward.5} parent=0 // pred_region
    _
  $region9: #{forward.5} parent=0 // pred_fallthru
    _
  // Predicated region
  $region10: #{forward.5} parent=0 // pred_check
    _
  $region11: #{forward.5} parent=0 // pred_check_branch
    %23 = sbr.rel (0) target = $region13
  $region12: #{forward.5} parent=0 // pred_region
    _
  $region13: #{forward.5} parent=0 // pred_fallthru
    _
  // Predicated region
  $region14: #{forward.5} parent=0 // pred_check
    _
  $region15: #{forward.5} parent=0 // pred_check_branch
    %25 = sbr.rel (0) target = $region17
  $region16: #{forward.5} parent=0 // pred_region
    _
  $region17: #{forward.5} parent=0 // pred_fallthru
    _
  // Predicated region
  $region18: #{forward.5} parent=0 // pred_check
    _
  $region19: #{forward.5} parent=0 // pred_check_branch
    %27 = sbr.rel (0) target = $region21
  $region20: #{forward.5} parent=0 // pred_region
    _
  $region21: #{forward.5} parent=0 // pred_fallthru
    _
  // Predicated region
  $region22: #{forward.5} parent=0 // pred_check
    _
  $region23: #{forward.5} parent=0 // pred_check_branch
    %29 = sbr.rel (0) target = $region25
  $region24: #{forward.5} parent=0 // pred_region
    _
  $region25: #{forward.5} parent=0 // pred_fallthru
    _
  // Predicated region
  $region26: #{forward.5} parent=0 // pred_check
    _
  $region27: #{forward.5} parent=0 // pred_check_branch
    %31 = sbr.rel (0) target = $region29
  $region28: #{forward.5} parent=0 // pred_region
    _
  $region29: #{forward.5} parent=0 // pred_fallthru
    _
  // Predicated region
  $region30: #{forward.5} parent=0 // pred_check
    _
  $region31: #{forward.5} parent=0 // pred_check_branch
    %33 = sbr.rel (0) target = $region33
  $region32: #{forward.5} parent=0 // pred_region
    _
  $region33: #{forward.5} parent=0 // pred_fallthru
    _
  // Predicated region
  $region34: #{forward.5} parent=0 // pred_check
    _
  $region35: #{forward.5} parent=0 // pred_check_branch
    %35 = sbr.rel (0) target = $region37
  $region36: #{forward.5} parent=0 // pred_region
    _
  $region37: #{forward.5} parent=0 // pred_fallthru
    _
  // Predicated region
  $region38: #{forward.5} parent=0 // pred_check
    _
  $region39: #{forward.5} parent=0 // pred_check_branch
    %37 = sbr.rel (0) target = $region41
  $region40: #{forward.5} parent=0 // pred_region
    _
  $region41: #{forward.5} parent=0 // pred_fallthru
    _
  %v38 = vlaneseq
  %v39 = vshrl.u32 %v38, 7
  %vm40 = vcmp.eq.s32.totalorder %v39, 0
  %v41 = vld [vmem:[%s0] sm:$0xff]
  %v42 = vld [vmem:[%s0 + $0x8] sm:$0xff]
  %v43 = vld [vmem:[%s2] sm:$0xff]
  %v44 = vld [vmem:[%s2 + $0x8] sm:$0xff]
  %v45 = vld [vmem:[%s2 + $0x10] sm:$0xff]
  %v46 = vld [vmem:[%s2 + $0x18] sm:$0xff]
  %v47 = vld [vmem:[%s2 + $0x20] sm:$0xff]
  %v48 = vld [vmem:[%s2 + $0x28] sm:$0xff]
  %v49 = vld [vmem:[%s2 + $0x30] sm:$0xff]
  %v50 = vld [vmem:[%s2 + $0x38] sm:$0xff]
  %v51 = vld [vmem:[%s3] sm:$0x1]
  %v53 = vlaneseq
  %v54 = vshrl.u32 %v53, 7
  %v55 = vsub.s32 0, %v54
  %v56 = vrot.slane %v51, %v55
  %vm58 = vcmask 523264
  %v60 = vsel %vm58, %v41, 0
  %v63 = vsel %vm58, %v42, 0
  %65 = vmatprep.subr.mxu0 0.0
  %66 = vmatpush1.msra.mxu0 0.0
  %67 = vmatprep.subr.mxu0 0.0
  %68 = vmatpush1.msra.mxu0 0.0
  %69 = vmatprep.subr.mxu0 0.0
  %70 = vmatpush1.msra.mxu0 0.0
  %71 = vmatprep.subr.mxu0 0.0
  %72 = vmatpush1.msra.mxu0 0.0
  %73 = vmatprep.subr.mxu0 0.0
  %74 = vmatpush1.msra.mxu0 0.0
  %75 = vmatprep.subr.mxu0 0.0
  %76 = vmatpush1.msra.mxu0 0.0
  %77 = vmatprep.subr.mxu0 0.0
  %78 = vmatpush1.msra.mxu0 0.0
  %79 = vmatprep.subr.mxu0 0.0
  %80 = vmatpush1.msra.mxu0 0.0
  %81 = vmatprep.subr.mxu0 0.0
  %82 = vmatpush1.msra.mxu0 %v50
  %83 = vmatprep.subr.mxu0 0.0
  %84 = vmatpush1.msra.mxu0 %v49
  %85 = vmatprep.subr.mxu0 0.0
  %86 = vmatpush1.msra.mxu0 %v48
  %87 = vmatprep.subr.mxu0 0.0
  %88 = vmatpush1.msra.mxu0 %v47
  %89 = vmatprep.subr.mxu0 0.0
  %90 = vmatpush1.msra.mxu0 %v46
  %91 = vmatprep.subr.mxu0 0.0
  %92 = vmatpush1.msra.mxu0 %v45
  %93 = vmatprep.subr.mxu0 0.0
  %94 = vmatpush1.msra.mxu0 %v44
  %95 = vmatprep.subr.mxu0 0.0
  %96 = vmatpush1.msra.mxu0 %v43
  %97 = vmatprep.subr.mxu0 0.0
  %98 = vmatpush2.msra.mxu0 0.0
  %99 = vmatprep.subr.mxu0 0.0
  %100 = vmatpush2.msra.mxu0 0.0
  %101 = vmatprep.subr.mxu0 0.0
  %102 = vmatpush2.msra.mxu0 0.0
  %103 = vmatprep.subr.mxu0 0.0
  %104 = vmatpush2.msra.mxu0 0.0
  %105 = vmatprep.subr.mxu0 0.0
  %106 = vmatpush2.msra.mxu0 0.0
  %107 = vmatprep.subr.mxu0 0.0
  %108 = vmatpush2.msra.mxu0 0.0
  %109 = vmatprep.subr.mxu0 0.0
  %110 = vmatpush2.msra.mxu0 0.0
  %111 = vmatprep.subr.mxu0 0.0
  %112 = vmatpush2.msra.mxu0 0.0
  %113 = vmatprep.subr.mxu0 0.0
  %114 = vmatpush2.msra.mxu0 0.0
  %115 = vmatprep.subr.mxu0 0.0
  %116 = vmatpush2.msra.mxu0 0.0
  %117 = vmatprep.subr.mxu0 0.0
  %118 = vmatpush2.msra.mxu0 0.0
  %119 = vmatprep.subr.mxu0 0.0
  %120 = vmatpush2.msra.mxu0 0.0
  %121 = vmatprep.subr.mxu0 0.0
  %122 = vmatpush2.msra.mxu0 0.0
  %123 = vmatprep.subr.mxu0 0.0
  %124 = vmatpush2.msra.mxu0 0.0
  %125 = vmatprep.subr.mxu0 0.0
  %126 = vmatpush2.msra.mxu0 0.0
  %127 = vmatprep.subr.mxu0 0.0
  %128 = vmatpush2.msra.mxu0 0.0
  %129 = vmatprep.mubr.f32.mxu0 0.0
  %130 = vmatmul.mubr.f32.gmra.mxu0 %v60
  %v131 = vpop.f32.mrf.mxu0
  %v132 = vadd.f32 %v56, %v131
  %v133 = vpop.f32.mrf.mxu0
  %134 = vmatprep.mubr.f32.mxu0 0.0
  %135 = vmatmul.mubr.f32.gmra.mxu0 %v63
  %v136 = vpop.f32.mrf.mxu0
  %v137 = vadd.f32 %v56, %v136
  %v138 = vpop.f32.mrf.mxu0
  %139 = vdwg.mxu0
  %v140 = vld [vmem:[%s4] sm:$0xff]
  %v141 = vld [vmem:[%s4 + $0x8] sm:$0xff]
  %v142 = vld [vmem:[%s4 + $0x10] sm:$0xff]
  %v143 = vld [vmem:[%s4 + $0x18] sm:$0xff]
  %v144 = vld [vmem:[%s5] sm:$0x1]
  %v146 = vlaneseq
  %v147 = vshrl.u32 %v146, 7
  %v148 = vsub.s32 0, %v147
  %v149 = vrot.slane %v144, %v148
  %vm151 = vcmask 261120
  %v153 = vsel %vm151, %v132, 0
  %v156 = vsel %vm151, %v137, 0
  %158 = vmatprep.subr.mxu0 0.0
  %159 = vmatpush1.msra.mxu0 0.0
  %160 = vmatprep.subr.mxu0 0.0
  %161 = vmatpush1.msra.mxu0 0.0
  %162 = vmatprep.subr.mxu0 0.0
  %163 = vmatpush1.msra.mxu0 0.0
  %164 = vmatprep.subr.mxu0 0.0
  %165 = vmatpush1.msra.mxu0 0.0
  %166 = vmatprep.subr.mxu0 0.0
  %167 = vmatpush1.msra.mxu0 0.0
  %168 = vmatprep.subr.mxu0 0.0
  %169 = vmatpush1.msra.mxu0 0.0
  %170 = vmatprep.subr.mxu0 0.0
  %171 = vmatpush1.msra.mxu0 0.0
  %172 = vmatprep.subr.mxu0 0.0
  %173 = vmatpush1.msra.mxu0 0.0
  %174 = vmatprep.subr.mxu0 0.0
  %175 = vmatpush1.msra.mxu0 0.0
  %176 = vmatprep.subr.mxu0 0.0
  %177 = vmatpush1.msra.mxu0 0.0
  %178 = vmatprep.subr.mxu0 0.0
  %179 = vmatpush1.msra.mxu0 0.0
  %180 = vmatprep.subr.mxu0 0.0
  %181 = vmatpush1.msra.mxu0 0.0
  %182 = vmatprep.subr.mxu0 0.0
  %183 = vmatpush1.msra.mxu0 %v143
  %184 = vmatprep.subr.mxu0 0.0
  %185 = vmatpush1.msra.mxu0 %v142
  %186 = vmatprep.subr.mxu0 0.0
  %187 = vmatpush1.msra.mxu0 %v141
  %188 = vmatprep.subr.mxu0 0.0
  %189 = vmatpush1.msra.mxu0 %v140
  %190 = vmatprep.subr.mxu0 0.0
  %191 = vmatpush2.msra.mxu0 0.0
  %192 = vmatprep.subr.mxu0 0.0
  %193 = vmatpush2.msra.mxu0 0.0
  %194 = vmatprep.subr.mxu0 0.0
  %195 = vmatpush2.msra.mxu0 0.0
  %196 = vmatprep.subr.mxu0 0.0
  %197 = vmatpush2.msra.mxu0 0.0
  %198 = vmatprep.subr.mxu0 0.0
  %199 = vmatpush2.msra.mxu0 0.0
  %200 = vmatprep.subr.mxu0 0.0
  %201 = vmatpush2.msra.mxu0 0.0
  %202 = vmatprep.subr.mxu0 0.0
  %203 = vmatpush2.msra.mxu0 0.0
  %204 = vmatprep.subr.mxu0 0.0
  %205 = vmatpush2.msra.mxu0 0.0
  %206 = vmatprep.subr.mxu0 0.0
  %207 = vmatpush2.msra.mxu0 0.0
  %208 = vmatprep.subr.mxu0 0.0
  %209 = vmatpush2.msra.mxu0 0.0
  %210 = vmatprep.subr.mxu0 0.0
  %211 = vmatpush2.msra.mxu0 0.0
  %212 = vmatprep.subr.mxu0 0.0
  %213 = vmatpush2.msra.mxu0 0.0
  %214 = vmatprep.subr.mxu0 0.0
  %215 = vmatpush2.msra.mxu0 0.0
  %216 = vmatprep.subr.mxu0 0.0
  %217 = vmatpush2.msra.mxu0 0.0
  %218 = vmatprep.subr.mxu0 0.0
  %219 = vmatpush2.msra.mxu0 0.0
  %220 = vmatprep.subr.mxu0 0.0
  %221 = vmatpush2.msra.mxu0 0.0
  %222 = vmatprep.mubr.f32.mxu0 0.0
  %223 = vmatmul.mubr.f32.gmra.mxu0 %v153
  %v224 = vpop.f32.mrf.mxu0
  %v225 = vadd.f32 %v149, %v224
  %v226 = vpop.f32.mrf.mxu0
  %227 = vmatprep.mubr.f32.mxu0 0.0
  %228 = vmatmul.mubr.f32.gmra.mxu0 %v156
  %v229 = vpop.f32.mrf.mxu0
  %v230 = vadd.f32 %v149, %v229
  %v231 = vpop.f32.mrf.mxu0
  %232 = vdwg.mxu0
  %233 = vst.msk [vmem:[%s10] sm:$0xff] %vm151, %v225
  %234 = vst.msk [vmem:[%s10 + $0x8] sm:$0xff] %vm151, %v230
  %v235 = vld [vmem:[%s6] sm:$0xff]
  %v236 = vld [vmem:[%s6 + $0x8] sm:$0xff]
  %v237 = vld [vmem:[%s6 + $0x10] sm:$0xff]
  %v238 = vld [vmem:[%s6 + $0x18] sm:$0xff]
  %v239 = vld [vmem:[%s7] sm:$0x1]
  %v241 = vlaneseq
  %v242 = vshrl.u32 %v241, 7
  %v243 = vsub.s32 0, %v242
  %v244 = vrot.slane %v239, %v243
  %246 = vmatprep.subr.mxu0 0.0
  %247 = vmatpush1.msra.mxu0 0.0
  %248 = vmatprep.subr.mxu0 0.0
  %249 = vmatpush1.msra.mxu0 0.0
  %250 = vmatprep.subr.mxu0 0.0
  %251 = vmatpush1.msra.mxu0 0.0
  %252 = vmatprep.subr.mxu0 0.0
  %253 = vmatpush1.msra.mxu0 0.0
  %254 = vmatprep.subr.mxu0 0.0
  %255 = vmatpush1.msra.mxu0 0.0
  %256 = vmatprep.subr.mxu0 0.0
  %257 = vmatpush1.msra.mxu0 0.0
  %258 = vmatprep.subr.mxu0 0.0
  %259 = vmatpush1.msra.mxu0 0.0
  %260 = vmatprep.subr.mxu0 0.0
  %261 = vmatpush1.msra.mxu0 0.0
  %262 = vmatprep.subr.mxu0 0.0
  %263 = vmatpush1.msra.mxu0 0.0
  %264 = vmatprep.subr.mxu0 0.0
  %265 = vmatpush1.msra.mxu0 0.0
  %266 = vmatprep.subr.mxu0 0.0
  %267 = vmatpush1.msra.mxu0 0.0
  %268 = vmatprep.subr.mxu0 0.0
  %269 = vmatpush1.msra.mxu0 0.0
  %270 = vmatprep.subr.mxu0 0.0
  %271 = vmatpush1.msra.mxu0 %v238
  %272 = vmatprep.subr.mxu0 0.0
  %273 = vmatpush1.msra.mxu0 %v237
  %274 = vmatprep.subr.mxu0 0.0
  %275 = vmatpush1.msra.mxu0 %v236
  %276 = vmatprep.subr.mxu0 0.0
  %277 = vmatpush1.msra.mxu0 %v235
  %278 = vmatprep.subr.mxu0 0.0
  %279 = vmatpush2.msra.mxu0 0.0
  %280 = vmatprep.subr.mxu0 0.0
  %281 = vmatpush2.msra.mxu0 0.0
  %282 = vmatprep.subr.mxu0 0.0
  %283 = vmatpush2.msra.mxu0 0.0
  %284 = vmatprep.subr.mxu0 0.0
  %285 = vmatpush2.msra.mxu0 0.0
  %286 = vmatprep.subr.mxu0 0.0
  %287 = vmatpush2.msra.mxu0 0.0
  %288 = vmatprep.subr.mxu0 0.0
  %289 = vmatpush2.msra.mxu0 0.0
  %290 = vmatprep.subr.mxu0 0.0
  %291 = vmatpush2.msra.mxu0 0.0
  %292 = vmatprep.subr.mxu0 0.0
  %293 = vmatpush2.msra.mxu0 0.0
  %294 = vmatprep.subr.mxu0 0.0
  %295 = vmatpush2.msra.mxu0 0.0
  %296 = vmatprep.subr.mxu0 0.0
  %297 = vmatpush2.msra.mxu0 0.0
  %298 = vmatprep.subr.mxu0 0.0
  %299 = vmatpush2.msra.mxu0 0.0
  %300 = vmatprep.subr.mxu0 0.0
  %301 = vmatpush2.msra.mxu0 0.0
  %302 = vmatprep.subr.mxu0 0.0
  %303 = vmatpush2.msra.mxu0 0.0
  %304 = vmatprep.subr.mxu0 0.0
  %305 = vmatpush2.msra.mxu0 0.0
  %306 = vmatprep.subr.mxu0 0.0
  %307 = vmatpush2.msra.mxu0 0.0
  %308 = vmatprep.subr.mxu0 0.0
  %309 = vmatpush2.msra.mxu0 0.0
  %310 = vmatprep.mubr.f32.mxu0 0.0
  %311 = vmatmul.mubr.f32.gmra.mxu0 %v153
  %v312 = vpop.f32.mrf.mxu0
  %v313 = vadd.f32 %v244, %v312
  %v314 = vpop.f32.mrf.mxu0
  %315 = vmatprep.mubr.f32.mxu0 0.0
  %316 = vmatmul.mubr.f32.gmra.mxu0 %v156
  %v317 = vpop.f32.mrf.mxu0
  %v318 = vadd.f32 %v244, %v317
  %v319 = vpop.f32.mrf.mxu0
  %320 = vdwg.mxu0
  %321 = vst.msk [vmem:[%s11] sm:$0xff] %vm151, %v313
  %322 = vst.msk [vmem:[%s11 + $0x8] sm:$0xff] %vm151, %v318
  %v323 = vld [vmem:[%s1] sm:$0x1]
  %v324 = vld [vmem:[%s8] sm:$0x3]
  %v325 = vld [vmem:[%s9] sm:$0x1]
  %vm326 = vcmask 15360
  %v328 = vsel %vm326, %v323, 0
  %vm330 = vcmask 1041408
  %v332 = vsel %vm330, %v324, 0
  %334 = vmatprep.subr.mxu0 0.0
  %335 = vmatpush1.msra.mxu0 0.0
  %336 = vmatprep.subr.mxu0 0.0
  %337 = vmatpush1.msra.mxu0 0.0
  %338 = vmatprep.subr.mxu0 0.0
  %339 = vmatpush1.msra.mxu0 0.0
  %340 = vmatprep.subr.mxu0 0.0
  %341 = vmatpush1.msra.mxu0 0.0
  %342 = vmatprep.subr.mxu0 0.0
  %343 = vmatpush1.msra.mxu0 0.0
  %344 = vmatprep.subr.mxu0 0.0
  %345 = vmatpush1.msra.mxu0 0.0
  %346 = vmatprep.subr.mxu0 0.0
  %347 = vmatpush1.msra.mxu0 0.0
  %348 = vmatprep.subr.mxu0 0.0
  %349 = vmatpush1.msra.mxu0 0.0
  %350 = vmatprep.subr.mxu0 0.0
  %351 = vmatpush1.msra.mxu0 0.0
  %352 = vmatprep.subr.mxu0 0.0
  %353 = vmatpush1.msra.mxu0 0.0
  %354 = vmatprep.subr.mxu0 0.0
  %355 = vmatpush1.msra.mxu0 0.0
  %356 = vmatprep.subr.mxu0 0.0
  %357 = vmatpush1.msra.mxu0 0.0
  %358 = vmatprep.subr.mxu0 0.0
  %359 = vmatpush1.msra.mxu0 0.0
  %360 = vmatprep.subr.mxu0 0.0
  %361 = vmatpush1.msra.mxu0 0.0
  %362 = vmatprep.subr.mxu0 0.0
  %363 = vmatpush1.msra.mxu0 0.0
  %364 = vmatprep.subr.mxu0 0.0
  %365 = vmatpush1.msra.mxu0 %v332
  %366 = vmatprep.subr.mxu0 0.0
  %367 = vmatpush2.msra.mxu0 0.0
  %368 = vmatprep.subr.mxu0 0.0
  %369 = vmatpush2.msra.mxu0 0.0
  %370 = vmatprep.subr.mxu0 0.0
  %371 = vmatpush2.msra.mxu0 0.0
  %372 = vmatprep.subr.mxu0 0.0
  %373 = vmatpush2.msra.mxu0 0.0
  %374 = vmatprep.subr.mxu0 0.0
  %375 = vmatpush2.msra.mxu0 0.0
  %376 = vmatprep.subr.mxu0 0.0
  %377 = vmatpush2.msra.mxu0 0.0
  %378 = vmatprep.subr.mxu0 0.0
  %379 = vmatpush2.msra.mxu0 0.0
  %380 = vmatprep.subr.mxu0 0.0
  %381 = vmatpush2.msra.mxu0 0.0
  %382 = vmatprep.subr.mxu0 0.0
  %383 = vmatpush2.msra.mxu0 0.0
  %384 = vmatprep.subr.mxu0 0.0
  %385 = vmatpush2.msra.mxu0 0.0
  %386 = vmatprep.subr.mxu0 0.0
  %387 = vmatpush2.msra.mxu0 0.0
  %388 = vmatprep.subr.mxu0 0.0
  %389 = vmatpush2.msra.mxu0 0.0
  %390 = vmatprep.subr.mxu0 0.0
  %391 = vmatpush2.msra.mxu0 0.0
  %392 = vmatprep.subr.mxu0 0.0
  %393 = vmatpush2.msra.mxu0 0.0
  %394 = vmatprep.subr.mxu0 0.0
  %395 = vmatpush2.msra.mxu0 0.0
  %396 = vmatprep.subr.mxu0 0.0
  %397 = vmatpush2.msra.mxu0 0.0
  %398 = vmatprep.mubr.f32.mxu0 0.0
  %399 = vmatmul.mubr.f32.gmra.mxu0 %v328
  %v400 = vpop.f32.mrf.mxu0
  %v401 = vadd.f32 %v325, %v400
  %v402 = vpop.f32.mrf.mxu0
  %403 = vdwg.mxu0
  %v404 = vsel %vm40, 1, 0
  %vm405 = vcmp.eq.s32.totalorder %v404, 1
  %v406 = vlaneseq
  %v407 = vshrl.u32 %v406, 7
  %v408 = vsub.s32 0, %v407
  %v409 = vrot.slane %v401, %v408
  %v410 = vsel %vm405, %v409, 0.0
  %411 = vst.msk [vmem:[%s12] sm:$0xff] %vm151, %v410
  %s412 = scalar_lea.vmem %s0, 16
  %v413 = vld [vmem:[%s412] sm:$0xff]
  %v414 = vld [vmem:[%s412 + $0x8] sm:$0xff]
  %v415 = vld [vmem:[%s2] sm:$0xff]
  %v416 = vld [vmem:[%s2 + $0x8] sm:$0xff]
  %v417 = vld [vmem:[%s2 + $0x10] sm:$0xff]
  %v418 = vld [vmem:[%s2 + $0x18] sm:$0xff]
  %v419 = vld [vmem:[%s2 + $0x20] sm:$0xff]
  %v420 = vld [vmem:[%s2 + $0x28] sm:$0xff]
  %v421 = vld [vmem:[%s2 + $0x30] sm:$0xff]
  %v422 = vld [vmem:[%s2 + $0x38] sm:$0xff]
  %v423 = vld [vmem:[%s3] sm:$0x1]
  %v425 = vlaneseq
  %v426 = vshrl.u32 %v425, 7
  %v427 = vsub.s32 0, %v426
  %v428 = vrot.slane %v423, %v427
  %v431 = vsel %vm58, %v413, 0
  %v434 = vsel %vm58, %v414, 0
  %436 = vmatprep.subr.mxu0 0.0
  %437 = vmatpush1.msra.mxu0 0.0
  %438 = vmatprep.subr.mxu0 0.0
  %439 = vmatpush1.msra.mxu0 0.0
  %440 = vmatprep.subr.mxu0 0.0
  %441 = vmatpush1.msra.mxu0 0.0
  %442 = vmatprep.subr.mxu0 0.0
  %443 = vmatpush1.msra.mxu0 0.0
  %444 = vmatprep.subr.mxu0 0.0
  %445 = vmatpush1.msra.mxu0 0.0
  %446 = vmatprep.subr.mxu0 0.0
  %447 = vmatpush1.msra.mxu0 0.0
  %448 = vmatprep.subr.mxu0 0.0
  %449 = vmatpush1.msra.mxu0 0.0
  %450 = vmatprep.subr.mxu0 0.0
  %451 = vmatpush1.msra.mxu0 0.0
  %452 = vmatprep.subr.mxu0 0.0
  %453 = vmatpush1.msra.mxu0 %v422
  %454 = vmatprep.subr.mxu0 0.0
  %455 = vmatpush1.msra.mxu0 %v421
  %456 = vmatprep.subr.mxu0 0.0
  %457 = vmatpush1.msra.mxu0 %v420
  %458 = vmatprep.subr.mxu0 0.0
  %459 = vmatpush1.msra.mxu0 %v419
  %460 = vmatprep.subr.mxu0 0.0
  %461 = vmatpush1.msra.mxu0 %v418
  %462 = vmatprep.subr.mxu0 0.0
  %463 = vmatpush1.msra.mxu0 %v417
  %464 = vmatprep.subr.mxu0 0.0
  %465 = vmatpush1.msra.mxu0 %v416
  %466 = vmatprep.subr.mxu0 0.0
  %467 = vmatpush1.msra.mxu0 %v415
  %468 = vmatprep.subr.mxu0 0.0
  %469 = vmatpush2.msra.mxu0 0.0
  %470 = vmatprep.subr.mxu0 0.0
  %471 = vmatpush2.msra.mxu0 0.0
  %472 = vmatprep.subr.mxu0 0.0
  %473 = vmatpush2.msra.mxu0 0.0
  %474 = vmatprep.subr.mxu0 0.0
  %475 = vmatpush2.msra.mxu0 0.0
  %476 = vmatprep.subr.mxu0 0.0
  %477 = vmatpush2.msra.mxu0 0.0
  %478 = vmatprep.subr.mxu0 0.0
  %479 = vmatpush2.msra.mxu0 0.0
  %480 = vmatprep.subr.mxu0 0.0
  %481 = vmatpush2.msra.mxu0 0.0
  %482 = vmatprep.subr.mxu0 0.0
  %483 = vmatpush2.msra.mxu0 0.0
  %484 = vmatprep.subr.mxu0 0.0
  %485 = vmatpush2.msra.mxu0 0.0
  %486 = vmatprep.subr.mxu0 0.0
  %487 = vmatpush2.msra.mxu0 0.0
  %488 = vmatprep.subr.mxu0 0.0
  %489 = vmatpush2.msra.mxu0 0.0
  %490 = vmatprep.subr.mxu0 0.0
  %491 = vmatpush2.msra.mxu0 0.0
  %492 = vmatprep.subr.mxu0 0.0
  %493 = vmatpush2.msra.mxu0 0.0
  %494 = vmatprep.subr.mxu0 0.0
  %495 = vmatpush2.msra.mxu0 0.0
  %496 = vmatprep.subr.mxu0 0.0
  %497 = vmatpush2.msra.mxu0 0.0
  %498 = vmatprep.subr.mxu0 0.0
  %499 = vmatpush2.msra.mxu0 0.0
  %500 = vmatprep.mubr.f32.mxu0 0.0
  %501 = vmatmul.mubr.f32.gmra.mxu0 %v431
  %v502 = vpop.f32.mrf.mxu0
  %v503 = vadd.f32 %v428, %v502
  %v504 = vpop.f32.mrf.mxu0
  %505 = vmatprep.mubr.f32.mxu0 0.0
  %506 = vmatmul.mubr.f32.gmra.mxu0 %v434
  %v507 = vpop.f32.mrf.mxu0
  %v508 = vadd.f32 %v428, %v507
  %v509 = vpop.f32.mrf.mxu0
  %510 = vdwg.mxu0
  %v511 = vld [vmem:[%s4] sm:$0xff]
  %v512 = vld [vmem:[%s4 + $0x8] sm:$0xff]
  %v513 = vld [vmem:[%s4 + $0x10] sm:$0xff]
  %v514 = vld [vmem:[%s4 + $0x18] sm:$0xff]
  %v515 = vld [vmem:[%s5] sm:$0x1]
  %v517 = vlaneseq
  %v518 = vshrl.u32 %v517, 7
  %v519 = vsub.s32 0, %v518
  %v520 = vrot.slane %v515, %v519
  %v523 = vsel %vm151, %v503, 0
  %v526 = vsel %vm151, %v508, 0
  %528 = vmatprep.subr.mxu0 0.0
  %529 = vmatpush1.msra.mxu0 0.0
  %530 = vmatprep.subr.mxu0 0.0
  %531 = vmatpush1.msra.mxu0 0.0
  %532 = vmatprep.subr.mxu0 0.0
  %533 = vmatpush1.msra.mxu0 0.0
  %534 = vmatprep.subr.mxu0 0.0
  %535 = vmatpush1.msra.mxu0 0.0
  %536 = vmatprep.subr.mxu0 0.0
  %537 = vmatpush1.msra.mxu0 0.0
  %538 = vmatprep.subr.mxu0 0.0
  %539 = vmatpush1.msra.mxu0 0.0
  %540 = vmatprep.subr.mxu0 0.0
  %541 = vmatpush1.msra.mxu0 0.0
  %542 = vmatprep.subr.mxu0 0.0
  %543 = vmatpush1.msra.mxu0 0.0
  %544 = vmatprep.subr.mxu0 0.0
  %545 = vmatpush1.msra.mxu0 0.0
  %546 = vmatprep.subr.mxu0 0.0
  %547 = vmatpush1.msra.mxu0 0.0
  %548 = vmatprep.subr.mxu0 0.0
  %549 = vmatpush1.msra.mxu0 0.0
  %550 = vmatprep.subr.mxu0 0.0
  %551 = vmatpush1.msra.mxu0 0.0
  %552 = vmatprep.subr.mxu0 0.0
  %553 = vmatpush1.msra.mxu0 %v514
  %554 = vmatprep.subr.mxu0 0.0
  %555 = vmatpush1.msra.mxu0 %v513
  %556 = vmatprep.subr.mxu0 0.0
  %557 = vmatpush1.msra.mxu0 %v512
  %558 = vmatprep.subr.mxu0 0.0
  %559 = vmatpush1.msra.mxu0 %v511
  %560 = vmatprep.subr.mxu0 0.0
  %561 = vmatpush2.msra.mxu0 0.0
  %562 = vmatprep.subr.mxu0 0.0
  %563 = vmatpush2.msra.mxu0 0.0
  %564 = vmatprep.subr.mxu0 0.0
  %565 = vmatpush2.msra.mxu0 0.0
  %566 = vmatprep.subr.mxu0 0.0
  %567 = vmatpush2.msra.mxu0 0.0
  %568 = vmatprep.subr.mxu0 0.0
  %569 = vmatpush2.msra.mxu0 0.0
  %570 = vmatprep.subr.mxu0 0.0
  %571 = vmatpush2.msra.mxu0 0.0
  %572 = vmatprep.subr.mxu0 0.0
  %573 = vmatpush2.msra.mxu0 0.0
  %574 = vmatprep.subr.mxu0 0.0
  %575 = vmatpush2.msra.mxu0 0.0
  %576 = vmatprep.subr.mxu0 0.0
  %577 = vmatpush2.msra.mxu0 0.0
  %578 = vmatprep.subr.mxu0 0.0
  %579 = vmatpush2.msra.mxu0 0.0
  %580 = vmatprep.subr.mxu0 0.0
  %581 = vmatpush2.msra.mxu0 0.0
  %582 = vmatprep.subr.mxu0 0.0
  %583 = vmatpush2.msra.mxu0 0.0
  %584 = vmatprep.subr.mxu0 0.0
  %585 = vmatpush2.msra.mxu0 0.0
  %586 = vmatprep.subr.mxu0 0.0
  %587 = vmatpush2.msra.mxu0 0.0
  %588 = vmatprep.subr.mxu0 0.0
  %589 = vmatpush2.msra.mxu0 0.0
  %590 = vmatprep.subr.mxu0 0.0
  %591 = vmatpush2.msra.mxu0 0.0
  %592 = vmatprep.mubr.f32.mxu0 0.0
  %593 = vmatmul.mubr.f32.gmra.mxu0 %v523
  %v594 = vpop.f32.mrf.mxu0
  %v595 = vadd.f32 %v520, %v594
  %v596 = vpop.f32.mrf.mxu0
  %597 = vmatprep.mubr.f32.mxu0 0.0
  %598 = vmatmul.mubr.f32.gmra.mxu0 %v526
  %v599 = vpop.f32.mrf.mxu0
  %v600 = vadd.f32 %v520, %v599
  %v601 = vpop.f32.mrf.mxu0
  %602 = vdwg.mxu0
  %s603 = scalar_lea.vmem %s10, 16
  %604 = vst.msk [vmem:[%s603] sm:$0xff] %vm151, %v595
  %605 = vst.msk [vmem:[%s603 + $0x8] sm:$0xff] %vm151, %v600
  %v606 = vld [vmem:[%s6] sm:$0xff]
  %v607 = vld [vmem:[%s6 + $0x8] sm:$0xff]
  %v608 = vld [vmem:[%s6 + $0x10] sm:$0xff]
  %v609 = vld [vmem:[%s6 + $0x18] sm:$0xff]
  %v610 = vld [vmem:[%s7] sm:$0x1]
  %v612 = vlaneseq
  %v613 = vshrl.u32 %v612, 7
  %v614 = vsub.s32 0, %v613
  %v615 = vrot.slane %v610, %v614
  %617 = vmatprep.subr.mxu0 0.0
  %618 = vmatpush1.msra.mxu0 0.0
  %619 = vmatprep.subr.mxu0 0.0
  %620 = vmatpush1.msra.mxu0 0.0
  %621 = vmatprep.subr.mxu0 0.0
  %622 = vmatpush1.msra.mxu0 0.0
  %623 = vmatprep.subr.mxu0 0.0
  %624 = vmatpush1.msra.mxu0 0.0
  %625 = vmatprep.subr.mxu0 0.0
  %626 = vmatpush1.msra.mxu0 0.0
  %627 = vmatprep.subr.mxu0 0.0
  %628 = vmatpush1.msra.mxu0 0.0
  %629 = vmatprep.subr.mxu0 0.0
  %630 = vmatpush1.msra.mxu0 0.0
  %631 = vmatprep.subr.mxu0 0.0
  %632 = vmatpush1.msra.mxu0 0.0
  %633 = vmatprep.subr.mxu0 0.0
  %634 = vmatpush1.msra.mxu0 0.0
  %635 = vmatprep.subr.mxu0 0.0
  %636 = vmatpush1.msra.mxu0 0.0
  %637 = vmatprep.subr.mxu0 0.0
  %638 = vmatpush1.msra.mxu0 0.0
  %639 = vmatprep.subr.mxu0 0.0
  %640 = vmatpush1.msra.mxu0 0.0
  %641 = vmatprep.subr.mxu0 0.0
  %642 = vmatpush1.msra.mxu0 %v609
  %643 = vmatprep.subr.mxu0 0.0
  %644 = vmatpush1.msra.mxu0 %v608
  %645 = vmatprep.subr.mxu0 0.0
  %646 = vmatpush1.msra.mxu0 %v607
  %647 = vmatprep.subr.mxu0 0.0
  %648 = vmatpush1.msra.mxu0 %v606
  %649 = vmatprep.subr.mxu0 0.0
  %650 = vmatpush2.msra.mxu0 0.0
  %651 = vmatprep.subr.mxu0 0.0
  %652 = vmatpush2.msra.mxu0 0.0
  %653 = vmatprep.subr.mxu0 0.0
  %654 = vmatpush2.msra.mxu0 0.0
  %655 = vmatprep.subr.mxu0 0.0
  %656 = vmatpush2.msra.mxu0 0.0
  %657 = vmatprep.subr.mxu0 0.0
  %658 = vmatpush2.msra.mxu0 0.0
  %659 = vmatprep.subr.mxu0 0.0
  %660 = vmatpush2.msra.mxu0 0.0
  %661 = vmatprep.subr.mxu0 0.0
  %662 = vmatpush2.msra.mxu0 0.0
  %663 = vmatprep.subr.mxu0 0.0
  %664 = vmatpush2.msra.mxu0 0.0
  %665 = vmatprep.subr.mxu0 0.0
  %666 = vmatpush2.msra.mxu0 0.0
  %667 = vmatprep.subr.mxu0 0.0
  %668 = vmatpush2.msra.mxu0 0.0
  %669 = vmatprep.subr.mxu0 0.0
  %670 = vmatpush2.msra.mxu0 0.0
  %671 = vmatprep.subr.mxu0 0.0
  %672 = vmatpush2.msra.mxu0 0.0
  %673 = vmatprep.subr.mxu0 0.0
  %674 = vmatpush2.msra.mxu0 0.0
  %675 = vmatprep.subr.mxu0 0.0
  %676 = vmatpush2.msra.mxu0 0.0
  %677 = vmatprep.subr.mxu0 0.0
  %678 = vmatpush2.msra.mxu0 0.0
  %679 = vmatprep.subr.mxu0 0.0
  %680 = vmatpush2.msra.mxu0 0.0
  %681 = vmatprep.mubr.f32.mxu0 0.0
  %682 = vmatmul.mubr.f32.gmra.mxu0 %v523
  %v683 = vpop.f32.mrf.mxu0
  %v684 = vadd.f32 %v615, %v683
  %v685 = vpop.f32.mrf.mxu0
  %686 = vmatprep.mubr.f32.mxu0 0.0
  %687 = vmatmul.mubr.f32.gmra.mxu0 %v526
  %v688 = vpop.f32.mrf.mxu0
  %v689 = vadd.f32 %v615, %v688
  %v690 = vpop.f32.mrf.mxu0
  %691 = vdwg.mxu0
  %s692 = scalar_lea.vmem %s11, 16
  %693 = vst.msk [vmem:[%s692] sm:$0xff] %vm151, %v684
  %694 = vst.msk [vmem:[%s692 + $0x8] sm:$0xff] %vm151, %v689
  %v695 = vld [vmem:[%s1 + $0x1] sm:$0x1]
  %v696 = vld [vmem:[%s8] sm:$0x3]
  %v697 = vld [vmem:[%s9] sm:$0x1]
  %v699 = vsel %vm326, %v695, 0
  %v702 = vsel %vm330, %v696, 0
  %704 = vmatprep.subr.mxu0 0.0
  %705 = vmatpush1.msra.mxu0 0.0
  %706 = vmatprep.subr.mxu0 0.0
  %707 = vmatpush1.msra.mxu0 0.0
  %708 = vmatprep.subr.mxu0 0.0
  %709 = vmatpush1.msra.mxu0 0.0
  %710 = vmatprep.subr.mxu0 0.0
  %711 = vmatpush1.msra.mxu0 0.0
  %712 = vmatprep.subr.mxu0 0.0
  %713 = vmatpush1.msra.mxu0 0.0
  %714 = vmatprep.subr.mxu0 0.0
  %715 = vmatpush1.msra.mxu0 0.0
  %716 = vmatprep.subr.mxu0 0.0
  %717 = vmatpush1.msra.mxu0 0.0
  %718 = vmatprep.subr.mxu0 0.0
  %719 = vmatpush1.msra.mxu0 0.0
  %720 = vmatprep.subr.mxu0 0.0
  %721 = vmatpush1.msra.mxu0 0.0
  %722 = vmatprep.subr.mxu0 0.0
  %723 = vmatpush1.msra.mxu0 0.0
  %724 = vmatprep.subr.mxu0 0.0
  %725 = vmatpush1.msra.mxu0 0.0
  %726 = vmatprep.subr.mxu0 0.0
  %727 = vmatpush1.msra.mxu0 0.0
  %728 = vmatprep.subr.mxu0 0.0
  %729 = vmatpush1.msra.mxu0 0.0
  %730 = vmatprep.subr.mxu0 0.0
  %731 = vmatpush1.msra.mxu0 0.0
  %732 = vmatprep.subr.mxu0 0.0
  %733 = vmatpush1.msra.mxu0 0.0
  %734 = vmatprep.subr.mxu0 0.0
  %735 = vmatpush1.msra.mxu0 %v702
  %736 = vmatprep.subr.mxu0 0.0
  %737 = vmatpush2.msra.mxu0 0.0
  %738 = vmatprep.subr.mxu0 0.0
  %739 = vmatpush2.msra.mxu0 0.0
  %740 = vmatprep.subr.mxu0 0.0
  %741 = vmatpush2.msra.mxu0 0.0
  %742 = vmatprep.subr.mxu0 0.0
  %743 = vmatpush2.msra.mxu0 0.0
  %744 = vmatprep.subr.mxu0 0.0
  %745 = vmatpush2.msra.mxu0 0.0
  %746 = vmatprep.subr.mxu0 0.0
  %747 = vmatpush2.msra.mxu0 0.0
  %748 = vmatprep.subr.mxu0 0.0
  %749 = vmatpush2.msra.mxu0 0.0
  %750 = vmatprep.subr.mxu0 0.0
  %751 = vmatpush2.msra.mxu0 0.0
  %752 = vmatprep.subr.mxu0 0.0
  %753 = vmatpush2.msra.mxu0 0.0
  %754 = vmatprep.subr.mxu0 0.0
  %755 = vmatpush2.msra.mxu0 0.0
  %756 = vmatprep.subr.mxu0 0.0
  %757 = vmatpush2.msra.mxu0 0.0
  %758 = vmatprep.subr.mxu0 0.0
  %759 = vmatpush2.msra.mxu0 0.0
  %760 = vmatprep.subr.mxu0 0.0
  %761 = vmatpush2.msra.mxu0 0.0
  %762 = vmatprep.subr.mxu0 0.0
  %763 = vmatpush2.msra.mxu0 0.0
  %764 = vmatprep.subr.mxu0 0.0
  %765 = vmatpush2.msra.mxu0 0.0
  %766 = vmatprep.subr.mxu0 0.0
  %767 = vmatpush2.msra.mxu0 0.0
  %768 = vmatprep.mubr.f32.mxu0 0.0
  %769 = vmatmul.mubr.f32.gmra.mxu0 %v699
  %v770 = vpop.f32.mrf.mxu0
  %v771 = vadd.f32 %v697, %v770
  %v772 = vpop.f32.mrf.mxu0
  %773 = vdwg.mxu0
  %v774 = vlaneseq
  %v775 = vshrl.u32 %v774, 7
  %v776 = vsub.s32 0, %v775
  %v777 = vrot.slane %v771, %v776
  %v778 = vsel %vm405, %v777, 0.0
  %s779 = scalar_lea.vmem %s12, 8
  %780 = vst.msk [vmem:[%s779] sm:$0xff] %vm151, %v778
  // Predicated region
  $region42: #{forward.5} parent=0 // pred_check
    _
  $region43: #{forward.5} parent=0 // pred_check_branch
    %782 = sbr.rel (0) target = $region45
  $region44: #{forward.5} parent=0 // pred_region
    _
  $region45: #{forward.5} parent=0 // pred_fallthru
    _
  // Predicated region
  $region46: #{forward.5} parent=0 // pred_check
    _
  $region47: #{forward.5} parent=0 // pred_check_branch
    %784 = sbr.rel (0) target = $region49
  $region48: #{forward.5} parent=0 // pred_region
    _
  $region49: #{forward.5} parent=0 // pred_fallthru
    _
  // Predicated region
  $region50: #{forward.5} parent=0 // pred_check
    _
  $region51: #{forward.5} parent=0 // pred_check_branch
    %786 = sbr.rel (0) target = $region53
  $region52: #{forward.5} parent=0 // pred_region
    _
  $region53: #{forward.5} parent=0 // pred_fallthru
    _
  // Predicated region
  $region54: #{forward.5} parent=0 // pred_check
    _
  $region55: #{forward.5} parent=0 // pred_check_branch
    %788 = sbr.rel (0) target = $region57
  $region56: #{forward.5} parent=0 // pred_region
    _
  $region57: #{forward.5} parent=0 // pred_fallthru
    _
  // Predicated region
  $region58: #{forward.5} parent=0 // pred_check
    _
  $region59: #{forward.5} parent=0 // pred_check_branch
    %790 = sbr.rel (0) target = $region61
  $region60: #{forward.5} parent=0 // pred_region
    _
  $region61: #{forward.5} parent=0 // pred_fallthru
    _
  // Predicated region
  $region62: #{forward.5} parent=0 // pred_check
    _
  $region63: #{forward.5} parent=0 // pred_check_branch
    %792 = sbr.rel (0) target = $region65
  $region64: #{forward.5} parent=0 // pred_region
    _
  $region65: #{forward.5} parent=0 // pred_fallthru
    _

// kernel: forward.4
$region0: #{forward.4}
  #allocation0 [shape = 'u32[]', space=smem, size = 0x4, offset = 0x4, fixed_abs, tag = 'smem constant byte address 0x4 - core index']
  #allocation1 [shape = 'u32[144,128]{1,0:T(1,128)}', space=vmem, size = 0x12000, scoped, tag = 'internal scratch']
  #allocation2 [shape = 'f32[16,96]{1,0:T(8,128)}', space=vmem, size = 0x2000, scoped, tag = 'scratch operand']
  #allocation3 [shape = 'f32[1,96]{1,0:T(1,128)}', space=vmem, size = 0x200, scoped, tag = 'scratch operand']
  #allocation4 [shape = 'f32[1,32]{1,0:T(1,128)}', space=vmem, size = 0x200, scoped, tag = 'scratch operand']
  %s0 = inlined_call_operand.vmem [shape: f32[2,16,128], index: 0, kind: input, shape index: {}]
  %s1 = inlined_call_operand.vmem [shape: f32[2,128,96], index: 1, kind: input, shape index: {}]
  %s2 = inlined_call_operand.vmem [shape: f32[2,32,96], index: 2, kind: input, shape index: {}]
  %s3 = inlined_call_operand.vmem [shape: f32[2,1,96], index: 3, kind: input, shape index: {}]
  %s4 = inlined_call_operand.vmem [shape: f32[2,1,96], index: 4, kind: input, shape index: {}]
  %s5 = inlined_call_operand.vmem [shape: f32[2,16,64], index: 5, kind: output, shape index: {}]
  %s6 = sld [smem:[#allocation0]]
  $region67: #{forward.4} parent=0
    _
  %s8 = ssub.s32 1, %s6
  %s9 = scalar_select 0, %s8, %s6
  loop: start=0, step=1, limit=4
  $region2: #{forward.4} parent=0 // loop_pre_header
    _
  $region3: #{forward.4} parent=0 // loop_header
    %s11 = sphi 0, %s15
    %p12 = scmp.ge.s32.totalorder %s11, 4
    %s21 = sphi 0, %s23
    %s24 = sphi 0, %s21
    %s25 = sphi 0, %s24
    %s41 = sphi 0, %s25
    %s45 = sphi 0, %s45
    %s47 = sphi 0, %s45
    %s48 = sphi 0, %s47
    %s62 = sphi 0, %s48
    %s66 = sphi 0, %s66
    %s68 = sphi 0, %s66
    %s69 = sphi 0, %s68
    %s83 = sphi 0, %s69
    %s87 = sphi 0, %s87
    %s89 = sphi 0, %s87
    %s90 = sphi 0, %s89
    %s104 = sphi 0, %s90
    %s108 = sphi 0, %s108
    %s110 = sphi 0, %s108
    %s111 = sphi 0, %s110
    %s125 = sphi 0, %s111
    %s131 = sphi 0, %s133
    %s134 = sphi 0, %s131
    %s135 = sphi 0, %s134
    %s151 = sphi 0, %s135
  $region4: #{forward.4} parent=0 // loop_header_branch
    %14 = sbr.rel (%p12) target = $region8
  $region5: #{forward.4} parent=0 // loop_body
    %s16 = ssub.s32 %s11, 1
    %s17 = ssub.s32 %s11, 2
    %s18 = sadd.s32 %s11, 1
    %s19 = ssub.s32 %s11, %s18
    %p20 = scmp.eq.s32.totalorder %s19, 0
    %s22 = sadd.s32 %s21, 1
    %s23 = scalar_select %p20, %s21, %s22
    %p26 = pneg %p20
    %p27 = scmp.eq.s32.totalorder %s11, 1
    %p28 = por %p26, %p27
    %p29 = scmp.ne.s32.totalorder %s21, %s24
    %p30 = scmp.eq.s32.totalorder %s11, 0
    %p31 = por %p29, %p30
    %p32 = scmp.ne.s32.totalorder %s21, %s24
    %p33 = scmp.eq.s32.totalorder %s16, 1
    %p34 = por %p32, %p33
    %p35 = scmp.ne.s32.totalorder %s24, %s25
    %p36 = scmp.eq.s32.totalorder %s16, 0
    %p37 = por %p35, %p36
    %p38 = scmp.ne.s32.totalorder %s24, %s25
    %p39 = scmp.eq.s32.totalorder %s17, 1
    %p40 = por %p38, %p39
    %p42 = scmp.ne.s32.totalorder %s25, %s41
    %p43 = scmp.eq.s32.totalorder %s17, 0
    %p44 = por %p42, %p43
    %s46 = sadd.s32 %s45, 1
    %p49 = scmp.eq.s32.totalorder %s11, 1
    %p50 = scmp.ne.s32.totalorder %s45, %s47
    %p51 = scmp.eq.s32.totalorder %s11, 0
    %p52 = por %p50, %p51
    %p53 = scmp.ne.s32.totalorder %s45, %s47
    %p54 = scmp.eq.s32.totalorder %s16, 1
    %p55 = por %p53, %p54
    %p56 = scmp.ne.s32.totalorder %s47, %s48
    %p57 = scmp.eq.s32.totalorder %s16, 0
    %p58 = por %p56, %p57
    %p59 = scmp.ne.s32.totalorder %s47, %s48
    %p60 = scmp.eq.s32.totalorder %s17, 1
    %p61 = por %p59, %p60
    %p63 = scmp.ne.s32.totalorder %s48, %s62
    %p64 = scmp.eq.s32.totalorder %s17, 0
    %p65 = por %p63, %p64
    %s67 = sadd.s32 %s66, 1
    %p70 = scmp.eq.s32.totalorder %s11, 1
    %p71 = scmp.ne.s32.totalorder %s66, %s68
    %p72 = scmp.eq.s32.totalorder %s11, 0
    %p73 = por %p71, %p72
    %p74 = scmp.ne.s32.totalorder %s66, %s68
    %p75 = scmp.eq.s32.totalorder %s16, 1
    %p76 = por %p74, %p75
    %p77 = scmp.ne.s32.totalorder %s68, %s69
    %p78 = scmp.eq.s32.totalorder %s16, 0
    %p79 = por %p77, %p78
    %p80 = scmp.ne.s32.totalorder %s68, %s69
    %p81 = scmp.eq.s32.totalorder %s17, 1
    %p82 = por %p80, %p81
    %p84 = scmp.ne.s32.totalorder %s69, %s83
    %p85 = scmp.eq.s32.totalorder %s17, 0
    %p86 = por %p84, %p85
    %s88 = sadd.s32 %s87, 1
    %p91 = scmp.eq.s32.totalorder %s11, 1
    %p92 = scmp.ne.s32.totalorder %s87, %s89
    %p93 = scmp.eq.s32.totalorder %s11, 0
    %p94 = por %p92, %p93
    %p95 = scmp.ne.s32.totalorder %s87, %s89
    %p96 = scmp.eq.s32.totalorder %s16, 1
    %p97 = por %p95, %p96
    %p98 = scmp.ne.s32.totalorder %s89, %s90
    %p99 = scmp.eq.s32.totalorder %s16, 0
    %p100 = por %p98, %p99
    %p101 = scmp.ne.s32.totalorder %s89, %s90
    %p102 = scmp.eq.s32.totalorder %s17, 1
    %p103 = por %p101, %p102
    %p105 = scmp.ne.s32.totalorder %s90, %s104
    %p106 = scmp.eq.s32.totalorder %s17, 0
    %p107 = por %p105, %p106
    %s109 = sadd.s32 %s108, 1
    %p112 = scmp.eq.s32.totalorder %s11, 1
    %p113 = scmp.ne.s32.totalorder %s108, %s110
    %p114 = scmp.eq.s32.totalorder %s11, 0
    %p115 = por %p113, %p114
    %p116 = scmp.ne.s32.totalorder %s108, %s110
    %p117 = scmp.eq.s32.totalorder %s16, 1
    %p118 = por %p116, %p117
    %p119 = scmp.ne.s32.totalorder %s110, %s111
    %p120 = scmp.eq.s32.totalorder %s16, 0
    %p121 = por %p119, %p120
    %p122 = scmp.ne.s32.totalorder %s110, %s111
    %p123 = scmp.eq.s32.totalorder %s17, 1
    %p124 = por %p122, %p123
    %p126 = scmp.ne.s32.totalorder %s111, %s125
    %p127 = scmp.eq.s32.totalorder %s17, 0
    %p128 = por %p126, %p127
    %s129 = ssub.s32 %s11, %s18
    %p130 = scmp.eq.s32.totalorder %s129, 0
    %s132 = sadd.s32 %s131, 1
    %s133 = scalar_select %p130, %s131, %s132
    %p136 = pneg %p130
    %p137 = scmp.eq.s32.totalorder %s11, 1
    %p138 = por %p136, %p137
    %p139 = scmp.ne.s32.totalorder %s131, %s134
    %p140 = scmp.eq.s32.totalorder %s11, 0
    %p141 = por %p139, %p140
    %p142 = scmp.ne.s32.totalorder %s131, %s134
    %p143 = scmp.eq.s32.totalorder %s16, 1
    %p144 = por %p142, %p143
    %p145 = scmp.ne.s32.totalorder %s134, %s135
    %p146 = scmp.eq.s32.totalorder %s16, 0
    %p147 = por %p145, %p146
    %p148 = scmp.ne.s32.totalorder %s134, %s135
    %p149 = scmp.eq.s32.totalorder %s17, 1
    %p150 = por %p148, %p149
    %p152 = scmp.ne.s32.totalorder %s135, %s151
    %p153 = scmp.eq.s32.totalorder %s17, 0
    %p154 = por %p152, %p153
    %p155 = scmp.le.s32.totalorder 1, %s11
    %p156 = scmp.lt.s32.totalorder %s11, 3
    %p157 = pnand %p155, %p156
    %p158 = pneg %p157
    // Predicated region
    $region9: #{forward.4} parent=5 // pred_check
      _
    $region10: #{forward.4} parent=5 // pred_check_branch
      %160 = sbr.rel (%p157) target = $region12
    $region11: #{forward.4} parent=5 // pred_region
      %s161 = ssub.s32 %s11, 1
      // Predicated region
      $region13: #{forward.4} parent=11 // pred_check
        %p162 = pneg %p58
      $region14: #{forward.4} parent=11 // pred_check_branch
        %164 = sbr.rel (%p162) target = $region16
      $region15: #{forward.4} parent=11 // pred_region
        _
      $region16: #{forward.4} parent=11 // pred_fallthru
        _
      // Predicated region
      $region17: #{forward.4} parent=11 // pred_check
        %p165 = pneg %p79
      $region18: #{forward.4} parent=11 // pred_check_branch
        %167 = sbr.rel (%p165) target = $region20
      $region19: #{forward.4} parent=11 // pred_region
        _
      $region20: #{forward.4} parent=11 // pred_fallthru
        _
      // Predicated region
      $region21: #{forward.4} parent=11 // pred_check
        %p168 = pneg %p100
      $region22: #{forward.4} parent=11 // pred_check_branch
        %170 = sbr.rel (%p168) target = $region24
      $region23: #{forward.4} parent=11 // pred_region
        _
      $region24: #{forward.4} parent=11 // pred_fallthru
        _
      // Predicated region
      $region25: #{forward.4} parent=11 // pred_check
        %p171 = pneg %p121
      $region26: #{forward.4} parent=11 // pred_check_branch
        %173 = sbr.rel (%p171) target = $region28
      $region27: #{forward.4} parent=11 // pred_region
        _
      $region28: #{forward.4} parent=11 // pred_fallthru
        _
    $region12: #{forward.4} parent=5 // pred_fallthru
      _
    %p174 = scmp.lt.s32.totalorder %s11, 2
    // Predicated region
    $region29: #{forward.4} parent=5 // pred_check
      %p175 = pneg %p174
    $region30: #{forward.4} parent=5 // pred_check_branch
      %177 = sbr.rel (%p175) target = $region32
    $region31: #{forward.4} parent=5 // pred_region
      // Predicated region
      $region33: #{forward.4} parent=31 // pred_check
        %p178 = pneg %p31
      $region34: #{forward.4} parent=31 // pred_check_branch
        %180 = sbr.rel (%p178) target = $region36
      $region35: #{forward.4} parent=31 // pred_region
        %p181 = scmp.lt.s32.totalorder %s11, 1
        %s182 = scalar_select %p181, %s11, 1
        %s183 = smul.addr %s182, 2
        %s184 = smul.addr %s183, 8
        %s185 = scalar_lea.vmem %s0, %s184
      $region36: #{forward.4} parent=31 // pred_fallthru
        _
    $region32: #{forward.4} parent=5 // pred_fallthru
      _
    %p186 = scmp.le.s32.totalorder 1, %s11
    %p187 = scmp.lt.s32.totalorder %s11, 3
    %p188 = pnand %p186, %p187
    %p189 = pneg %p188
    // Predicated region
    $region37: #{forward.4} parent=5 // pred_check
      _
    $region38: #{forward.4} parent=5 // pred_check_branch
      %191 = sbr.rel (%p188) target = $region40
    $region39: #{forward.4} parent=5 // pred_region
      %s192 = ssub.s32 %s11, 1
      %p193 = scmp.lt.s32.totalorder %s16, 1
      %s194 = scalar_select %p193, %s16, 1
      %s195 = smul.addr %s194, 2
      %s196 = smul.addr %s195, 8
      %s197 = scalar_lea.vmem %s0, %s196
      %p198 = pneg %p37
      %p199 = pneg %p34
      %p200 = pneg %p58
      %p201 = pneg %p55
      %p202 = pneg %p79
      %p203 = pneg %p76
      %p204 = pneg %p100
      %p205 = pneg %p97
      %p206 = pneg %p121
      %p207 = pneg %p118
      %p208 = pneg %p147
      %p209 = pneg %p144
      %p210 = scmp.lt.s32.totalorder %s16, 1
      %s211 = scalar_select %p210, %s16, 1
      %s212 = smul.addr %s211, 2
      %s213 = smul.addr %s212, 8
      %s214 = scalar_lea.vmem %s5, %s213
      %p215 = scmp.lt.s32.totalorder %s16, 1
      %s216 = scalar_select %p215, %s16, 1
      %s217 = smul.addr %s216, 2
      %s218 = smul.addr %s217, 8
      %s219 = scalar_lea.vmem %s0, %s218
      %p220 = scmp.lt.s32.totalorder %s16, 1
      %s221 = scalar_select %p220, %s16, 1
      %s222 = smul.addr %s221, 2
      %s223 = smul.addr %s222, 8
      %s224 = scalar_lea.vmem %s5, %s223
      %v225 = vld [vmem:[%s219] sm:$0xff]
      %v226 = vld [vmem:[%s219 + $0x8] sm:$0xff]
      %v227 = vld [vmem:[%s1] sm:$0xff]
      %v228 = vld [vmem:[%s1 + $0x8] sm:$0xff]
      %v229 = vld [vmem:[%s1 + $0x10] sm:$0xff]
      %v230 = vld [vmem:[%s1 + $0x18] sm:$0xff]
      %v231 = vld [vmem:[%s1 + $0x20] sm:$0xff]
      %v232 = vld [vmem:[%s1 + $0x28] sm:$0xff]
      %v233 = vld [vmem:[%s1 + $0x30] sm:$0xff]
      %v234 = vld [vmem:[%s1 + $0x38] sm:$0xff]
      %v235 = vld [vmem:[%s1 + $0x40] sm:$0xff]
      %v236 = vld [vmem:[%s1 + $0x48] sm:$0xff]
      %v237 = vld [vmem:[%s1 + $0x50] sm:$0xff]
      %v238 = vld [vmem:[%s1 + $0x58] sm:$0xff]
      %v239 = vld [vmem:[%s1 + $0x60] sm:$0xff]
      %v240 = vld [vmem:[%s1 + $0x68] sm:$0xff]
      %v241 = vld [vmem:[%s1 + $0x70] sm:$0xff]
      %v242 = vld [vmem:[%s1 + $0x78] sm:$0xff]
      %v243 = vld [vmem:[%s3] sm:$0x1]
      %v245 = vlaneseq
      %v246 = vshrl.u32 %v245, 7
      %v247 = vsub.s32 0, %v246
      %v248 = vrot.slane %v243, %v247
      %250 = vmatprep.subr.mxu0 0.0
      %251 = vmatpush1.msra.mxu0 %v242
      %252 = vmatprep.subr.mxu0 0.0
      %253 = vmatpush1.msra.mxu0 %v241
      %254 = vmatprep.subr.mxu0 0.0
      %255 = vmatpush1.msra.mxu0 %v240
      %256 = vmatprep.subr.mxu0 0.0
      %257 = vmatpush1.msra.mxu0 %v239
      %258 = vmatprep.subr.mxu0 0.0
      %259 = vmatpush1.msra.mxu0 %v238
      %260 = vmatprep.subr.mxu0 0.0
      %261 = vmatpush1.msra.mxu0 %v237
      %262 = vmatprep.subr.mxu0 0.0
      %263 = vmatpush1.msra.mxu0 %v236
      %264 = vmatprep.subr.mxu0 0.0
      %265 = vmatpush1.msra.mxu0 %v235
      %266 = vmatprep.subr.mxu0 0.0
      %267 = vmatpush1.msra.mxu0 %v234
      %268 = vmatprep.subr.mxu0 0.0
      %269 = vmatpush1.msra.mxu0 %v233
      %270 = vmatprep.subr.mxu0 0.0
      %271 = vmatpush1.msra.mxu0 %v232
      %272 = vmatprep.subr.mxu0 0.0
      %273 = vmatpush1.msra.mxu0 %v231
      %274 = vmatprep.subr.mxu0 0.0
      %275 = vmatpush1.msra.mxu0 %v230
      %276 = vmatprep.subr.mxu0 0.0
      %277 = vmatpush1.msra.mxu0 %v229
      %278 = vmatprep.subr.mxu0 0.0
      %279 = vmatpush1.msra.mxu0 %v228
      %280 = vmatprep.subr.mxu0 0.0
      %281 = vmatpush1.msra.mxu0 %v227
      %282 = vmatprep.subr.mxu0 0.0
      %283 = vmatpush2.msra.mxu0 0.0
      %284 = vmatprep.subr.mxu0 0.0
      %285 = vmatpush2.msra.mxu0 0.0
      %286 = vmatprep.subr.mxu0 0.0
      %287 = vmatpush2.msra.mxu0 0.0
      %288 = vmatprep.subr.mxu0 0.0
      %289 = vmatpush2.msra.mxu0 0.0
      %290 = vmatprep.subr.mxu0 0.0
      %291 = vmatpush2.msra.mxu0 0.0
      %292 = vmatprep.subr.mxu0 0.0
      %293 = vmatpush2.msra.mxu0 0.0
      %294 = vmatprep.subr.mxu0 0.0
      %295 = vmatpush2.msra.mxu0 0.0
      %296 = vmatprep.subr.mxu0 0.0
      %297 = vmatpush2.msra.mxu0 0.0
      %298 = vmatprep.subr.mxu0 0.0
      %299 = vmatpush2.msra.mxu0 0.0
      %300 = vmatprep.subr.mxu0 0.0
      %301 = vmatpush2.msra.mxu0 0.0
      %302 = vmatprep.subr.mxu0 0.0
      %303 = vmatpush2.msra.mxu0 0.0
      %304 = vmatprep.subr.mxu0 0.0
      %305 = vmatpush2.msra.mxu0 0.0
      %306 = vmatprep.subr.mxu0 0.0
      %307 = vmatpush2.msra.mxu0 0.0
      %308 = vmatprep.subr.mxu0 0.0
      %309 = vmatpush2.msra.mxu0 0.0
      %310 = vmatprep.subr.mxu0 0.0
      %311 = vmatpush2.msra.mxu0 0.0
      %312 = vmatprep.subr.mxu0 0.0
      %313 = vmatpush2.msra.mxu0 0.0
      %314 = vmatprep.mubr.f32.mxu0 0.0
      %315 = vmatmul.mubr.f32.gmra.mxu0 %v225
      %v316 = vpop.f32.mrf.mxu0
      %v317 = vadd.f32 %v248, %v316
      %v318 = vpop.f32.mrf.mxu0
      %319 = vmatprep.mubr.f32.mxu0 0.0
      %320 = vmatmul.mubr.f32.gmra.mxu0 %v226
      %v321 = vpop.f32.mrf.mxu0
      %v322 = vadd.f32 %v248, %v321
      %v323 = vpop.f32.mrf.mxu0
      %324 = vdwg.mxu0
      %vm325 = vcmask 785408
      %326 = vst.msk [vmem:[#allocation2] sm:$0xff] %vm325, %v317
      %327 = vst.msk [vmem:[#allocation2 + $0x8] sm:$0xff] %vm325, %v322
      %vm328 = vcmask 253952
      %329 = vst.msk [vmem:[#allocation4] sm:$0x1] %vm328, 0.0
      %v330 = vld [vmem:[%s2] sm:$0xff]
      %v331 = vld [vmem:[%s2 + $0x8] sm:$0xff]
      %v332 = vld [vmem:[%s2 + $0x10] sm:$0xff]
      %v333 = vld [vmem:[%s2 + $0x18] sm:$0xff]
      %v334 = vld [vmem:[%s4] sm:$0x1]
      loop: start=0, step=1, limit=16
      $region41: #{forward.4} parent=39 // loop_pre_header
        _
      $region42: #{forward.4} parent=39 // loop_header
        %s336 = sphi 0, %s340
        %p337 = scmp.ge.s32.totalorder %s336, 16
      $region43: #{forward.4} parent=39 // loop_header_branch
        %339 = sbr.rel (%p337) target = $region47
      $region44: #{forward.4} parent=39 // loop_body
        %v341 = vld [vmem:[#allocation4] sm:$0x1]
        %vm342 = vcmask 261120
        %v344 = vsel %vm342, %v341, 0
        %346 = vmatprep.subr.mxu0 0.0
        %347 = vmatpush1.msra.mxu0 0.0
        %348 = vmatprep.subr.mxu0 0.0
        %349 = vmatpush1.msra.mxu0 0.0
        %350 = vmatprep.subr.mxu0 0.0
        %351 = vmatpush1.msra.mxu0 0.0
        %352 = vmatprep.subr.mxu0 0.0
        %353 = vmatpush1.msra.mxu0 0.0
        %354 = vmatprep.subr.mxu0 0.0
        %355 = vmatpush1.msra.mxu0 0.0
        %356 = vmatprep.subr.mxu0 0.0
        %357 = vmatpush1.msra.mxu0 0.0
        %358 = vmatprep.subr.mxu0 0.0
        %359 = vmatpush1.msra.mxu0 0.0
        %360 = vmatprep.subr.mxu0 0.0
        %361 = vmatpush1.msra.mxu0 0.0
        %362 = vmatprep.subr.mxu0 0.0
        %363 = vmatpush1.msra.mxu0 0.0
        %364 = vmatprep.subr.mxu0 0.0
        %365 = vmatpush1.msra.mxu0 0.0
        %366 = vmatprep.subr.mxu0 0.0
        %367 = vmatpush1.msra.mxu0 0.0
        %368 = vmatprep.subr.mxu0 0.0
        %369 = vmatpush1.msra.mxu0 0.0
        %370 = vmatprep.subr.mxu0 0.0
        %371 = vmatpush1.msra.mxu0 %v333
        %372 = vmatprep.subr.mxu0 0.0
        %373 = vmatpush1.msra.mxu0 %v332
        %374 = vmatprep.subr.mxu0 0.0
        %375 = vmatpush1.msra.mxu0 %v331
        %376 = vmatprep.subr.mxu0 0.0
        %377 = vmatpush1.msra.mxu0 %v330
        %378 = vmatprep.subr.mxu0 0.0
        %379 = vmatpush2.msra.mxu0 0.0
        %380 = vmatprep.subr.mxu0 0.0
        %381 = vmatpush2.msra.mxu0 0.0
        %382 = vmatprep.subr.mxu0 0.0
        %383 = vmatpush2.msra.mxu0 0.0
        %384 = vmatprep.subr.mxu0 0.0
        %385 = vmatpush2.msra.mxu0 0.0
        %386 = vmatprep.subr.mxu0 0.0
        %387 = vmatpush2.msra.mxu0 0.0
        %388 = vmatprep.subr.mxu0 0.0
        %389 = vmatpush2.msra.mxu0 0.0
        %390 = vmatprep.subr.mxu0 0.0
        %391 = vmatpush2.msra.mxu0 0.0
        %392 = vmatprep.subr.mxu0 0.0
        %393 = vmatpush2.msra.mxu0 0.0
        %394 = vmatprep.subr.mxu0 0.0
        %395 = vmatpush2.msra.mxu0 0.0
        %396 = vmatprep.subr.mxu0 0.0
        %397 = vmatpush2.msra.mxu0 0.0
        %398 = vmatprep.subr.mxu0 0.0
        %399 = vmatpush2.msra.mxu0 0.0
        %400 = vmatprep.subr.mxu0 0.0
        %401 = vmatpush2.msra.mxu0 0.0
        %402 = vmatprep.subr.mxu0 0.0
        %403 = vmatpush2.msra.mxu0 0.0
        %404 = vmatprep.subr.mxu0 0.0
        %405 = vmatpush2.msra.mxu0 0.0
        %406 = vmatprep.subr.mxu0 0.0
        %407 = vmatpush2.msra.mxu0 0.0
        %408 = vmatprep.subr.mxu0 0.0
        %409 = vmatpush2.msra.mxu0 0.0
        %410 = vmatprep.mubr.f32.mxu0 0.0
        %411 = vmatmul.mubr.f32.gmra.mxu0 %v344
        %v412 = vpop.f32.mrf.mxu0
        %v413 = vadd.f32 %v334, %v412
        %v414 = vpop.f32.mrf.mxu0
        %415 = vdwg.mxu0
        %vm416 = vcmask 778240
        %417 = vst.msk [vmem:[#allocation3] sm:$0x1] %vm416, %v413
        %s418 = scalar_lea.vmem [#allocation2], %s336
        %v419 = vld [vmem:[%s418] sm:$0x1]
        %v420 = vld [vmem:[#allocation3] sm:$0x1]
        %v421 = vadd.f32 %v419, %v420
        %v422 = vxor.u32 %v421, 2147483648
        %v423 = vmul.f32 %v422, 1.442695
        %v424 = vpow.pop %v423
        %v425 = vadd.f32 %v424, 1.0
        %v426 = vrcp.pop %v425
        %v427 = vmul.f32 1.0, %v426
        %v429 = vlaneseq
        %v430 = vshrl.u32 %v429, 7
        %v431 = vsub.s32 0, %v430
        %v432 = vrot.slane %v420, %v431
        %433 = vrot.lane.b32.xlu0 %v432, 64
        %v434 = vpop.permute.xlu0 %433
        %v436 = vmul.f32 %v427, %v434
        %438 = vrot.lane.b32.xlu0 %v436, 64
        %v439 = vpop.permute.xlu0 %438
        %v441 = vadd.f32 %v419, %v439
        %v442 = vtanh.pop %v441
        %v443 = vsub.f32 1.0, %v427
        %445 = vrot.lane.b32.xlu0 %v442, 96
        %v446 = vpop.permute.xlu0 %445
        %v448 = vmul.f32 %v443, %v446
        %v449 = vlaneseq
        %v450 = vshrl.u32 %v449, 7
        %v451 = vsub.s32 0, %v450
        %v452 = vrot.slane %v341, %v451
        %453 = vrot.lane.b32.xlu0 %v452, 32
        %v454 = vpop.permute.xlu0 %453
        %v456 = vmul.f32 %v427, %v454
        %v457 = vadd.f32 %v448, %v456
        %459 = vrot.lane.b32.xlu0 %v457, 96
        %v460 = vpop.permute.xlu0 %459
        %462 = vst.msk [vmem:[#allocation4] sm:$0x1] %vm328, %v460
        %s463 = scalar_lea.vmem %s224, %s336
        %464 = vst.msk [vmem:[%s463] sm:$0x1] %vm328, %v460
      $region45: #{forward.4} parent=39 // loop_footer
        %s340 = sadd.s32 1, %s336
      $region46: #{forward.4} parent=39 // loop_footer_branch
        %335 = sbr.rel target = $region42
      $region47: #{forward.4} parent=39 // loop_exit
        _
      %s465 = scalar_lea.vmem %s1, 128
      %v466 = vld [vmem:[%s465] sm:$0xff]
      %v467 = vld [vmem:[%s465 + $0x8] sm:$0xff]
      %v468 = vld [vmem:[%s465 + $0x10] sm:$0xff]
      %v469 = vld [vmem:[%s465 + $0x18] sm:$0xff]
      %v470 = vld [vmem:[%s465 + $0x20] sm:$0xff]
      %v471 = vld [vmem:[%s465 + $0x28] sm:$0xff]
      %v472 = vld [vmem:[%s465 + $0x30] sm:$0xff]
      %v473 = vld [vmem:[%s465 + $0x38] sm:$0xff]
      %v474 = vld [vmem:[%s465 + $0x40] sm:$0xff]
      %v475 = vld [vmem:[%s465 + $0x48] sm:$0xff]
      %v476 = vld [vmem:[%s465 + $0x50] sm:$0xff]
      %v477 = vld [vmem:[%s465 + $0x58] sm:$0xff]
      %v478 = vld [vmem:[%s465 + $0x60] sm:$0xff]
      %v479 = vld [vmem:[%s465 + $0x68] sm:$0xff]
      %v480 = vld [vmem:[%s465 + $0x70] sm:$0xff]
      %v481 = vld [vmem:[%s465 + $0x78] sm:$0xff]
      %s482 = scalar_lea.vmem %s3, 1
      %v483 = vld [vmem:[%s482] sm:$0x1]
      %v485 = vlaneseq
      %v486 = vshrl.u32 %v485, 7
      %v487 = vsub.s32 0, %v486
      %v488 = vrot.slane %v483, %v487
      %490 = vmatprep.subr.mxu0 0.0
      %491 = vmatpush1.msra.mxu0 %v481
      %492 = vmatprep.subr.mxu0 0.0
      %493 = vmatpush1.msra.mxu0 %v480
      %494 = vmatprep.subr.mxu0 0.0
      %495 = vmatpush1.msra.mxu0 %v479
      %496 = vmatprep.subr.mxu0 0.0
      %497 = vmatpush1.msra.mxu0 %v478
      %498 = vmatprep.subr.mxu0 0.0
      %499 = vmatpush1.msra.mxu0 %v477
      %500 = vmatprep.subr.mxu0 0.0
      %501 = vmatpush1.msra.mxu0 %v476
      %502 = vmatprep.subr.mxu0 0.0
      %503 = vmatpush1.msra.mxu0 %v475
      %504 = vmatprep.subr.mxu0 0.0
      %505 = vmatpush1.msra.mxu0 %v474
      %506 = vmatprep.subr.mxu0 0.0
      %507 = vmatpush1.msra.mxu0 %v473
      %508 = vmatprep.subr.mxu0 0.0
      %509 = vmatpush1.msra.mxu0 %v472
      %510 = vmatprep.subr.mxu0 0.0
      %511 = vmatpush1.msra.mxu0 %v471
      %512 = vmatprep.subr.mxu0 0.0
      %513 = vmatpush1.msra.mxu0 %v470
      %514 = vmatprep.subr.mxu0 0.0
      %515 = vmatpush1.msra.mxu0 %v469
      %516 = vmatprep.subr.mxu0 0.0
      %517 = vmatpush1.msra.mxu0 %v468
      %518 = vmatprep.subr.mxu0 0.0
      %519 = vmatpush1.msra.mxu0 %v467
      %520 = vmatprep.subr.mxu0 0.0
      %521 = vmatpush1.msra.mxu0 %v466
      %522 = vmatprep.subr.mxu0 0.0
      %523 = vmatpush2.msra.mxu0 0.0
      %524 = vmatprep.subr.mxu0 0.0
      %525 = vmatpush2.msra.mxu0 0.0
      %526 = vmatprep.subr.mxu0 0.0
      %527 = vmatpush2.msra.mxu0 0.0
      %528 = vmatprep.subr.mxu0 0.0
      %529 = vmatpush2.msra.mxu0 0.0
      %530 = vmatprep.subr.mxu0 0.0
      %531 = vmatpush2.msra.mxu0 0.0
      %532 = vmatprep.subr.mxu0 0.0
      %533 = vmatpush2.msra.mxu0 0.0
      %534 = vmatprep.subr.mxu0 0.0
      %535 = vmatpush2.msra.mxu0 0.0
      %536 = vmatprep.subr.mxu0 0.0
      %537 = vmatpush2.msra.mxu0 0.0
      %538 = vmatprep.subr.mxu0 0.0
      %539 = vmatpush2.msra.mxu0 0.0
      %540 = vmatprep.subr.mxu0 0.0
      %541 = vmatpush2.msra.mxu0 0.0
      %542 = vmatprep.subr.mxu0 0.0
      %543 = vmatpush2.msra.mxu0 0.0
      %544 = vmatprep.subr.mxu0 0.0
      %545 = vmatpush2.msra.mxu0 0.0
      %546 = vmatprep.subr.mxu0 0.0
      %547 = vmatpush2.msra.mxu0 0.0
      %548 = vmatprep.subr.mxu0 0.0
      %549 = vmatpush2.msra.mxu0 0.0
      %550 = vmatprep.subr.mxu0 0.0
      %551 = vmatpush2.msra.mxu0 0.0
      %552 = vmatprep.subr.mxu0 0.0
      %553 = vmatpush2.msra.mxu0 0.0
      %554 = vmatprep.mubr.f32.mxu0 0.0
      %555 = vmatmul.mubr.f32.gmra.mxu0 %v225
      %v556 = vpop.f32.mrf.mxu0
      %v557 = vadd.f32 %v488, %v556
      %v558 = vpop.f32.mrf.mxu0
      %559 = vmatprep.mubr.f32.mxu0 0.0
      %560 = vmatmul.mubr.f32.gmra.mxu0 %v226
      %v561 = vpop.f32.mrf.mxu0
      %v562 = vadd.f32 %v488, %v561
      %v563 = vpop.f32.mrf.mxu0
      %564 = vdwg.mxu0
      %565 = vst.msk [vmem:[#allocation2] sm:$0xff] %vm325, %v557
      %566 = vst.msk [vmem:[#allocation2 + $0x8] sm:$0xff] %vm325, %v562
      %567 = vst.msk [vmem:[#allocation4] sm:$0x1] %vm328, 0.0
      %s568 = scalar_lea.vmem %s2, 32
      %v569 = vld [vmem:[%s568] sm:$0xff]
      %v570 = vld [vmem:[%s568 + $0x8] sm:$0xff]
      %v571 = vld [vmem:[%s568 + $0x10] sm:$0xff]
      %v572 = vld [vmem:[%s568 + $0x18] sm:$0xff]
      %s573 = scalar_lea.vmem %s4, 1
      %v574 = vld [vmem:[%s573] sm:$0x1]
      loop: start=0, step=1, limit=16
      $region48: #{forward.4} parent=39 // loop_pre_header
        _
      $region49: #{forward.4} parent=39 // loop_header
        %s576 = sphi 0, %s580
        %p577 = scmp.ge.s32.totalorder %s576, 16
      $region50: #{forward.4} parent=39 // loop_header_branch
        %579 = sbr.rel (%p577) target = $region54
      $region51: #{forward.4} parent=39 // loop_body
        %s581 = ssub.s32 15, %s576
        %v582 = vld [vmem:[#allocation4] sm:$0x1]
        %vm583 = vcmask 261120
        %v585 = vsel %vm583, %v582, 0
        %587 = vmatprep.subr.mxu0 0.0
        %588 = vmatpush1.msra.mxu0 0.0
        %589 = vmatprep.subr.mxu0 0.0
        %590 = vmatpush1.msra.mxu0 0.0
        %591 = vmatprep.subr.mxu0 0.0
        %592 = vmatpush1.msra.mxu0 0.0
        %593 = vmatprep.subr.mxu0 0.0
        %594 = vmatpush1.msra.mxu0 0.0
        %595 = vmatprep.subr.mxu0 0.0
        %596 = vmatpush1.msra.mxu0 0.0
        %597 = vmatprep.subr.mxu0 0.0
        %598 = vmatpush1.msra.mxu0 0.0
        %599 = vmatprep.subr.mxu0 0.0
        %600 = vmatpush1.msra.mxu0 0.0
        %601 = vmatprep.subr.mxu0 0.0
        %602 = vmatpush1.msra.mxu0 0.0
        %603 = vmatprep.subr.mxu0 0.0
        %604 = vmatpush1.msra.mxu0 0.0
        %605 = vmatprep.subr.mxu0 0.0
        %606 = vmatpush1.msra.mxu0 0.0
        %607 = vmatprep.subr.mxu0 0.0
        %608 = vmatpush1.msra.mxu0 0.0
        %609 = vmatprep.subr.mxu0 0.0
        %610 = vmatpush1.msra.mxu0 0.0
        %611 = vmatprep.subr.mxu0 0.0
        %612 = vmatpush1.msra.mxu0 %v572
        %613 = vmatprep.subr.mxu0 0.0
        %614 = vmatpush1.msra.mxu0 %v571
        %615 = vmatprep.subr.mxu0 0.0
        %616 = vmatpush1.msra.mxu0 %v570
        %617 = vmatprep.subr.mxu0 0.0
        %618 = vmatpush1.msra.mxu0 %v569
        %619 = vmatprep.subr.mxu0 0.0
        %620 = vmatpush2.msra.mxu0 0.0
        %621 = vmatprep.subr.mxu0 0.0
        %622 = vmatpush2.msra.mxu0 0.0
        %623 = vmatprep.subr.mxu0 0.0
        %624 = vmatpush2.msra.mxu0 0.0
        %625 = vmatprep.subr.mxu0 0.0
        %626 = vmatpush2.msra.mxu0 0.0
        %627 = vmatprep.subr.mxu0 0.0
        %628 = vmatpush2.msra.mxu0 0.0
        %629 = vmatprep.subr.mxu0 0.0
        %630 = vmatpush2.msra.mxu0 0.0
        %631 = vmatprep.subr.mxu0 0.0
        %632 = vmatpush2.msra.mxu0 0.0
        %633 = vmatprep.subr.mxu0 0.0
        %634 = vmatpush2.msra.mxu0 0.0
        %635 = vmatprep.subr.mxu0 0.0
        %636 = vmatpush2.msra.mxu0 0.0
        %637 = vmatprep.subr.mxu0 0.0
        %638 = vmatpush2.msra.mxu0 0.0
        %639 = vmatprep.subr.mxu0 0.0
        %640 = vmatpush2.msra.mxu0 0.0
        %641 = vmatprep.subr.mxu0 0.0
        %642 = vmatpush2.msra.mxu0 0.0
        %643 = vmatprep.subr.mxu0 0.0
        %644 = vmatpush2.msra.mxu0 0.0
        %645 = vmatprep.subr.mxu0 0.0
        %646 = vmatpush2.msra.mxu0 0.0
        %647 = vmatprep.subr.mxu0 0.0
        %648 = vmatpush2.msra.mxu0 0.0
        %649 = vmatprep.subr.mxu0 0.0
        %650 = vmatpush2.msra.mxu0 0.0
        %651 = vmatprep.mubr.f32.mxu0 0.0
        %652 = vmatmul.mubr.f32.gmra.mxu0 %v585
        %v653 = vpop.f32.mrf.mxu0
        %v654 = vadd.f32 %v574, %v653
        %v655 = vpop.f32.mrf.mxu0
        %656 = vdwg.mxu0
        %vm657 = vcmask 778240
        %658 = vst.msk [vmem:[#allocation3] sm:$0x1] %vm657, %v654
        %s659 = scalar_lea.vmem [#allocation2], %s581
        %v660 = vld [vmem:[%s659] sm:$0x1]
        %v661 = vld [vmem:[#allocation3] sm:$0x1]
        %v662 = vadd.f32 %v660, %v661
        %v663 = vxor.u32 %v662, 2147483648
        %v664 = vmul.f32 %v663, 1.442695
        %v665 = vpow.pop %v664
        %v666 = vadd.f32 %v665, 1.0
        %v667 = vrcp.pop %v666
        %v668 = vmul.f32 1.0, %v667
        %v670 = vlaneseq
        %v671 = vshrl.u32 %v670, 7
        %v672 = vsub.s32 0, %v671
        %v673 = vrot.slane %v661, %v672
        %674 = vrot.lane.b32.xlu0 %v673, 64
        %v675 = vpop.permute.xlu0 %674
        %v677 = vmul.f32 %v668, %v675
        %679 = vrot.lane.b32.xlu0 %v677, 64
        %v680 = vpop.permute.xlu0 %679
        %v682 = vadd.f32 %v660, %v680
        %v683 = vtanh.pop %v682
        %v684 = vsub.f32 1.0, %v668
        %686 = vrot.lane.b32.xlu0 %v683, 96
        %v687 = vpop.permute.xlu0 %686
        %v689 = vmul.f32 %v684, %v687
        %v690 = vlaneseq
        %v691 = vshrl.u32 %v690, 7
        %v692 = vsub.s32 0, %v691
        %v693 = vrot.slane %v582, %v692
        %694 = vrot.lane.b32.xlu0 %v693, 32
        %v695 = vpop.permute.xlu0 %694
        %v697 = vmul.f32 %v668, %v695
        %v698 = vadd.f32 %v689, %v697
        %700 = vrot.lane.b32.xlu0 %v698, 96
        %v701 = vpop.permute.xlu0 %700
        %703 = vst.msk [vmem:[#allocation4] sm:$0x1] %vm328, %v701
        %s704 = scalar_lea.vmem %s224, %s581
        %vm705 = vcmask 516352
        %706 = vst.msk [vmem:[%s704] sm:$0x1] %vm705, %v698
      $region52: #{forward.4} parent=39 // loop_footer
        %s580 = sadd.s32 1, %s576
      $region53: #{forward.4} parent=39 // loop_footer_branch
        %575 = sbr.rel target = $region49
      $region54: #{forward.4} parent=39 // loop_exit
        _
      %p707 = scmp.lt.s32.totalorder %s16, 1
      %s708 = scalar_select %p707, %s16, 1
      %s709 = smul.addr %s708, 2
      %s710 = smul.addr %s709, 8
      %s711 = scalar_lea.vmem %s5, %s710
      // Predicated region
      $region55: #{forward.4} parent=39 // pred_check
        %p712 = pneg %p144
      $region56: #{forward.4} parent=39 // pred_check_branch
        %714 = sbr.rel (%p712) target = $region58
      $region57: #{forward.4} parent=39 // pred_region
        _
      $region58: #{forward.4} parent=39 // pred_fallthru
        _
    $region40: #{forward.4} parent=5 // pred_fallthru
      _
    %p715 = scmp.le.s32.totalorder 2, %s11
    // Predicated region
    $region59: #{forward.4} parent=5 // pred_check
      %p716 = pneg %p715
    $region60: #{forward.4} parent=5 // pred_check_branch
      %718 = sbr.rel (%p716) target = $region62
    $region61: #{forward.4} parent=5 // pred_region
      %s719 = ssub.s32 %s11, 2
      // Predicated region
      $region63: #{forward.4} parent=61 // pred_check
        %p720 = pneg %p150
      $region64: #{forward.4} parent=61 // pred_check_branch
        %722 = sbr.rel (%p720) target = $region66
      $region65: #{forward.4} parent=61 // pred_region
        %p723 = scmp.lt.s32.totalorder %s17, 1
        %s724 = scalar_select %p723, %s17, 1
        %s725 = smul.addr %s724, 2
        %s726 = smul.addr %s725, 8
        %s727 = scalar_lea.vmem %s5, %s726
      $region66: #{forward.4} parent=61 // pred_fallthru
        _
    $region62: #{forward.4} parent=5 // pred_fallthru
      _
  $region6: #{forward.4} parent=0 // loop_footer
    %s15 = sadd.s32 1, %s11
  $region7: #{forward.4} parent=0 // loop_footer_branch
    %10 = sbr.rel target = $region3
  $region8: #{forward.4} parent=0 // loop_exit
    _

// kernel: forward.3
$region0: #{forward.3}
  #allocation0 [shape = 'u32[]', space=smem, size = 0x4, offset = 0x4, fixed_abs, tag = 'smem constant byte address 0x4 - core index']
  #allocation1 [shape = 'u32[144,128]{1,0:T(1,128)}', space=vmem, size = 0x12000, scoped, tag = 'internal scratch']
  #allocation2 [shape = 'f32[48,128]{1,0:T(8,128)}', space=vmem, size = 0x6000, scoped, tag = 'scratch operand']
  %s0 = inlined_call_operand.vmem [shape: f32[2,62,4], index: 0, kind: input, shape index: {}]
  %s1 = inlined_call_operand.vmem [shape: f32[15,4,128], index: 1, kind: input, shape index: {}]
  %s2 = inlined_call_operand.vmem [shape: f32[1,128], index: 2, kind: input, shape index: {}]
  %s3 = inlined_call_operand.vmem [shape: f32[1,128], index: 3, kind: input, shape index: {}]
  %s4 = inlined_call_operand.vmem [shape: f32[2,16,128], index: 4, kind: output, shape index: {}]
  %s5 = sld [smem:[#allocation0]]
  $region49: #{forward.3} parent=0
    _
  %s7 = ssub.s32 1, %s5
  %s8 = scalar_select 0, %s7, %s5
  loop: start=0, step=1, limit=4
  $region2: #{forward.3} parent=0 // loop_pre_header
    _
  $region3: #{forward.3} parent=0 // loop_header
    %s10 = sphi 0, %s14
    %p11 = scmp.ge.s32.totalorder %s10, 4
    %s20 = sphi 0, %s22
    %s23 = sphi 0, %s20
    %s24 = sphi 0, %s23
    %s40 = sphi 0, %s24
    %s44 = sphi 0, %s44
    %s46 = sphi 0, %s44
    %s47 = sphi 0, %s46
    %s61 = sphi 0, %s47
    %s65 = sphi 0, %s65
    %s67 = sphi 0, %s65
    %s68 = sphi 0, %s67
    %s82 = sphi 0, %s68
    %s86 = sphi 0, %s86
    %s88 = sphi 0, %s86
    %s89 = sphi 0, %s88
    %s103 = sphi 0, %s89
    %s109 = sphi 0, %s111
    %s112 = sphi 0, %s109
    %s113 = sphi 0, %s112
    %s129 = sphi 0, %s113
  $region4: #{forward.3} parent=0 // loop_header_branch
    %13 = sbr.rel (%p11) target = $region8
  $region5: #{forward.3} parent=0 // loop_body
    %s15 = ssub.s32 %s10, 1
    %s16 = ssub.s32 %s10, 2
    %s17 = sadd.s32 %s10, 1
    %s18 = ssub.s32 %s10, %s17
    %p19 = scmp.eq.s32.totalorder %s18, 0
    %s21 = sadd.s32 %s20, 1
    %s22 = scalar_select %p19, %s20, %s21
    %p25 = pneg %p19
    %p26 = scmp.eq.s32.totalorder %s10, 1
    %p27 = por %p25, %p26
    %p28 = scmp.ne.s32.totalorder %s20, %s23
    %p29 = scmp.eq.s32.totalorder %s10, 0
    %p30 = por %p28, %p29
    %p31 = scmp.ne.s32.totalorder %s20, %s23
    %p32 = scmp.eq.s32.totalorder %s15, 1
    %p33 = por %p31, %p32
    %p34 = scmp.ne.s32.totalorder %s23, %s24
    %p35 = scmp.eq.s32.totalorder %s15, 0
    %p36 = por %p34, %p35
    %p37 = scmp.ne.s32.totalorder %s23, %s24
    %p38 = scmp.eq.s32.totalorder %s16, 1
    %p39 = por %p37, %p38
    %p41 = scmp.ne.s32.totalorder %s24, %s40
    %p42 = scmp.eq.s32.totalorder %s16, 0
    %p43 = por %p41, %p42
    %s45 = sadd.s32 %s44, 1
    %p48 = scmp.eq.s32.totalorder %s10, 1
    %p49 = scmp.ne.s32.totalorder %s44, %s46
    %p50 = scmp.eq.s32.totalorder %s10, 0
    %p51 = por %p49, %p50
    %p52 = scmp.ne.s32.totalorder %s44, %s46
    %p53 = scmp.eq.s32.totalorder %s15, 1
    %p54 = por %p52, %p53
    %p55 = scmp.ne.s32.totalorder %s46, %s47
    %p56 = scmp.eq.s32.totalorder %s15, 0
    %p57 = por %p55, %p56
    %p58 = scmp.ne.s32.totalorder %s46, %s47
    %p59 = scmp.eq.s32.totalorder %s16, 1
    %p60 = por %p58, %p59
    %p62 = scmp.ne.s32.totalorder %s47, %s61
    %p63 = scmp.eq.s32.totalorder %s16, 0
    %p64 = por %p62, %p63
    %s66 = sadd.s32 %s65, 1
    %p69 = scmp.eq.s32.totalorder %s10, 1
    %p70 = scmp.ne.s32.totalorder %s65, %s67
    %p71 = scmp.eq.s32.totalorder %s10, 0
    %p72 = por %p70, %p71
    %p73 = scmp.ne.s32.totalorder %s65, %s67
    %p74 = scmp.eq.s32.totalorder %s15, 1
    %p75 = por %p73, %p74
    %p76 = scmp.ne.s32.totalorder %s67, %s68
    %p77 = scmp.eq.s32.totalorder %s15, 0
    %p78 = por %p76, %p77
    %p79 = scmp.ne.s32.totalorder %s67, %s68
    %p80 = scmp.eq.s32.totalorder %s16, 1
    %p81 = por %p79, %p80
    %p83 = scmp.ne.s32.totalorder %s68, %s82
    %p84 = scmp.eq.s32.totalorder %s16, 0
    %p85 = por %p83, %p84
    %s87 = sadd.s32 %s86, 1
    %p90 = scmp.eq.s32.totalorder %s10, 1
    %p91 = scmp.ne.s32.totalorder %s86, %s88
    %p92 = scmp.eq.s32.totalorder %s10, 0
    %p93 = por %p91, %p92
    %p94 = scmp.ne.s32.totalorder %s86, %s88
    %p95 = scmp.eq.s32.totalorder %s15, 1
    %p96 = por %p94, %p95
    %p97 = scmp.ne.s32.totalorder %s88, %s89
    %p98 = scmp.eq.s32.totalorder %s15, 0
    %p99 = por %p97, %p98
    %p100 = scmp.ne.s32.totalorder %s88, %s89
    %p101 = scmp.eq.s32.totalorder %s16, 1
    %p102 = por %p100, %p101
    %p104 = scmp.ne.s32.totalorder %s89, %s103
    %p105 = scmp.eq.s32.totalorder %s16, 0
    %p106 = por %p104, %p105
    %s107 = ssub.s32 %s10, %s17
    %p108 = scmp.eq.s32.totalorder %s107, 0
    %s110 = sadd.s32 %s109, 1
    %s111 = scalar_select %p108, %s109, %s110
    %p114 = pneg %p108
    %p115 = scmp.eq.s32.totalorder %s10, 1
    %p116 = por %p114, %p115
    %p117 = scmp.ne.s32.totalorder %s109, %s112
    %p118 = scmp.eq.s32.totalorder %s10, 0
    %p119 = por %p117, %p118
    %p120 = scmp.ne.s32.totalorder %s109, %s112
    %p121 = scmp.eq.s32.totalorder %s15, 1
    %p122 = por %p120, %p121
    %p123 = scmp.ne.s32.totalorder %s112, %s113
    %p124 = scmp.eq.s32.totalorder %s15, 0
    %p125 = por %p123, %p124
    %p126 = scmp.ne.s32.totalorder %s112, %s113
    %p127 = scmp.eq.s32.totalorder %s16, 1
    %p128 = por %p126, %p127
    %p130 = scmp.ne.s32.totalorder %s113, %s129
    %p131 = scmp.eq.s32.totalorder %s16, 0
    %p132 = por %p130, %p131
    %p133 = scmp.le.s32.totalorder 1, %s10
    %p134 = scmp.lt.s32.totalorder %s10, 3
    %p135 = pnand %p133, %p134
    %p136 = pneg %p135
    // Predicated region
    $region9: #{forward.3} parent=5 // pred_check
      _
    $region10: #{forward.3} parent=5 // pred_check_branch
      %138 = sbr.rel (%p135) target = $region12
    $region11: #{forward.3} parent=5 // pred_region
      %s139 = ssub.s32 %s10, 1
      // Predicated region
      $region13: #{forward.3} parent=11 // pred_check
        %p140 = pneg %p57
      $region14: #{forward.3} parent=11 // pred_check_branch
        %142 = sbr.rel (%p140) target = $region16
      $region15: #{forward.3} parent=11 // pred_region
        _
      $region16: #{forward.3} parent=11 // pred_fallthru
        _
      // Predicated region
      $region17: #{forward.3} parent=11 // pred_check
        %p143 = pneg %p78
      $region18: #{forward.3} parent=11 // pred_check_branch
        %145 = sbr.rel (%p143) target = $region20
      $region19: #{forward.3} parent=11 // pred_region
        _
      $region20: #{forward.3} parent=11 // pred_fallthru
        _
      // Predicated region
      $region21: #{forward.3} parent=11 // pred_check
        %p146 = pneg %p99
      $region22: #{forward.3} parent=11 // pred_check_branch
        %148 = sbr.rel (%p146) target = $region24
      $region23: #{forward.3} parent=11 // pred_region
        _
      $region24: #{forward.3} parent=11 // pred_fallthru
        _
    $region12: #{forward.3} parent=5 // pred_fallthru
      _
    %p149 = scmp.lt.s32.totalorder %s10, 2
    // Predicated region
    $region25: #{forward.3} parent=5 // pred_check
      %p150 = pneg %p149
    $region26: #{forward.3} parent=5 // pred_check_branch
      %152 = sbr.rel (%p150) target = $region28
    $region27: #{forward.3} parent=5 // pred_region
      // Predicated region
      $region29: #{forward.3} parent=27 // pred_check
        %p153 = pneg %p30
      $region30: #{forward.3} parent=27 // pred_check_branch
        %155 = sbr.rel (%p153) target = $region32
      $region31: #{forward.3} parent=27 // pred_region
        %p156 = scmp.lt.s32.totalorder %s10, 1
        %s157 = scalar_select %p156, %s10, 1
        %s158 = smul.addr %s157, 8
        %s159 = smul.addr %s158, 8
        %s160 = scalar_lea.vmem %s0, %s159
      $region32: #{forward.3} parent=27 // pred_fallthru
        _
    $region28: #{forward.3} parent=5 // pred_fallthru
      _
    %p161 = scmp.le.s32.totalorder 1, %s10
    %p162 = scmp.lt.s32.totalorder %s10, 3
    %p163 = pnand %p161, %p162
    %p164 = pneg %p163
    // Predicated region
    $region33: #{forward.3} parent=5 // pred_check
      _
    $region34: #{forward.3} parent=5 // pred_check_branch
      %166 = sbr.rel (%p163) target = $region36
    $region35: #{forward.3} parent=5 // pred_region
      %s167 = ssub.s32 %s10, 1
      %p168 = scmp.lt.s32.totalorder %s15, 1
      %s169 = scalar_select %p168, %s15, 1
      %s170 = smul.addr %s169, 8
      %s171 = smul.addr %s170, 8
      %s172 = scalar_lea.vmem %s0, %s171
      %p173 = pneg %p36
      %p174 = pneg %p33
      %p175 = pneg %p57
      %p176 = pneg %p54
      %p177 = pneg %p78
      %p178 = pneg %p75
      %p179 = pneg %p99
      %p180 = pneg %p96
      %p181 = pneg %p125
      %p182 = pneg %p122
      %p183 = scmp.lt.s32.totalorder %s15, 1
      %s184 = scalar_select %p183, %s15, 1
      %s185 = smul.addr %s184, 2
      %s186 = smul.addr %s185, 8
      %s187 = scalar_lea.vmem %s4, %s186
      %p188 = scmp.lt.s32.totalorder %s15, 1
      %s189 = scalar_select %p188, %s15, 1
      %s190 = smul.addr %s189, 8
      %s191 = smul.addr %s190, 8
      %s192 = scalar_lea.vmem %s0, %s191
      %p193 = scmp.lt.s32.totalorder %s15, 1
      %s194 = scalar_select %p193, %s15, 1
      %s195 = smul.addr %s194, 2
      %s196 = smul.addr %s195, 8
      %s197 = scalar_lea.vmem %s4, %s196
      %v198 = vld [vmem:[%s192] sm:$0xff]
      %v199 = vld [vmem:[%s192 + $0x8] sm:$0xff]
      %v200 = vld [vmem:[%s192 + $0x10] sm:$0xff]
      %v201 = vld [vmem:[%s192 + $0x18] sm:$0xff]
      %v202 = vld [vmem:[%s192 + $0x20] sm:$0xff]
      %v203 = vld [vmem:[%s192 + $0x28] sm:$0xff]
      %v204 = vld [vmem:[%s1] sm:$0xf]
      %v205 = vld [vmem:[%s192 + $0x1] sm:$0xff]
      %v206 = vld [vmem:[%s192 + $0x9] sm:$0xff]
      %v207 = vld [vmem:[%s192 + $0x11] sm:$0xff]
      %v208 = vld [vmem:[%s192 + $0x19] sm:$0xff]
      %v209 = vld [vmem:[%s192 + $0x21] sm:$0xff]
      %v210 = vld [vmem:[%s192 + $0x29] sm:$0xff]
      %s211 = scalar_lea.vmem %s1, 4
      %v212 = vld [vmem:[%s211] sm:$0xf]
      %vm213 = vcmask 31744
      %v215 = vsel %vm213, %v205, 0
      %v218 = vsel %vm213, %v206, 0
      %v221 = vsel %vm213, %v207, 0
      %v224 = vsel %vm213, %v208, 0
      %v227 = vsel %vm213, %v209, 0
      %v230 = vsel %vm213, %v210, 0
      %vm232 = vcmask 1043456
      %v234 = vsel %vm232, %v212, 0
      %236 = vmatprep.subr.mxu0 0.0
      %237 = vmatpush1.msra.mxu0 0.0
      %238 = vmatprep.subr.mxu0 0.0
      %239 = vmatpush1.msra.mxu0 0.0
      %240 = vmatprep.subr.mxu0 0.0
      %241 = vmatpush1.msra.mxu0 0.0
      %242 = vmatprep.subr.mxu0 0.0
      %243 = vmatpush1.msra.mxu0 0.0
      %244 = vmatprep.subr.mxu0 0.0
      %245 = vmatpush1.msra.mxu0 0.0
      %246 = vmatprep.subr.mxu0 0.0
      %247 = vmatpush1.msra.mxu0 0.0
      %248 = vmatprep.subr.mxu0 0.0
      %249 = vmatpush1.msra.mxu0 0.0
      %250 = vmatprep.subr.mxu0 0.0
      %251 = vmatpush1.msra.mxu0 0.0
      %252 = vmatprep.subr.mxu0 0.0
      %253 = vmatpush1.msra.mxu0 0.0
      %254 = vmatprep.subr.mxu0 0.0
      %255 = vmatpush1.msra.mxu0 0.0
      %256 = vmatprep.subr.mxu0 0.0
      %257 = vmatpush1.msra.mxu0 0.0
      %258 = vmatprep.subr.mxu0 0.0
      %259 = vmatpush1.msra.mxu0 0.0
      %260 = vmatprep.subr.mxu0 0.0
      %261 = vmatpush1.msra.mxu0 0.0
      %262 = vmatprep.subr.mxu0 0.0
      %263 = vmatpush1.msra.mxu0 0.0
      %264 = vmatprep.subr.mxu0 0.0
      %265 = vmatpush1.msra.mxu0 0.0
      %266 = vmatprep.subr.mxu0 0.0
      %267 = vmatpush1.msra.mxu0 %v234
      %268 = vmatprep.subr.mxu0 0.0
      %269 = vmatpush2.msra.mxu0 0.0
      %270 = vmatprep.subr.mxu0 0.0
      %271 = vmatpush2.msra.mxu0 0.0
      %272 = vmatprep.subr.mxu0 0.0
      %273 = vmatpush2.msra.mxu0 0.0
      %274 = vmatprep.subr.mxu0 0.0
      %275 = vmatpush2.msra.mxu0 0.0
      %276 = vmatprep.subr.mxu0 0.0
      %277 = vmatpush2.msra.mxu0 0.0
      %278 = vmatprep.subr.mxu0 0.0
      %279 = vmatpush2.msra.mxu0 0.0
      %280 = vmatprep.subr.mxu0 0.0
      %281 = vmatpush2.msra.mxu0 0.0
      %282 = vmatprep.subr.mxu0 0.0
      %283 = vmatpush2.msra.mxu0 0.0
      %284 = vmatprep.subr.mxu0 0.0
      %285 = vmatpush2.msra.mxu0 0.0
      %286 = vmatprep.subr.mxu0 0.0
      %287 = vmatpush2.msra.mxu0 0.0
      %288 = vmatprep.subr.mxu0 0.0
      %289 = vmatpush2.msra.mxu0 0.0
      %290 = vmatprep.subr.mxu0 0.0
      %291 = vmatpush2.msra.mxu0 0.0
      %292 = vmatprep.subr.mxu0 0.0
      %293 = vmatpush2.msra.mxu0 0.0
      %294 = vmatprep.subr.mxu0 0.0
      %295 = vmatpush2.msra.mxu0 0.0
      %296 = vmatprep.subr.mxu0 0.0
      %297 = vmatpush2.msra.mxu0 0.0
      %298 = vmatprep.subr.mxu0 0.0
      %299 = vmatpush2.msra.mxu0 0.0
      %300 = vmatprep.mubr.f32.mxu0 0.0
      %301 = vmatmul.mubr.f32.gmra.mxu0 %v215
      %v302 = vpop.f32.mrf.mxu0
      %v303 = vadd.f32 0.0, %v302
      %v304 = vpop.f32.mrf.mxu0
      %305 = vmatprep.mubr.f32.mxu0 0.0
      %306 = vmatmul.mubr.f32.gmra.mxu0 %v218
      %v307 = vpop.f32.mrf.mxu0
      %v308 = vadd.f32 0.0, %v307
      %v309 = vpop.f32.mrf.mxu0
      %310 = vmatprep.mubr.f32.mxu0 0.0
      %311 = vmatmul.mubr.f32.gmra.mxu0 %v221
      %v312 = vpop.f32.mrf.mxu0
      %v313 = vadd.f32 0.0, %v312
      %v314 = vpop.f32.mrf.mxu0
      %315 = vmatprep.mubr.f32.mxu0 0.0
      %316 = vmatmul.mubr.f32.gmra.mxu0 %v224
      %v317 = vpop.f32.mrf.mxu0
      %v318 = vadd.f32 0.0, %v317
      %v319 = vpop.f32.mrf.mxu0
      %320 = vmatprep.mubr.f32.mxu0 0.0
      %321 = vmatmul.mubr.f32.gmra.mxu0 %v227
      %v322 = vpop.f32.mrf.mxu0
      %v323 = vadd.f32 0.0, %v322
      %v324 = vpop.f32.mrf.mxu0
      %325 = vmatprep.mubr.f32.mxu0 0.0
      %326 = vmatmul.mubr.f32.gmra.mxu0 %v230
      %v327 = vpop.f32.mrf.mxu0
      %v328 = vadd.f32 0.0, %v327
      %v329 = vpop.f32.mrf.mxu0
      %330 = vdwg.mxu0
      %v332 = vsel %vm213, %v198, 0
      %v335 = vsel %vm213, %v199, 0
      %v338 = vsel %vm213, %v200, 0
      %v341 = vsel %vm213, %v201, 0
      %v344 = vsel %vm213, %v202, 0
      %v347 = vsel %vm213, %v203, 0
      %v350 = vsel %vm232, %v204, 0
      %352 = vmatprep.subr.mxu0 0.0
      %353 = vmatpush1.msra.mxu0 0.0
      %354 = vmatprep.subr.mxu0 0.0
      %355 = vmatpush1.msra.mxu0 0.0
      %356 = vmatprep.subr.mxu0 0.0
      %357 = vmatpush1.msra.mxu0 0.0
      %358 = vmatprep.subr.mxu0 0.0
      %359 = vmatpush1.msra.mxu0 0.0
      %360 = vmatprep.subr.mxu0 0.0
      %361 = vmatpush1.msra.mxu0 0.0
      %362 = vmatprep.subr.mxu0 0.0
      %363 = vmatpush1.msra.mxu0 0.0
      %364 = vmatprep.subr.mxu0 0.0
      %365 = vmatpush1.msra.mxu0 0.0
      %366 = vmatprep.subr.mxu0 0.0
      %367 = vmatpush1.msra.mxu0 0.0
      %368 = vmatprep.subr.mxu0 0.0
      %369 = vmatpush1.msra.mxu0 0.0
      %370 = vmatprep.subr.mxu0 0.0
      %371 = vmatpush1.msra.mxu0 0.0
      %372 = vmatprep.subr.mxu0 0.0
      %373 = vmatpush1.msra.mxu0 0.0
      %374 = vmatprep.subr.mxu0 0.0
      %375 = vmatpush1.msra.mxu0 0.0
      %376 = vmatprep.subr.mxu0 0.0
      %377 = vmatpush1.msra.mxu0 0.0
      %378 = vmatprep.subr.mxu0 0.0
      %379 = vmatpush1.msra.mxu0 0.0
      %380 = vmatprep.subr.mxu0 0.0
      %381 = vmatpush1.msra.mxu0 0.0
      %382 = vmatprep.subr.mxu0 0.0
      %383 = vmatpush1.msra.mxu0 %v350
      %384 = vmatprep.subr.mxu0 0.0
      %385 = vmatpush2.msra.mxu0 0.0
      %386 = vmatprep.subr.mxu0 0.0
      %387 = vmatpush2.msra.mxu0 0.0
      %388 = vmatprep.subr.mxu0 0.0
      %389 = vmatpush2.msra.mxu0 0.0
      %390 = vmatprep.subr.mxu0 0.0
      %391 = vmatpush2.msra.mxu0 0.0
      %392 = vmatprep.subr.mxu0 0.0
      %393 = vmatpush2.msra.mxu0 0.0
      %394 = vmatprep.subr.mxu0 0.0
      %395 = vmatpush2.msra.mxu0 0.0
      %396 = vmatprep.subr.mxu0 0.0
      %397 = vmatpush2.msra.mxu0 0.0
      %398 = vmatprep.subr.mxu0 0.0
      %399 = vmatpush2.msra.mxu0 0.0
      %400 = vmatprep.subr.mxu0 0.0
      %401 = vmatpush2.msra.mxu0 0.0
      %402 = vmatprep.subr.mxu0 0.0
      %403 = vmatpush2.msra.mxu0 0.0
      %404 = vmatprep.subr.mxu0 0.0
      %405 = vmatpush2.msra.mxu0 0.0
      %406 = vmatprep.subr.mxu0 0.0
      %407 = vmatpush2.msra.mxu0 0.0
      %408 = vmatprep.subr.mxu0 0.0
      %409 = vmatpush2.msra.mxu0 0.0
      %410 = vmatprep.subr.mxu0 0.0
      %411 = vmatpush2.msra.mxu0 0.0
      %412 = vmatprep.subr.mxu0 0.0
      %413 = vmatpush2.msra.mxu0 0.0
      %414 = vmatprep.subr.mxu0 0.0
      %415 = vmatpush2.msra.mxu0 0.0
      %416 = vmatprep.mubr.f32.mxu0 0.0
      %417 = vmatmul.mubr.f32.gmra.mxu0 %v332
      %v418 = vpop.f32.mrf.mxu0
      %v419 = vadd.f32 %v303, %v418
      %v420 = vpop.f32.mrf.mxu0
      %421 = vmatprep.mubr.f32.mxu0 0.0
      %422 = vmatmul.mubr.f32.gmra.mxu0 %v335
      %v423 = vpop.f32.mrf.mxu0
      %v424 = vadd.f32 %v308, %v423
      %v425 = vpop.f32.mrf.mxu0
      %426 = vmatprep.mubr.f32.mxu0 0.0
      %427 = vmatmul.mubr.f32.gmra.mxu0 %v338
      %v428 = vpop.f32.mrf.mxu0
      %v429 = vadd.f32 %v313, %v428
      %v430 = vpop.f32.mrf.mxu0
      %431 = vmatprep.mubr.f32.mxu0 0.0
      %432 = vmatmul.mubr.f32.gmra.mxu0 %v341
      %v433 = vpop.f32.mrf.mxu0
      %v434 = vadd.f32 %v318, %v433
      %v435 = vpop.f32.mrf.mxu0
      %436 = vmatprep.mubr.f32.mxu0 0.0
      %437 = vmatmul.mubr.f32.gmra.mxu0 %v344
      %v438 = vpop.f32.mrf.mxu0
      %v439 = vadd.f32 %v323, %v438
      %v440 = vpop.f32.mrf.mxu0
      %441 = vmatprep.mubr.f32.mxu0 0.0
      %442 = vmatmul.mubr.f32.gmra.mxu0 %v347
      %v443 = vpop.f32.mrf.mxu0
      %v444 = vadd.f32 %v328, %v443
      %v445 = vpop.f32.mrf.mxu0
      %446 = vdwg.mxu0
      %v447 = vld [vmem:[%s192 + $0x2] sm:$0xff]
      %v448 = vld [vmem:[%s192 + $0xa] sm:$0xff]
      %v449 = vld [vmem:[%s192 + $0x12] sm:$0xff]
      %v450 = vld [vmem:[%s192 + $0x1a] sm:$0xff]
      %v451 = vld [vmem:[%s192 + $0x22] sm:$0xff]
      %v452 = vld [vmem:[%s192 + $0x2a] sm:$0xff]
      %s453 = scalar_lea.vmem %s1, 8
      %v454 = vld [vmem:[%s453] sm:$0xf]
      %v456 = vsel %vm213, %v447, 0
      %v459 = vsel %vm213, %v448, 0
      %v462 = vsel %vm213, %v449, 0
      %v465 = vsel %vm213, %v450, 0
      %v468 = vsel %vm213, %v451, 0
      %v471 = vsel %vm213, %v452, 0
      %v474 = vsel %vm232, %v454, 0
      %476 = vmatprep.subr.mxu0 0.0
      %477 = vmatpush1.msra.mxu0 0.0
      %478 = vmatprep.subr.mxu0 0.0
      %479 = vmatpush1.msra.mxu0 0.0
      %480 = vmatprep.subr.mxu0 0.0
      %481 = vmatpush1.msra.mxu0 0.0
      %482 = vmatprep.subr.mxu0 0.0
      %483 = vmatpush1.msra.mxu0 0.0
      %484 = vmatprep.subr.mxu0 0.0
      %485 = vmatpush1.msra.mxu0 0.0
      %486 = vmatprep.subr.mxu0 0.0
      %487 = vmatpush1.msra.mxu0 0.0
      %488 = vmatprep.subr.mxu0 0.0
      %489 = vmatpush1.msra.mxu0 0.0
      %490 = vmatprep.subr.mxu0 0.0
      %491 = vmatpush1.msra.mxu0 0.0
      %492 = vmatprep.subr.mxu0 0.0
      %493 = vmatpush1.msra.mxu0 0.0
      %494 = vmatprep.subr.mxu0 0.0
      %495 = vmatpush1.msra.mxu0 0.0
      %496 = vmatprep.subr.mxu0 0.0
      %497 = vmatpush1.msra.mxu0 0.0
      %498 = vmatprep.subr.mxu0 0.0
      %499 = vmatpush1.msra.mxu0 0.0
      %500 = vmatprep.subr.mxu0 0.0
      %501 = vmatpush1.msra.mxu0 0.0
      %502 = vmatprep.subr.mxu0 0.0
      %503 = vmatpush1.msra.mxu0 0.0
      %504 = vmatprep.subr.mxu0 0.0
      %505 = vmatpush1.msra.mxu0 0.0
      %506 = vmatprep.subr.mxu0 0.0
      %507 = vmatpush1.msra.mxu0 %v474
      %508 = vmatprep.subr.mxu0 0.0
      %509 = vmatpush2.msra.mxu0 0.0
      %510 = vmatprep.subr.mxu0 0.0
      %511 = vmatpush2.msra.mxu0 0.0
      %512 = vmatprep.subr.mxu0 0.0
      %513 = vmatpush2.msra.mxu0 0.0
      %514 = vmatprep.subr.mxu0 0.0
      %515 = vmatpush2.msra.mxu0 0.0
      %516 = vmatprep.subr.mxu0 0.0
      %517 = vmatpush2.msra.mxu0 0.0
      %518 = vmatprep.subr.mxu0 0.0
      %519 = vmatpush2.msra.mxu0 0.0
      %520 = vmatprep.subr.mxu0 0.0
      %521 = vmatpush2.msra.mxu0 0.0
      %522 = vmatprep.subr.mxu0 0.0
      %523 = vmatpush2.msra.mxu0 0.0
      %524 = vmatprep.subr.mxu0 0.0
      %525 = vmatpush2.msra.mxu0 0.0
      %526 = vmatprep.subr.mxu0 0.0
      %527 = vmatpush2.msra.mxu0 0.0
      %528 = vmatprep.subr.mxu0 0.0
      %529 = vmatpush2.msra.mxu0 0.0
      %530 = vmatprep.subr.mxu0 0.0
      %531 = vmatpush2.msra.mxu0 0.0
      %532 = vmatprep.subr.mxu0 0.0
      %533 = vmatpush2.msra.mxu0 0.0
      %534 = vmatprep.subr.mxu0 0.0
      %535 = vmatpush2.msra.mxu0 0.0
      %536 = vmatprep.subr.mxu0 0.0
      %537 = vmatpush2.msra.mxu0 0.0
      %538 = vmatprep.subr.mxu0 0.0
      %539 = vmatpush2.msra.mxu0 0.0
      %540 = vmatprep.mubr.f32.mxu0 0.0
      %541 = vmatmul.mubr.f32.gmra.mxu0 %v456
      %v542 = vpop.f32.mrf.mxu0
      %v543 = vadd.f32 0.0, %v542
      %v544 = vpop.f32.mrf.mxu0
      %545 = vmatprep.mubr.f32.mxu0 0.0
      %546 = vmatmul.mubr.f32.gmra.mxu0 %v459
      %v547 = vpop.f32.mrf.mxu0
      %v548 = vadd.f32 0.0, %v547
      %v549 = vpop.f32.mrf.mxu0
      %550 = vmatprep.mubr.f32.mxu0 0.0
      %551 = vmatmul.mubr.f32.gmra.mxu0 %v462
      %v552 = vpop.f32.mrf.mxu0
      %v553 = vadd.f32 0.0, %v552
      %v554 = vpop.f32.mrf.mxu0
      %555 = vmatprep.mubr.f32.mxu0 0.0
      %556 = vmatmul.mubr.f32.gmra.mxu0 %v465
      %v557 = vpop.f32.mrf.mxu0
      %v558 = vadd.f32 0.0, %v557
      %v559 = vpop.f32.mrf.mxu0
      %560 = vmatprep.mubr.f32.mxu0 0.0
      %561 = vmatmul.mubr.f32.gmra.mxu0 %v468
      %v562 = vpop.f32.mrf.mxu0
      %v563 = vadd.f32 0.0, %v562
      %v564 = vpop.f32.mrf.mxu0
      %565 = vmatprep.mubr.f32.mxu0 0.0
      %566 = vmatmul.mubr.f32.gmra.mxu0 %v471
      %v567 = vpop.f32.mrf.mxu0
      %v568 = vadd.f32 0.0, %v567
      %v569 = vpop.f32.mrf.mxu0
      %570 = vdwg.mxu0
      %v571 = vadd.f32 %v419, %v543
      %v572 = vadd.f32 %v424, %v548
      %v573 = vadd.f32 %v429, %v553
      %v574 = vadd.f32 %v434, %v558
      %v575 = vadd.f32 %v439, %v563
      %v576 = vadd.f32 %v444, %v568
      %v577 = vld [vmem:[%s192 + $0x3] sm:$0xff]
      %v578 = vld [vmem:[%s192 + $0xb] sm:$0xff]
      %v579 = vld [vmem:[%s192 + $0x13] sm:$0xff]
      %v580 = vld [vmem:[%s192 + $0x1b] sm:$0xff]
      %v581 = vld [vmem:[%s192 + $0x23] sm:$0xff]
      %v582 = vld [vmem:[%s192 + $0x2b] sm:$0xff]
      %s583 = scalar_lea.vmem %s1, 12
      %v584 = vld [vmem:[%s583] sm:$0xf]
      %v586 = vsel %vm213, %v577, 0
      %v589 = vsel %vm213, %v578, 0
      %v592 = vsel %vm213, %v579, 0
      %v595 = vsel %vm213, %v580, 0
      %v598 = vsel %vm213, %v581, 0
      %v601 = vsel %vm213, %v582, 0
      %v604 = vsel %vm232, %v584, 0
      %606 = vmatprep.subr.mxu0 0.0
      %607 = vmatpush1.msra.mxu0 0.0
      %608 = vmatprep.subr.mxu0 0.0
      %609 = vmatpush1.msra.mxu0 0.0
      %610 = vmatprep.subr.mxu0 0.0
      %611 = vmatpush1.msra.mxu0 0.0
      %612 = vmatprep.subr.mxu0 0.0
      %613 = vmatpush1.msra.mxu0 0.0
      %614 = vmatprep.subr.mxu0 0.0
      %615 = vmatpush1.msra.mxu0 0.0
      %616 = vmatprep.subr.mxu0 0.0
      %617 = vmatpush1.msra.mxu0 0.0
      %618 = vmatprep.subr.mxu0 0.0
      %619 = vmatpush1.msra.mxu0 0.0
      %620 = vmatprep.subr.mxu0 0.0
      %621 = vmatpush1.msra.mxu0 0.0
      %622 = vmatprep.subr.mxu0 0.0
      %623 = vmatpush1.msra.mxu0 0.0
      %624 = vmatprep.subr.mxu0 0.0
      %625 = vmatpush1.msra.mxu0 0.0
      %626 = vmatprep.subr.mxu0 0.0
      %627 = vmatpush1.msra.mxu0 0.0
      %628 = vmatprep.subr.mxu0 0.0
      %629 = vmatpush1.msra.mxu0 0.0
      %630 = vmatprep.subr.mxu0 0.0
      %631 = vmatpush1.msra.mxu0 0.0
      %632 = vmatprep.subr.mxu0 0.0
      %633 = vmatpush1.msra.mxu0 0.0
      %634 = vmatprep.subr.mxu0 0.0
      %635 = vmatpush1.msra.mxu0 0.0
      %636 = vmatprep.subr.mxu0 0.0
      %637 = vmatpush1.msra.mxu0 %v604
      %638 = vmatprep.subr.mxu0 0.0
      %639 = vmatpush2.msra.mxu0 0.0
      %640 = vmatprep.subr.mxu0 0.0
      %641 = vmatpush2.msra.mxu0 0.0
      %642 = vmatprep.subr.mxu0 0.0
      %643 = vmatpush2.msra.mxu0 0.0
      %644 = vmatprep.subr.mxu0 0.0
      %645 = vmatpush2.msra.mxu0 0.0
      %646 = vmatprep.subr.mxu0 0.0
      %647 = vmatpush2.msra.mxu0 0.0
      %648 = vmatprep.subr.mxu0 0.0
      %649 = vmatpush2.msra.mxu0 0.0
      %650 = vmatprep.subr.mxu0 0.0
      %651 = vmatpush2.msra.mxu0 0.0
      %652 = vmatprep.subr.mxu0 0.0
      %653 = vmatpush2.msra.mxu0 0.0
      %654 = vmatprep.subr.mxu0 0.0
      %655 = vmatpush2.msra.mxu0 0.0
      %656 = vmatprep.subr.mxu0 0.0
      %657 = vmatpush2.msra.mxu0 0.0
      %658 = vmatprep.subr.mxu0 0.0
      %659 = vmatpush2.msra.mxu0 0.0
      %660 = vmatprep.subr.mxu0 0.0
      %661 = vmatpush2.msra.mxu0 0.0
      %662 = vmatprep.subr.mxu0 0.0
      %663 = vmatpush2.msra.mxu0 0.0
      %664 = vmatprep.subr.mxu0 0.0
      %665 = vmatpush2.msra.mxu0 0.0
      %666 = vmatprep.subr.mxu0 0.0
      %667 = vmatpush2.msra.mxu0 0.0
      %668 = vmatprep.subr.mxu0 0.0
      %669 = vmatpush2.msra.mxu0 0.0
      %670 = vmatprep.mubr.f32.mxu0 0.0
      %671 = vmatmul.mubr.f32.gmra.mxu0 %v586
      %v672 = vpop.f32.mrf.mxu0
      %v673 = vadd.f32 0.0, %v672
      %v674 = vpop.f32.mrf.mxu0
      %675 = vmatprep.mubr.f32.mxu0 0.0
      %676 = vmatmul.mubr.f32.gmra.mxu0 %v589
      %v677 = vpop.f32.mrf.mxu0
      %v678 = vadd.f32 0.0, %v677
      %v679 = vpop.f32.mrf.mxu0
      %680 = vmatprep.mubr.f32.mxu0 0.0
      %681 = vmatmul.mubr.f32.gmra.mxu0 %v592
      %v682 = vpop.f32.mrf.mxu0
      %v683 = vadd.f32 0.0, %v682
      %v684 = vpop.f32.mrf.mxu0
      %685 = vmatprep.mubr.f32.mxu0 0.0
      %686 = vmatmul.mubr.f32.gmra.mxu0 %v595
      %v687 = vpop.f32.mrf.mxu0
      %v688 = vadd.f32 0.0, %v687
      %v689 = vpop.f32.mrf.mxu0
      %690 = vmatprep.mubr.f32.mxu0 0.0
      %691 = vmatmul.mubr.f32.gmra.mxu0 %v598
      %v692 = vpop.f32.mrf.mxu0
      %v693 = vadd.f32 0.0, %v692
      %v694 = vpop.f32.mrf.mxu0
      %695 = vmatprep.mubr.f32.mxu0 0.0
      %696 = vmatmul.mubr.f32.gmra.mxu0 %v601
      %v697 = vpop.f32.mrf.mxu0
      %v698 = vadd.f32 0.0, %v697
      %v699 = vpop.f32.mrf.mxu0
      %700 = vdwg.mxu0
      %v701 = vadd.f32 %v571, %v673
      %v702 = vadd.f32 %v572, %v678
      %v703 = vadd.f32 %v573, %v683
      %v704 = vadd.f32 %v574, %v688
      %v705 = vadd.f32 %v575, %v693
      %v706 = vadd.f32 %v576, %v698
      %v707 = vld [vmem:[%s192 + $0x4] sm:$0xff]
      %v708 = vld [vmem:[%s192 + $0xc] sm:$0xff]
      %v709 = vld [vmem:[%s192 + $0x14] sm:$0xff]
      %v710 = vld [vmem:[%s192 + $0x1c] sm:$0xff]
      %v711 = vld [vmem:[%s192 + $0x24] sm:$0xff]
      %v712 = vld [vmem:[%s192 + $0x2c] sm:$0xff]
      %s713 = scalar_lea.vmem %s1, 16
      %v714 = vld [vmem:[%s713] sm:$0xf]
      %v716 = vsel %vm213, %v707, 0
      %v719 = vsel %vm213, %v708, 0
      %v722 = vsel %vm213, %v709, 0
      %v725 = vsel %vm213, %v710, 0
      %v728 = vsel %vm213, %v711, 0
      %v731 = vsel %vm213, %v712, 0
      %v734 = vsel %vm232, %v714, 0
      %736 = vmatprep.subr.mxu0 0.0
      %737 = vmatpush1.msra.mxu0 0.0
      %738 = vmatprep.subr.mxu0 0.0
      %739 = vmatpush1.msra.mxu0 0.0
      %740 = vmatprep.subr.mxu0 0.0
      %741 = vmatpush1.msra.mxu0 0.0
      %742 = vmatprep.subr.mxu0 0.0
      %743 = vmatpush1.msra.mxu0 0.0
      %744 = vmatprep.subr.mxu0 0.0
      %745 = vmatpush1.msra.mxu0 0.0
      %746 = vmatprep.subr.mxu0 0.0
      %747 = vmatpush1.msra.mxu0 0.0
      %748 = vmatprep.subr.mxu0 0.0
      %749 = vmatpush1.msra.mxu0 0.0
      %750 = vmatprep.subr.mxu0 0.0
      %751 = vmatpush1.msra.mxu0 0.0
      %752 = vmatprep.subr.mxu0 0.0
      %753 = vmatpush1.msra.mxu0 0.0
      %754 = vmatprep.subr.mxu0 0.0
      %755 = vmatpush1.msra.mxu0 0.0
      %756 = vmatprep.subr.mxu0 0.0
      %757 = vmatpush1.msra.mxu0 0.0
      %758 = vmatprep.subr.mxu0 0.0
      %759 = vmatpush1.msra.mxu0 0.0
      %760 = vmatprep.subr.mxu0 0.0
      %761 = vmatpush1.msra.mxu0 0.0
      %762 = vmatprep.subr.mxu0 0.0
      %763 = vmatpush1.msra.mxu0 0.0
      %764 = vmatprep.subr.mxu0 0.0
      %765 = vmatpush1.msra.mxu0 0.0
      %766 = vmatprep.subr.mxu0 0.0
      %767 = vmatpush1.msra.mxu0 %v734
      %768 = vmatprep.subr.mxu0 0.0
      %769 = vmatpush2.msra.mxu0 0.0
      %770 = vmatprep.subr.mxu0 0.0
      %771 = vmatpush2.msra.mxu0 0.0
      %772 = vmatprep.subr.mxu0 0.0
      %773 = vmatpush2.msra.mxu0 0.0
      %774 = vmatprep.subr.mxu0 0.0
      %775 = vmatpush2.msra.mxu0 0.0
      %776 = vmatprep.subr.mxu0 0.0
      %777 = vmatpush2.msra.mxu0 0.0
      %778 = vmatprep.subr.mxu0 0.0
      %779 = vmatpush2.msra.mxu0 0.0
      %780 = vmatprep.subr.mxu0 0.0
      %781 = vmatpush2.msra.mxu0 0.0
      %782 = vmatprep.subr.mxu0 0.0
      %783 = vmatpush2.msra.mxu0 0.0
      %784 = vmatprep.subr.mxu0 0.0
      %785 = vmatpush2.msra.mxu0 0.0
      %786 = vmatprep.subr.mxu0 0.0
      %787 = vmatpush2.msra.mxu0 0.0
      %788 = vmatprep.subr.mxu0 0.0
      %789 = vmatpush2.msra.mxu0 0.0
      %790 = vmatprep.subr.mxu0 0.0
      %791 = vmatpush2.msra.mxu0 0.0
      %792 = vmatprep.subr.mxu0 0.0
      %793 = vmatpush2.msra.mxu0 0.0
      %794 = vmatprep.subr.mxu0 0.0
      %795 = vmatpush2.msra.mxu0 0.0
      %796 = vmatprep.subr.mxu0 0.0
      %797 = vmatpush2.msra.mxu0 0.0
      %798 = vmatprep.subr.mxu0 0.0
      %799 = vmatpush2.msra.mxu0 0.0
      %800 = vmatprep.mubr.f32.mxu0 0.0
      %801 = vmatmul.mubr.f32.gmra.mxu0 %v716
      %v802 = vpop.f32.mrf.mxu0
      %v803 = vadd.f32 0.0, %v802
      %v804 = vpop.f32.mrf.mxu0
      %805 = vmatprep.mubr.f32.mxu0 0.0
      %806 = vmatmul.mubr.f32.gmra.mxu0 %v719
      %v807 = vpop.f32.mrf.mxu0
      %v808 = vadd.f32 0.0, %v807
      %v809 = vpop.f32.mrf.mxu0
      %810 = vmatprep.mubr.f32.mxu0 0.0
      %811 = vmatmul.mubr.f32.gmra.mxu0 %v722
      %v812 = vpop.f32.mrf.mxu0
      %v813 = vadd.f32 0.0, %v812
      %v814 = vpop.f32.mrf.mxu0
      %815 = vmatprep.mubr.f32.mxu0 0.0
      %816 = vmatmul.mubr.f32.gmra.mxu0 %v725
      %v817 = vpop.f32.mrf.mxu0
      %v818 = vadd.f32 0.0, %v817
      %v819 = vpop.f32.mrf.mxu0
      %820 = vmatprep.mubr.f32.mxu0 0.0
      %821 = vmatmul.mubr.f32.gmra.mxu0 %v728
      %v822 = vpop.f32.mrf.mxu0
      %v823 = vadd.f32 0.0, %v822
      %v824 = vpop.f32.mrf.mxu0
      %825 = vmatprep.mubr.f32.mxu0 0.0
      %826 = vmatmul.mubr.f32.gmra.mxu0 %v731
      %v827 = vpop.f32.mrf.mxu0
      %v828 = vadd.f32 0.0, %v827
      %v829 = vpop.f32.mrf.mxu0
      %830 = vdwg.mxu0
      %v831 = vadd.f32 %v701, %v803
      %v832 = vadd.f32 %v702, %v808
      %v833 = vadd.f32 %v703, %v813
      %v834 = vadd.f32 %v704, %v818
      %v835 = vadd.f32 %v705, %v823
      %v836 = vadd.f32 %v706, %v828
      %v837 = vld [vmem:[%s192 + $0x5] sm:$0xff]
      %v838 = vld [vmem:[%s192 + $0xd] sm:$0xff]
      %v839 = vld [vmem:[%s192 + $0x15] sm:$0xff]
      %v840 = vld [vmem:[%s192 + $0x1d] sm:$0xff]
      %v841 = vld [vmem:[%s192 + $0x25] sm:$0xff]
      %v842 = vld [vmem:[%s192 + $0x2d] sm:$0xff]
      %s843 = scalar_lea.vmem %s1, 20
      %v844 = vld [vmem:[%s843] sm:$0xf]
      %v846 = vsel %vm213, %v837, 0
      %v849 = vsel %vm213, %v838, 0
      %v852 = vsel %vm213, %v839, 0
      %v855 = vsel %vm213, %v840, 0
      %v858 = vsel %vm213, %v841, 0
      %v861 = vsel %vm213, %v842, 0
      %v864 = vsel %vm232, %v844, 0
      %866 = vmatprep.subr.mxu0 0.0
      %867 = vmatpush1.msra.mxu0 0.0
      %868 = vmatprep.subr.mxu0 0.0
      %869 = vmatpush1.msra.mxu0 0.0
      %870 = vmatprep.subr.mxu0 0.0
      %871 = vmatpush1.msra.mxu0 0.0
      %872 = vmatprep.subr.mxu0 0.0
      %873 = vmatpush1.msra.mxu0 0.0
      %874 = vmatprep.subr.mxu0 0.0
      %875 = vmatpush1.msra.mxu0 0.0
      %876 = vmatprep.subr.mxu0 0.0
      %877 = vmatpush1.msra.mxu0 0.0
      %878 = vmatprep.subr.mxu0 0.0
      %879 = vmatpush1.msra.mxu0 0.0
      %880 = vmatprep.subr.mxu0 0.0
      %881 = vmatpush1.msra.mxu0 0.0
      %882 = vmatprep.subr.mxu0 0.0
      %883 = vmatpush1.msra.mxu0 0.0
      %884 = vmatprep.subr.mxu0 0.0
      %885 = vmatpush1.msra.mxu0 0.0
      %886 = vmatprep.subr.mxu0 0.0
      %887 = vmatpush1.msra.mxu0 0.0
      %888 = vmatprep.subr.mxu0 0.0
      %889 = vmatpush1.msra.mxu0 0.0
      %890 = vmatprep.subr.mxu0 0.0
      %891 = vmatpush1.msra.mxu0 0.0
      %892 = vmatprep.subr.mxu0 0.0
      %893 = vmatpush1.msra.mxu0 0.0
      %894 = vmatprep.subr.mxu0 0.0
      %895 = vmatpush1.msra.mxu0 0.0
      %896 = vmatprep.subr.mxu0 0.0
      %897 = vmatpush1.msra.mxu0 %v864
      %898 = vmatprep.subr.mxu0 0.0
      %899 = vmatpush2.msra.mxu0 0.0
      %900 = vmatprep.subr.mxu0 0.0
      %901 = vmatpush2.msra.mxu0 0.0
      %902 = vmatprep.subr.mxu0 0.0
      %903 = vmatpush2.msra.mxu0 0.0
      %904 = vmatprep.subr.mxu0 0.0
      %905 = vmatpush2.msra.mxu0 0.0
      %906 = vmatprep.subr.mxu0 0.0
      %907 = vmatpush2.msra.mxu0 0.0
      %908 = vmatprep.subr.mxu0 0.0
      %909 = vmatpush2.msra.mxu0 0.0
      %910 = vmatprep.subr.mxu0 0.0
      %911 = vmatpush2.msra.mxu0 0.0
      %912 = vmatprep.subr.mxu0 0.0
      %913 = vmatpush2.msra.mxu0 0.0
      %914 = vmatprep.subr.mxu0 0.0
      %915 = vmatpush2.msra.mxu0 0.0
      %916 = vmatprep.subr.mxu0 0.0
      %917 = vmatpush2.msra.mxu0 0.0
      %918 = vmatprep.subr.mxu0 0.0
      %919 = vmatpush2.msra.mxu0 0.0
      %920 = vmatprep.subr.mxu0 0.0
      %921 = vmatpush2.msra.mxu0 0.0
      %922 = vmatprep.subr.mxu0 0.0
      %923 = vmatpush2.msra.mxu0 0.0
      %924 = vmatprep.subr.mxu0 0.0
      %925 = vmatpush2.msra.mxu0 0.0
      %926 = vmatprep.subr.mxu0 0.0
      %927 = vmatpush2.msra.mxu0 0.0
      %928 = vmatprep.subr.mxu0 0.0
      %929 = vmatpush2.msra.mxu0 0.0
      %930 = vmatprep.mubr.f32.mxu0 0.0
      %931 = vmatmul.mubr.f32.gmra.mxu0 %v846
      %v932 = vpop.f32.mrf.mxu0
      %v933 = vadd.f32 0.0, %v932
      %v934 = vpop.f32.mrf.mxu0
      %935 = vmatprep.mubr.f32.mxu0 0.0
      %936 = vmatmul.mubr.f32.gmra.mxu0 %v849
      %v937 = vpop.f32.mrf.mxu0
      %v938 = vadd.f32 0.0, %v937
      %v939 = vpop.f32.mrf.mxu0
      %940 = vmatprep.mubr.f32.mxu0 0.0
      %941 = vmatmul.mubr.f32.gmra.mxu0 %v852
      %v942 = vpop.f32.mrf.mxu0
      %v943 = vadd.f32 0.0, %v942
      %v944 = vpop.f32.mrf.mxu0
      %945 = vmatprep.mubr.f32.mxu0 0.0
      %946 = vmatmul.mubr.f32.gmra.mxu0 %v855
      %v947 = vpop.f32.mrf.mxu0
      %v948 = vadd.f32 0.0, %v947
      %v949 = vpop.f32.mrf.mxu0
      %950 = vmatprep.mubr.f32.mxu0 0.0
      %951 = vmatmul.mubr.f32.gmra.mxu0 %v858
      %v952 = vpop.f32.mrf.mxu0
      %v953 = vadd.f32 0.0, %v952
      %v954 = vpop.f32.mrf.mxu0
      %955 = vmatprep.mubr.f32.mxu0 0.0
      %956 = vmatmul.mubr.f32.gmra.mxu0 %v861
      %v957 = vpop.f32.mrf.mxu0
      %v958 = vadd.f32 0.0, %v957
      %v959 = vpop.f32.mrf.mxu0
      %960 = vdwg.mxu0
      %v961 = vadd.f32 %v831, %v933
      %v962 = vadd.f32 %v832, %v938
      %v963 = vadd.f32 %v833, %v943
      %v964 = vadd.f32 %v834, %v948
      %v965 = vadd.f32 %v835, %v953
      %v966 = vadd.f32 %v836, %v958
      %v967 = vld [vmem:[%s192 + $0x6] sm:$0xff]
      %v968 = vld [vmem:[%s192 + $0xe] sm:$0xff]
      %v969 = vld [vmem:[%s192 + $0x16] sm:$0xff]
      %v970 = vld [vmem:[%s192 + $0x1e] sm:$0xff]
      %v971 = vld [vmem:[%s192 + $0x26] sm:$0xff]
      %v972 = vld [vmem:[%s192 + $0x2e] sm:$0xff]
      %s973 = scalar_lea.vmem %s1, 24
      %v974 = vld [vmem:[%s973] sm:$0xf]
      %v976 = vsel %vm213, %v967, 0
      %v979 = vsel %vm213, %v968, 0
      %v982 = vsel %vm213, %v969, 0
      %v985 = vsel %vm213, %v970, 0
      %v988 = vsel %vm213, %v971, 0
      %v991 = vsel %vm213, %v972, 0
      %v994 = vsel %vm232, %v974, 0
      %996 = vmatprep.subr.mxu0 0.0
      %997 = vmatpush1.msra.mxu0 0.0
      %998 = vmatprep.subr.mxu0 0.0
      %999 = vmatpush1.msra.mxu0 0.0
      %1000 = vmatprep.subr.mxu0 0.0
      %1001 = vmatpush1.msra.mxu0 0.0
      %1002 = vmatprep.subr.mxu0 0.0
      %1003 = vmatpush1.msra.mxu0 0.0
      %1004 = vmatprep.subr.mxu0 0.0
      %1005 = vmatpush1.msra.mxu0 0.0
      %1006 = vmatprep.subr.mxu0 0.0
      %1007 = vmatpush1.msra.mxu0 0.0
      %1008 = vmatprep.subr.mxu0 0.0
      %1009 = vmatpush1.msra.mxu0 0.0
      %1010 = vmatprep.subr.mxu0 0.0
      %1011 = vmatpush1.msra.mxu0 0.0
      %1012 = vmatprep.subr.mxu0 0.0
      %1013 = vmatpush1.msra.mxu0 0.0
      %1014 = vmatprep.subr.mxu0 0.0
      %1015 = vmatpush1.msra.mxu0 0.0
      %1016 = vmatprep.subr.mxu0 0.0
      %1017 = vmatpush1.msra.mxu0 0.0
      %1018 = vmatprep.subr.mxu0 0.0
      %1019 = vmatpush1.msra.mxu0 0.0
      %1020 = vmatprep.subr.mxu0 0.0
      %1021 = vmatpush1.msra.mxu0 0.0
      %1022 = vmatprep.subr.mxu0 0.0
      %1023 = vmatpush1.msra.mxu0 0.0
      %1024 = vmatprep.subr.mxu0 0.0
      %1025 = vmatpush1.msra.mxu0 0.0
      %1026 = vmatprep.subr.mxu0 0.0
      %1027 = vmatpush1.msra.mxu0 %v994
      %1028 = vmatprep.subr.mxu0 0.0
      %1029 = vmatpush2.msra.mxu0 0.0
      %1030 = vmatprep.subr.mxu0 0.0
      %1031 = vmatpush2.msra.mxu0 0.0
      %1032 = vmatprep.subr.mxu0 0.0
      %1033 = vmatpush2.msra.mxu0 0.0
      %1034 = vmatprep.subr.mxu0 0.0
      %1035 = vmatpush2.msra.mxu0 0.0
      %1036 = vmatprep.subr.mxu0 0.0
      %1037 = vmatpush2.msra.mxu0 0.0
      %1038 = vmatprep.subr.mxu0 0.0
      %1039 = vmatpush2.msra.mxu0 0.0
      %1040 = vmatprep.subr.mxu0 0.0
      %1041 = vmatpush2.msra.mxu0 0.0
      %1042 = vmatprep.subr.mxu0 0.0
      %1043 = vmatpush2.msra.mxu0 0.0
      %1044 = vmatprep.subr.mxu0 0.0
      %1045 = vmatpush2.msra.mxu0 0.0
      %1046 = vmatprep.subr.mxu0 0.0
      %1047 = vmatpush2.msra.mxu0 0.0
      %1048 = vmatprep.subr.mxu0 0.0
      %1049 = vmatpush2.msra.mxu0 0.0
      %1050 = vmatprep.subr.mxu0 0.0
      %1051 = vmatpush2.msra.mxu0 0.0
      %1052 = vmatprep.subr.mxu0 0.0
      %1053 = vmatpush2.msra.mxu0 0.0
      %1054 = vmatprep.subr.mxu0 0.0
      %1055 = vmatpush2.msra.mxu0 0.0
      %1056 = vmatprep.subr.mxu0 0.0
      %1057 = vmatpush2.msra.mxu0 0.0
      %1058 = vmatprep.subr.mxu0 0.0
      %1059 = vmatpush2.msra.mxu0 0.0
      %1060 = vmatprep.mubr.f32.mxu0 0.0
      %1061 = vmatmul.mubr.f32.gmra.mxu0 %v976
      %v1062 = vpop.f32.mrf.mxu0
      %v1063 = vadd.f32 0.0, %v1062
      %v1064 = vpop.f32.mrf.mxu0
      %1065 = vmatprep.mubr.f32.mxu0 0.0
      %1066 = vmatmul.mubr.f32.gmra.mxu0 %v979
      %v1067 = vpop.f32.mrf.mxu0
      %v1068 = vadd.f32 0.0, %v1067
      %v1069 = vpop.f32.mrf.mxu0
      %1070 = vmatprep.mubr.f32.mxu0 0.0
      %1071 = vmatmul.mubr.f32.gmra.mxu0 %v982
      %v1072 = vpop.f32.mrf.mxu0
      %v1073 = vadd.f32 0.0, %v1072
      %v1074 = vpop.f32.mrf.mxu0
      %1075 = vmatprep.mubr.f32.mxu0 0.0
      %1076 = vmatmul.mubr.f32.gmra.mxu0 %v985
      %v1077 = vpop.f32.mrf.mxu0
      %v1078 = vadd.f32 0.0, %v1077
      %v1079 = vpop.f32.mrf.mxu0
      %1080 = vmatprep.mubr.f32.mxu0 0.0
      %1081 = vmatmul.mubr.f32.gmra.mxu0 %v988
      %v1082 = vpop.f32.mrf.mxu0
      %v1083 = vadd.f32 0.0, %v1082
      %v1084 = vpop.f32.mrf.mxu0
      %1085 = vmatprep.mubr.f32.mxu0 0.0
      %1086 = vmatmul.mubr.f32.gmra.mxu0 %v991
      %v1087 = vpop.f32.mrf.mxu0
      %v1088 = vadd.f32 0.0, %v1087
      %v1089 = vpop.f32.mrf.mxu0
      %1090 = vdwg.mxu0
      %v1091 = vadd.f32 %v961, %v1063
      %v1092 = vadd.f32 %v962, %v1068
      %v1093 = vadd.f32 %v963, %v1073
      %v1094 = vadd.f32 %v964, %v1078
      %v1095 = vadd.f32 %v965, %v1083
      %v1096 = vadd.f32 %v966, %v1088
      %v1097 = vld [vmem:[%s192 + $0x7] sm:$0xff]
      %v1098 = vld [vmem:[%s192 + $0xf] sm:$0xff]
      %v1099 = vld [vmem:[%s192 + $0x17] sm:$0xff]
      %v1100 = vld [vmem:[%s192 + $0x1f] sm:$0xff]
      %v1101 = vld [vmem:[%s192 + $0x27] sm:$0xff]
      %v1102 = vld [vmem:[%s192 + $0x2f] sm:$0xff]
      %s1103 = scalar_lea.vmem %s1, 28
      %v1104 = vld [vmem:[%s1103] sm:$0xf]
      %v1106 = vsel %vm213, %v1097, 0
      %v1109 = vsel %vm213, %v1098, 0
      %v1112 = vsel %vm213, %v1099, 0
      %v1115 = vsel %vm213, %v1100, 0
      %v1118 = vsel %vm213, %v1101, 0
      %v1121 = vsel %vm213, %v1102, 0
      %v1124 = vsel %vm232, %v1104, 0
      %1126 = vmatprep.subr.mxu0 0.0
      %1127 = vmatpush1.msra.mxu0 0.0
      %1128 = vmatprep.subr.mxu0 0.0
      %1129 = vmatpush1.msra.mxu0 0.0
      %1130 = vmatprep.subr.mxu0 0.0
      %1131 = vmatpush1.msra.mxu0 0.0
      %1132 = vmatprep.subr.mxu0 0.0
      %1133 = vmatpush1.msra.mxu0 0.0
      %1134 = vmatprep.subr.mxu0 0.0
      %1135 = vmatpush1.msra.mxu0 0.0
      %1136 = vmatprep.subr.mxu0 0.0
      %1137 = vmatpush1.msra.mxu0 0.0
      %1138 = vmatprep.subr.mxu0 0.0
      %1139 = vmatpush1.msra.mxu0 0.0
      %1140 = vmatprep.subr.mxu0 0.0
      %1141 = vmatpush1.msra.mxu0 0.0
      %1142 = vmatprep.subr.mxu0 0.0
      %1143 = vmatpush1.msra.mxu0 0.0
      %1144 = vmatprep.subr.mxu0 0.0
      %1145 = vmatpush1.msra.mxu0 0.0
      %1146 = vmatprep.subr.mxu0 0.0
      %1147 = vmatpush1.msra.mxu0 0.0
      %1148 = vmatprep.subr.mxu0 0.0
      %1149 = vmatpush1.msra.mxu0 0.0
      %1150 = vmatprep.subr.mxu0 0.0
      %1151 = vmatpush1.msra.mxu0 0.0
      %1152 = vmatprep.subr.mxu0 0.0
      %1153 = vmatpush1.msra.mxu0 0.0
      %1154 = vmatprep.subr.mxu0 0.0
      %1155 = vmatpush1.msra.mxu0 0.0
      %1156 = vmatprep.subr.mxu0 0.0
      %1157 = vmatpush1.msra.mxu0 %v1124
      %1158 = vmatprep.subr.mxu0 0.0
      %1159 = vmatpush2.msra.mxu0 0.0
      %1160 = vmatprep.subr.mxu0 0.0
      %1161 = vmatpush2.msra.mxu0 0.0
      %1162 = vmatprep.subr.mxu0 0.0
      %1163 = vmatpush2.msra.mxu0 0.0
      %1164 = vmatprep.subr.mxu0 0.0
      %1165 = vmatpush2.msra.mxu0 0.0
      %1166 = vmatprep.subr.mxu0 0.0
      %1167 = vmatpush2.msra.mxu0 0.0
      %1168 = vmatprep.subr.mxu0 0.0
      %1169 = vmatpush2.msra.mxu0 0.0
      %1170 = vmatprep.subr.mxu0 0.0
      %1171 = vmatpush2.msra.mxu0 0.0
      %1172 = vmatprep.subr.mxu0 0.0
      %1173 = vmatpush2.msra.mxu0 0.0
      %1174 = vmatprep.subr.mxu0 0.0
      %1175 = vmatpush2.msra.mxu0 0.0
      %1176 = vmatprep.subr.mxu0 0.0
      %1177 = vmatpush2.msra.mxu0 0.0
      %1178 = vmatprep.subr.mxu0 0.0
      %1179 = vmatpush2.msra.mxu0 0.0
      %1180 = vmatprep.subr.mxu0 0.0
      %1181 = vmatpush2.msra.mxu0 0.0
      %1182 = vmatprep.subr.mxu0 0.0
      %1183 = vmatpush2.msra.mxu0 0.0
      %1184 = vmatprep.subr.mxu0 0.0
      %1185 = vmatpush2.msra.mxu0 0.0
      %1186 = vmatprep.subr.mxu0 0.0
      %1187 = vmatpush2.msra.mxu0 0.0
      %1188 = vmatprep.subr.mxu0 0.0
      %1189 = vmatpush2.msra.mxu0 0.0
      %1190 = vmatprep.mubr.f32.mxu0 0.0
      %1191 = vmatmul.mubr.f32.gmra.mxu0 %v1106
      %v1192 = vpop.f32.mrf.mxu0
      %v1193 = vadd.f32 0.0, %v1192
      %v1194 = vpop.f32.mrf.mxu0
      %1195 = vmatprep.mubr.f32.mxu0 0.0
      %1196 = vmatmul.mubr.f32.gmra.mxu0 %v1109
      %v1197 = vpop.f32.mrf.mxu0
      %v1198 = vadd.f32 0.0, %v1197
      %v1199 = vpop.f32.mrf.mxu0
      %1200 = vmatprep.mubr.f32.mxu0 0.0
      %1201 = vmatmul.mubr.f32.gmra.mxu0 %v1112
      %v1202 = vpop.f32.mrf.mxu0
      %v1203 = vadd.f32 0.0, %v1202
      %v1204 = vpop.f32.mrf.mxu0
      %1205 = vmatprep.mubr.f32.mxu0 0.0
      %1206 = vmatmul.mubr.f32.gmra.mxu0 %v1115
      %v1207 = vpop.f32.mrf.mxu0
      %v1208 = vadd.f32 0.0, %v1207
      %v1209 = vpop.f32.mrf.mxu0
      %1210 = vmatprep.mubr.f32.mxu0 0.0
      %1211 = vmatmul.mubr.f32.gmra.mxu0 %v1118
      %v1212 = vpop.f32.mrf.mxu0
      %v1213 = vadd.f32 0.0, %v1212
      %v1214 = vpop.f32.mrf.mxu0
      %1215 = vmatprep.mubr.f32.mxu0 0.0
      %1216 = vmatmul.mubr.f32.gmra.mxu0 %v1121
      %v1217 = vpop.f32.mrf.mxu0
      %v1218 = vadd.f32 0.0, %v1217
      %v1219 = vpop.f32.mrf.mxu0
      %1220 = vdwg.mxu0
      %v1221 = vadd.f32 %v1091, %v1193
      %v1222 = vadd.f32 %v1092, %v1198
      %v1223 = vadd.f32 %v1093, %v1203
      %v1224 = vadd.f32 %v1094, %v1208
      %v1225 = vadd.f32 %v1095, %v1213
      %v1226 = vadd.f32 %v1096, %v1218
      %v1227 = vld [vmem:[%s192 + $0x8] sm:$0xff]
      %v1228 = vld [vmem:[%s192 + $0x10] sm:$0xff]
      %v1229 = vld [vmem:[%s192 + $0x18] sm:$0xff]
      %v1230 = vld [vmem:[%s192 + $0x20] sm:$0xff]
      %v1231 = vld [vmem:[%s192 + $0x28] sm:$0xff]
      %v1232 = vld [vmem:[%s192 + $0x30] sm:$0xff]
      %s1233 = scalar_lea.vmem %s1, 32
      %v1234 = vld [vmem:[%s1233] sm:$0xf]
      %v1236 = vsel %vm213, %v1227, 0
      %v1239 = vsel %vm213, %v1228, 0
      %v1242 = vsel %vm213, %v1229, 0
      %v1245 = vsel %vm213, %v1230, 0
      %v1248 = vsel %vm213, %v1231, 0
      %v1251 = vsel %vm213, %v1232, 0
      %v1254 = vsel %vm232, %v1234, 0
      %1256 = vmatprep.subr.mxu0 0.0
      %1257 = vmatpush1.msra.mxu0 0.0
      %1258 = vmatprep.subr.mxu0 0.0
      %1259 = vmatpush1.msra.mxu0 0.0
      %1260 = vmatprep.subr.mxu0 0.0
      %1261 = vmatpush1.msra.mxu0 0.0
      %1262 = vmatprep.subr.mxu0 0.0
      %1263 = vmatpush1.msra.mxu0 0.0
      %1264 = vmatprep.subr.mxu0 0.0
      %1265 = vmatpush1.msra.mxu0 0.0
      %1266 = vmatprep.subr.mxu0 0.0
      %1267 = vmatpush1.msra.mxu0 0.0
      %1268 = vmatprep.subr.mxu0 0.0
      %1269 = vmatpush1.msra.mxu0 0.0
      %1270 = vmatprep.subr.mxu0 0.0
      %1271 = vmatpush1.msra.mxu0 0.0
      %1272 = vmatprep.subr.mxu0 0.0
      %1273 = vmatpush1.msra.mxu0 0.0
      %1274 = vmatprep.subr.mxu0 0.0
      %1275 = vmatpush1.msra.mxu0 0.0
      %1276 = vmatprep.subr.mxu0 0.0
      %1277 = vmatpush1.msra.mxu0 0.0
      %1278 = vmatprep.subr.mxu0 0.0
      %1279 = vmatpush1.msra.mxu0 0.0
      %1280 = vmatprep.subr.mxu0 0.0
      %1281 = vmatpush1.msra.mxu0 0.0
      %1282 = vmatprep.subr.mxu0 0.0
      %1283 = vmatpush1.msra.mxu0 0.0
      %1284 = vmatprep.subr.mxu0 0.0
      %1285 = vmatpush1.msra.mxu0 0.0
      %1286 = vmatprep.subr.mxu0 0.0
      %1287 = vmatpush1.msra.mxu0 %v1254
      %1288 = vmatprep.subr.mxu0 0.0
      %1289 = vmatpush2.msra.mxu0 0.0
      %1290 = vmatprep.subr.mxu0 0.0
      %1291 = vmatpush2.msra.mxu0 0.0
      %1292 = vmatprep.subr.mxu0 0.0
      %1293 = vmatpush2.msra.mxu0 0.0
      %1294 = vmatprep.subr.mxu0 0.0
      %1295 = vmatpush2.msra.mxu0 0.0
      %1296 = vmatprep.subr.mxu0 0.0
      %1297 = vmatpush2.msra.mxu0 0.0
      %1298 = vmatprep.subr.mxu0 0.0
      %1299 = vmatpush2.msra.mxu0 0.0
      %1300 = vmatprep.subr.mxu0 0.0
      %1301 = vmatpush2.msra.mxu0 0.0
      %1302 = vmatprep.subr.mxu0 0.0
      %1303 = vmatpush2.msra.mxu0 0.0
      %1304 = vmatprep.subr.mxu0 0.0
      %1305 = vmatpush2.msra.mxu0 0.0
      %1306 = vmatprep.subr.mxu0 0.0
      %1307 = vmatpush2.msra.mxu0 0.0
      %1308 = vmatprep.subr.mxu0 0.0
      %1309 = vmatpush2.msra.mxu0 0.0
      %1310 = vmatprep.subr.mxu0 0.0
      %1311 = vmatpush2.msra.mxu0 0.0
      %1312 = vmatprep.subr.mxu0 0.0
      %1313 = vmatpush2.msra.mxu0 0.0
      %1314 = vmatprep.subr.mxu0 0.0
      %1315 = vmatpush2.msra.mxu0 0.0
      %1316 = vmatprep.subr.mxu0 0.0
      %1317 = vmatpush2.msra.mxu0 0.0
      %1318 = vmatprep.subr.mxu0 0.0
      %1319 = vmatpush2.msra.mxu0 0.0
      %1320 = vmatprep.mubr.f32.mxu0 0.0
      %1321 = vmatmul.mubr.f32.gmra.mxu0 %v1236
      %v1322 = vpop.f32.mrf.mxu0
      %v1323 = vadd.f32 0.0, %v1322
      %v1324 = vpop.f32.mrf.mxu0
      %1325 = vmatprep.mubr.f32.mxu0 0.0
      %1326 = vmatmul.mubr.f32.gmra.mxu0 %v1239
      %v1327 = vpop.f32.mrf.mxu0
      %v1328 = vadd.f32 0.0, %v1327
      %v1329 = vpop.f32.mrf.mxu0
      %1330 = vmatprep.mubr.f32.mxu0 0.0
      %1331 = vmatmul.mubr.f32.gmra.mxu0 %v1242
      %v1332 = vpop.f32.mrf.mxu0
      %v1333 = vadd.f32 0.0, %v1332
      %v1334 = vpop.f32.mrf.mxu0
      %1335 = vmatprep.mubr.f32.mxu0 0.0
      %1336 = vmatmul.mubr.f32.gmra.mxu0 %v1245
      %v1337 = vpop.f32.mrf.mxu0
      %v1338 = vadd.f32 0.0, %v1337
      %v1339 = vpop.f32.mrf.mxu0
      %1340 = vmatprep.mubr.f32.mxu0 0.0
      %1341 = vmatmul.mubr.f32.gmra.mxu0 %v1248
      %v1342 = vpop.f32.mrf.mxu0
      %v1343 = vadd.f32 0.0, %v1342
      %v1344 = vpop.f32.mrf.mxu0
      %1345 = vmatprep.mubr.f32.mxu0 0.0
      %1346 = vmatmul.mubr.f32.gmra.mxu0 %v1251
      %v1347 = vpop.f32.mrf.mxu0
      %v1348 = vadd.f32 0.0, %v1347
      %v1349 = vpop.f32.mrf.mxu0
      %1350 = vdwg.mxu0
      %v1351 = vadd.f32 %v1221, %v1323
      %v1352 = vadd.f32 %v1222, %v1328
      %v1353 = vadd.f32 %v1223, %v1333
      %v1354 = vadd.f32 %v1224, %v1338
      %v1355 = vadd.f32 %v1225, %v1343
      %v1356 = vadd.f32 %v1226, %v1348
      %v1357 = vld [vmem:[%s192 + $0x9] sm:$0xff]
      %v1358 = vld [vmem:[%s192 + $0x11] sm:$0xff]
      %v1359 = vld [vmem:[%s192 + $0x19] sm:$0xff]
      %v1360 = vld [vmem:[%s192 + $0x21] sm:$0xff]
      %v1361 = vld [vmem:[%s192 + $0x29] sm:$0xff]
      %v1362 = vld [vmem:[%s192 + $0x31] sm:$0xff]
      %s1363 = scalar_lea.vmem %s1, 36
      %v1364 = vld [vmem:[%s1363] sm:$0xf]
      %v1366 = vsel %vm213, %v1357, 0
      %v1369 = vsel %vm213, %v1358, 0
      %v1372 = vsel %vm213, %v1359, 0
      %v1375 = vsel %vm213, %v1360, 0
      %v1378 = vsel %vm213, %v1361, 0
      %v1381 = vsel %vm213, %v1362, 0
      %v1384 = vsel %vm232, %v1364, 0
      %1386 = vmatprep.subr.mxu0 0.0
      %1387 = vmatpush1.msra.mxu0 0.0
      %1388 = vmatprep.subr.mxu0 0.0
      %1389 = vmatpush1.msra.mxu0 0.0
      %1390 = vmatprep.subr.mxu0 0.0
      %1391 = vmatpush1.msra.mxu0 0.0
      %1392 = vmatprep.subr.mxu0 0.0
      %1393 = vmatpush1.msra.mxu0 0.0
      %1394 = vmatprep.subr.mxu0 0.0
      %1395 = vmatpush1.msra.mxu0 0.0
      %1396 = vmatprep.subr.mxu0 0.0
      %1397 = vmatpush1.msra.mxu0 0.0
      %1398 = vmatprep.subr.mxu0 0.0
      %1399 = vmatpush1.msra.mxu0 0.0
      %1400 = vmatprep.subr.mxu0 0.0
      %1401 = vmatpush1.msra.mxu0 0.0
      %1402 = vmatprep.subr.mxu0 0.0
      %1403 = vmatpush1.msra.mxu0 0.0
      %1404 = vmatprep.subr.mxu0 0.0
      %1405 = vmatpush1.msra.mxu0 0.0
      %1406 = vmatprep.subr.mxu0 0.0
      %1407 = vmatpush1.msra.mxu0 0.0
      %1408 = vmatprep.subr.mxu0 0.0
      %1409 = vmatpush1.msra.mxu0 0.0
      %1410 = vmatprep.subr.mxu0 0.0
      %1411 = vmatpush1.msra.mxu0 0.0
      %1412 = vmatprep.subr.mxu0 0.0
      %1413 = vmatpush1.msra.mxu0 0.0
      %1414 = vmatprep.subr.mxu0 0.0
      %1415 = vmatpush1.msra.mxu0 0.0
      %1416 = vmatprep.subr.mxu0 0.0
      %1417 = vmatpush1.msra.mxu0 %v1384
      %1418 = vmatprep.subr.mxu0 0.0
      %1419 = vmatpush2.msra.mxu0 0.0
      %1420 = vmatprep.subr.mxu0 0.0
      %1421 = vmatpush2.msra.mxu0 0.0
      %1422 = vmatprep.subr.mxu0 0.0
      %1423 = vmatpush2.msra.mxu0 0.0
      %1424 = vmatprep.subr.mxu0 0.0
      %1425 = vmatpush2.msra.mxu0 0.0
      %1426 = vmatprep.subr.mxu0 0.0
      %1427 = vmatpush2.msra.mxu0 0.0
      %1428 = vmatprep.subr.mxu0 0.0
      %1429 = vmatpush2.msra.mxu0 0.0
      %1430 = vmatprep.subr.mxu0 0.0
      %1431 = vmatpush2.msra.mxu0 0.0
      %1432 = vmatprep.subr.mxu0 0.0
      %1433 = vmatpush2.msra.mxu0 0.0
      %1434 = vmatprep.subr.mxu0 0.0
      %1435 = vmatpush2.msra.mxu0 0.0
      %1436 = vmatprep.subr.mxu0 0.0
      %1437 = vmatpush2.msra.mxu0 0.0
      %1438 = vmatprep.subr.mxu0 0.0
      %1439 = vmatpush2.msra.mxu0 0.0
      %1440 = vmatprep.subr.mxu0 0.0
      %1441 = vmatpush2.msra.mxu0 0.0
      %1442 = vmatprep.subr.mxu0 0.0
      %1443 = vmatpush2.msra.mxu0 0.0
      %1444 = vmatprep.subr.mxu0 0.0
      %1445 = vmatpush2.msra.mxu0 0.0
      %1446 = vmatprep.subr.mxu0 0.0
      %1447 = vmatpush2.msra.mxu0 0.0
      %1448 = vmatprep.subr.mxu0 0.0
      %1449 = vmatpush2.msra.mxu0 0.0
      %1450 = vmatprep.mubr.f32.mxu0 0.0
      %1451 = vmatmul.mubr.f32.gmra.mxu0 %v1366
      %v1452 = vpop.f32.mrf.mxu0
      %v1453 = vadd.f32 0.0, %v1452
      %v1454 = vpop.f32.mrf.mxu0
      %1455 = vmatprep.mubr.f32.mxu0 0.0
      %1456 = vmatmul.mubr.f32.gmra.mxu0 %v1369
      %v1457 = vpop.f32.mrf.mxu0
      %v1458 = vadd.f32 0.0, %v1457
      %v1459 = vpop.f32.mrf.mxu0
      %1460 = vmatprep.mubr.f32.mxu0 0.0
      %1461 = vmatmul.mubr.f32.gmra.mxu0 %v1372
      %v1462 = vpop.f32.mrf.mxu0
      %v1463 = vadd.f32 0.0, %v1462
      %v1464 = vpop.f32.mrf.mxu0
      %1465 = vmatprep.mubr.f32.mxu0 0.0
      %1466 = vmatmul.mubr.f32.gmra.mxu0 %v1375
      %v1467 = vpop.f32.mrf.mxu0
      %v1468 = vadd.f32 0.0, %v1467
      %v1469 = vpop.f32.mrf.mxu0
      %1470 = vmatprep.mubr.f32.mxu0 0.0
      %1471 = vmatmul.mubr.f32.gmra.mxu0 %v1378
      %v1472 = vpop.f32.mrf.mxu0
      %v1473 = vadd.f32 0.0, %v1472
      %v1474 = vpop.f32.mrf.mxu0
      %1475 = vmatprep.mubr.f32.mxu0 0.0
      %1476 = vmatmul.mubr.f32.gmra.mxu0 %v1381
      %v1477 = vpop.f32.mrf.mxu0
      %v1478 = vadd.f32 0.0, %v1477
      %v1479 = vpop.f32.mrf.mxu0
      %1480 = vdwg.mxu0
      %v1481 = vadd.f32 %v1351, %v1453
      %v1482 = vadd.f32 %v1352, %v1458
      %v1483 = vadd.f32 %v1353, %v1463
      %v1484 = vadd.f32 %v1354, %v1468
      %v1485 = vadd.f32 %v1355, %v1473
      %v1486 = vadd.f32 %v1356, %v1478
      %v1487 = vld [vmem:[%s192 + $0xa] sm:$0xff]
      %v1488 = vld [vmem:[%s192 + $0x12] sm:$0xff]
      %v1489 = vld [vmem:[%s192 + $0x1a] sm:$0xff]
      %v1490 = vld [vmem:[%s192 + $0x22] sm:$0xff]
      %v1491 = vld [vmem:[%s192 + $0x2a] sm:$0xff]
      %v1492 = vld [vmem:[%s192 + $0x32] sm:$0xff]
      %s1493 = scalar_lea.vmem %s1, 40
      %v1494 = vld [vmem:[%s1493] sm:$0xf]
      %v1496 = vsel %vm213, %v1487, 0
      %v1499 = vsel %vm213, %v1488, 0
      %v1502 = vsel %vm213, %v1489, 0
      %v1505 = vsel %vm213, %v1490, 0
      %v1508 = vsel %vm213, %v1491, 0
      %v1511 = vsel %vm213, %v1492, 0
      %v1514 = vsel %vm232, %v1494, 0
      %1516 = vmatprep.subr.mxu0 0.0
      %1517 = vmatpush1.msra.mxu0 0.0
      %1518 = vmatprep.subr.mxu0 0.0
      %1519 = vmatpush1.msra.mxu0 0.0
      %1520 = vmatprep.subr.mxu0 0.0
      %1521 = vmatpush1.msra.mxu0 0.0
      %1522 = vmatprep.subr.mxu0 0.0
      %1523 = vmatpush1.msra.mxu0 0.0
      %1524 = vmatprep.subr.mxu0 0.0
      %1525 = vmatpush1.msra.mxu0 0.0
      %1526 = vmatprep.subr.mxu0 0.0
      %1527 = vmatpush1.msra.mxu0 0.0
      %1528 = vmatprep.subr.mxu0 0.0
      %1529 = vmatpush1.msra.mxu0 0.0
      %1530 = vmatprep.subr.mxu0 0.0
      %1531 = vmatpush1.msra.mxu0 0.0
      %1532 = vmatprep.subr.mxu0 0.0
      %1533 = vmatpush1.msra.mxu0 0.0
      %1534 = vmatprep.subr.mxu0 0.0
      %1535 = vmatpush1.msra.mxu0 0.0
      %1536 = vmatprep.subr.mxu0 0.0
      %1537 = vmatpush1.msra.mxu0 0.0
      %1538 = vmatprep.subr.mxu0 0.0
      %1539 = vmatpush1.msra.mxu0 0.0
      %1540 = vmatprep.subr.mxu0 0.0
      %1541 = vmatpush1.msra.mxu0 0.0
      %1542 = vmatprep.subr.mxu0 0.0
      %1543 = vmatpush1.msra.mxu0 0.0
      %1544 = vmatprep.subr.mxu0 0.0
      %1545 = vmatpush1.msra.mxu0 0.0
      %1546 = vmatprep.subr.mxu0 0.0
      %1547 = vmatpush1.msra.mxu0 %v1514
      %1548 = vmatprep.subr.mxu0 0.0
      %1549 = vmatpush2.msra.mxu0 0.0
      %1550 = vmatprep.subr.mxu0 0.0
      %1551 = vmatpush2.msra.mxu0 0.0
      %1552 = vmatprep.subr.mxu0 0.0
      %1553 = vmatpush2.msra.mxu0 0.0
      %1554 = vmatprep.subr.mxu0 0.0
      %1555 = vmatpush2.msra.mxu0 0.0
      %1556 = vmatprep.subr.mxu0 0.0
      %1557 = vmatpush2.msra.mxu0 0.0
      %1558 = vmatprep.subr.mxu0 0.0
      %1559 = vmatpush2.msra.mxu0 0.0
      %1560 = vmatprep.subr.mxu0 0.0
      %1561 = vmatpush2.msra.mxu0 0.0
      %1562 = vmatprep.subr.mxu0 0.0
      %1563 = vmatpush2.msra.mxu0 0.0
      %1564 = vmatprep.subr.mxu0 0.0
      %1565 = vmatpush2.msra.mxu0 0.0
      %1566 = vmatprep.subr.mxu0 0.0
      %1567 = vmatpush2.msra.mxu0 0.0
      %1568 = vmatprep.subr.mxu0 0.0
      %1569 = vmatpush2.msra.mxu0 0.0
      %1570 = vmatprep.subr.mxu0 0.0
      %1571 = vmatpush2.msra.mxu0 0.0
      %1572 = vmatprep.subr.mxu0 0.0
      %1573 = vmatpush2.msra.mxu0 0.0
      %1574 = vmatprep.subr.mxu0 0.0
      %1575 = vmatpush2.msra.mxu0 0.0
      %1576 = vmatprep.subr.mxu0 0.0
      %1577 = vmatpush2.msra.mxu0 0.0
      %1578 = vmatprep.subr.mxu0 0.0
      %1579 = vmatpush2.msra.mxu0 0.0
      %1580 = vmatprep.mubr.f32.mxu0 0.0
      %1581 = vmatmul.mubr.f32.gmra.mxu0 %v1496
      %v1582 = vpop.f32.mrf.mxu0
      %v1583 = vadd.f32 0.0, %v1582
      %v1584 = vpop.f32.mrf.mxu0
      %1585 = vmatprep.mubr.f32.mxu0 0.0
      %1586 = vmatmul.mubr.f32.gmra.mxu0 %v1499
      %v1587 = vpop.f32.mrf.mxu0
      %v1588 = vadd.f32 0.0, %v1587
      %v1589 = vpop.f32.mrf.mxu0
      %1590 = vmatprep.mubr.f32.mxu0 0.0
      %1591 = vmatmul.mubr.f32.gmra.mxu0 %v1502
      %v1592 = vpop.f32.mrf.mxu0
      %v1593 = vadd.f32 0.0, %v1592
      %v1594 = vpop.f32.mrf.mxu0
      %1595 = vmatprep.mubr.f32.mxu0 0.0
      %1596 = vmatmul.mubr.f32.gmra.mxu0 %v1505
      %v1597 = vpop.f32.mrf.mxu0
      %v1598 = vadd.f32 0.0, %v1597
      %v1599 = vpop.f32.mrf.mxu0
      %1600 = vmatprep.mubr.f32.mxu0 0.0
      %1601 = vmatmul.mubr.f32.gmra.mxu0 %v1508
      %v1602 = vpop.f32.mrf.mxu0
      %v1603 = vadd.f32 0.0, %v1602
      %v1604 = vpop.f32.mrf.mxu0
      %1605 = vmatprep.mubr.f32.mxu0 0.0
      %1606 = vmatmul.mubr.f32.gmra.mxu0 %v1511
      %v1607 = vpop.f32.mrf.mxu0
      %v1608 = vadd.f32 0.0, %v1607
      %v1609 = vpop.f32.mrf.mxu0
      %1610 = vdwg.mxu0
      %v1611 = vadd.f32 %v1481, %v1583
      %v1612 = vadd.f32 %v1482, %v1588
      %v1613 = vadd.f32 %v1483, %v1593
      %v1614 = vadd.f32 %v1484, %v1598
      %v1615 = vadd.f32 %v1485, %v1603
      %v1616 = vadd.f32 %v1486, %v1608
      %v1617 = vld [vmem:[%s192 + $0xb] sm:$0xff]
      %v1618 = vld [vmem:[%s192 + $0x13] sm:$0xff]
      %v1619 = vld [vmem:[%s192 + $0x1b] sm:$0xff]
      %v1620 = vld [vmem:[%s192 + $0x23] sm:$0xff]
      %v1621 = vld [vmem:[%s192 + $0x2b] sm:$0xff]
      %v1622 = vld [vmem:[%s192 + $0x33] sm:$0xff]
      %s1623 = scalar_lea.vmem %s1, 44
      %v1624 = vld [vmem:[%s1623] sm:$0xf]
      %v1626 = vsel %vm213, %v1617, 0
      %v1629 = vsel %vm213, %v1618, 0
      %v1632 = vsel %vm213, %v1619, 0
      %v1635 = vsel %vm213, %v1620, 0
      %v1638 = vsel %vm213, %v1621, 0
      %v1641 = vsel %vm213, %v1622, 0
      %v1644 = vsel %vm232, %v1624, 0
      %1646 = vmatprep.subr.mxu0 0.0
      %1647 = vmatpush1.msra.mxu0 0.0
      %1648 = vmatprep.subr.mxu0 0.0
      %1649 = vmatpush1.msra.mxu0 0.0
      %1650 = vmatprep.subr.mxu0 0.0
      %1651 = vmatpush1.msra.mxu0 0.0
      %1652 = vmatprep.subr.mxu0 0.0
      %1653 = vmatpush1.msra.mxu0 0.0
      %1654 = vmatprep.subr.mxu0 0.0
      %1655 = vmatpush1.msra.mxu0 0.0
      %1656 = vmatprep.subr.mxu0 0.0
      %1657 = vmatpush1.msra.mxu0 0.0
      %1658 = vmatprep.subr.mxu0 0.0
      %1659 = vmatpush1.msra.mxu0 0.0
      %1660 = vmatprep.subr.mxu0 0.0
      %1661 = vmatpush1.msra.mxu0 0.0
      %1662 = vmatprep.subr.mxu0 0.0
      %1663 = vmatpush1.msra.mxu0 0.0
      %1664 = vmatprep.subr.mxu0 0.0
      %1665 = vmatpush1.msra.mxu0 0.0
      %1666 = vmatprep.subr.mxu0 0.0
      %1667 = vmatpush1.msra.mxu0 0.0
      %1668 = vmatprep.subr.mxu0 0.0
      %1669 = vmatpush1.msra.mxu0 0.0
      %1670 = vmatprep.subr.mxu0 0.0
      %1671 = vmatpush1.msra.mxu0 0.0
      %1672 = vmatprep.subr.mxu0 0.0
      %1673 = vmatpush1.msra.mxu0 0.0
      %1674 = vmatprep.subr.mxu0 0.0
      %1675 = vmatpush1.msra.mxu0 0.0
      %1676 = vmatprep.subr.mxu0 0.0
      %1677 = vmatpush1.msra.mxu0 %v1644
      %1678 = vmatprep.subr.mxu0 0.0
      %1679 = vmatpush2.msra.mxu0 0.0
      %1680 = vmatprep.subr.mxu0 0.0
      %1681 = vmatpush2.msra.mxu0 0.0
      %1682 = vmatprep.subr.mxu0 0.0
      %1683 = vmatpush2.msra.mxu0 0.0
      %1684 = vmatprep.subr.mxu0 0.0
      %1685 = vmatpush2.msra.mxu0 0.0
      %1686 = vmatprep.subr.mxu0 0.0
      %1687 = vmatpush2.msra.mxu0 0.0
      %1688 = vmatprep.subr.mxu0 0.0
      %1689 = vmatpush2.msra.mxu0 0.0
      %1690 = vmatprep.subr.mxu0 0.0
      %1691 = vmatpush2.msra.mxu0 0.0
      %1692 = vmatprep.subr.mxu0 0.0
      %1693 = vmatpush2.msra.mxu0 0.0
      %1694 = vmatprep.subr.mxu0 0.0
      %1695 = vmatpush2.msra.mxu0 0.0
      %1696 = vmatprep.subr.mxu0 0.0
      %1697 = vmatpush2.msra.mxu0 0.0
      %1698 = vmatprep.subr.mxu0 0.0
      %1699 = vmatpush2.msra.mxu0 0.0
      %1700 = vmatprep.subr.mxu0 0.0
      %1701 = vmatpush2.msra.mxu0 0.0
      %1702 = vmatprep.subr.mxu0 0.0
      %1703 = vmatpush2.msra.mxu0 0.0
      %1704 = vmatprep.subr.mxu0 0.0
      %1705 = vmatpush2.msra.mxu0 0.0
      %1706 = vmatprep.subr.mxu0 0.0
      %1707 = vmatpush2.msra.mxu0 0.0
      %1708 = vmatprep.subr.mxu0 0.0
      %1709 = vmatpush2.msra.mxu0 0.0
      %1710 = vmatprep.mubr.f32.mxu0 0.0
      %1711 = vmatmul.mubr.f32.gmra.mxu0 %v1626
      %v1712 = vpop.f32.mrf.mxu0
      %v1713 = vadd.f32 0.0, %v1712
      %v1714 = vpop.f32.mrf.mxu0
      %1715 = vmatprep.mubr.f32.mxu0 0.0
      %1716 = vmatmul.mubr.f32.gmra.mxu0 %v1629
      %v1717 = vpop.f32.mrf.mxu0
      %v1718 = vadd.f32 0.0, %v1717
      %v1719 = vpop.f32.mrf.mxu0
      %1720 = vmatprep.mubr.f32.mxu0 0.0
      %1721 = vmatmul.mubr.f32.gmra.mxu0 %v1632
      %v1722 = vpop.f32.mrf.mxu0
      %v1723 = vadd.f32 0.0, %v1722
      %v1724 = vpop.f32.mrf.mxu0
      %1725 = vmatprep.mubr.f32.mxu0 0.0
      %1726 = vmatmul.mubr.f32.gmra.mxu0 %v1635
      %v1727 = vpop.f32.mrf.mxu0
      %v1728 = vadd.f32 0.0, %v1727
      %v1729 = vpop.f32.mrf.mxu0
      %1730 = vmatprep.mubr.f32.mxu0 0.0
      %1731 = vmatmul.mubr.f32.gmra.mxu0 %v1638
      %v1732 = vpop.f32.mrf.mxu0
      %v1733 = vadd.f32 0.0, %v1732
      %v1734 = vpop.f32.mrf.mxu0
      %1735 = vmatprep.mubr.f32.mxu0 0.0
      %1736 = vmatmul.mubr.f32.gmra.mxu0 %v1641
      %v1737 = vpop.f32.mrf.mxu0
      %v1738 = vadd.f32 0.0, %v1737
      %v1739 = vpop.f32.mrf.mxu0
      %1740 = vdwg.mxu0
      %v1741 = vadd.f32 %v1611, %v1713
      %v1742 = vadd.f32 %v1612, %v1718
      %v1743 = vadd.f32 %v1613, %v1723
      %v1744 = vadd.f32 %v1614, %v1728
      %v1745 = vadd.f32 %v1615, %v1733
      %v1746 = vadd.f32 %v1616, %v1738
      %v1747 = vld [vmem:[%s192 + $0xc] sm:$0xff]
      %v1748 = vld [vmem:[%s192 + $0x14] sm:$0xff]
      %v1749 = vld [vmem:[%s192 + $0x1c] sm:$0xff]
      %v1750 = vld [vmem:[%s192 + $0x24] sm:$0xff]
      %v1751 = vld [vmem:[%s192 + $0x2c] sm:$0xff]
      %v1752 = vld [vmem:[%s192 + $0x34] sm:$0xff]
      %s1753 = scalar_lea.vmem %s1, 48
      %v1754 = vld [vmem:[%s1753] sm:$0xf]
      %v1756 = vsel %vm213, %v1747, 0
      %v1759 = vsel %vm213, %v1748, 0
      %v1762 = vsel %vm213, %v1749, 0
      %v1765 = vsel %vm213, %v1750, 0
      %v1768 = vsel %vm213, %v1751, 0
      %v1771 = vsel %vm213, %v1752, 0
      %v1774 = vsel %vm232, %v1754, 0
      %1776 = vmatprep.subr.mxu0 0.0
      %1777 = vmatpush1.msra.mxu0 0.0
      %1778 = vmatprep.subr.mxu0 0.0
      %1779 = vmatpush1.msra.mxu0 0.0
      %1780 = vmatprep.subr.mxu0 0.0
      %1781 = vmatpush1.msra.mxu0 0.0
      %1782 = vmatprep.subr.mxu0 0.0
      %1783 = vmatpush1.msra.mxu0 0.0
      %1784 = vmatprep.subr.mxu0 0.0
      %1785 = vmatpush1.msra.mxu0 0.0
      %1786 = vmatprep.subr.mxu0 0.0
      %1787 = vmatpush1.msra.mxu0 0.0
      %1788 = vmatprep.subr.mxu0 0.0
      %1789 = vmatpush1.msra.mxu0 0.0
      %1790 = vmatprep.subr.mxu0 0.0
      %1791 = vmatpush1.msra.mxu0 0.0
      %1792 = vmatprep.subr.mxu0 0.0
      %1793 = vmatpush1.msra.mxu0 0.0
      %1794 = vmatprep.subr.mxu0 0.0
      %1795 = vmatpush1.msra.mxu0 0.0
      %1796 = vmatprep.subr.mxu0 0.0
      %1797 = vmatpush1.msra.mxu0 0.0
      %1798 = vmatprep.subr.mxu0 0.0
      %1799 = vmatpush1.msra.mxu0 0.0
      %1800 = vmatprep.subr.mxu0 0.0
      %1801 = vmatpush1.msra.mxu0 0.0
      %1802 = vmatprep.subr.mxu0 0.0
      %1803 = vmatpush1.msra.mxu0 0.0
      %1804 = vmatprep.subr.mxu0 0.0
      %1805 = vmatpush1.msra.mxu0 0.0
      %1806 = vmatprep.subr.mxu0 0.0
      %1807 = vmatpush1.msra.mxu0 %v1774
      %1808 = vmatprep.subr.mxu0 0.0
      %1809 = vmatpush2.msra.mxu0 0.0
      %1810 = vmatprep.subr.mxu0 0.0
      %1811 = vmatpush2.msra.mxu0 0.0
      %1812 = vmatprep.subr.mxu0 0.0
      %1813 = vmatpush2.msra.mxu0 0.0
      %1814 = vmatprep.subr.mxu0 0.0
      %1815 = vmatpush2.msra.mxu0 0.0
      %1816 = vmatprep.subr.mxu0 0.0
      %1817 = vmatpush2.msra.mxu0 0.0
      %1818 = vmatprep.subr.mxu0 0.0
      %1819 = vmatpush2.msra.mxu0 0.0
      %1820 = vmatprep.subr.mxu0 0.0
      %1821 = vmatpush2.msra.mxu0 0.0
      %1822 = vmatprep.subr.mxu0 0.0
      %1823 = vmatpush2.msra.mxu0 0.0
      %1824 = vmatprep.subr.mxu0 0.0
      %1825 = vmatpush2.msra.mxu0 0.0
      %1826 = vmatprep.subr.mxu0 0.0
      %1827 = vmatpush2.msra.mxu0 0.0
      %1828 = vmatprep.subr.mxu0 0.0
      %1829 = vmatpush2.msra.mxu0 0.0
      %1830 = vmatprep.subr.mxu0 0.0
      %1831 = vmatpush2.msra.mxu0 0.0
      %1832 = vmatprep.subr.mxu0 0.0
      %1833 = vmatpush2.msra.mxu0 0.0
      %1834 = vmatprep.subr.mxu0 0.0
      %1835 = vmatpush2.msra.mxu0 0.0
      %1836 = vmatprep.subr.mxu0 0.0
      %1837 = vmatpush2.msra.mxu0 0.0
      %1838 = vmatprep.subr.mxu0 0.0
      %1839 = vmatpush2.msra.mxu0 0.0
      %1840 = vmatprep.mubr.f32.mxu0 0.0
      %1841 = vmatmul.mubr.f32.gmra.mxu0 %v1756
      %v1842 = vpop.f32.mrf.mxu0
      %v1843 = vadd.f32 0.0, %v1842
      %v1844 = vpop.f32.mrf.mxu0
      %1845 = vmatprep.mubr.f32.mxu0 0.0
      %1846 = vmatmul.mubr.f32.gmra.mxu0 %v1759
      %v1847 = vpop.f32.mrf.mxu0
      %v1848 = vadd.f32 0.0, %v1847
      %v1849 = vpop.f32.mrf.mxu0
      %1850 = vmatprep.mubr.f32.mxu0 0.0
      %1851 = vmatmul.mubr.f32.gmra.mxu0 %v1762
      %v1852 = vpop.f32.mrf.mxu0
      %v1853 = vadd.f32 0.0, %v1852
      %v1854 = vpop.f32.mrf.mxu0
      %1855 = vmatprep.mubr.f32.mxu0 0.0
      %1856 = vmatmul.mubr.f32.gmra.mxu0 %v1765
      %v1857 = vpop.f32.mrf.mxu0
      %v1858 = vadd.f32 0.0, %v1857
      %v1859 = vpop.f32.mrf.mxu0
      %1860 = vmatprep.mubr.f32.mxu0 0.0
      %1861 = vmatmul.mubr.f32.gmra.mxu0 %v1768
      %v1862 = vpop.f32.mrf.mxu0
      %v1863 = vadd.f32 0.0, %v1862
      %v1864 = vpop.f32.mrf.mxu0
      %1865 = vmatprep.mubr.f32.mxu0 0.0
      %1866 = vmatmul.mubr.f32.gmra.mxu0 %v1771
      %v1867 = vpop.f32.mrf.mxu0
      %v1868 = vadd.f32 0.0, %v1867
      %v1869 = vpop.f32.mrf.mxu0
      %1870 = vdwg.mxu0
      %v1871 = vadd.f32 %v1741, %v1843
      %v1872 = vadd.f32 %v1742, %v1848
      %v1873 = vadd.f32 %v1743, %v1853
      %v1874 = vadd.f32 %v1744, %v1858
      %v1875 = vadd.f32 %v1745, %v1863
      %v1876 = vadd.f32 %v1746, %v1868
      %v1877 = vld [vmem:[%s192 + $0xd] sm:$0xff]
      %v1878 = vld [vmem:[%s192 + $0x15] sm:$0xff]
      %v1879 = vld [vmem:[%s192 + $0x1d] sm:$0xff]
      %v1880 = vld [vmem:[%s192 + $0x25] sm:$0xff]
      %v1881 = vld [vmem:[%s192 + $0x2d] sm:$0xff]
      %v1882 = vld [vmem:[%s192 + $0x35] sm:$0xff]
      %s1883 = scalar_lea.vmem %s1, 52
      %v1884 = vld [vmem:[%s1883] sm:$0xf]
      %v1886 = vsel %vm213, %v1877, 0
      %v1889 = vsel %vm213, %v1878, 0
      %v1892 = vsel %vm213, %v1879, 0
      %v1895 = vsel %vm213, %v1880, 0
      %v1898 = vsel %vm213, %v1881, 0
      %v1901 = vsel %vm213, %v1882, 0
      %v1904 = vsel %vm232, %v1884, 0
      %1906 = vmatprep.subr.mxu0 0.0
      %1907 = vmatpush1.msra.mxu0 0.0
      %1908 = vmatprep.subr.mxu0 0.0
      %1909 = vmatpush1.msra.mxu0 0.0
      %1910 = vmatprep.subr.mxu0 0.0
      %1911 = vmatpush1.msra.mxu0 0.0
      %1912 = vmatprep.subr.mxu0 0.0
      %1913 = vmatpush1.msra.mxu0 0.0
      %1914 = vmatprep.subr.mxu0 0.0
      %1915 = vmatpush1.msra.mxu0 0.0
      %1916 = vmatprep.subr.mxu0 0.0
      %1917 = vmatpush1.msra.mxu0 0.0
      %1918 = vmatprep.subr.mxu0 0.0
      %1919 = vmatpush1.msra.mxu0 0.0
      %1920 = vmatprep.subr.mxu0 0.0
      %1921 = vmatpush1.msra.mxu0 0.0
      %1922 = vmatprep.subr.mxu0 0.0
      %1923 = vmatpush1.msra.mxu0 0.0
      %1924 = vmatprep.subr.mxu0 0.0
      %1925 = vmatpush1.msra.mxu0 0.0
      %1926 = vmatprep.subr.mxu0 0.0
      %1927 = vmatpush1.msra.mxu0 0.0
      %1928 = vmatprep.subr.mxu0 0.0
      %1929 = vmatpush1.msra.mxu0 0.0
      %1930 = vmatprep.subr.mxu0 0.0
      %1931 = vmatpush1.msra.mxu0 0.0
      %1932 = vmatprep.subr.mxu0 0.0
      %1933 = vmatpush1.msra.mxu0 0.0
      %1934 = vmatprep.subr.mxu0 0.0
      %1935 = vmatpush1.msra.mxu0 0.0
      %1936 = vmatprep.subr.mxu0 0.0
      %1937 = vmatpush1.msra.mxu0 %v1904
      %1938 = vmatprep.subr.mxu0 0.0
      %1939 = vmatpush2.msra.mxu0 0.0
      %1940 = vmatprep.subr.mxu0 0.0
      %1941 = vmatpush2.msra.mxu0 0.0
      %1942 = vmatprep.subr.mxu0 0.0
      %1943 = vmatpush2.msra.mxu0 0.0
      %1944 = vmatprep.subr.mxu0 0.0
      %1945 = vmatpush2.msra.mxu0 0.0
      %1946 = vmatprep.subr.mxu0 0.0
      %1947 = vmatpush2.msra.mxu0 0.0
      %1948 = vmatprep.subr.mxu0 0.0
      %1949 = vmatpush2.msra.mxu0 0.0
      %1950 = vmatprep.subr.mxu0 0.0
      %1951 = vmatpush2.msra.mxu0 0.0
      %1952 = vmatprep.subr.mxu0 0.0
      %1953 = vmatpush2.msra.mxu0 0.0
      %1954 = vmatprep.subr.mxu0 0.0
      %1955 = vmatpush2.msra.mxu0 0.0
      %1956 = vmatprep.subr.mxu0 0.0
      %1957 = vmatpush2.msra.mxu0 0.0
      %1958 = vmatprep.subr.mxu0 0.0
      %1959 = vmatpush2.msra.mxu0 0.0
      %1960 = vmatprep.subr.mxu0 0.0
      %1961 = vmatpush2.msra.mxu0 0.0
      %1962 = vmatprep.subr.mxu0 0.0
      %1963 = vmatpush2.msra.mxu0 0.0
      %1964 = vmatprep.subr.mxu0 0.0
      %1965 = vmatpush2.msra.mxu0 0.0
      %1966 = vmatprep.subr.mxu0 0.0
      %1967 = vmatpush2.msra.mxu0 0.0
      %1968 = vmatprep.subr.mxu0 0.0
      %1969 = vmatpush2.msra.mxu0 0.0
      %1970 = vmatprep.mubr.f32.mxu0 0.0
      %1971 = vmatmul.mubr.f32.gmra.mxu0 %v1886
      %v1972 = vpop.f32.mrf.mxu0
      %v1973 = vadd.f32 0.0, %v1972
      %v1974 = vpop.f32.mrf.mxu0
      %1975 = vmatprep.mubr.f32.mxu0 0.0
      %1976 = vmatmul.mubr.f32.gmra.mxu0 %v1889
      %v1977 = vpop.f32.mrf.mxu0
      %v1978 = vadd.f32 0.0, %v1977
      %v1979 = vpop.f32.mrf.mxu0
      %1980 = vmatprep.mubr.f32.mxu0 0.0
      %1981 = vmatmul.mubr.f32.gmra.mxu0 %v1892
      %v1982 = vpop.f32.mrf.mxu0
      %v1983 = vadd.f32 0.0, %v1982
      %v1984 = vpop.f32.mrf.mxu0
      %1985 = vmatprep.mubr.f32.mxu0 0.0
      %1986 = vmatmul.mubr.f32.gmra.mxu0 %v1895
      %v1987 = vpop.f32.mrf.mxu0
      %v1988 = vadd.f32 0.0, %v1987
      %v1989 = vpop.f32.mrf.mxu0
      %1990 = vmatprep.mubr.f32.mxu0 0.0
      %1991 = vmatmul.mubr.f32.gmra.mxu0 %v1898
      %v1992 = vpop.f32.mrf.mxu0
      %v1993 = vadd.f32 0.0, %v1992
      %v1994 = vpop.f32.mrf.mxu0
      %1995 = vmatprep.mubr.f32.mxu0 0.0
      %1996 = vmatmul.mubr.f32.gmra.mxu0 %v1901
      %v1997 = vpop.f32.mrf.mxu0
      %v1998 = vadd.f32 0.0, %v1997
      %v1999 = vpop.f32.mrf.mxu0
      %2000 = vdwg.mxu0
      %v2001 = vadd.f32 %v1871, %v1973
      %v2002 = vadd.f32 %v1872, %v1978
      %v2003 = vadd.f32 %v1873, %v1983
      %v2004 = vadd.f32 %v1874, %v1988
      %v2005 = vadd.f32 %v1875, %v1993
      %v2006 = vadd.f32 %v1876, %v1998
      %v2007 = vld [vmem:[%s192 + $0xe] sm:$0xff]
      %v2008 = vld [vmem:[%s192 + $0x16] sm:$0xff]
      %v2009 = vld [vmem:[%s192 + $0x1e] sm:$0xff]
      %v2010 = vld [vmem:[%s192 + $0x26] sm:$0xff]
      %v2011 = vld [vmem:[%s192 + $0x2e] sm:$0xff]
      %v2012 = vld [vmem:[%s192 + $0x36] sm:$0xff]
      %s2013 = scalar_lea.vmem %s1, 56
      %v2014 = vld [vmem:[%s2013] sm:$0xf]
      %v2016 = vsel %vm213, %v2007, 0
      %v2019 = vsel %vm213, %v2008, 0
      %v2022 = vsel %vm213, %v2009, 0
      %v2025 = vsel %vm213, %v2010, 0
      %v2028 = vsel %vm213, %v2011, 0
      %v2031 = vsel %vm213, %v2012, 0
      %v2034 = vsel %vm232, %v2014, 0
      %2036 = vmatprep.subr.mxu0 0.0
      %2037 = vmatpush1.msra.mxu0 0.0
      %2038 = vmatprep.subr.mxu0 0.0
      %2039 = vmatpush1.msra.mxu0 0.0
      %2040 = vmatprep.subr.mxu0 0.0
      %2041 = vmatpush1.msra.mxu0 0.0
      %2042 = vmatprep.subr.mxu0 0.0
      %2043 = vmatpush1.msra.mxu0 0.0
      %2044 = vmatprep.subr.mxu0 0.0
      %2045 = vmatpush1.msra.mxu0 0.0
      %2046 = vmatprep.subr.mxu0 0.0
      %2047 = vmatpush1.msra.mxu0 0.0
      %2048 = vmatprep.subr.mxu0 0.0
      %2049 = vmatpush1.msra.mxu0 0.0
      %2050 = vmatprep.subr.mxu0 0.0
      %2051 = vmatpush1.msra.mxu0 0.0
      %2052 = vmatprep.subr.mxu0 0.0
      %2053 = vmatpush1.msra.mxu0 0.0
      %2054 = vmatprep.subr.mxu0 0.0
      %2055 = vmatpush1.msra.mxu0 0.0
      %2056 = vmatprep.subr.mxu0 0.0
      %2057 = vmatpush1.msra.mxu0 0.0
      %2058 = vmatprep.subr.mxu0 0.0
      %2059 = vmatpush1.msra.mxu0 0.0
      %2060 = vmatprep.subr.mxu0 0.0
      %2061 = vmatpush1.msra.mxu0 0.0
      %2062 = vmatprep.subr.mxu0 0.0
      %2063 = vmatpush1.msra.mxu0 0.0
      %2064 = vmatprep.subr.mxu0 0.0
      %2065 = vmatpush1.msra.mxu0 0.0
      %2066 = vmatprep.subr.mxu0 0.0
      %2067 = vmatpush1.msra.mxu0 %v2034
      %2068 = vmatprep.subr.mxu0 0.0
      %2069 = vmatpush2.msra.mxu0 0.0
      %2070 = vmatprep.subr.mxu0 0.0
      %2071 = vmatpush2.msra.mxu0 0.0
      %2072 = vmatprep.subr.mxu0 0.0
      %2073 = vmatpush2.msra.mxu0 0.0
      %2074 = vmatprep.subr.mxu0 0.0
      %2075 = vmatpush2.msra.mxu0 0.0
      %2076 = vmatprep.subr.mxu0 0.0
      %2077 = vmatpush2.msra.mxu0 0.0
      %2078 = vmatprep.subr.mxu0 0.0
      %2079 = vmatpush2.msra.mxu0 0.0
      %2080 = vmatprep.subr.mxu0 0.0
      %2081 = vmatpush2.msra.mxu0 0.0
      %2082 = vmatprep.subr.mxu0 0.0
      %2083 = vmatpush2.msra.mxu0 0.0
      %2084 = vmatprep.subr.mxu0 0.0
      %2085 = vmatpush2.msra.mxu0 0.0
      %2086 = vmatprep.subr.mxu0 0.0
      %2087 = vmatpush2.msra.mxu0 0.0
      %2088 = vmatprep.subr.mxu0 0.0
      %2089 = vmatpush2.msra.mxu0 0.0
      %2090 = vmatprep.subr.mxu0 0.0
      %2091 = vmatpush2.msra.mxu0 0.0
      %2092 = vmatprep.subr.mxu0 0.0
      %2093 = vmatpush2.msra.mxu0 0.0
      %2094 = vmatprep.subr.mxu0 0.0
      %2095 = vmatpush2.msra.mxu0 0.0
      %2096 = vmatprep.subr.mxu0 0.0
      %2097 = vmatpush2.msra.mxu0 0.0
      %2098 = vmatprep.subr.mxu0 0.0
      %2099 = vmatpush2.msra.mxu0 0.0
      %2100 = vmatprep.mubr.f32.mxu0 0.0
      %2101 = vmatmul.mubr.f32.gmra.mxu0 %v2016
      %v2102 = vpop.f32.mrf.mxu0
      %v2103 = vadd.f32 0.0, %v2102
      %v2104 = vpop.f32.mrf.mxu0
      %2105 = vmatprep.mubr.f32.mxu0 0.0
      %2106 = vmatmul.mubr.f32.gmra.mxu0 %v2019
      %v2107 = vpop.f32.mrf.mxu0
      %v2108 = vadd.f32 0.0, %v2107
      %v2109 = vpop.f32.mrf.mxu0
      %2110 = vmatprep.mubr.f32.mxu0 0.0
      %2111 = vmatmul.mubr.f32.gmra.mxu0 %v2022
      %v2112 = vpop.f32.mrf.mxu0
      %v2113 = vadd.f32 0.0, %v2112
      %v2114 = vpop.f32.mrf.mxu0
      %2115 = vmatprep.mubr.f32.mxu0 0.0
      %2116 = vmatmul.mubr.f32.gmra.mxu0 %v2025
      %v2117 = vpop.f32.mrf.mxu0
      %v2118 = vadd.f32 0.0, %v2117
      %v2119 = vpop.f32.mrf.mxu0
      %2120 = vmatprep.mubr.f32.mxu0 0.0
      %2121 = vmatmul.mubr.f32.gmra.mxu0 %v2028
      %v2122 = vpop.f32.mrf.mxu0
      %v2123 = vadd.f32 0.0, %v2122
      %v2124 = vpop.f32.mrf.mxu0
      %2125 = vmatprep.mubr.f32.mxu0 0.0
      %2126 = vmatmul.mubr.f32.gmra.mxu0 %v2031
      %v2127 = vpop.f32.mrf.mxu0
      %v2128 = vadd.f32 0.0, %v2127
      %v2129 = vpop.f32.mrf.mxu0
      %2130 = vdwg.mxu0
      %v2131 = vadd.f32 %v2001, %v2103
      %v2132 = vadd.f32 %v2002, %v2108
      %v2133 = vadd.f32 %v2003, %v2113
      %v2134 = vadd.f32 %v2004, %v2118
      %v2135 = vadd.f32 %v2005, %v2123
      %v2136 = vadd.f32 %v2006, %v2128
      %v2137 = vld [vmem:[%s2] sm:$0x1]
      %v2139 = vlaneseq
      %v2140 = vshrl.u32 %v2139, 7
      %v2141 = vsub.s32 0, %v2140
      %v2142 = vrot.slane %v2137, %v2141
      %v2144 = vmul.f32 %v2131, %v2142
      %v2145 = vmul.f32 %v2132, %v2142
      %v2146 = vmul.f32 %v2133, %v2142
      %v2147 = vmul.f32 %v2134, %v2142
      %v2148 = vmul.f32 %v2135, %v2142
      %v2149 = vmul.f32 %v2136, %v2142
      %v2150 = vld [vmem:[%s3] sm:$0x1]
      %v2152 = vlaneseq
      %v2153 = vshrl.u32 %v2152, 7
      %v2154 = vsub.s32 0, %v2153
      %v2155 = vrot.slane %v2150, %v2154
      %v2157 = vadd.f32 %v2144, %v2155
      %v2158 = vadd.f32 %v2145, %v2155
      %v2159 = vadd.f32 %v2146, %v2155
      %v2160 = vadd.f32 %v2147, %v2155
      %v2161 = vadd.f32 %v2148, %v2155
      %v2162 = vadd.f32 %v2149, %v2155
      %v2163 = vmax.f32 %v2157, 0.0
      %v2164 = vmax.f32 %v2158, 0.0
      %v2165 = vmax.f32 %v2159, 0.0
      %v2166 = vmax.f32 %v2160, 0.0
      %v2167 = vmax.f32 %v2161, 0.0
      %v2168 = vmax.f32 %v2162, 0.0
      %2169 = vst [vmem:[#allocation2] sm:$0xff] %v2163
      %2170 = vst [vmem:[#allocation2 + $0x8] sm:$0xff] %v2164
      %2171 = vst [vmem:[#allocation2 + $0x10] sm:$0xff] %v2165
      %2172 = vst [vmem:[#allocation2 + $0x18] sm:$0xff] %v2166
      %2173 = vst [vmem:[#allocation2 + $0x20] sm:$0xff] %v2167
      %2174 = vst [vmem:[#allocation2 + $0x28] sm:$0xff] %v2168
      %v2175 = vld [vmem:[#allocation2] ss:$3 sm:$0xff]
      %s2176 = scalar_lea.vmem [#allocation2], 24
      %v2177 = vld [vmem:[%s2176] ss:$3 sm:$0xff]
      %s2178 = scalar_lea.vmem [#allocation2], 1
      %v2179 = vld [vmem:[%s2178] ss:$3 sm:$0xff]
      %s2180 = scalar_lea.vmem [#allocation2], 25
      %v2181 = vld [vmem:[%s2180] ss:$3 sm:$0xff]
      %v2182 = vmax.f32 %v2175, %v2179
      %v2183 = vmax.f32 %v2177, %v2181
      %s2184 = scalar_lea.vmem [#allocation2], 2
      %v2185 = vld [vmem:[%s2184] ss:$3 sm:$0xff]
      %s2186 = scalar_lea.vmem [#allocation2], 26
      %v2187 = vld [vmem:[%s2186] ss:$3 sm:$0xff]
      %v2188 = vmax.f32 %v2182, %v2185
      %v2189 = vmax.f32 %v2183, %v2187
      %2190 = vst [vmem:[%s197] sm:$0xff] %v2188
      %2191 = vst [vmem:[%s197 + $0x8] sm:$0xff] %v2189
      %p2192 = scmp.lt.s32.totalorder %s15, 1
      %s2193 = scalar_select %p2192, %s15, 1
      %s2194 = smul.addr %s2193, 2
      %s2195 = smul.addr %s2194, 8
      %s2196 = scalar_lea.vmem %s4, %s2195
      // Predicated region
      $region37: #{forward.3} parent=35 // pred_check
        %p2197 = pneg %p122
      $region38: #{forward.3} parent=35 // pred_check_branch
        %2199 = sbr.rel (%p2197) target = $region40
      $region39: #{forward.3} parent=35 // pred_region
        _
      $region40: #{forward.3} parent=35 // pred_fallthru
        _
    $region36: #{forward.3} parent=5 // pred_fallthru
      _
    %p2200 = scmp.le.s32.totalorder 2, %s10
    // Predicated region
    $region41: #{forward.3} parent=5 // pred_check
      %p2201 = pneg %p2200
    $region42: #{forward.3} parent=5 // pred_check_branch
      %2203 = sbr.rel (%p2201) target = $region44
    $region43: #{forward.3} parent=5 // pred_region
      %s2204 = ssub.s32 %s10, 2
      // Predicated region
      $region45: #{forward.3} parent=43 // pred_check
        %p2205 = pneg %p128
      $region46: #{forward.3} parent=43 // pred_check_branch
        %2207 = sbr.rel (%p2205) target = $region48
      $region47: #{forward.3} parent=43 // pred_region
        %p2208 = scmp.lt.s32.totalorder %s16, 1
        %s2209 = scalar_select %p2208, %s16, 1
        %s2210 = smul.addr %s2209, 2
        %s2211 = smul.addr %s2210, 8
        %s2212 = scalar_lea.vmem %s4, %s2211
      $region48: #{forward.3} parent=43 // pred_fallthru
        _
    $region44: #{forward.3} parent=5 // pred_fallthru
      _
  $region6: #{forward.3} parent=0 // loop_footer
    %s14 = sadd.s32 1, %s10
  $region7: #{forward.3} parent=0 // loop_footer_branch
    %9 = sbr.rel target = $region3
  $region8: #{forward.3} parent=0 // loop_exit
    _

// kernel: closed_call.13
$region0: #{closed_call.13}
  #allocation0 [shape = 'u32[]', space=smem, size = 0x4, offset = 0x4, fixed_abs, tag = 'smem constant byte address 0x4 - core index']
  #allocation1 [shape = 'u32[144,128]{1,0:T(1,128)}', space=vmem, size = 0x12000, scoped, tag = 'internal scratch']
  #allocation2 [shape = 'f32[8,96]{1,0:T(8,128)}', space=vmem, size = 0x1000, scoped, tag = 'scratch operand']
  #allocation3 [shape = 'f32[8,32]{1,0:T(8,128)}', space=vmem, size = 0x1000, scoped, tag = 'scratch operand']
  #allocation4 [shape = 's32[1,1]{1,0:T(1,128)S(1)}', space=vmem, size = 0x200, scoped, tag = 'scoped memory for closed_call.13']
  %s0 = inlined_call_operand.smem [shape: u32[30], index: -1, kind: input, shape index: {}]
  %s1 = sld [smem:[%s0]]
  %s2 = scalar_lea.smem %s0, 1
  %s3 = sld [smem:[%s2]]
  %s4 = scalar_lea.smem %s0, 2
  %s5 = sld [smem:[%s4]]
  %s6 = scalar_lea.smem %s0, 3
  %s7 = sld [smem:[%s6]]
  %s8 = scalar_lea.smem %s0, 4
  %s9 = sld [smem:[%s8]]
  %s10 = scalar_lea.smem %s0, 5
  %s11 = sld [smem:[%s10]]
  %s12 = scalar_lea.smem %s0, 6
  %s13 = sld [smem:[%s12]]
  %s14 = scalar_lea.smem %s0, 7
  %s15 = sld [smem:[%s14]]
  %s16 = scalar_lea.smem %s0, 8
  %s17 = sld [smem:[%s16]]
  %s18 = scalar_lea.smem %s0, 9
  %s19 = sld [smem:[%s18]]
  %s20 = scalar_lea.smem %s0, 10
  %s21 = sld [smem:[%s20]]
  %s22 = scalar_lea.smem %s0, 11
  %s23 = sld [smem:[%s22]]
  %s24 = scalar_lea.smem %s0, 12
  %s25 = sld [smem:[%s24]]
  %s26 = scalar_lea.smem %s0, 13
  %s27 = sld [smem:[%s26]]
  %s28 = scalar_lea.smem %s0, 14
  %s29 = sld [smem:[%s28]]
  %s30 = scalar_lea.smem %s0, 15
  %s31 = sld [smem:[%s30]]
  %s32 = scalar_lea.smem %s0, 16
  %s33 = sld [smem:[%s32]]
  %s34 = scalar_lea.smem %s0, 17
  %s35 = sld [smem:[%s34]]
  %s36 = scalar_lea.smem %s0, 18
  %s37 = sld [smem:[%s36]]
  %s38 = scalar_lea.smem %s0, 19
  %s39 = sld [smem:[%s38]]
  %s40 = scalar_lea.smem %s0, 20
  %s41 = sld [smem:[%s40]]
  %s42 = scalar_lea.smem %s0, 21
  %s43 = sld [smem:[%s42]]
  %s44 = scalar_lea.smem %s0, 22
  %s45 = sld [smem:[%s44]]
  %s46 = scalar_lea.smem %s0, 23
  %s47 = sld [smem:[%s46]]
  %s48 = scalar_lea.smem %s0, 24
  %s49 = sld [smem:[%s48]]
  %s50 = scalar_lea.smem %s0, 25
  %s51 = sld [smem:[%s50]]
  %s52 = scalar_lea.smem %s0, 26
  %s53 = sld [smem:[%s52]]
  %s54 = scalar_lea.smem %s0, 27
  %s55 = sld [smem:[%s54]]
  %s56 = scalar_lea.smem %s0, 28
  %s57 = sld [smem:[%s56]]
  %s58 = scalar_lea.smem %s0, 29
  %s59 = sld [smem:[%s58]]
  %60 = xla_tuple %s57, %s59
  %s61 = smul.addr %s3, 2
  %s62 = scalar_lea.vmem %s57, %s61
  %s63 = sld [smem:[#allocation0]]
  $region152: #{closed_call.13} parent=0
    _
  %s65 = ssub.s32 1, %s63
  %s66 = scalar_select 0, %s65, %s63
  %v67 = vstv %s5
  %68 = vst [vmem:[#allocation4] sm:$0x1] %v67
  $region1: #{closed_call.13} parent=0
    #allocation5 [shape = 'u8[1024]{0}', space=vmem, size = 0x400, scoped, tag = 'output window, operand 1, single buffered']
    // Predicated region
    $region2: #{closed_call.13} parent=1 // pred_check
      _
    $region3: #{closed_call.13} parent=1 // pred_check_branch
      %70 = sbr.rel (0) target = $region5
    $region4: #{closed_call.13} parent=1 // pred_region
      _
    $region5: #{closed_call.13} parent=1 // pred_fallthru
      _
    // Predicated region
    $region6: #{closed_call.13} parent=1 // pred_check
      _
    $region7: #{closed_call.13} parent=1 // pred_check_branch
      %72 = sbr.rel (0) target = $region9
    $region8: #{closed_call.13} parent=1 // pred_region
      _
    $region9: #{closed_call.13} parent=1 // pred_fallthru
      _
    // Predicated region
    $region10: #{closed_call.13} parent=1 // pred_check
      _
    $region11: #{closed_call.13} parent=1 // pred_check_branch
      %74 = sbr.rel (0) target = $region13
    $region12: #{closed_call.13} parent=1 // pred_region
      _
    $region13: #{closed_call.13} parent=1 // pred_fallthru
      _
    // Predicated region
    $region14: #{closed_call.13} parent=1 // pred_check
      _
    $region15: #{closed_call.13} parent=1 // pred_check_branch
      %76 = sbr.rel (0) target = $region17
    $region16: #{closed_call.13} parent=1 // pred_region
      _
    $region17: #{closed_call.13} parent=1 // pred_fallthru
      _
    // Predicated region
    $region18: #{closed_call.13} parent=1 // pred_check
      _
    $region19: #{closed_call.13} parent=1 // pred_check_branch
      %78 = sbr.rel (0) target = $region21
    $region20: #{closed_call.13} parent=1 // pred_region
      _
    $region21: #{closed_call.13} parent=1 // pred_fallthru
      _
    // Predicated region
    $region22: #{closed_call.13} parent=1 // pred_check
      _
    $region23: #{closed_call.13} parent=1 // pred_check_branch
      %80 = sbr.rel (0) target = $region25
    $region24: #{closed_call.13} parent=1 // pred_region
      _
    $region25: #{closed_call.13} parent=1 // pred_fallthru
      _
    // Predicated region
    $region26: #{closed_call.13} parent=1 // pred_check
      _
    $region27: #{closed_call.13} parent=1 // pred_check_branch
      %82 = sbr.rel (0) target = $region29
    $region28: #{closed_call.13} parent=1 // pred_region
      _
    $region29: #{closed_call.13} parent=1 // pred_fallthru
      _
    // Predicated region
    $region30: #{closed_call.13} parent=1 // pred_check
      _
    $region31: #{closed_call.13} parent=1 // pred_check_branch
      %84 = sbr.rel (0) target = $region33
    $region32: #{closed_call.13} parent=1 // pred_region
      _
    $region33: #{closed_call.13} parent=1 // pred_fallthru
      _
    // Predicated region
    $region34: #{closed_call.13} parent=1 // pred_check
      _
    $region35: #{closed_call.13} parent=1 // pred_check_branch
      %86 = sbr.rel (0) target = $region37
    $region36: #{closed_call.13} parent=1 // pred_region
      _
    $region37: #{closed_call.13} parent=1 // pred_fallthru
      _
    // Predicated region
    $region38: #{closed_call.13} parent=1 // pred_check
      _
    $region39: #{closed_call.13} parent=1 // pred_check_branch
      %88 = sbr.rel (0) target = $region41
    $region40: #{closed_call.13} parent=1 // pred_region
      _
    $region41: #{closed_call.13} parent=1 // pred_fallthru
      _
    // Predicated region
    $region42: #{closed_call.13} parent=1 // pred_check
      _
    $region43: #{closed_call.13} parent=1 // pred_check_branch
      %90 = sbr.rel (0) target = $region45
    $region44: #{closed_call.13} parent=1 // pred_region
      _
    $region45: #{closed_call.13} parent=1 // pred_fallthru
      _
    // Predicated region
    $region46: #{closed_call.13} parent=1 // pred_check
      _
    $region47: #{closed_call.13} parent=1 // pred_check_branch
      %92 = sbr.rel (0) target = $region49
    $region48: #{closed_call.13} parent=1 // pred_region
      _
    $region49: #{closed_call.13} parent=1 // pred_fallthru
      _
    // Predicated region
    $region50: #{closed_call.13} parent=1 // pred_check
      _
    $region51: #{closed_call.13} parent=1 // pred_check_branch
      %94 = sbr.rel (0) target = $region53
    $region52: #{closed_call.13} parent=1 // pred_region
      _
    $region53: #{closed_call.13} parent=1 // pred_fallthru
      _
    // Predicated region
    $region54: #{closed_call.13} parent=1 // pred_check
      _
    $region55: #{closed_call.13} parent=1 // pred_check_branch
      %96 = sbr.rel (0) target = $region57
    $region56: #{closed_call.13} parent=1 // pred_region
      _
    $region57: #{closed_call.13} parent=1 // pred_fallthru
      _
    // Predicated region
    $region58: #{closed_call.13} parent=1 // pred_check
      _
    $region59: #{closed_call.13} parent=1 // pred_check_branch
      %98 = sbr.rel (0) target = $region61
    $region60: #{closed_call.13} parent=1 // pred_region
      _
    $region61: #{closed_call.13} parent=1 // pred_fallthru
      _
    // Predicated region
    $region62: #{closed_call.13} parent=1 // pred_check
      _
    $region63: #{closed_call.13} parent=1 // pred_check_branch
      %100 = sbr.rel (0) target = $region65
    $region64: #{closed_call.13} parent=1 // pred_region
      _
    $region65: #{closed_call.13} parent=1 // pred_fallthru
      _
    // Predicated region
    $region66: #{closed_call.13} parent=1 // pred_check
      _
    $region67: #{closed_call.13} parent=1 // pred_check_branch
      %102 = sbr.rel (0) target = $region69
    $region68: #{closed_call.13} parent=1 // pred_region
      _
    $region69: #{closed_call.13} parent=1 // pred_fallthru
      _
    // Predicated region
    $region70: #{closed_call.13} parent=1 // pred_check
      _
    $region71: #{closed_call.13} parent=1 // pred_check_branch
      %104 = sbr.rel (0) target = $region73
    $region72: #{closed_call.13} parent=1 // pred_region
      _
    $region73: #{closed_call.13} parent=1 // pred_fallthru
      _
    // Predicated region
    $region74: #{closed_call.13} parent=1 // pred_check
      _
    $region75: #{closed_call.13} parent=1 // pred_check_branch
      %106 = sbr.rel (0) target = $region77
    $region76: #{closed_call.13} parent=1 // pred_region
      _
    $region77: #{closed_call.13} parent=1 // pred_fallthru
      _
    // Predicated region
    $region78: #{closed_call.13} parent=1 // pred_check
      _
    $region79: #{closed_call.13} parent=1 // pred_check_branch
      %108 = sbr.rel (0) target = $region81
    $region80: #{closed_call.13} parent=1 // pred_region
      _
    $region81: #{closed_call.13} parent=1 // pred_fallthru
      _
    // Predicated region
    $region82: #{closed_call.13} parent=1 // pred_check
      _
    $region83: #{closed_call.13} parent=1 // pred_check_branch
      %110 = sbr.rel (0) target = $region85
    $region84: #{closed_call.13} parent=1 // pred_region
      _
    $region85: #{closed_call.13} parent=1 // pred_fallthru
      _
    // Predicated region
    $region86: #{closed_call.13} parent=1 // pred_check
      _
    $region87: #{closed_call.13} parent=1 // pred_check_branch
      %112 = sbr.rel (0) target = $region89
    $region88: #{closed_call.13} parent=1 // pred_region
      _
    $region89: #{closed_call.13} parent=1 // pred_fallthru
      _
    // Predicated region
    $region90: #{closed_call.13} parent=1 // pred_check
      _
    $region91: #{closed_call.13} parent=1 // pred_check_branch
      %114 = sbr.rel (0) target = $region93
    $region92: #{closed_call.13} parent=1 // pred_region
      _
    $region93: #{closed_call.13} parent=1 // pred_fallthru
      _
    // Predicated region
    $region94: #{closed_call.13} parent=1 // pred_check
      _
    $region95: #{closed_call.13} parent=1 // pred_check_branch
      %116 = sbr.rel (0) target = $region97
    $region96: #{closed_call.13} parent=1 // pred_region
      _
    $region97: #{closed_call.13} parent=1 // pred_fallthru
      _
    // Predicated region
    $region98: #{closed_call.13} parent=1 // pred_check
      _
    $region99: #{closed_call.13} parent=1 // pred_check_branch
      %118 = sbr.rel (0) target = $region101
    $region100: #{closed_call.13} parent=1 // pred_region
      _
    $region101: #{closed_call.13} parent=1 // pred_fallthru
      _
    // Predicated region
    $region102: #{closed_call.13} parent=1 // pred_check
      _
    $region103: #{closed_call.13} parent=1 // pred_check_branch
      %120 = sbr.rel (0) target = $region105
    $region104: #{closed_call.13} parent=1 // pred_region
      _
    $region105: #{closed_call.13} parent=1 // pred_fallthru
      _
    %v121 = vld [vmem:[#allocation4] sm:$0x1]
    %v122 = vlaneseq
    %v123 = vshrl.u32 %v122, 7
    %v124 = vlaneseq
    %v125 = vand.u32 %v124, 127
    %126 = vset.pattern.permute.xlu0 0
    %127 = vperm.xlu0 %126, %v121
    %v128 = vpop.permute.xlu0 %127
    %v129 = vlaneseq
    %v130 = vshrl.u32 %v129, 7
    %v131 = vsub.s32 0, %v130
    %v132 = vrot.slane %v128, %v131
    %vm133 = vcmp.lt.s32.totalorder %v125, %v132
    %v134 = vsub.s32 %v121, 1
    %v135 = vlaneseq
    %v136 = vshrl.u32 %v135, 7
    %v137 = vsub.s32 0, %v136
    %v138 = vrot.slane %v134, %v137
    %vm139 = vcmp.eq.s32.totalorder %v123, %v138
    %v140 = vsel %vm139, 1, 0
    %v141 = vcvt.s32.f32 %v140
    %v142 = vlaneseq
    %v143 = vshrl.u32 %v142, 7
    %v144 = vsub.s32 0, %v143
    %v145 = vrot.slane %v121, %v144
    %vm146 = vcmp.eq.s32.totalorder %v123, %v145
    %v147 = vld [vmem:[%s13] sm:$0xff]
    %v148 = vld [vmem:[%s13 + $0x8] sm:$0xff]
    %v149 = vld [vmem:[%s13 + $0x10] sm:$0xff]
    %v150 = vld [vmem:[%s13 + $0x18] sm:$0xff]
    %v151 = vld [vmem:[%s15] sm:$0x1]
    %v152 = vld [vmem:[%s17] sm:$0xff]
    %v153 = vld [vmem:[%s17 + $0x8] sm:$0xff]
    %v154 = vld [vmem:[%s17 + $0x10] sm:$0xff]
    %v155 = vld [vmem:[%s17 + $0x18] sm:$0xff]
    %v156 = vld [vmem:[%s19] sm:$0x1]
    %v157 = vld [vmem:[%s21] sm:$0xff]
    %v158 = vld [vmem:[%s21 + $0x8] sm:$0xff]
    %v159 = vld [vmem:[%s21 + $0x10] sm:$0xff]
    %v160 = vld [vmem:[%s21 + $0x18] sm:$0xff]
    %v161 = vld [vmem:[%s23] sm:$0x1]
    %v162 = vld [vmem:[%s25] sm:$0xff]
    %v163 = vld [vmem:[%s25 + $0x8] sm:$0xff]
    %v164 = vld [vmem:[%s25 + $0x10] sm:$0xff]
    %v165 = vld [vmem:[%s25 + $0x18] sm:$0xff]
    %v166 = vld [vmem:[%s27] sm:$0x1]
    %v167 = vld [vmem:[%s41] sm:$0xff]
    %v168 = vld [vmem:[%s41 + $0x8] sm:$0xff]
    %v169 = vld [vmem:[%s41 + $0x10] sm:$0xff]
    %v170 = vld [vmem:[%s41 + $0x18] sm:$0xff]
    %v171 = vld [vmem:[%s43] sm:$0x1]
    %v172 = vld [vmem:[%s45] sm:$0xff]
    %v173 = vld [vmem:[%s45 + $0x8] sm:$0xff]
    %v174 = vld [vmem:[%s45 + $0x10] sm:$0xff]
    %v175 = vld [vmem:[%s45 + $0x18] sm:$0xff]
    %v176 = vld [vmem:[%s45 + $0x20] sm:$0xff]
    %v177 = vld [vmem:[%s45 + $0x28] sm:$0xff]
    %v178 = vld [vmem:[%s45 + $0x30] sm:$0xff]
    %v179 = vld [vmem:[%s45 + $0x38] sm:$0xff]
    %v180 = vld [vmem:[%s47] sm:$0x1]
    %v181 = vld [vmem:[%s49] sm:$0xff]
    %v182 = vld [vmem:[%s49 + $0x8] sm:$0xff]
    %v183 = vld [vmem:[%s49 + $0x10] sm:$0xff]
    %v184 = vld [vmem:[%s49 + $0x18] sm:$0xff]
    %v185 = vld [vmem:[%s51] sm:$0x1]
    %v186 = vld [vmem:[%s53] sm:$0x3]
    %v187 = vld [vmem:[%s55] sm:$0x1]
    %v188 = vld [vmem:[%s29] sm:$0x1]
    %v189 = vld [vmem:[%s31] sm:$0x1]
    %v190 = vld [vmem:[%s33] sm:$0x1]
    %v191 = vld [vmem:[%s35] sm:$0x1]
    %v192 = vld [vmem:[%s37] sm:$0x1]
    %v193 = vld [vmem:[%s39] sm:$0x1]
    %v194 = vld [vmem:[%s7] sm:$0xff]
    %v196 = vlaneseq
    %v197 = vshrl.u32 %v196, 7
    %v198 = vsub.s32 0, %v197
    %v199 = vrot.slane %v151, %v198
    %vm201 = vcmask 261120
    %v203 = vsel %vm201, %v194, 0
    %205 = vmatprep.subr.mxu0 0.0
    %206 = vmatpush1.msra.mxu0 0.0
    %207 = vmatprep.subr.mxu0 0.0
    %208 = vmatpush1.msra.mxu0 0.0
    %209 = vmatprep.subr.mxu0 0.0
    %210 = vmatpush1.msra.mxu0 0.0
    %211 = vmatprep.subr.mxu0 0.0
    %212 = vmatpush1.msra.mxu0 0.0
    %213 = vmatprep.subr.mxu0 0.0
    %214 = vmatpush1.msra.mxu0 0.0
    %215 = vmatprep.subr.mxu0 0.0
    %216 = vmatpush1.msra.mxu0 0.0
    %217 = vmatprep.subr.mxu0 0.0
    %218 = vmatpush1.msra.mxu0 0.0
    %219 = vmatprep.subr.mxu0 0.0
    %220 = vmatpush1.msra.mxu0 0.0
    %221 = vmatprep.subr.mxu0 0.0
    %222 = vmatpush1.msra.mxu0 0.0
    %223 = vmatprep.subr.mxu0 0.0
    %224 = vmatpush1.msra.mxu0 0.0
    %225 = vmatprep.subr.mxu0 0.0
    %226 = vmatpush1.msra.mxu0 0.0
    %227 = vmatprep.subr.mxu0 0.0
    %228 = vmatpush1.msra.mxu0 0.0
    %229 = vmatprep.subr.mxu0 0.0
    %230 = vmatpush1.msra.mxu0 %v150
    %231 = vmatprep.subr.mxu0 0.0
    %232 = vmatpush1.msra.mxu0 %v149
    %233 = vmatprep.subr.mxu0 0.0
    %234 = vmatpush1.msra.mxu0 %v148
    %235 = vmatprep.subr.mxu0 0.0
    %236 = vmatpush1.msra.mxu0 %v147
    %237 = vmatprep.subr.mxu0 0.0
    %238 = vmatpush2.msra.mxu0 0.0
    %239 = vmatprep.subr.mxu0 0.0
    %240 = vmatpush2.msra.mxu0 0.0
    %241 = vmatprep.subr.mxu0 0.0
    %242 = vmatpush2.msra.mxu0 0.0
    %243 = vmatprep.subr.mxu0 0.0
    %244 = vmatpush2.msra.mxu0 0.0
    %245 = vmatprep.subr.mxu0 0.0
    %246 = vmatpush2.msra.mxu0 0.0
    %247 = vmatprep.subr.mxu0 0.0
    %248 = vmatpush2.msra.mxu0 0.0
    %249 = vmatprep.subr.mxu0 0.0
    %250 = vmatpush2.msra.mxu0 0.0
    %251 = vmatprep.subr.mxu0 0.0
    %252 = vmatpush2.msra.mxu0 0.0
    %253 = vmatprep.subr.mxu0 0.0
    %254 = vmatpush2.msra.mxu0 0.0
    %255 = vmatprep.subr.mxu0 0.0
    %256 = vmatpush2.msra.mxu0 0.0
    %257 = vmatprep.subr.mxu0 0.0
    %258 = vmatpush2.msra.mxu0 0.0
    %259 = vmatprep.subr.mxu0 0.0
    %260 = vmatpush2.msra.mxu0 0.0
    %261 = vmatprep.subr.mxu0 0.0
    %262 = vmatpush2.msra.mxu0 0.0
    %263 = vmatprep.subr.mxu0 0.0
    %264 = vmatpush2.msra.mxu0 0.0
    %265 = vmatprep.subr.mxu0 0.0
    %266 = vmatpush2.msra.mxu0 0.0
    %267 = vmatprep.subr.mxu0 0.0
    %268 = vmatpush2.msra.mxu0 0.0
    %269 = vmatprep.mubr.f32.mxu0 0.0
    %270 = vmatmul.mubr.f32.gmra.mxu0 %v203
    %v271 = vpop.f32.mrf.mxu0
    %v272 = vadd.f32 %v199, %v271
    %v273 = vpop.f32.mrf.mxu0
    %274 = vdwg.mxu0
    %vm275 = vcmask 785408
    %276 = vst.msk [vmem:[#allocation2] sm:$0xff] %vm275, %v272
    %v277 = vld [vmem:[#allocation2] sm:$0xff]
    %279 = vrot.lane.b32.xlu0 %v277, 96
    %v280 = vpop.permute.xlu0 %279
    %vm281 = vcmask 64512
    %v282 = vsel %vm281, %v277, 0
    %v284 = vsel %vm281, %v280, 0
    %286 = vmatprep.subr.mxu0 0.0
    %287 = vmatpush1.xpose.msra.mxu0 0.0
    %288 = vmatprep.subr.mxu0 0.0
    %289 = vmatpush1.xpose.msra.mxu0 0.0
    %290 = vmatprep.subr.mxu0 0.0
    %291 = vmatpush1.xpose.msra.mxu0 0.0
    %292 = vmatprep.subr.mxu0 0.0
    %293 = vmatpush1.xpose.msra.mxu0 0.0
    %294 = vmatprep.subr.mxu0 0.0
    %295 = vmatpush1.xpose.msra.mxu0 0.0
    %296 = vmatprep.subr.mxu0 0.0
    %297 = vmatpush1.xpose.msra.mxu0 0.0
    %298 = vmatprep.subr.mxu0 0.0
    %299 = vmatpush1.xpose.msra.mxu0 0.0
    %300 = vmatprep.subr.mxu0 0.0
    %301 = vmatpush1.xpose.msra.mxu0 0.0
    %302 = vmatprep.subr.mxu0 0.0
    %303 = vmatpush1.xpose.msra.mxu0 0.0
    %304 = vmatprep.subr.mxu0 0.0
    %305 = vmatpush1.xpose.msra.mxu0 0.0
    %306 = vmatprep.subr.mxu0 0.0
    %307 = vmatpush1.xpose.msra.mxu0 0.0
    %308 = vmatprep.subr.mxu0 0.0
    %309 = vmatpush1.xpose.msra.mxu0 0.0
    %310 = vmatprep.subr.mxu0 0.0
    %311 = vmatpush1.xpose.msra.mxu0 0.0
    %312 = vmatprep.subr.mxu0 0.0
    %313 = vmatpush1.xpose.msra.mxu0 0.0
    %314 = vmatprep.subr.mxu0 0.0
    %315 = vmatpush1.xpose.msra.mxu0 0.0
    %316 = vmatprep.subr.mxu0 0.0
    %317 = vmatpush1.xpose.msra.mxu0 %v284
    %318 = vmatprep.subr.mxu0 0.0
    %319 = vmatpush2.xpose.msra.mxu0 0.0
    %320 = vmatprep.subr.mxu0 0.0
    %321 = vmatpush2.xpose.msra.mxu0 0.0
    %322 = vmatprep.subr.mxu0 0.0
    %323 = vmatpush2.xpose.msra.mxu0 0.0
    %324 = vmatprep.subr.mxu0 0.0
    %325 = vmatpush2.xpose.msra.mxu0 0.0
    %326 = vmatprep.subr.mxu0 0.0
    %327 = vmatpush2.xpose.msra.mxu0 0.0
    %328 = vmatprep.subr.mxu0 0.0
    %329 = vmatpush2.xpose.msra.mxu0 0.0
    %330 = vmatprep.subr.mxu0 0.0
    %331 = vmatpush2.xpose.msra.mxu0 0.0
    %332 = vmatprep.subr.mxu0 0.0
    %333 = vmatpush2.xpose.msra.mxu0 0.0
    %334 = vmatprep.subr.mxu0 0.0
    %335 = vmatpush2.xpose.msra.mxu0 0.0
    %336 = vmatprep.subr.mxu0 0.0
    %337 = vmatpush2.xpose.msra.mxu0 0.0
    %338 = vmatprep.subr.mxu0 0.0
    %339 = vmatpush2.xpose.msra.mxu0 0.0
    %340 = vmatprep.subr.mxu0 0.0
    %341 = vmatpush2.xpose.msra.mxu0 0.0
    %342 = vmatprep.subr.mxu0 0.0
    %343 = vmatpush2.xpose.msra.mxu0 0.0
    %344 = vmatprep.subr.mxu0 0.0
    %345 = vmatpush2.xpose.msra.mxu0 0.0
    %346 = vmatprep.subr.mxu0 0.0
    %347 = vmatpush2.xpose.msra.mxu0 0.0
    %348 = vmatprep.subr.mxu0 0.0
    %349 = vmatpush2.xpose.msra.mxu0 0.0
    %350 = vmatprep.mubr.f32.mxu0 0.0
    %351 = vmatmul.mubr.f32.gmra.mxu0 %v282
    %v352 = vpop.f32.mrf.mxu0
    %v353 = vadd.f32 0.0, %v352
    %v354 = vpop.f32.mrf.mxu0
    %355 = vdwg.mxu0
    %v356 = vmul.f32 %v353, 0.35355338
    %v357 = vsel %vm133, 1, 0
    %vm358 = vcmp.eq.s32.totalorder %v357, 1
    %v359 = vsel %vm358, %v356, -1e+30
    %v360 = vsel %vm281, %v359, -inf
    %361 = vmax.xlane.f32.xlu0 %v360
    %v362 = vpop.xlane.xlu0 %361
    %v363 = vsub.f32 %v359, %v362
    %v364 = vmul.f32 %v363, 1.442695
    %v365 = vpow.pop %v364
    %v366 = vsel %vm281, %v365, 0.0
    %367 = vadd.xlane.f32.xlu0 %v366
    %v368 = vpop.xlane.xlu0 %367
    %v369 = vrcp.pop %v368
    %v370 = vmul.f32 %v365, %v369
    %371 = vrot.lane.b32.xlu0 %v277, 64
    %v372 = vpop.permute.xlu0 %371
    %v375 = vsel %vm281, %v370, 0
    %377 = vmatprep.subr.mxu0 0.0
    %378 = vmatpush1.msra.mxu0 0.0
    %379 = vmatprep.subr.mxu0 0.0
    %380 = vmatpush1.msra.mxu0 0.0
    %381 = vmatprep.subr.mxu0 0.0
    %382 = vmatpush1.msra.mxu0 0.0
    %383 = vmatprep.subr.mxu0 0.0
    %384 = vmatpush1.msra.mxu0 0.0
    %385 = vmatprep.subr.mxu0 0.0
    %386 = vmatpush1.msra.mxu0 0.0
    %387 = vmatprep.subr.mxu0 0.0
    %388 = vmatpush1.msra.mxu0 0.0
    %389 = vmatprep.subr.mxu0 0.0
    %390 = vmatpush1.msra.mxu0 0.0
    %391 = vmatprep.subr.mxu0 0.0
    %392 = vmatpush1.msra.mxu0 0.0
    %393 = vmatprep.subr.mxu0 0.0
    %394 = vmatpush1.msra.mxu0 0.0
    %395 = vmatprep.subr.mxu0 0.0
    %396 = vmatpush1.msra.mxu0 0.0
    %397 = vmatprep.subr.mxu0 0.0
    %398 = vmatpush1.msra.mxu0 0.0
    %399 = vmatprep.subr.mxu0 0.0
    %400 = vmatpush1.msra.mxu0 0.0
    %401 = vmatprep.subr.mxu0 0.0
    %402 = vmatpush1.msra.mxu0 0.0
    %403 = vmatprep.subr.mxu0 0.0
    %404 = vmatpush1.msra.mxu0 0.0
    %405 = vmatprep.subr.mxu0 0.0
    %406 = vmatpush1.msra.mxu0 0.0
    %407 = vmatprep.subr.mxu0 0.0
    %408 = vmatpush1.msra.mxu0 %v372
    %409 = vmatprep.subr.mxu0 0.0
    %410 = vmatpush2.msra.mxu0 0.0
    %411 = vmatprep.subr.mxu0 0.0
    %412 = vmatpush2.msra.mxu0 0.0
    %413 = vmatprep.subr.mxu0 0.0
    %414 = vmatpush2.msra.mxu0 0.0
    %415 = vmatprep.subr.mxu0 0.0
    %416 = vmatpush2.msra.mxu0 0.0
    %417 = vmatprep.subr.mxu0 0.0
    %418 = vmatpush2.msra.mxu0 0.0
    %419 = vmatprep.subr.mxu0 0.0
    %420 = vmatpush2.msra.mxu0 0.0
    %421 = vmatprep.subr.mxu0 0.0
    %422 = vmatpush2.msra.mxu0 0.0
    %423 = vmatprep.subr.mxu0 0.0
    %424 = vmatpush2.msra.mxu0 0.0
    %425 = vmatprep.subr.mxu0 0.0
    %426 = vmatpush2.msra.mxu0 0.0
    %427 = vmatprep.subr.mxu0 0.0
    %428 = vmatpush2.msra.mxu0 0.0
    %429 = vmatprep.subr.mxu0 0.0
    %430 = vmatpush2.msra.mxu0 0.0
    %431 = vmatprep.subr.mxu0 0.0
    %432 = vmatpush2.msra.mxu0 0.0
    %433 = vmatprep.subr.mxu0 0.0
    %434 = vmatpush2.msra.mxu0 0.0
    %435 = vmatprep.subr.mxu0 0.0
    %436 = vmatpush2.msra.mxu0 0.0
    %437 = vmatprep.subr.mxu0 0.0
    %438 = vmatpush2.msra.mxu0 0.0
    %439 = vmatprep.subr.mxu0 0.0
    %440 = vmatpush2.msra.mxu0 0.0
    %441 = vmatprep.mubr.f32.mxu0 0.0
    %442 = vmatmul.mubr.f32.gmra.mxu0 %v375
    %v443 = vpop.f32.mrf.mxu0
    %v444 = vadd.f32 0.0, %v443
    %v445 = vpop.f32.mrf.mxu0
    %446 = vdwg.mxu0
    %447 = vst.msk [vmem:[#allocation3] sm:$0xff] %vm281, %v444
    %v448 = vld [vmem:[#allocation2] sm:$0xff]
    %450 = vrot.lane.b32.xlu0 %v448, 120
    %v451 = vpop.permute.xlu0 %450
    %452 = vrot.lane.b32.xlu0 %v448, 88
    %v453 = vpop.permute.xlu0 %452
    %v454 = vsel %vm281, %v451, 0
    %v456 = vsel %vm281, %v453, 0
    %458 = vmatprep.subr.mxu0 0.0
    %459 = vmatpush1.xpose.msra.mxu0 0.0
    %460 = vmatprep.subr.mxu0 0.0
    %461 = vmatpush1.xpose.msra.mxu0 0.0
    %462 = vmatprep.subr.mxu0 0.0
    %463 = vmatpush1.xpose.msra.mxu0 0.0
    %464 = vmatprep.subr.mxu0 0.0
    %465 = vmatpush1.xpose.msra.mxu0 0.0
    %466 = vmatprep.subr.mxu0 0.0
    %467 = vmatpush1.xpose.msra.mxu0 0.0
    %468 = vmatprep.subr.mxu0 0.0
    %469 = vmatpush1.xpose.msra.mxu0 0.0
    %470 = vmatprep.subr.mxu0 0.0
    %471 = vmatpush1.xpose.msra.mxu0 0.0
    %472 = vmatprep.subr.mxu0 0.0
    %473 = vmatpush1.xpose.msra.mxu0 0.0
    %474 = vmatprep.subr.mxu0 0.0
    %475 = vmatpush1.xpose.msra.mxu0 0.0
    %476 = vmatprep.subr.mxu0 0.0
    %477 = vmatpush1.xpose.msra.mxu0 0.0
    %478 = vmatprep.subr.mxu0 0.0
    %479 = vmatpush1.xpose.msra.mxu0 0.0
    %480 = vmatprep.subr.mxu0 0.0
    %481 = vmatpush1.xpose.msra.mxu0 0.0
    %482 = vmatprep.subr.mxu0 0.0
    %483 = vmatpush1.xpose.msra.mxu0 0.0
    %484 = vmatprep.subr.mxu0 0.0
    %485 = vmatpush1.xpose.msra.mxu0 0.0
    %486 = vmatprep.subr.mxu0 0.0
    %487 = vmatpush1.xpose.msra.mxu0 0.0
    %488 = vmatprep.subr.mxu0 0.0
    %489 = vmatpush1.xpose.msra.mxu0 %v456
    %490 = vmatprep.subr.mxu0 0.0
    %491 = vmatpush2.xpose.msra.mxu0 0.0
    %492 = vmatprep.subr.mxu0 0.0
    %493 = vmatpush2.xpose.msra.mxu0 0.0
    %494 = vmatprep.subr.mxu0 0.0
    %495 = vmatpush2.xpose.msra.mxu0 0.0
    %496 = vmatprep.subr.mxu0 0.0
    %497 = vmatpush2.xpose.msra.mxu0 0.0
    %498 = vmatprep.subr.mxu0 0.0
    %499 = vmatpush2.xpose.msra.mxu0 0.0
    %500 = vmatprep.subr.mxu0 0.0
    %501 = vmatpush2.xpose.msra.mxu0 0.0
    %502 = vmatprep.subr.mxu0 0.0
    %503 = vmatpush2.xpose.msra.mxu0 0.0
    %504 = vmatprep.subr.mxu0 0.0
    %505 = vmatpush2.xpose.msra.mxu0 0.0
    %506 = vmatprep.subr.mxu0 0.0
    %507 = vmatpush2.xpose.msra.mxu0 0.0
    %508 = vmatprep.subr.mxu0 0.0
    %509 = vmatpush2.xpose.msra.mxu0 0.0
    %510 = vmatprep.subr.mxu0 0.0
    %511 = vmatpush2.xpose.msra.mxu0 0.0
    %512 = vmatprep.subr.mxu0 0.0
    %513 = vmatpush2.xpose.msra.mxu0 0.0
    %514 = vmatprep.subr.mxu0 0.0
    %515 = vmatpush2.xpose.msra.mxu0 0.0
    %516 = vmatprep.subr.mxu0 0.0
    %517 = vmatpush2.xpose.msra.mxu0 0.0
    %518 = vmatprep.subr.mxu0 0.0
    %519 = vmatpush2.xpose.msra.mxu0 0.0
    %520 = vmatprep.subr.mxu0 0.0
    %521 = vmatpush2.xpose.msra.mxu0 0.0
    %522 = vmatprep.mubr.f32.mxu0 0.0
    %523 = vmatmul.mubr.f32.gmra.mxu0 %v454
    %v524 = vpop.f32.mrf.mxu0
    %v525 = vadd.f32 0.0, %v524
    %v526 = vpop.f32.mrf.mxu0
    %527 = vdwg.mxu0
    %v528 = vmul.f32 %v525, 0.35355338
    %v529 = vsel %vm358, %v528, -1e+30
    %v530 = vsel %vm281, %v529, -inf
    %531 = vmax.xlane.f32.xlu0 %v530
    %v532 = vpop.xlane.xlu0 %531
    %v533 = vsub.f32 %v529, %v532
    %v534 = vmul.f32 %v533, 1.442695
    %v535 = vpow.pop %v534
    %v536 = vsel %vm281, %v535, 0.0
    %537 = vadd.xlane.f32.xlu0 %v536
    %v538 = vpop.xlane.xlu0 %537
    %v539 = vrcp.pop %v538
    %v540 = vmul.f32 %v535, %v539
    %541 = vrot.lane.b32.xlu0 %v448, 56
    %v542 = vpop.permute.xlu0 %541
    %v545 = vsel %vm281, %v540, 0
    %547 = vmatprep.subr.mxu0 0.0
    %548 = vmatpush1.msra.mxu0 0.0
    %549 = vmatprep.subr.mxu0 0.0
    %550 = vmatpush1.msra.mxu0 0.0
    %551 = vmatprep.subr.mxu0 0.0
    %552 = vmatpush1.msra.mxu0 0.0
    %553 = vmatprep.subr.mxu0 0.0
    %554 = vmatpush1.msra.mxu0 0.0
    %555 = vmatprep.subr.mxu0 0.0
    %556 = vmatpush1.msra.mxu0 0.0
    %557 = vmatprep.subr.mxu0 0.0
    %558 = vmatpush1.msra.mxu0 0.0
    %559 = vmatprep.subr.mxu0 0.0
    %560 = vmatpush1.msra.mxu0 0.0
    %561 = vmatprep.subr.mxu0 0.0
    %562 = vmatpush1.msra.mxu0 0.0
    %563 = vmatprep.subr.mxu0 0.0
    %564 = vmatpush1.msra.mxu0 0.0
    %565 = vmatprep.subr.mxu0 0.0
    %566 = vmatpush1.msra.mxu0 0.0
    %567 = vmatprep.subr.mxu0 0.0
    %568 = vmatpush1.msra.mxu0 0.0
    %569 = vmatprep.subr.mxu0 0.0
    %570 = vmatpush1.msra.mxu0 0.0
    %571 = vmatprep.subr.mxu0 0.0
    %572 = vmatpush1.msra.mxu0 0.0
    %573 = vmatprep.subr.mxu0 0.0
    %574 = vmatpush1.msra.mxu0 0.0
    %575 = vmatprep.subr.mxu0 0.0
    %576 = vmatpush1.msra.mxu0 0.0
    %577 = vmatprep.subr.mxu0 0.0
    %578 = vmatpush1.msra.mxu0 %v542
    %579 = vmatprep.subr.mxu0 0.0
    %580 = vmatpush2.msra.mxu0 0.0
    %581 = vmatprep.subr.mxu0 0.0
    %582 = vmatpush2.msra.mxu0 0.0
    %583 = vmatprep.subr.mxu0 0.0
    %584 = vmatpush2.msra.mxu0 0.0
    %585 = vmatprep.subr.mxu0 0.0
    %586 = vmatpush2.msra.mxu0 0.0
    %587 = vmatprep.subr.mxu0 0.0
    %588 = vmatpush2.msra.mxu0 0.0
    %589 = vmatprep.subr.mxu0 0.0
    %590 = vmatpush2.msra.mxu0 0.0
    %591 = vmatprep.subr.mxu0 0.0
    %592 = vmatpush2.msra.mxu0 0.0
    %593 = vmatprep.subr.mxu0 0.0
    %594 = vmatpush2.msra.mxu0 0.0
    %595 = vmatprep.subr.mxu0 0.0
    %596 = vmatpush2.msra.mxu0 0.0
    %597 = vmatprep.subr.mxu0 0.0
    %598 = vmatpush2.msra.mxu0 0.0
    %599 = vmatprep.subr.mxu0 0.0
    %600 = vmatpush2.msra.mxu0 0.0
    %601 = vmatprep.subr.mxu0 0.0
    %602 = vmatpush2.msra.mxu0 0.0
    %603 = vmatprep.subr.mxu0 0.0
    %604 = vmatpush2.msra.mxu0 0.0
    %605 = vmatprep.subr.mxu0 0.0
    %606 = vmatpush2.msra.mxu0 0.0
    %607 = vmatprep.subr.mxu0 0.0
    %608 = vmatpush2.msra.mxu0 0.0
    %609 = vmatprep.subr.mxu0 0.0
    %610 = vmatpush2.msra.mxu0 0.0
    %611 = vmatprep.mubr.f32.mxu0 0.0
    %612 = vmatmul.mubr.f32.gmra.mxu0 %v545
    %v613 = vpop.f32.mrf.mxu0
    %v614 = vadd.f32 0.0, %v613
    %v615 = vpop.f32.mrf.mxu0
    %616 = vdwg.mxu0
    %618 = vrot.lane.b32.xlu0 %v614, 8
    %v619 = vpop.permute.xlu0 %618
    %vm621 = vcmask 130112
    %622 = vst.msk [vmem:[#allocation3] sm:$0xff] %vm621, %v619
    %v623 = vld [vmem:[#allocation2] sm:$0xff]
    %625 = vrot.lane.b32.xlu0 %v623, 112
    %v626 = vpop.permute.xlu0 %625
    %627 = vrot.lane.b32.xlu0 %v623, 80
    %v628 = vpop.permute.xlu0 %627
    %v629 = vsel %vm281, %v626, 0
    %v631 = vsel %vm281, %v628, 0
    %633 = vmatprep.subr.mxu0 0.0
    %634 = vmatpush1.xpose.msra.mxu0 0.0
    %635 = vmatprep.subr.mxu0 0.0
    %636 = vmatpush1.xpose.msra.mxu0 0.0
    %637 = vmatprep.subr.mxu0 0.0
    %638 = vmatpush1.xpose.msra.mxu0 0.0
    %639 = vmatprep.subr.mxu0 0.0
    %640 = vmatpush1.xpose.msra.mxu0 0.0
    %641 = vmatprep.subr.mxu0 0.0
    %642 = vmatpush1.xpose.msra.mxu0 0.0
    %643 = vmatprep.subr.mxu0 0.0
    %644 = vmatpush1.xpose.msra.mxu0 0.0
    %645 = vmatprep.subr.mxu0 0.0
    %646 = vmatpush1.xpose.msra.mxu0 0.0
    %647 = vmatprep.subr.mxu0 0.0
    %648 = vmatpush1.xpose.msra.mxu0 0.0
    %649 = vmatprep.subr.mxu0 0.0
    %650 = vmatpush1.xpose.msra.mxu0 0.0
    %651 = vmatprep.subr.mxu0 0.0
    %652 = vmatpush1.xpose.msra.mxu0 0.0
    %653 = vmatprep.subr.mxu0 0.0
    %654 = vmatpush1.xpose.msra.mxu0 0.0
    %655 = vmatprep.subr.mxu0 0.0
    %656 = vmatpush1.xpose.msra.mxu0 0.0
    %657 = vmatprep.subr.mxu0 0.0
    %658 = vmatpush1.xpose.msra.mxu0 0.0
    %659 = vmatprep.subr.mxu0 0.0
    %660 = vmatpush1.xpose.msra.mxu0 0.0
    %661 = vmatprep.subr.mxu0 0.0
    %662 = vmatpush1.xpose.msra.mxu0 0.0
    %663 = vmatprep.subr.mxu0 0.0
    %664 = vmatpush1.xpose.msra.mxu0 %v631
    %665 = vmatprep.subr.mxu0 0.0
    %666 = vmatpush2.xpose.msra.mxu0 0.0
    %667 = vmatprep.subr.mxu0 0.0
    %668 = vmatpush2.xpose.msra.mxu0 0.0
    %669 = vmatprep.subr.mxu0 0.0
    %670 = vmatpush2.xpose.msra.mxu0 0.0
    %671 = vmatprep.subr.mxu0 0.0
    %672 = vmatpush2.xpose.msra.mxu0 0.0
    %673 = vmatprep.subr.mxu0 0.0
    %674 = vmatpush2.xpose.msra.mxu0 0.0
    %675 = vmatprep.subr.mxu0 0.0
    %676 = vmatpush2.xpose.msra.mxu0 0.0
    %677 = vmatprep.subr.mxu0 0.0
    %678 = vmatpush2.xpose.msra.mxu0 0.0
    %679 = vmatprep.subr.mxu0 0.0
    %680 = vmatpush2.xpose.msra.mxu0 0.0
    %681 = vmatprep.subr.mxu0 0.0
    %682 = vmatpush2.xpose.msra.mxu0 0.0
    %683 = vmatprep.subr.mxu0 0.0
    %684 = vmatpush2.xpose.msra.mxu0 0.0
    %685 = vmatprep.subr.mxu0 0.0
    %686 = vmatpush2.xpose.msra.mxu0 0.0
    %687 = vmatprep.subr.mxu0 0.0
    %688 = vmatpush2.xpose.msra.mxu0 0.0
    %689 = vmatprep.subr.mxu0 0.0
    %690 = vmatpush2.xpose.msra.mxu0 0.0
    %691 = vmatprep.subr.mxu0 0.0
    %692 = vmatpush2.xpose.msra.mxu0 0.0
    %693 = vmatprep.subr.mxu0 0.0
    %694 = vmatpush2.xpose.msra.mxu0 0.0
    %695 = vmatprep.subr.mxu0 0.0
    %696 = vmatpush2.xpose.msra.mxu0 0.0
    %697 = vmatprep.mubr.f32.mxu0 0.0
    %698 = vmatmul.mubr.f32.gmra.mxu0 %v629
    %v699 = vpop.f32.mrf.mxu0
    %v700 = vadd.f32 0.0, %v699
    %v701 = vpop.f32.mrf.mxu0
    %702 = vdwg.mxu0
    %v703 = vmul.f32 %v700, 0.35355338
    %v704 = vsel %vm358, %v703, -1e+30
    %v705 = vsel %vm281, %v704, -inf
    %706 = vmax.xlane.f32.xlu0 %v705
    %v707 = vpop.xlane.xlu0 %706
    %v708 = vsub.f32 %v704, %v707
    %v709 = vmul.f32 %v708, 1.442695
    %v710 = vpow.pop %v709
    %v711 = vsel %vm281, %v710, 0.0
    %712 = vadd.xlane.f32.xlu0 %v711
    %v713 = vpop.xlane.xlu0 %712
    %v714 = vrcp.pop %v713
    %v715 = vmul.f32 %v710, %v714
    %716 = vrot.lane.b32.xlu0 %v623, 48
    %v717 = vpop.permute.xlu0 %716
    %v720 = vsel %vm281, %v715, 0
    %722 = vmatprep.subr.mxu0 0.0
    %723 = vmatpush1.msra.mxu0 0.0
    %724 = vmatprep.subr.mxu0 0.0
    %725 = vmatpush1.msra.mxu0 0.0
    %726 = vmatprep.subr.mxu0 0.0
    %727 = vmatpush1.msra.mxu0 0.0
    %728 = vmatprep.subr.mxu0 0.0
    %729 = vmatpush1.msra.mxu0 0.0
    %730 = vmatprep.subr.mxu0 0.0
    %731 = vmatpush1.msra.mxu0 0.0
    %732 = vmatprep.subr.mxu0 0.0
    %733 = vmatpush1.msra.mxu0 0.0
    %734 = vmatprep.subr.mxu0 0.0
    %735 = vmatpush1.msra.mxu0 0.0
    %736 = vmatprep.subr.mxu0 0.0
    %737 = vmatpush1.msra.mxu0 0.0
    %738 = vmatprep.subr.mxu0 0.0
    %739 = vmatpush1.msra.mxu0 0.0
    %740 = vmatprep.subr.mxu0 0.0
    %741 = vmatpush1.msra.mxu0 0.0
    %742 = vmatprep.subr.mxu0 0.0
    %743 = vmatpush1.msra.mxu0 0.0
    %744 = vmatprep.subr.mxu0 0.0
    %745 = vmatpush1.msra.mxu0 0.0
    %746 = vmatprep.subr.mxu0 0.0
    %747 = vmatpush1.msra.mxu0 0.0
    %748 = vmatprep.subr.mxu0 0.0
    %749 = vmatpush1.msra.mxu0 0.0
    %750 = vmatprep.subr.mxu0 0.0
    %751 = vmatpush1.msra.mxu0 0.0
    %752 = vmatprep.subr.mxu0 0.0
    %753 = vmatpush1.msra.mxu0 %v717
    %754 = vmatprep.subr.mxu0 0.0
    %755 = vmatpush2.msra.mxu0 0.0
    %756 = vmatprep.subr.mxu0 0.0
    %757 = vmatpush2.msra.mxu0 0.0
    %758 = vmatprep.subr.mxu0 0.0
    %759 = vmatpush2.msra.mxu0 0.0
    %760 = vmatprep.subr.mxu0 0.0
    %761 = vmatpush2.msra.mxu0 0.0
    %762 = vmatprep.subr.mxu0 0.0
    %763 = vmatpush2.msra.mxu0 0.0
    %764 = vmatprep.subr.mxu0 0.0
    %765 = vmatpush2.msra.mxu0 0.0
    %766 = vmatprep.subr.mxu0 0.0
    %767 = vmatpush2.msra.mxu0 0.0
    %768 = vmatprep.subr.mxu0 0.0
    %769 = vmatpush2.msra.mxu0 0.0
    %770 = vmatprep.subr.mxu0 0.0
    %771 = vmatpush2.msra.mxu0 0.0
    %772 = vmatprep.subr.mxu0 0.0
    %773 = vmatpush2.msra.mxu0 0.0
    %774 = vmatprep.subr.mxu0 0.0
    %775 = vmatpush2.msra.mxu0 0.0
    %776 = vmatprep.subr.mxu0 0.0
    %777 = vmatpush2.msra.mxu0 0.0
    %778 = vmatprep.subr.mxu0 0.0
    %779 = vmatpush2.msra.mxu0 0.0
    %780 = vmatprep.subr.mxu0 0.0
    %781 = vmatpush2.msra.mxu0 0.0
    %782 = vmatprep.subr.mxu0 0.0
    %783 = vmatpush2.msra.mxu0 0.0
    %784 = vmatprep.subr.mxu0 0.0
    %785 = vmatpush2.msra.mxu0 0.0
    %786 = vmatprep.mubr.f32.mxu0 0.0
    %787 = vmatmul.mubr.f32.gmra.mxu0 %v720
    %v788 = vpop.f32.mrf.mxu0
    %v789 = vadd.f32 0.0, %v788
    %v790 = vpop.f32.mrf.mxu0
    %791 = vdwg.mxu0
    %793 = vrot.lane.b32.xlu0 %v789, 16
    %v794 = vpop.permute.xlu0 %793
    %vm796 = vcmask 195712
    %797 = vst.msk [vmem:[#allocation3] sm:$0xff] %vm796, %v794
    %v798 = vld [vmem:[#allocation2] sm:$0xff]
    %800 = vrot.lane.b32.xlu0 %v798, 104
    %v801 = vpop.permute.xlu0 %800
    %802 = vrot.lane.b32.xlu0 %v798, 72
    %v803 = vpop.permute.xlu0 %802
    %v804 = vsel %vm281, %v801, 0
    %v806 = vsel %vm281, %v803, 0
    %808 = vmatprep.subr.mxu0 0.0
    %809 = vmatpush1.xpose.msra.mxu0 0.0
    %810 = vmatprep.subr.mxu0 0.0
    %811 = vmatpush1.xpose.msra.mxu0 0.0
    %812 = vmatprep.subr.mxu0 0.0
    %813 = vmatpush1.xpose.msra.mxu0 0.0
    %814 = vmatprep.subr.mxu0 0.0
    %815 = vmatpush1.xpose.msra.mxu0 0.0
    %816 = vmatprep.subr.mxu0 0.0
    %817 = vmatpush1.xpose.msra.mxu0 0.0
    %818 = vmatprep.subr.mxu0 0.0
    %819 = vmatpush1.xpose.msra.mxu0 0.0
    %820 = vmatprep.subr.mxu0 0.0
    %821 = vmatpush1.xpose.msra.mxu0 0.0
    %822 = vmatprep.subr.mxu0 0.0
    %823 = vmatpush1.xpose.msra.mxu0 0.0
    %824 = vmatprep.subr.mxu0 0.0
    %825 = vmatpush1.xpose.msra.mxu0 0.0
    %826 = vmatprep.subr.mxu0 0.0
    %827 = vmatpush1.xpose.msra.mxu0 0.0
    %828 = vmatprep.subr.mxu0 0.0
    %829 = vmatpush1.xpose.msra.mxu0 0.0
    %830 = vmatprep.subr.mxu0 0.0
    %831 = vmatpush1.xpose.msra.mxu0 0.0
    %832 = vmatprep.subr.mxu0 0.0
    %833 = vmatpush1.xpose.msra.mxu0 0.0
    %834 = vmatprep.subr.mxu0 0.0
    %835 = vmatpush1.xpose.msra.mxu0 0.0
    %836 = vmatprep.subr.mxu0 0.0
    %837 = vmatpush1.xpose.msra.mxu0 0.0
    %838 = vmatprep.subr.mxu0 0.0
    %839 = vmatpush1.xpose.msra.mxu0 %v806
    %840 = vmatprep.subr.mxu0 0.0
    %841 = vmatpush2.xpose.msra.mxu0 0.0
    %842 = vmatprep.subr.mxu0 0.0
    %843 = vmatpush2.xpose.msra.mxu0 0.0
    %844 = vmatprep.subr.mxu0 0.0
    %845 = vmatpush2.xpose.msra.mxu0 0.0
    %846 = vmatprep.subr.mxu0 0.0
    %847 = vmatpush2.xpose.msra.mxu0 0.0
    %848 = vmatprep.subr.mxu0 0.0
    %849 = vmatpush2.xpose.msra.mxu0 0.0
    %850 = vmatprep.subr.mxu0 0.0
    %851 = vmatpush2.xpose.msra.mxu0 0.0
    %852 = vmatprep.subr.mxu0 0.0
    %853 = vmatpush2.xpose.msra.mxu0 0.0
    %854 = vmatprep.subr.mxu0 0.0
    %855 = vmatpush2.xpose.msra.mxu0 0.0
    %856 = vmatprep.subr.mxu0 0.0
    %857 = vmatpush2.xpose.msra.mxu0 0.0
    %858 = vmatprep.subr.mxu0 0.0
    %859 = vmatpush2.xpose.msra.mxu0 0.0
    %860 = vmatprep.subr.mxu0 0.0
    %861 = vmatpush2.xpose.msra.mxu0 0.0
    %862 = vmatprep.subr.mxu0 0.0
    %863 = vmatpush2.xpose.msra.mxu0 0.0
    %864 = vmatprep.subr.mxu0 0.0
    %865 = vmatpush2.xpose.msra.mxu0 0.0
    %866 = vmatprep.subr.mxu0 0.0
    %867 = vmatpush2.xpose.msra.mxu0 0.0
    %868 = vmatprep.subr.mxu0 0.0
    %869 = vmatpush2.xpose.msra.mxu0 0.0
    %870 = vmatprep.subr.mxu0 0.0
    %871 = vmatpush2.xpose.msra.mxu0 0.0
    %872 = vmatprep.mubr.f32.mxu0 0.0
    %873 = vmatmul.mubr.f32.gmra.mxu0 %v804
    %v874 = vpop.f32.mrf.mxu0
    %v875 = vadd.f32 0.0, %v874
    %v876 = vpop.f32.mrf.mxu0
    %877 = vdwg.mxu0
    %v878 = vmul.f32 %v875, 0.35355338
    %v879 = vsel %vm358, %v878, -1e+30
    %v880 = vsel %vm281, %v879, -inf
    %881 = vmax.xlane.f32.xlu0 %v880
    %v882 = vpop.xlane.xlu0 %881
    %v883 = vsub.f32 %v879, %v882
    %v884 = vmul.f32 %v883, 1.442695
    %v885 = vpow.pop %v884
    %v886 = vsel %vm281, %v885, 0.0
    %887 = vadd.xlane.f32.xlu0 %v886
    %v888 = vpop.xlane.xlu0 %887
    %v889 = vrcp.pop %v888
    %v890 = vmul.f32 %v885, %v889
    %891 = vrot.lane.b32.xlu0 %v798, 40
    %v892 = vpop.permute.xlu0 %891
    %v895 = vsel %vm281, %v890, 0
    %897 = vmatprep.subr.mxu0 0.0
    %898 = vmatpush1.msra.mxu0 0.0
    %899 = vmatprep.subr.mxu0 0.0
    %900 = vmatpush1.msra.mxu0 0.0
    %901 = vmatprep.subr.mxu0 0.0
    %902 = vmatpush1.msra.mxu0 0.0
    %903 = vmatprep.subr.mxu0 0.0
    %904 = vmatpush1.msra.mxu0 0.0
    %905 = vmatprep.subr.mxu0 0.0
    %906 = vmatpush1.msra.mxu0 0.0
    %907 = vmatprep.subr.mxu0 0.0
    %908 = vmatpush1.msra.mxu0 0.0
    %909 = vmatprep.subr.mxu0 0.0
    %910 = vmatpush1.msra.mxu0 0.0
    %911 = vmatprep.subr.mxu0 0.0
    %912 = vmatpush1.msra.mxu0 0.0
    %913 = vmatprep.subr.mxu0 0.0
    %914 = vmatpush1.msra.mxu0 0.0
    %915 = vmatprep.subr.mxu0 0.0
    %916 = vmatpush1.msra.mxu0 0.0
    %917 = vmatprep.subr.mxu0 0.0
    %918 = vmatpush1.msra.mxu0 0.0
    %919 = vmatprep.subr.mxu0 0.0
    %920 = vmatpush1.msra.mxu0 0.0
    %921 = vmatprep.subr.mxu0 0.0
    %922 = vmatpush1.msra.mxu0 0.0
    %923 = vmatprep.subr.mxu0 0.0
    %924 = vmatpush1.msra.mxu0 0.0
    %925 = vmatprep.subr.mxu0 0.0
    %926 = vmatpush1.msra.mxu0 0.0
    %927 = vmatprep.subr.mxu0 0.0
    %928 = vmatpush1.msra.mxu0 %v892
    %929 = vmatprep.subr.mxu0 0.0
    %930 = vmatpush2.msra.mxu0 0.0
    %931 = vmatprep.subr.mxu0 0.0
    %932 = vmatpush2.msra.mxu0 0.0
    %933 = vmatprep.subr.mxu0 0.0
    %934 = vmatpush2.msra.mxu0 0.0
    %935 = vmatprep.subr.mxu0 0.0
    %936 = vmatpush2.msra.mxu0 0.0
    %937 = vmatprep.subr.mxu0 0.0
    %938 = vmatpush2.msra.mxu0 0.0
    %939 = vmatprep.subr.mxu0 0.0
    %940 = vmatpush2.msra.mxu0 0.0
    %941 = vmatprep.subr.mxu0 0.0
    %942 = vmatpush2.msra.mxu0 0.0
    %943 = vmatprep.subr.mxu0 0.0
    %944 = vmatpush2.msra.mxu0 0.0
    %945 = vmatprep.subr.mxu0 0.0
    %946 = vmatpush2.msra.mxu0 0.0
    %947 = vmatprep.subr.mxu0 0.0
    %948 = vmatpush2.msra.mxu0 0.0
    %949 = vmatprep.subr.mxu0 0.0
    %950 = vmatpush2.msra.mxu0 0.0
    %951 = vmatprep.subr.mxu0 0.0
    %952 = vmatpush2.msra.mxu0 0.0
    %953 = vmatprep.subr.mxu0 0.0
    %954 = vmatpush2.msra.mxu0 0.0
    %955 = vmatprep.subr.mxu0 0.0
    %956 = vmatpush2.msra.mxu0 0.0
    %957 = vmatprep.subr.mxu0 0.0
    %958 = vmatpush2.msra.mxu0 0.0
    %959 = vmatprep.subr.mxu0 0.0
    %960 = vmatpush2.msra.mxu0 0.0
    %961 = vmatprep.mubr.f32.mxu0 0.0
    %962 = vmatmul.mubr.f32.gmra.mxu0 %v895
    %v963 = vpop.f32.mrf.mxu0
    %v964 = vadd.f32 0.0, %v963
    %v965 = vpop.f32.mrf.mxu0
    %966 = vdwg.mxu0
    %968 = vrot.lane.b32.xlu0 %v964, 24
    %v969 = vpop.permute.xlu0 %968
    %vm971 = vcmask 261312
    %972 = vst.msk [vmem:[#allocation3] sm:$0xff] %vm971, %v969
    %v973 = vld [vmem:[#allocation3] sm:$0xff]
    %v975 = vlaneseq
    %v976 = vshrl.u32 %v975, 7
    %v977 = vsub.s32 0, %v976
    %v978 = vrot.slane %v156, %v977
    %v981 = vsel %vm201, %v973, 0
    %983 = vmatprep.subr.mxu0 0.0
    %984 = vmatpush1.msra.mxu0 0.0
    %985 = vmatprep.subr.mxu0 0.0
    %986 = vmatpush1.msra.mxu0 0.0
    %987 = vmatprep.subr.mxu0 0.0
    %988 = vmatpush1.msra.mxu0 0.0
    %989 = vmatprep.subr.mxu0 0.0
    %990 = vmatpush1.msra.mxu0 0.0
    %991 = vmatprep.subr.mxu0 0.0
    %992 = vmatpush1.msra.mxu0 0.0
    %993 = vmatprep.subr.mxu0 0.0
    %994 = vmatpush1.msra.mxu0 0.0
    %995 = vmatprep.subr.mxu0 0.0
    %996 = vmatpush1.msra.mxu0 0.0
    %997 = vmatprep.subr.mxu0 0.0
    %998 = vmatpush1.msra.mxu0 0.0
    %999 = vmatprep.subr.mxu0 0.0
    %1000 = vmatpush1.msra.mxu0 0.0
    %1001 = vmatprep.subr.mxu0 0.0
    %1002 = vmatpush1.msra.mxu0 0.0
    %1003 = vmatprep.subr.mxu0 0.0
    %1004 = vmatpush1.msra.mxu0 0.0
    %1005 = vmatprep.subr.mxu0 0.0
    %1006 = vmatpush1.msra.mxu0 0.0
    %1007 = vmatprep.subr.mxu0 0.0
    %1008 = vmatpush1.msra.mxu0 %v155
    %1009 = vmatprep.subr.mxu0 0.0
    %1010 = vmatpush1.msra.mxu0 %v154
    %1011 = vmatprep.subr.mxu0 0.0
    %1012 = vmatpush1.msra.mxu0 %v153
    %1013 = vmatprep.subr.mxu0 0.0
    %1014 = vmatpush1.msra.mxu0 %v152
    %1015 = vmatprep.subr.mxu0 0.0
    %1016 = vmatpush2.msra.mxu0 0.0
    %1017 = vmatprep.subr.mxu0 0.0
    %1018 = vmatpush2.msra.mxu0 0.0
    %1019 = vmatprep.subr.mxu0 0.0
    %1020 = vmatpush2.msra.mxu0 0.0
    %1021 = vmatprep.subr.mxu0 0.0
    %1022 = vmatpush2.msra.mxu0 0.0
    %1023 = vmatprep.subr.mxu0 0.0
    %1024 = vmatpush2.msra.mxu0 0.0
    %1025 = vmatprep.subr.mxu0 0.0
    %1026 = vmatpush2.msra.mxu0 0.0
    %1027 = vmatprep.subr.mxu0 0.0
    %1028 = vmatpush2.msra.mxu0 0.0
    %1029 = vmatprep.subr.mxu0 0.0
    %1030 = vmatpush2.msra.mxu0 0.0
    %1031 = vmatprep.subr.mxu0 0.0
    %1032 = vmatpush2.msra.mxu0 0.0
    %1033 = vmatprep.subr.mxu0 0.0
    %1034 = vmatpush2.msra.mxu0 0.0
    %1035 = vmatprep.subr.mxu0 0.0
    %1036 = vmatpush2.msra.mxu0 0.0
    %1037 = vmatprep.subr.mxu0 0.0
    %1038 = vmatpush2.msra.mxu0 0.0
    %1039 = vmatprep.subr.mxu0 0.0
    %1040 = vmatpush2.msra.mxu0 0.0
    %1041 = vmatprep.subr.mxu0 0.0
    %1042 = vmatpush2.msra.mxu0 0.0
    %1043 = vmatprep.subr.mxu0 0.0
    %1044 = vmatpush2.msra.mxu0 0.0
    %1045 = vmatprep.subr.mxu0 0.0
    %1046 = vmatpush2.msra.mxu0 0.0
    %1047 = vmatprep.mubr.f32.mxu0 0.0
    %1048 = vmatmul.mubr.f32.gmra.mxu0 %v981
    %v1049 = vpop.f32.mrf.mxu0
    %v1050 = vadd.f32 %v978, %v1049
    %v1051 = vpop.f32.mrf.mxu0
    %1052 = vdwg.mxu0
    %v1053 = vadd.f32 %v194, %v1050
    %v1054 = vsel %vm201, %v1053, 0.0
    %1055 = vadd.xlane.f32.xlu0 %v1054
    %v1056 = vpop.xlane.xlu0 %1055
    %v1057 = vrcp.pop 32.0
    %v1058 = vmul.f32 %v1056, %v1057
    %v1059 = vsub.f32 %v1053, %v1058
    %v1060 = vmul.f32 %v1059, %v1059
    %v1061 = vsel %vm201, %v1060, 0.0
    %1062 = vadd.xlane.f32.xlu0 %v1061
    %v1063 = vpop.xlane.xlu0 %1062
    %v1064 = vmul.f32 %v1063, %v1057
    %v1065 = vadd.f32 %v1064, 1e-05
    %v1066 = vrsqrt.pop %v1065
    %v1067 = vmul.f32 %v1059, %v1066
    %v1069 = vlaneseq
    %v1070 = vshrl.u32 %v1069, 7
    %v1071 = vsub.s32 0, %v1070
    %v1072 = vrot.slane %v188, %v1071
    %v1074 = vmul.f32 %v1067, %v1072
    %v1076 = vlaneseq
    %v1077 = vshrl.u32 %v1076, 7
    %v1078 = vsub.s32 0, %v1077
    %v1079 = vrot.slane %v189, %v1078
    %v1081 = vadd.f32 %v1074, %v1079
    %v1083 = vlaneseq
    %v1084 = vshrl.u32 %v1083, 7
    %v1085 = vsub.s32 0, %v1084
    %v1086 = vrot.slane %v161, %v1085
    %v1089 = vsel %vm201, %v1081, 0
    %1091 = vmatprep.subr.mxu0 0.0
    %1092 = vmatpush1.msra.mxu0 0.0
    %1093 = vmatprep.subr.mxu0 0.0
    %1094 = vmatpush1.msra.mxu0 0.0
    %1095 = vmatprep.subr.mxu0 0.0
    %1096 = vmatpush1.msra.mxu0 0.0
    %1097 = vmatprep.subr.mxu0 0.0
    %1098 = vmatpush1.msra.mxu0 0.0
    %1099 = vmatprep.subr.mxu0 0.0
    %1100 = vmatpush1.msra.mxu0 0.0
    %1101 = vmatprep.subr.mxu0 0.0
    %1102 = vmatpush1.msra.mxu0 0.0
    %1103 = vmatprep.subr.mxu0 0.0
    %1104 = vmatpush1.msra.mxu0 0.0
    %1105 = vmatprep.subr.mxu0 0.0
    %1106 = vmatpush1.msra.mxu0 0.0
    %1107 = vmatprep.subr.mxu0 0.0
    %1108 = vmatpush1.msra.mxu0 0.0
    %1109 = vmatprep.subr.mxu0 0.0
    %1110 = vmatpush1.msra.mxu0 0.0
    %1111 = vmatprep.subr.mxu0 0.0
    %1112 = vmatpush1.msra.mxu0 0.0
    %1113 = vmatprep.subr.mxu0 0.0
    %1114 = vmatpush1.msra.mxu0 0.0
    %1115 = vmatprep.subr.mxu0 0.0
    %1116 = vmatpush1.msra.mxu0 %v160
    %1117 = vmatprep.subr.mxu0 0.0
    %1118 = vmatpush1.msra.mxu0 %v159
    %1119 = vmatprep.subr.mxu0 0.0
    %1120 = vmatpush1.msra.mxu0 %v158
    %1121 = vmatprep.subr.mxu0 0.0
    %1122 = vmatpush1.msra.mxu0 %v157
    %1123 = vmatprep.subr.mxu0 0.0
    %1124 = vmatpush2.msra.mxu0 0.0
    %1125 = vmatprep.subr.mxu0 0.0
    %1126 = vmatpush2.msra.mxu0 0.0
    %1127 = vmatprep.subr.mxu0 0.0
    %1128 = vmatpush2.msra.mxu0 0.0
    %1129 = vmatprep.subr.mxu0 0.0
    %1130 = vmatpush2.msra.mxu0 0.0
    %1131 = vmatprep.subr.mxu0 0.0
    %1132 = vmatpush2.msra.mxu0 0.0
    %1133 = vmatprep.subr.mxu0 0.0
    %1134 = vmatpush2.msra.mxu0 0.0
    %1135 = vmatprep.subr.mxu0 0.0
    %1136 = vmatpush2.msra.mxu0 0.0
    %1137 = vmatprep.subr.mxu0 0.0
    %1138 = vmatpush2.msra.mxu0 0.0
    %1139 = vmatprep.subr.mxu0 0.0
    %1140 = vmatpush2.msra.mxu0 0.0
    %1141 = vmatprep.subr.mxu0 0.0
    %1142 = vmatpush2.msra.mxu0 0.0
    %1143 = vmatprep.subr.mxu0 0.0
    %1144 = vmatpush2.msra.mxu0 0.0
    %1145 = vmatprep.subr.mxu0 0.0
    %1146 = vmatpush2.msra.mxu0 0.0
    %1147 = vmatprep.subr.mxu0 0.0
    %1148 = vmatpush2.msra.mxu0 0.0
    %1149 = vmatprep.subr.mxu0 0.0
    %1150 = vmatpush2.msra.mxu0 0.0
    %1151 = vmatprep.subr.mxu0 0.0
    %1152 = vmatpush2.msra.mxu0 0.0
    %1153 = vmatprep.subr.mxu0 0.0
    %1154 = vmatpush2.msra.mxu0 0.0
    %1155 = vmatprep.mubr.f32.mxu0 0.0
    %1156 = vmatmul.mubr.f32.gmra.mxu0 %v1089
    %v1157 = vpop.f32.mrf.mxu0
    %v1158 = vadd.f32 %v1086, %v1157
    %v1159 = vpop.f32.mrf.mxu0
    %1160 = vdwg.mxu0
    %1161 = vst.msk [vmem:[#allocation2] sm:$0xff] %vm201, %v1158
    %v1162 = vld [vmem:[#allocation2] sm:$0xff]
    %v1163 = vld [vmem:[%s9] sm:$0xff]
    %v1164 = vld [vmem:[%s9 + $0x8] sm:$0xff]
    %v1165 = vld [vmem:[%s11] sm:$0xff]
    %v1166 = vld [vmem:[%s11 + $0x8] sm:$0xff]
    %v1168 = vsel %vm281, %v1162, 0
    %v1171 = vsel %vm281, %v1163, 0
    %v1174 = vsel %vm281, %v1164, 0
    %1176 = vmatprep.subr.mxu0 0.0
    %1177 = vmatpush1.xpose.msra.mxu0 0.0
    %1178 = vmatprep.subr.mxu0 0.0
    %1179 = vmatpush1.xpose.msra.mxu0 0.0
    %1180 = vmatprep.subr.mxu0 0.0
    %1181 = vmatpush1.xpose.msra.mxu0 0.0
    %1182 = vmatprep.subr.mxu0 0.0
    %1183 = vmatpush1.xpose.msra.mxu0 0.0
    %1184 = vmatprep.subr.mxu0 0.0
    %1185 = vmatpush1.xpose.msra.mxu0 0.0
    %1186 = vmatprep.subr.mxu0 0.0
    %1187 = vmatpush1.xpose.msra.mxu0 0.0
    %1188 = vmatprep.subr.mxu0 0.0
    %1189 = vmatpush1.xpose.msra.mxu0 0.0
    %1190 = vmatprep.subr.mxu0 0.0
    %1191 = vmatpush1.xpose.msra.mxu0 0.0
    %1192 = vmatprep.subr.mxu0 0.0
    %1193 = vmatpush1.xpose.msra.mxu0 0.0
    %1194 = vmatprep.subr.mxu0 0.0
    %1195 = vmatpush1.xpose.msra.mxu0 0.0
    %1196 = vmatprep.subr.mxu0 0.0
    %1197 = vmatpush1.xpose.msra.mxu0 0.0
    %1198 = vmatprep.subr.mxu0 0.0
    %1199 = vmatpush1.xpose.msra.mxu0 0.0
    %1200 = vmatprep.subr.mxu0 0.0
    %1201 = vmatpush1.xpose.msra.mxu0 0.0
    %1202 = vmatprep.subr.mxu0 0.0
    %1203 = vmatpush1.xpose.msra.mxu0 0.0
    %1204 = vmatprep.subr.mxu0 0.0
    %1205 = vmatpush1.xpose.msra.mxu0 %v1174
    %1206 = vmatprep.subr.mxu0 0.0
    %1207 = vmatpush1.xpose.msra.mxu0 %v1171
    %1208 = vmatprep.subr.mxu0 0.0
    %1209 = vmatpush2.xpose.msra.mxu0 0.0
    %1210 = vmatprep.subr.mxu0 0.0
    %1211 = vmatpush2.xpose.msra.mxu0 0.0
    %1212 = vmatprep.subr.mxu0 0.0
    %1213 = vmatpush2.xpose.msra.mxu0 0.0
    %1214 = vmatprep.subr.mxu0 0.0
    %1215 = vmatpush2.xpose.msra.mxu0 0.0
    %1216 = vmatprep.subr.mxu0 0.0
    %1217 = vmatpush2.xpose.msra.mxu0 0.0
    %1218 = vmatprep.subr.mxu0 0.0
    %1219 = vmatpush2.xpose.msra.mxu0 0.0
    %1220 = vmatprep.subr.mxu0 0.0
    %1221 = vmatpush2.xpose.msra.mxu0 0.0
    %1222 = vmatprep.subr.mxu0 0.0
    %1223 = vmatpush2.xpose.msra.mxu0 0.0
    %1224 = vmatprep.subr.mxu0 0.0
    %1225 = vmatpush2.xpose.msra.mxu0 0.0
    %1226 = vmatprep.subr.mxu0 0.0
    %1227 = vmatpush2.xpose.msra.mxu0 0.0
    %1228 = vmatprep.subr.mxu0 0.0
    %1229 = vmatpush2.xpose.msra.mxu0 0.0
    %1230 = vmatprep.subr.mxu0 0.0
    %1231 = vmatpush2.xpose.msra.mxu0 0.0
    %1232 = vmatprep.subr.mxu0 0.0
    %1233 = vmatpush2.xpose.msra.mxu0 0.0
    %1234 = vmatprep.subr.mxu0 0.0
    %1235 = vmatpush2.xpose.msra.mxu0 0.0
    %1236 = vmatprep.subr.mxu0 0.0
    %1237 = vmatpush2.xpose.msra.mxu0 0.0
    %1238 = vmatprep.subr.mxu0 0.0
    %1239 = vmatpush2.xpose.msra.mxu0 0.0
    %1240 = vmatprep.mubr.f32.mxu0 0.0
    %1241 = vmatmul.mubr.f32.gmra.mxu0 %v1168
    %v1242 = vpop.f32.mrf.mxu0
    %v1243 = vadd.f32 0.0, %v1242
    %v1244 = vpop.f32.mrf.mxu0
    %1245 = vdwg.mxu0
    %v1246 = vmul.f32 %v1243, 0.35355338
    %vm1247 = vcmask 130048
    %v1248 = vsel %vm1247, %v1246, -inf
    %1249 = vmax.xlane.f32.xlu0 %v1248
    %v1250 = vpop.xlane.xlu0 %1249
    %v1251 = vsub.f32 %v1246, %v1250
    %v1252 = vmul.f32 %v1251, 1.442695
    %v1253 = vpow.pop %v1252
    %v1254 = vsel %vm1247, %v1253, 0.0
    %1255 = vadd.xlane.f32.xlu0 %v1254
    %v1256 = vpop.xlane.xlu0 %1255
    %v1257 = vrcp.pop %v1256
    %v1258 = vmul.f32 %v1253, %v1257
    %v1260 = vsel %vm1247, %v1258, 0
    %1262 = vmatprep.subr.mxu0 0.0
    %1263 = vmatpush1.msra.mxu0 0.0
    %1264 = vmatprep.subr.mxu0 0.0
    %1265 = vmatpush1.msra.mxu0 0.0
    %1266 = vmatprep.subr.mxu0 0.0
    %1267 = vmatpush1.msra.mxu0 0.0
    %1268 = vmatprep.subr.mxu0 0.0
    %1269 = vmatpush1.msra.mxu0 0.0
    %1270 = vmatprep.subr.mxu0 0.0
    %1271 = vmatpush1.msra.mxu0 0.0
    %1272 = vmatprep.subr.mxu0 0.0
    %1273 = vmatpush1.msra.mxu0 0.0
    %1274 = vmatprep.subr.mxu0 0.0
    %1275 = vmatpush1.msra.mxu0 0.0
    %1276 = vmatprep.subr.mxu0 0.0
    %1277 = vmatpush1.msra.mxu0 0.0
    %1278 = vmatprep.subr.mxu0 0.0
    %1279 = vmatpush1.msra.mxu0 0.0
    %1280 = vmatprep.subr.mxu0 0.0
    %1281 = vmatpush1.msra.mxu0 0.0
    %1282 = vmatprep.subr.mxu0 0.0
    %1283 = vmatpush1.msra.mxu0 0.0
    %1284 = vmatprep.subr.mxu0 0.0
    %1285 = vmatpush1.msra.mxu0 0.0
    %1286 = vmatprep.subr.mxu0 0.0
    %1287 = vmatpush1.msra.mxu0 0.0
    %1288 = vmatprep.subr.mxu0 0.0
    %1289 = vmatpush1.msra.mxu0 0.0
    %1290 = vmatprep.subr.mxu0 0.0
    %1291 = vmatpush1.msra.mxu0 %v1166
    %1292 = vmatprep.subr.mxu0 0.0
    %1293 = vmatpush1.msra.mxu0 %v1165
    %1294 = vmatprep.subr.mxu0 0.0
    %1295 = vmatpush2.msra.mxu0 0.0
    %1296 = vmatprep.subr.mxu0 0.0
    %1297 = vmatpush2.msra.mxu0 0.0
    %1298 = vmatprep.subr.mxu0 0.0
    %1299 = vmatpush2.msra.mxu0 0.0
    %1300 = vmatprep.subr.mxu0 0.0
    %1301 = vmatpush2.msra.mxu0 0.0
    %1302 = vmatprep.subr.mxu0 0.0
    %1303 = vmatpush2.msra.mxu0 0.0
    %1304 = vmatprep.subr.mxu0 0.0
    %1305 = vmatpush2.msra.mxu0 0.0
    %1306 = vmatprep.subr.mxu0 0.0
    %1307 = vmatpush2.msra.mxu0 0.0
    %1308 = vmatprep.subr.mxu0 0.0
    %1309 = vmatpush2.msra.mxu0 0.0
    %1310 = vmatprep.subr.mxu0 0.0
    %1311 = vmatpush2.msra.mxu0 0.0
    %1312 = vmatprep.subr.mxu0 0.0
    %1313 = vmatpush2.msra.mxu0 0.0
    %1314 = vmatprep.subr.mxu0 0.0
    %1315 = vmatpush2.msra.mxu0 0.0
    %1316 = vmatprep.subr.mxu0 0.0
    %1317 = vmatpush2.msra.mxu0 0.0
    %1318 = vmatprep.subr.mxu0 0.0
    %1319 = vmatpush2.msra.mxu0 0.0
    %1320 = vmatprep.subr.mxu0 0.0
    %1321 = vmatpush2.msra.mxu0 0.0
    %1322 = vmatprep.subr.mxu0 0.0
    %1323 = vmatpush2.msra.mxu0 0.0
    %1324 = vmatprep.subr.mxu0 0.0
    %1325 = vmatpush2.msra.mxu0 0.0
    %1326 = vmatprep.mubr.f32.mxu0 0.0
    %1327 = vmatmul.mubr.f32.gmra.mxu0 %v1260
    %v1328 = vpop.f32.mrf.mxu0
    %v1329 = vadd.f32 0.0, %v1328
    %v1330 = vpop.f32.mrf.mxu0
    %1331 = vdwg.mxu0
    %1332 = vst.msk [vmem:[#allocation3] sm:$0xff] %vm281, %v1329
    %v1333 = vld [vmem:[#allocation2] sm:$0xff]
    %v1334 = vld [vmem:[%s9] sm:$0xff]
    %v1335 = vld [vmem:[%s9 + $0x8] sm:$0xff]
    %v1336 = vld [vmem:[%s11] sm:$0xff]
    %v1337 = vld [vmem:[%s11 + $0x8] sm:$0xff]
    %1339 = vrot.lane.b32.xlu0 %v1333, 120
    %v1340 = vpop.permute.xlu0 %1339
    %1343 = vrot.lane.b32.xlu0 %v1334, 120
    %v1344 = vpop.permute.xlu0 %1343
    %1345 = vrot.lane.b32.xlu0 %v1335, 120
    %v1346 = vpop.permute.xlu0 %1345
    %v1347 = vsel %vm281, %v1340, 0
    %v1349 = vsel %vm281, %v1344, 0
    %v1351 = vsel %vm281, %v1346, 0
    %1353 = vmatprep.subr.mxu0 0.0
    %1354 = vmatpush1.xpose.msra.mxu0 0.0
    %1355 = vmatprep.subr.mxu0 0.0
    %1356 = vmatpush1.xpose.msra.mxu0 0.0
    %1357 = vmatprep.subr.mxu0 0.0
    %1358 = vmatpush1.xpose.msra.mxu0 0.0
    %1359 = vmatprep.subr.mxu0 0.0
    %1360 = vmatpush1.xpose.msra.mxu0 0.0
    %1361 = vmatprep.subr.mxu0 0.0
    %1362 = vmatpush1.xpose.msra.mxu0 0.0
    %1363 = vmatprep.subr.mxu0 0.0
    %1364 = vmatpush1.xpose.msra.mxu0 0.0
    %1365 = vmatprep.subr.mxu0 0.0
    %1366 = vmatpush1.xpose.msra.mxu0 0.0
    %1367 = vmatprep.subr.mxu0 0.0
    %1368 = vmatpush1.xpose.msra.mxu0 0.0
    %1369 = vmatprep.subr.mxu0 0.0
    %1370 = vmatpush1.xpose.msra.mxu0 0.0
    %1371 = vmatprep.subr.mxu0 0.0
    %1372 = vmatpush1.xpose.msra.mxu0 0.0
    %1373 = vmatprep.subr.mxu0 0.0
    %1374 = vmatpush1.xpose.msra.mxu0 0.0
    %1375 = vmatprep.subr.mxu0 0.0
    %1376 = vmatpush1.xpose.msra.mxu0 0.0
    %1377 = vmatprep.subr.mxu0 0.0
    %1378 = vmatpush1.xpose.msra.mxu0 0.0
    %1379 = vmatprep.subr.mxu0 0.0
    %1380 = vmatpush1.xpose.msra.mxu0 0.0
    %1381 = vmatprep.subr.mxu0 0.0
    %1382 = vmatpush1.xpose.msra.mxu0 %v1351
    %1383 = vmatprep.subr.mxu0 0.0
    %1384 = vmatpush1.xpose.msra.mxu0 %v1349
    %1385 = vmatprep.subr.mxu0 0.0
    %1386 = vmatpush2.xpose.msra.mxu0 0.0
    %1387 = vmatprep.subr.mxu0 0.0
    %1388 = vmatpush2.xpose.msra.mxu0 0.0
    %1389 = vmatprep.subr.mxu0 0.0
    %1390 = vmatpush2.xpose.msra.mxu0 0.0
    %1391 = vmatprep.subr.mxu0 0.0
    %1392 = vmatpush2.xpose.msra.mxu0 0.0
    %1393 = vmatprep.subr.mxu0 0.0
    %1394 = vmatpush2.xpose.msra.mxu0 0.0
    %1395 = vmatprep.subr.mxu0 0.0
    %1396 = vmatpush2.xpose.msra.mxu0 0.0
    %1397 = vmatprep.subr.mxu0 0.0
    %1398 = vmatpush2.xpose.msra.mxu0 0.0
    %1399 = vmatprep.subr.mxu0 0.0
    %1400 = vmatpush2.xpose.msra.mxu0 0.0
    %1401 = vmatprep.subr.mxu0 0.0
    %1402 = vmatpush2.xpose.msra.mxu0 0.0
    %1403 = vmatprep.subr.mxu0 0.0
    %1404 = vmatpush2.xpose.msra.mxu0 0.0
    %1405 = vmatprep.subr.mxu0 0.0
    %1406 = vmatpush2.xpose.msra.mxu0 0.0
    %1407 = vmatprep.subr.mxu0 0.0
    %1408 = vmatpush2.xpose.msra.mxu0 0.0
    %1409 = vmatprep.subr.mxu0 0.0
    %1410 = vmatpush2.xpose.msra.mxu0 0.0
    %1411 = vmatprep.subr.mxu0 0.0
    %1412 = vmatpush2.xpose.msra.mxu0 0.0
    %1413 = vmatprep.subr.mxu0 0.0
    %1414 = vmatpush2.xpose.msra.mxu0 0.0
    %1415 = vmatprep.subr.mxu0 0.0
    %1416 = vmatpush2.xpose.msra.mxu0 0.0
    %1417 = vmatprep.mubr.f32.mxu0 0.0
    %1418 = vmatmul.mubr.f32.gmra.mxu0 %v1347
    %v1419 = vpop.f32.mrf.mxu0
    %v1420 = vadd.f32 0.0, %v1419
    %v1421 = vpop.f32.mrf.mxu0
    %1422 = vdwg.mxu0
    %v1423 = vmul.f32 %v1420, 0.35355338
    %v1424 = vsel %vm1247, %v1423, -inf
    %1425 = vmax.xlane.f32.xlu0 %v1424
    %v1426 = vpop.xlane.xlu0 %1425
    %v1427 = vsub.f32 %v1423, %v1426
    %v1428 = vmul.f32 %v1427, 1.442695
    %v1429 = vpow.pop %v1428
    %v1430 = vsel %vm1247, %v1429, 0.0
    %1431 = vadd.xlane.f32.xlu0 %v1430
    %v1432 = vpop.xlane.xlu0 %1431
    %v1433 = vrcp.pop %v1432
    %v1434 = vmul.f32 %v1429, %v1433
    %1437 = vrot.lane.b32.xlu0 %v1336, 120
    %v1438 = vpop.permute.xlu0 %1437
    %1439 = vrot.lane.b32.xlu0 %v1337, 120
    %v1440 = vpop.permute.xlu0 %1439
    %v1444 = vsel %vm1247, %v1434, 0
    %1446 = vmatprep.subr.mxu0 0.0
    %1447 = vmatpush1.msra.mxu0 0.0
    %1448 = vmatprep.subr.mxu0 0.0
    %1449 = vmatpush1.msra.mxu0 0.0
    %1450 = vmatprep.subr.mxu0 0.0
    %1451 = vmatpush1.msra.mxu0 0.0
    %1452 = vmatprep.subr.mxu0 0.0
    %1453 = vmatpush1.msra.mxu0 0.0
    %1454 = vmatprep.subr.mxu0 0.0
    %1455 = vmatpush1.msra.mxu0 0.0
    %1456 = vmatprep.subr.mxu0 0.0
    %1457 = vmatpush1.msra.mxu0 0.0
    %1458 = vmatprep.subr.mxu0 0.0
    %1459 = vmatpush1.msra.mxu0 0.0
    %1460 = vmatprep.subr.mxu0 0.0
    %1461 = vmatpush1.msra.mxu0 0.0
    %1462 = vmatprep.subr.mxu0 0.0
    %1463 = vmatpush1.msra.mxu0 0.0
    %1464 = vmatprep.subr.mxu0 0.0
    %1465 = vmatpush1.msra.mxu0 0.0
    %1466 = vmatprep.subr.mxu0 0.0
    %1467 = vmatpush1.msra.mxu0 0.0
    %1468 = vmatprep.subr.mxu0 0.0
    %1469 = vmatpush1.msra.mxu0 0.0
    %1470 = vmatprep.subr.mxu0 0.0
    %1471 = vmatpush1.msra.mxu0 0.0
    %1472 = vmatprep.subr.mxu0 0.0
    %1473 = vmatpush1.msra.mxu0 0.0
    %1474 = vmatprep.subr.mxu0 0.0
    %1475 = vmatpush1.msra.mxu0 %v1440
    %1476 = vmatprep.subr.mxu0 0.0
    %1477 = vmatpush1.msra.mxu0 %v1438
    %1478 = vmatprep.subr.mxu0 0.0
    %1479 = vmatpush2.msra.mxu0 0.0
    %1480 = vmatprep.subr.mxu0 0.0
    %1481 = vmatpush2.msra.mxu0 0.0
    %1482 = vmatprep.subr.mxu0 0.0
    %1483 = vmatpush2.msra.mxu0 0.0
    %1484 = vmatprep.subr.mxu0 0.0
    %1485 = vmatpush2.msra.mxu0 0.0
    %1486 = vmatprep.subr.mxu0 0.0
    %1487 = vmatpush2.msra.mxu0 0.0
    %1488 = vmatprep.subr.mxu0 0.0
    %1489 = vmatpush2.msra.mxu0 0.0
    %1490 = vmatprep.subr.mxu0 0.0
    %1491 = vmatpush2.msra.mxu0 0.0
    %1492 = vmatprep.subr.mxu0 0.0
    %1493 = vmatpush2.msra.mxu0 0.0
    %1494 = vmatprep.subr.mxu0 0.0
    %1495 = vmatpush2.msra.mxu0 0.0
    %1496 = vmatprep.subr.mxu0 0.0
    %1497 = vmatpush2.msra.mxu0 0.0
    %1498 = vmatprep.subr.mxu0 0.0
    %1499 = vmatpush2.msra.mxu0 0.0
    %1500 = vmatprep.subr.mxu0 0.0
    %1501 = vmatpush2.msra.mxu0 0.0
    %1502 = vmatprep.subr.mxu0 0.0
    %1503 = vmatpush2.msra.mxu0 0.0
    %1504 = vmatprep.subr.mxu0 0.0
    %1505 = vmatpush2.msra.mxu0 0.0
    %1506 = vmatprep.subr.mxu0 0.0
    %1507 = vmatpush2.msra.mxu0 0.0
    %1508 = vmatprep.subr.mxu0 0.0
    %1509 = vmatpush2.msra.mxu0 0.0
    %1510 = vmatprep.mubr.f32.mxu0 0.0
    %1511 = vmatmul.mubr.f32.gmra.mxu0 %v1444
    %v1512 = vpop.f32.mrf.mxu0
    %v1513 = vadd.f32 0.0, %v1512
    %v1514 = vpop.f32.mrf.mxu0
    %1515 = vdwg.mxu0
    %1517 = vrot.lane.b32.xlu0 %v1513, 8
    %v1518 = vpop.permute.xlu0 %1517
    %1520 = vst.msk [vmem:[#allocation3] sm:$0xff] %vm621, %v1518
    %v1521 = vld [vmem:[#allocation2] sm:$0xff]
    %v1522 = vld [vmem:[%s9] sm:$0xff]
    %v1523 = vld [vmem:[%s9 + $0x8] sm:$0xff]
    %v1524 = vld [vmem:[%s11] sm:$0xff]
    %v1525 = vld [vmem:[%s11 + $0x8] sm:$0xff]
    %1527 = vrot.lane.b32.xlu0 %v1521, 112
    %v1528 = vpop.permute.xlu0 %1527
    %1531 = vrot.lane.b32.xlu0 %v1522, 112
    %v1532 = vpop.permute.xlu0 %1531
    %1533 = vrot.lane.b32.xlu0 %v1523, 112
    %v1534 = vpop.permute.xlu0 %1533
    %v1535 = vsel %vm281, %v1528, 0
    %v1537 = vsel %vm281, %v1532, 0
    %v1539 = vsel %vm281, %v1534, 0
    %1541 = vmatprep.subr.mxu0 0.0
    %1542 = vmatpush1.xpose.msra.mxu0 0.0
    %1543 = vmatprep.subr.mxu0 0.0
    %1544 = vmatpush1.xpose.msra.mxu0 0.0
    %1545 = vmatprep.subr.mxu0 0.0
    %1546 = vmatpush1.xpose.msra.mxu0 0.0
    %1547 = vmatprep.subr.mxu0 0.0
    %1548 = vmatpush1.xpose.msra.mxu0 0.0
    %1549 = vmatprep.subr.mxu0 0.0
    %1550 = vmatpush1.xpose.msra.mxu0 0.0
    %1551 = vmatprep.subr.mxu0 0.0
    %1552 = vmatpush1.xpose.msra.mxu0 0.0
    %1553 = vmatprep.subr.mxu0 0.0
    %1554 = vmatpush1.xpose.msra.mxu0 0.0
    %1555 = vmatprep.subr.mxu0 0.0
    %1556 = vmatpush1.xpose.msra.mxu0 0.0
    %1557 = vmatprep.subr.mxu0 0.0
    %1558 = vmatpush1.xpose.msra.mxu0 0.0
    %1559 = vmatprep.subr.mxu0 0.0
    %1560 = vmatpush1.xpose.msra.mxu0 0.0
    %1561 = vmatprep.subr.mxu0 0.0
    %1562 = vmatpush1.xpose.msra.mxu0 0.0
    %1563 = vmatprep.subr.mxu0 0.0
    %1564 = vmatpush1.xpose.msra.mxu0 0.0
    %1565 = vmatprep.subr.mxu0 0.0
    %1566 = vmatpush1.xpose.msra.mxu0 0.0
    %1567 = vmatprep.subr.mxu0 0.0
    %1568 = vmatpush1.xpose.msra.mxu0 0.0
    %1569 = vmatprep.subr.mxu0 0.0
    %1570 = vmatpush1.xpose.msra.mxu0 %v1539
    %1571 = vmatprep.subr.mxu0 0.0
    %1572 = vmatpush1.xpose.msra.mxu0 %v1537
    %1573 = vmatprep.subr.mxu0 0.0
    %1574 = vmatpush2.xpose.msra.mxu0 0.0
    %1575 = vmatprep.subr.mxu0 0.0
    %1576 = vmatpush2.xpose.msra.mxu0 0.0
    %1577 = vmatprep.subr.mxu0 0.0
    %1578 = vmatpush2.xpose.msra.mxu0 0.0
    %1579 = vmatprep.subr.mxu0 0.0
    %1580 = vmatpush2.xpose.msra.mxu0 0.0
    %1581 = vmatprep.subr.mxu0 0.0
    %1582 = vmatpush2.xpose.msra.mxu0 0.0
    %1583 = vmatprep.subr.mxu0 0.0
    %1584 = vmatpush2.xpose.msra.mxu0 0.0
    %1585 = vmatprep.subr.mxu0 0.0
    %1586 = vmatpush2.xpose.msra.mxu0 0.0
    %1587 = vmatprep.subr.mxu0 0.0
    %1588 = vmatpush2.xpose.msra.mxu0 0.0
    %1589 = vmatprep.subr.mxu0 0.0
    %1590 = vmatpush2.xpose.msra.mxu0 0.0
    %1591 = vmatprep.subr.mxu0 0.0
    %1592 = vmatpush2.xpose.msra.mxu0 0.0
    %1593 = vmatprep.subr.mxu0 0.0
    %1594 = vmatpush2.xpose.msra.mxu0 0.0
    %1595 = vmatprep.subr.mxu0 0.0
    %1596 = vmatpush2.xpose.msra.mxu0 0.0
    %1597 = vmatprep.subr.mxu0 0.0
    %1598 = vmatpush2.xpose.msra.mxu0 0.0
    %1599 = vmatprep.subr.mxu0 0.0
    %1600 = vmatpush2.xpose.msra.mxu0 0.0
    %1601 = vmatprep.subr.mxu0 0.0
    %1602 = vmatpush2.xpose.msra.mxu0 0.0
    %1603 = vmatprep.subr.mxu0 0.0
    %1604 = vmatpush2.xpose.msra.mxu0 0.0
    %1605 = vmatprep.mubr.f32.mxu0 0.0
    %1606 = vmatmul.mubr.f32.gmra.mxu0 %v1535
    %v1607 = vpop.f32.mrf.mxu0
    %v1608 = vadd.f32 0.0, %v1607
    %v1609 = vpop.f32.mrf.mxu0
    %1610 = vdwg.mxu0
    %v1611 = vmul.f32 %v1608, 0.35355338
    %v1612 = vsel %vm1247, %v1611, -inf
    %1613 = vmax.xlane.f32.xlu0 %v1612
    %v1614 = vpop.xlane.xlu0 %1613
    %v1615 = vsub.f32 %v1611, %v1614
    %v1616 = vmul.f32 %v1615, 1.442695
    %v1617 = vpow.pop %v1616
    %v1618 = vsel %vm1247, %v1617, 0.0
    %1619 = vadd.xlane.f32.xlu0 %v1618
    %v1620 = vpop.xlane.xlu0 %1619
    %v1621 = vrcp.pop %v1620
    %v1622 = vmul.f32 %v1617, %v1621
    %1625 = vrot.lane.b32.xlu0 %v1524, 112
    %v1626 = vpop.permute.xlu0 %1625
    %1627 = vrot.lane.b32.xlu0 %v1525, 112
    %v1628 = vpop.permute.xlu0 %1627
    %v1632 = vsel %vm1247, %v1622, 0
    %1634 = vmatprep.subr.mxu0 0.0
    %1635 = vmatpush1.msra.mxu0 0.0
    %1636 = vmatprep.subr.mxu0 0.0
    %1637 = vmatpush1.msra.mxu0 0.0
    %1638 = vmatprep.subr.mxu0 0.0
    %1639 = vmatpush1.msra.mxu0 0.0
    %1640 = vmatprep.subr.mxu0 0.0
    %1641 = vmatpush1.msra.mxu0 0.0
    %1642 = vmatprep.subr.mxu0 0.0
    %1643 = vmatpush1.msra.mxu0 0.0
    %1644 = vmatprep.subr.mxu0 0.0
    %1645 = vmatpush1.msra.mxu0 0.0
    %1646 = vmatprep.subr.mxu0 0.0
    %1647 = vmatpush1.msra.mxu0 0.0
    %1648 = vmatprep.subr.mxu0 0.0
    %1649 = vmatpush1.msra.mxu0 0.0
    %1650 = vmatprep.subr.mxu0 0.0
    %1651 = vmatpush1.msra.mxu0 0.0
    %1652 = vmatprep.subr.mxu0 0.0
    %1653 = vmatpush1.msra.mxu0 0.0
    %1654 = vmatprep.subr.mxu0 0.0
    %1655 = vmatpush1.msra.mxu0 0.0
    %1656 = vmatprep.subr.mxu0 0.0
    %1657 = vmatpush1.msra.mxu0 0.0
    %1658 = vmatprep.subr.mxu0 0.0
    %1659 = vmatpush1.msra.mxu0 0.0
    %1660 = vmatprep.subr.mxu0 0.0
    %1661 = vmatpush1.msra.mxu0 0.0
    %1662 = vmatprep.subr.mxu0 0.0
    %1663 = vmatpush1.msra.mxu0 %v1628
    %1664 = vmatprep.subr.mxu0 0.0
    %1665 = vmatpush1.msra.mxu0 %v1626
    %1666 = vmatprep.subr.mxu0 0.0
    %1667 = vmatpush2.msra.mxu0 0.0
    %1668 = vmatprep.subr.mxu0 0.0
    %1669 = vmatpush2.msra.mxu0 0.0
    %1670 = vmatprep.subr.mxu0 0.0
    %1671 = vmatpush2.msra.mxu0 0.0
    %1672 = vmatprep.subr.mxu0 0.0
    %1673 = vmatpush2.msra.mxu0 0.0
    %1674 = vmatprep.subr.mxu0 0.0
    %1675 = vmatpush2.msra.mxu0 0.0
    %1676 = vmatprep.subr.mxu0 0.0
    %1677 = vmatpush2.msra.mxu0 0.0
    %1678 = vmatprep.subr.mxu0 0.0
    %1679 = vmatpush2.msra.mxu0 0.0
    %1680 = vmatprep.subr.mxu0 0.0
    %1681 = vmatpush2.msra.mxu0 0.0
    %1682 = vmatprep.subr.mxu0 0.0
    %1683 = vmatpush2.msra.mxu0 0.0
    %1684 = vmatprep.subr.mxu0 0.0
    %1685 = vmatpush2.msra.mxu0 0.0
    %1686 = vmatprep.subr.mxu0 0.0
    %1687 = vmatpush2.msra.mxu0 0.0
    %1688 = vmatprep.subr.mxu0 0.0
    %1689 = vmatpush2.msra.mxu0 0.0
    %1690 = vmatprep.subr.mxu0 0.0
    %1691 = vmatpush2.msra.mxu0 0.0
    %1692 = vmatprep.subr.mxu0 0.0
    %1693 = vmatpush2.msra.mxu0 0.0
    %1694 = vmatprep.subr.mxu0 0.0
    %1695 = vmatpush2.msra.mxu0 0.0
    %1696 = vmatprep.subr.mxu0 0.0
    %1697 = vmatpush2.msra.mxu0 0.0
    %1698 = vmatprep.mubr.f32.mxu0 0.0
    %1699 = vmatmul.mubr.f32.gmra.mxu0 %v1632
    %v1700 = vpop.f32.mrf.mxu0
    %v1701 = vadd.f32 0.0, %v1700
    %v1702 = vpop.f32.mrf.mxu0
    %1703 = vdwg.mxu0
    %1705 = vrot.lane.b32.xlu0 %v1701, 16
    %v1706 = vpop.permute.xlu0 %1705
    %1708 = vst.msk [vmem:[#allocation3] sm:$0xff] %vm796, %v1706
    %v1709 = vld [vmem:[#allocation2] sm:$0xff]
    %v1710 = vld [vmem:[%s9] sm:$0xff]
    %v1711 = vld [vmem:[%s9 + $0x8] sm:$0xff]
    %v1712 = vld [vmem:[%s11] sm:$0xff]
    %v1713 = vld [vmem:[%s11 + $0x8] sm:$0xff]
    %1715 = vrot.lane.b32.xlu0 %v1709, 104
    %v1716 = vpop.permute.xlu0 %1715
    %1719 = vrot.lane.b32.xlu0 %v1710, 104
    %v1720 = vpop.permute.xlu0 %1719
    %1721 = vrot.lane.b32.xlu0 %v1711, 104
    %v1722 = vpop.permute.xlu0 %1721
    %v1723 = vsel %vm281, %v1716, 0
    %v1725 = vsel %vm281, %v1720, 0
    %v1727 = vsel %vm281, %v1722, 0
    %1729 = vmatprep.subr.mxu0 0.0
    %1730 = vmatpush1.xpose.msra.mxu0 0.0
    %1731 = vmatprep.subr.mxu0 0.0
    %1732 = vmatpush1.xpose.msra.mxu0 0.0
    %1733 = vmatprep.subr.mxu0 0.0
    %1734 = vmatpush1.xpose.msra.mxu0 0.0
    %1735 = vmatprep.subr.mxu0 0.0
    %1736 = vmatpush1.xpose.msra.mxu0 0.0
    %1737 = vmatprep.subr.mxu0 0.0
    %1738 = vmatpush1.xpose.msra.mxu0 0.0
    %1739 = vmatprep.subr.mxu0 0.0
    %1740 = vmatpush1.xpose.msra.mxu0 0.0
    %1741 = vmatprep.subr.mxu0 0.0
    %1742 = vmatpush1.xpose.msra.mxu0 0.0
    %1743 = vmatprep.subr.mxu0 0.0
    %1744 = vmatpush1.xpose.msra.mxu0 0.0
    %1745 = vmatprep.subr.mxu0 0.0
    %1746 = vmatpush1.xpose.msra.mxu0 0.0
    %1747 = vmatprep.subr.mxu0 0.0
    %1748 = vmatpush1.xpose.msra.mxu0 0.0
    %1749 = vmatprep.subr.mxu0 0.0
    %1750 = vmatpush1.xpose.msra.mxu0 0.0
    %1751 = vmatprep.subr.mxu0 0.0
    %1752 = vmatpush1.xpose.msra.mxu0 0.0
    %1753 = vmatprep.subr.mxu0 0.0
    %1754 = vmatpush1.xpose.msra.mxu0 0.0
    %1755 = vmatprep.subr.mxu0 0.0
    %1756 = vmatpush1.xpose.msra.mxu0 0.0
    %1757 = vmatprep.subr.mxu0 0.0
    %1758 = vmatpush1.xpose.msra.mxu0 %v1727
    %1759 = vmatprep.subr.mxu0 0.0
    %1760 = vmatpush1.xpose.msra.mxu0 %v1725
    %1761 = vmatprep.subr.mxu0 0.0
    %1762 = vmatpush2.xpose.msra.mxu0 0.0
    %1763 = vmatprep.subr.mxu0 0.0
    %1764 = vmatpush2.xpose.msra.mxu0 0.0
    %1765 = vmatprep.subr.mxu0 0.0
    %1766 = vmatpush2.xpose.msra.mxu0 0.0
    %1767 = vmatprep.subr.mxu0 0.0
    %1768 = vmatpush2.xpose.msra.mxu0 0.0
    %1769 = vmatprep.subr.mxu0 0.0
    %1770 = vmatpush2.xpose.msra.mxu0 0.0
    %1771 = vmatprep.subr.mxu0 0.0
    %1772 = vmatpush2.xpose.msra.mxu0 0.0
    %1773 = vmatprep.subr.mxu0 0.0
    %1774 = vmatpush2.xpose.msra.mxu0 0.0
    %1775 = vmatprep.subr.mxu0 0.0
    %1776 = vmatpush2.xpose.msra.mxu0 0.0
    %1777 = vmatprep.subr.mxu0 0.0
    %1778 = vmatpush2.xpose.msra.mxu0 0.0
    %1779 = vmatprep.subr.mxu0 0.0
    %1780 = vmatpush2.xpose.msra.mxu0 0.0
    %1781 = vmatprep.subr.mxu0 0.0
    %1782 = vmatpush2.xpose.msra.mxu0 0.0
    %1783 = vmatprep.subr.mxu0 0.0
    %1784 = vmatpush2.xpose.msra.mxu0 0.0
    %1785 = vmatprep.subr.mxu0 0.0
    %1786 = vmatpush2.xpose.msra.mxu0 0.0
    %1787 = vmatprep.subr.mxu0 0.0
    %1788 = vmatpush2.xpose.msra.mxu0 0.0
    %1789 = vmatprep.subr.mxu0 0.0
    %1790 = vmatpush2.xpose.msra.mxu0 0.0
    %1791 = vmatprep.subr.mxu0 0.0
    %1792 = vmatpush2.xpose.msra.mxu0 0.0
    %1793 = vmatprep.mubr.f32.mxu0 0.0
    %1794 = vmatmul.mubr.f32.gmra.mxu0 %v1723
    %v1795 = vpop.f32.mrf.mxu0
    %v1796 = vadd.f32 0.0, %v1795
    %v1797 = vpop.f32.mrf.mxu0
    %1798 = vdwg.mxu0
    %v1799 = vmul.f32 %v1796, 0.35355338
    %v1800 = vsel %vm1247, %v1799, -inf
    %1801 = vmax.xlane.f32.xlu0 %v1800
    %v1802 = vpop.xlane.xlu0 %1801
    %v1803 = vsub.f32 %v1799, %v1802
    %v1804 = vmul.f32 %v1803, 1.442695
    %v1805 = vpow.pop %v1804
    %v1806 = vsel %vm1247, %v1805, 0.0
    %1807 = vadd.xlane.f32.xlu0 %v1806
    %v1808 = vpop.xlane.xlu0 %1807
    %v1809 = vrcp.pop %v1808
    %v1810 = vmul.f32 %v1805, %v1809
    %1813 = vrot.lane.b32.xlu0 %v1712, 104
    %v1814 = vpop.permute.xlu0 %1813
    %1815 = vrot.lane.b32.xlu0 %v1713, 104
    %v1816 = vpop.permute.xlu0 %1815
    %v1820 = vsel %vm1247, %v1810, 0
    %1822 = vmatprep.subr.mxu0 0.0
    %1823 = vmatpush1.msra.mxu0 0.0
    %1824 = vmatprep.subr.mxu0 0.0
    %1825 = vmatpush1.msra.mxu0 0.0
    %1826 = vmatprep.subr.mxu0 0.0
    %1827 = vmatpush1.msra.mxu0 0.0
    %1828 = vmatprep.subr.mxu0 0.0
    %1829 = vmatpush1.msra.mxu0 0.0
    %1830 = vmatprep.subr.mxu0 0.0
    %1831 = vmatpush1.msra.mxu0 0.0
    %1832 = vmatprep.subr.mxu0 0.0
    %1833 = vmatpush1.msra.mxu0 0.0
    %1834 = vmatprep.subr.mxu0 0.0
    %1835 = vmatpush1.msra.mxu0 0.0
    %1836 = vmatprep.subr.mxu0 0.0
    %1837 = vmatpush1.msra.mxu0 0.0
    %1838 = vmatprep.subr.mxu0 0.0
    %1839 = vmatpush1.msra.mxu0 0.0
    %1840 = vmatprep.subr.mxu0 0.0
    %1841 = vmatpush1.msra.mxu0 0.0
    %1842 = vmatprep.subr.mxu0 0.0
    %1843 = vmatpush1.msra.mxu0 0.0
    %1844 = vmatprep.subr.mxu0 0.0
    %1845 = vmatpush1.msra.mxu0 0.0
    %1846 = vmatprep.subr.mxu0 0.0
    %1847 = vmatpush1.msra.mxu0 0.0
    %1848 = vmatprep.subr.mxu0 0.0
    %1849 = vmatpush1.msra.mxu0 0.0
    %1850 = vmatprep.subr.mxu0 0.0
    %1851 = vmatpush1.msra.mxu0 %v1816
    %1852 = vmatprep.subr.mxu0 0.0
    %1853 = vmatpush1.msra.mxu0 %v1814
    %1854 = vmatprep.subr.mxu0 0.0
    %1855 = vmatpush2.msra.mxu0 0.0
    %1856 = vmatprep.subr.mxu0 0.0
    %1857 = vmatpush2.msra.mxu0 0.0
    %1858 = vmatprep.subr.mxu0 0.0
    %1859 = vmatpush2.msra.mxu0 0.0
    %1860 = vmatprep.subr.mxu0 0.0
    %1861 = vmatpush2.msra.mxu0 0.0
    %1862 = vmatprep.subr.mxu0 0.0
    %1863 = vmatpush2.msra.mxu0 0.0
    %1864 = vmatprep.subr.mxu0 0.0
    %1865 = vmatpush2.msra.mxu0 0.0
    %1866 = vmatprep.subr.mxu0 0.0
    %1867 = vmatpush2.msra.mxu0 0.0
    %1868 = vmatprep.subr.mxu0 0.0
    %1869 = vmatpush2.msra.mxu0 0.0
    %1870 = vmatprep.subr.mxu0 0.0
    %1871 = vmatpush2.msra.mxu0 0.0
    %1872 = vmatprep.subr.mxu0 0.0
    %1873 = vmatpush2.msra.mxu0 0.0
    %1874 = vmatprep.subr.mxu0 0.0
    %1875 = vmatpush2.msra.mxu0 0.0
    %1876 = vmatprep.subr.mxu0 0.0
    %1877 = vmatpush2.msra.mxu0 0.0
    %1878 = vmatprep.subr.mxu0 0.0
    %1879 = vmatpush2.msra.mxu0 0.0
    %1880 = vmatprep.subr.mxu0 0.0
    %1881 = vmatpush2.msra.mxu0 0.0
    %1882 = vmatprep.subr.mxu0 0.0
    %1883 = vmatpush2.msra.mxu0 0.0
    %1884 = vmatprep.subr.mxu0 0.0
    %1885 = vmatpush2.msra.mxu0 0.0
    %1886 = vmatprep.mubr.f32.mxu0 0.0
    %1887 = vmatmul.mubr.f32.gmra.mxu0 %v1820
    %v1888 = vpop.f32.mrf.mxu0
    %v1889 = vadd.f32 0.0, %v1888
    %v1890 = vpop.f32.mrf.mxu0
    %1891 = vdwg.mxu0
    %1893 = vrot.lane.b32.xlu0 %v1889, 24
    %v1894 = vpop.permute.xlu0 %1893
    %1896 = vst.msk [vmem:[#allocation3] sm:$0xff] %vm971, %v1894
    %v1897 = vld [vmem:[#allocation3] sm:$0xff]
    %v1899 = vlaneseq
    %v1900 = vshrl.u32 %v1899, 7
    %v1901 = vsub.s32 0, %v1900
    %v1902 = vrot.slane %v166, %v1901
    %v1905 = vsel %vm201, %v1897, 0
    %1907 = vmatprep.subr.mxu0 0.0
    %1908 = vmatpush1.msra.mxu0 0.0
    %1909 = vmatprep.subr.mxu0 0.0
    %1910 = vmatpush1.msra.mxu0 0.0
    %1911 = vmatprep.subr.mxu0 0.0
    %1912 = vmatpush1.msra.mxu0 0.0
    %1913 = vmatprep.subr.mxu0 0.0
    %1914 = vmatpush1.msra.mxu0 0.0
    %1915 = vmatprep.subr.mxu0 0.0
    %1916 = vmatpush1.msra.mxu0 0.0
    %1917 = vmatprep.subr.mxu0 0.0
    %1918 = vmatpush1.msra.mxu0 0.0
    %1919 = vmatprep.subr.mxu0 0.0
    %1920 = vmatpush1.msra.mxu0 0.0
    %1921 = vmatprep.subr.mxu0 0.0
    %1922 = vmatpush1.msra.mxu0 0.0
    %1923 = vmatprep.subr.mxu0 0.0
    %1924 = vmatpush1.msra.mxu0 0.0
    %1925 = vmatprep.subr.mxu0 0.0
    %1926 = vmatpush1.msra.mxu0 0.0
    %1927 = vmatprep.subr.mxu0 0.0
    %1928 = vmatpush1.msra.mxu0 0.0
    %1929 = vmatprep.subr.mxu0 0.0
    %1930 = vmatpush1.msra.mxu0 0.0
    %1931 = vmatprep.subr.mxu0 0.0
    %1932 = vmatpush1.msra.mxu0 %v165
    %1933 = vmatprep.subr.mxu0 0.0
    %1934 = vmatpush1.msra.mxu0 %v164
    %1935 = vmatprep.subr.mxu0 0.0
    %1936 = vmatpush1.msra.mxu0 %v163
    %1937 = vmatprep.subr.mxu0 0.0
    %1938 = vmatpush1.msra.mxu0 %v162
    %1939 = vmatprep.subr.mxu0 0.0
    %1940 = vmatpush2.msra.mxu0 0.0
    %1941 = vmatprep.subr.mxu0 0.0
    %1942 = vmatpush2.msra.mxu0 0.0
    %1943 = vmatprep.subr.mxu0 0.0
    %1944 = vmatpush2.msra.mxu0 0.0
    %1945 = vmatprep.subr.mxu0 0.0
    %1946 = vmatpush2.msra.mxu0 0.0
    %1947 = vmatprep.subr.mxu0 0.0
    %1948 = vmatpush2.msra.mxu0 0.0
    %1949 = vmatprep.subr.mxu0 0.0
    %1950 = vmatpush2.msra.mxu0 0.0
    %1951 = vmatprep.subr.mxu0 0.0
    %1952 = vmatpush2.msra.mxu0 0.0
    %1953 = vmatprep.subr.mxu0 0.0
    %1954 = vmatpush2.msra.mxu0 0.0
    %1955 = vmatprep.subr.mxu0 0.0
    %1956 = vmatpush2.msra.mxu0 0.0
    %1957 = vmatprep.subr.mxu0 0.0
    %1958 = vmatpush2.msra.mxu0 0.0
    %1959 = vmatprep.subr.mxu0 0.0
    %1960 = vmatpush2.msra.mxu0 0.0
    %1961 = vmatprep.subr.mxu0 0.0
    %1962 = vmatpush2.msra.mxu0 0.0
    %1963 = vmatprep.subr.mxu0 0.0
    %1964 = vmatpush2.msra.mxu0 0.0
    %1965 = vmatprep.subr.mxu0 0.0
    %1966 = vmatpush2.msra.mxu0 0.0
    %1967 = vmatprep.subr.mxu0 0.0
    %1968 = vmatpush2.msra.mxu0 0.0
    %1969 = vmatprep.subr.mxu0 0.0
    %1970 = vmatpush2.msra.mxu0 0.0
    %1971 = vmatprep.mubr.f32.mxu0 0.0
    %1972 = vmatmul.mubr.f32.gmra.mxu0 %v1905
    %v1973 = vpop.f32.mrf.mxu0
    %v1974 = vadd.f32 %v1902, %v1973
    %v1975 = vpop.f32.mrf.mxu0
    %1976 = vdwg.mxu0
    %v1977 = vadd.f32 %v1081, %v1974
    %v1978 = vsel %vm201, %v1977, 0.0
    %1979 = vadd.xlane.f32.xlu0 %v1978
    %v1980 = vpop.xlane.xlu0 %1979
    %v1981 = vmul.f32 %v1980, %v1057
    %v1982 = vsub.f32 %v1977, %v1981
    %v1983 = vmul.f32 %v1982, %v1982
    %v1984 = vsel %vm201, %v1983, 0.0
    %1985 = vadd.xlane.f32.xlu0 %v1984
    %v1986 = vpop.xlane.xlu0 %1985
    %v1987 = vmul.f32 %v1986, %v1057
    %v1988 = vadd.f32 %v1987, 1e-05
    %v1989 = vrsqrt.pop %v1988
    %v1990 = vmul.f32 %v1982, %v1989
    %v1992 = vlaneseq
    %v1993 = vshrl.u32 %v1992, 7
    %v1994 = vsub.s32 0, %v1993
    %v1995 = vrot.slane %v190, %v1994
    %v1997 = vmul.f32 %v1990, %v1995
    %v1999 = vlaneseq
    %v2000 = vshrl.u32 %v1999, 7
    %v2001 = vsub.s32 0, %v2000
    %v2002 = vrot.slane %v191, %v2001
    %v2004 = vadd.f32 %v1997, %v2002
    %v2006 = vlaneseq
    %v2007 = vshrl.u32 %v2006, 7
    %v2008 = vsub.s32 0, %v2007
    %v2009 = vrot.slane %v171, %v2008
    %v2012 = vsel %vm201, %v2004, 0
    %2014 = vmatprep.subr.mxu0 0.0
    %2015 = vmatpush1.msra.mxu0 0.0
    %2016 = vmatprep.subr.mxu0 0.0
    %2017 = vmatpush1.msra.mxu0 0.0
    %2018 = vmatprep.subr.mxu0 0.0
    %2019 = vmatpush1.msra.mxu0 0.0
    %2020 = vmatprep.subr.mxu0 0.0
    %2021 = vmatpush1.msra.mxu0 0.0
    %2022 = vmatprep.subr.mxu0 0.0
    %2023 = vmatpush1.msra.mxu0 0.0
    %2024 = vmatprep.subr.mxu0 0.0
    %2025 = vmatpush1.msra.mxu0 0.0
    %2026 = vmatprep.subr.mxu0 0.0
    %2027 = vmatpush1.msra.mxu0 0.0
    %2028 = vmatprep.subr.mxu0 0.0
    %2029 = vmatpush1.msra.mxu0 0.0
    %2030 = vmatprep.subr.mxu0 0.0
    %2031 = vmatpush1.msra.mxu0 0.0
    %2032 = vmatprep.subr.mxu0 0.0
    %2033 = vmatpush1.msra.mxu0 0.0
    %2034 = vmatprep.subr.mxu0 0.0
    %2035 = vmatpush1.msra.mxu0 0.0
    %2036 = vmatprep.subr.mxu0 0.0
    %2037 = vmatpush1.msra.mxu0 0.0
    %2038 = vmatprep.subr.mxu0 0.0
    %2039 = vmatpush1.msra.mxu0 %v170
    %2040 = vmatprep.subr.mxu0 0.0
    %2041 = vmatpush1.msra.mxu0 %v169
    %2042 = vmatprep.subr.mxu0 0.0
    %2043 = vmatpush1.msra.mxu0 %v168
    %2044 = vmatprep.subr.mxu0 0.0
    %2045 = vmatpush1.msra.mxu0 %v167
    %2046 = vmatprep.subr.mxu0 0.0
    %2047 = vmatpush2.msra.mxu0 0.0
    %2048 = vmatprep.subr.mxu0 0.0
    %2049 = vmatpush2.msra.mxu0 0.0
    %2050 = vmatprep.subr.mxu0 0.0
    %2051 = vmatpush2.msra.mxu0 0.0
    %2052 = vmatprep.subr.mxu0 0.0
    %2053 = vmatpush2.msra.mxu0 0.0
    %2054 = vmatprep.subr.mxu0 0.0
    %2055 = vmatpush2.msra.mxu0 0.0
    %2056 = vmatprep.subr.mxu0 0.0
    %2057 = vmatpush2.msra.mxu0 0.0
    %2058 = vmatprep.subr.mxu0 0.0
    %2059 = vmatpush2.msra.mxu0 0.0
    %2060 = vmatprep.subr.mxu0 0.0
    %2061 = vmatpush2.msra.mxu0 0.0
    %2062 = vmatprep.subr.mxu0 0.0
    %2063 = vmatpush2.msra.mxu0 0.0
    %2064 = vmatprep.subr.mxu0 0.0
    %2065 = vmatpush2.msra.mxu0 0.0
    %2066 = vmatprep.subr.mxu0 0.0
    %2067 = vmatpush2.msra.mxu0 0.0
    %2068 = vmatprep.subr.mxu0 0.0
    %2069 = vmatpush2.msra.mxu0 0.0
    %2070 = vmatprep.subr.mxu0 0.0
    %2071 = vmatpush2.msra.mxu0 0.0
    %2072 = vmatprep.subr.mxu0 0.0
    %2073 = vmatpush2.msra.mxu0 0.0
    %2074 = vmatprep.subr.mxu0 0.0
    %2075 = vmatpush2.msra.mxu0 0.0
    %2076 = vmatprep.subr.mxu0 0.0
    %2077 = vmatpush2.msra.mxu0 0.0
    %2078 = vmatprep.mubr.f32.mxu0 0.0
    %2079 = vmatmul.mubr.f32.gmra.mxu0 %v2012
    %v2080 = vpop.f32.mrf.mxu0
    %v2081 = vadd.f32 %v2009, %v2080
    %v2082 = vpop.f32.mrf.mxu0
    %2083 = vdwg.mxu0
    %v2084 = vmax.f32 %v2081, 0.0
    %v2086 = vlaneseq
    %v2087 = vshrl.u32 %v2086, 7
    %v2088 = vsub.s32 0, %v2087
    %v2089 = vrot.slane %v180, %v2088
    %vm2091 = vcmask 523264
    %v2093 = vsel %vm2091, %v2084, 0
    %2095 = vmatprep.subr.mxu0 0.0
    %2096 = vmatpush1.msra.mxu0 0.0
    %2097 = vmatprep.subr.mxu0 0.0
    %2098 = vmatpush1.msra.mxu0 0.0
    %2099 = vmatprep.subr.mxu0 0.0
    %2100 = vmatpush1.msra.mxu0 0.0
    %2101 = vmatprep.subr.mxu0 0.0
    %2102 = vmatpush1.msra.mxu0 0.0
    %2103 = vmatprep.subr.mxu0 0.0
    %2104 = vmatpush1.msra.mxu0 0.0
    %2105 = vmatprep.subr.mxu0 0.0
    %2106 = vmatpush1.msra.mxu0 0.0
    %2107 = vmatprep.subr.mxu0 0.0
    %2108 = vmatpush1.msra.mxu0 0.0
    %2109 = vmatprep.subr.mxu0 0.0
    %2110 = vmatpush1.msra.mxu0 0.0
    %2111 = vmatprep.subr.mxu0 0.0
    %2112 = vmatpush1.msra.mxu0 %v179
    %2113 = vmatprep.subr.mxu0 0.0
    %2114 = vmatpush1.msra.mxu0 %v178
    %2115 = vmatprep.subr.mxu0 0.0
    %2116 = vmatpush1.msra.mxu0 %v177
    %2117 = vmatprep.subr.mxu0 0.0
    %2118 = vmatpush1.msra.mxu0 %v176
    %2119 = vmatprep.subr.mxu0 0.0
    %2120 = vmatpush1.msra.mxu0 %v175
    %2121 = vmatprep.subr.mxu0 0.0
    %2122 = vmatpush1.msra.mxu0 %v174
    %2123 = vmatprep.subr.mxu0 0.0
    %2124 = vmatpush1.msra.mxu0 %v173
    %2125 = vmatprep.subr.mxu0 0.0
    %2126 = vmatpush1.msra.mxu0 %v172
    %2127 = vmatprep.subr.mxu0 0.0
    %2128 = vmatpush2.msra.mxu0 0.0
    %2129 = vmatprep.subr.mxu0 0.0
    %2130 = vmatpush2.msra.mxu0 0.0
    %2131 = vmatprep.subr.mxu0 0.0
    %2132 = vmatpush2.msra.mxu0 0.0
    %2133 = vmatprep.subr.mxu0 0.0
    %2134 = vmatpush2.msra.mxu0 0.0
    %2135 = vmatprep.subr.mxu0 0.0
    %2136 = vmatpush2.msra.mxu0 0.0
    %2137 = vmatprep.subr.mxu0 0.0
    %2138 = vmatpush2.msra.mxu0 0.0
    %2139 = vmatprep.subr.mxu0 0.0
    %2140 = vmatpush2.msra.mxu0 0.0
    %2141 = vmatprep.subr.mxu0 0.0
    %2142 = vmatpush2.msra.mxu0 0.0
    %2143 = vmatprep.subr.mxu0 0.0
    %2144 = vmatpush2.msra.mxu0 0.0
    %2145 = vmatprep.subr.mxu0 0.0
    %2146 = vmatpush2.msra.mxu0 0.0
    %2147 = vmatprep.subr.mxu0 0.0
    %2148 = vmatpush2.msra.mxu0 0.0
    %2149 = vmatprep.subr.mxu0 0.0
    %2150 = vmatpush2.msra.mxu0 0.0
    %2151 = vmatprep.subr.mxu0 0.0
    %2152 = vmatpush2.msra.mxu0 0.0
    %2153 = vmatprep.subr.mxu0 0.0
    %2154 = vmatpush2.msra.mxu0 0.0
    %2155 = vmatprep.subr.mxu0 0.0
    %2156 = vmatpush2.msra.mxu0 0.0
    %2157 = vmatprep.subr.mxu0 0.0
    %2158 = vmatpush2.msra.mxu0 0.0
    %2159 = vmatprep.mubr.f32.mxu0 0.0
    %2160 = vmatmul.mubr.f32.gmra.mxu0 %v2093
    %v2161 = vpop.f32.mrf.mxu0
    %v2162 = vadd.f32 %v2089, %v2161
    %v2163 = vpop.f32.mrf.mxu0
    %2164 = vdwg.mxu0
    %v2165 = vadd.f32 %v2004, %v2162
    %v2166 = vsel %vm201, %v2165, 0.0
    %2167 = vadd.xlane.f32.xlu0 %v2166
    %v2168 = vpop.xlane.xlu0 %2167
    %v2169 = vmul.f32 %v2168, %v1057
    %v2170 = vsub.f32 %v2165, %v2169
    %v2171 = vmul.f32 %v2170, %v2170
    %v2172 = vsel %vm201, %v2171, 0.0
    %2173 = vadd.xlane.f32.xlu0 %v2172
    %v2174 = vpop.xlane.xlu0 %2173
    %v2175 = vmul.f32 %v2174, %v1057
    %v2176 = vadd.f32 %v2175, 1e-05
    %v2177 = vrsqrt.pop %v2176
    %v2178 = vmul.f32 %v2170, %v2177
    %v2180 = vlaneseq
    %v2181 = vshrl.u32 %v2180, 7
    %v2182 = vsub.s32 0, %v2181
    %v2183 = vrot.slane %v192, %v2182
    %v2185 = vmul.f32 %v2178, %v2183
    %v2187 = vlaneseq
    %v2188 = vshrl.u32 %v2187, 7
    %v2189 = vsub.s32 0, %v2188
    %v2190 = vrot.slane %v193, %v2189
    %v2192 = vadd.f32 %v2185, %v2190
    %2194 = vset.pattern.permute.xlu0 0
    %2195 = vperm.xlu0 %2194, %v141
    %v2196 = vpop.permute.xlu0 %2195
    %v2198 = vmul.f32 %v2192, %v2196
    %v2199 = vsel %vm201, %v2198, 0.0
    %v2200 = vrot.slane %v2199, 4
    %v2201 = vadd.f32 %v2199, %v2200
    %v2202 = vrot.slane %v2201, 2
    %v2203 = vadd.f32 %v2201, %v2202
    %v2204 = vrot.slane %v2203, 1
    %v2205 = vadd.f32 %v2203, %v2204
    %v2207 = vsel %vm201, %v2205, 0
    %2209 = vmatprep.subr.mxu0 0.0
    %2210 = vmatpush1.msra.mxu0 0.0
    %2211 = vmatprep.subr.mxu0 0.0
    %2212 = vmatpush1.msra.mxu0 0.0
    %2213 = vmatprep.subr.mxu0 0.0
    %2214 = vmatpush1.msra.mxu0 0.0
    %2215 = vmatprep.subr.mxu0 0.0
    %2216 = vmatpush1.msra.mxu0 0.0
    %2217 = vmatprep.subr.mxu0 0.0
    %2218 = vmatpush1.msra.mxu0 0.0
    %2219 = vmatprep.subr.mxu0 0.0
    %2220 = vmatpush1.msra.mxu0 0.0
    %2221 = vmatprep.subr.mxu0 0.0
    %2222 = vmatpush1.msra.mxu0 0.0
    %2223 = vmatprep.subr.mxu0 0.0
    %2224 = vmatpush1.msra.mxu0 0.0
    %2225 = vmatprep.subr.mxu0 0.0
    %2226 = vmatpush1.msra.mxu0 0.0
    %2227 = vmatprep.subr.mxu0 0.0
    %2228 = vmatpush1.msra.mxu0 0.0
    %2229 = vmatprep.subr.mxu0 0.0
    %2230 = vmatpush1.msra.mxu0 0.0
    %2231 = vmatprep.subr.mxu0 0.0
    %2232 = vmatpush1.msra.mxu0 0.0
    %2233 = vmatprep.subr.mxu0 0.0
    %2234 = vmatpush1.msra.mxu0 %v184
    %2235 = vmatprep.subr.mxu0 0.0
    %2236 = vmatpush1.msra.mxu0 %v183
    %2237 = vmatprep.subr.mxu0 0.0
    %2238 = vmatpush1.msra.mxu0 %v182
    %2239 = vmatprep.subr.mxu0 0.0
    %2240 = vmatpush1.msra.mxu0 %v181
    %2241 = vmatprep.subr.mxu0 0.0
    %2242 = vmatpush2.msra.mxu0 0.0
    %2243 = vmatprep.subr.mxu0 0.0
    %2244 = vmatpush2.msra.mxu0 0.0
    %2245 = vmatprep.subr.mxu0 0.0
    %2246 = vmatpush2.msra.mxu0 0.0
    %2247 = vmatprep.subr.mxu0 0.0
    %2248 = vmatpush2.msra.mxu0 0.0
    %2249 = vmatprep.subr.mxu0 0.0
    %2250 = vmatpush2.msra.mxu0 0.0
    %2251 = vmatprep.subr.mxu0 0.0
    %2252 = vmatpush2.msra.mxu0 0.0
    %2253 = vmatprep.subr.mxu0 0.0
    %2254 = vmatpush2.msra.mxu0 0.0
    %2255 = vmatprep.subr.mxu0 0.0
    %2256 = vmatpush2.msra.mxu0 0.0
    %2257 = vmatprep.subr.mxu0 0.0
    %2258 = vmatpush2.msra.mxu0 0.0
    %2259 = vmatprep.subr.mxu0 0.0
    %2260 = vmatpush2.msra.mxu0 0.0
    %2261 = vmatprep.subr.mxu0 0.0
    %2262 = vmatpush2.msra.mxu0 0.0
    %2263 = vmatprep.subr.mxu0 0.0
    %2264 = vmatpush2.msra.mxu0 0.0
    %2265 = vmatprep.subr.mxu0 0.0
    %2266 = vmatpush2.msra.mxu0 0.0
    %2267 = vmatprep.subr.mxu0 0.0
    %2268 = vmatpush2.msra.mxu0 0.0
    %2269 = vmatprep.subr.mxu0 0.0
    %2270 = vmatpush2.msra.mxu0 0.0
    %2271 = vmatprep.subr.mxu0 0.0
    %2272 = vmatpush2.msra.mxu0 0.0
    %2273 = vmatprep.mubr.f32.mxu0 0.0
    %2274 = vmatmul.mubr.f32.gmra.mxu0 %v2207
    %v2275 = vpop.f32.mrf.mxu0
    %v2276 = vadd.f32 %v185, %v2275
    %v2277 = vpop.f32.mrf.mxu0
    %2278 = vdwg.mxu0
    %vm2279 = vcmask 8192
    %2280 = vst.msk [vmem:[#allocation5] sm:$0x1] %vm2279, %v2276
    %vm2281 = vcmask 15360
    %v2283 = vsel %vm2281, %v2276, 0
    %vm2285 = vcmask 1041408
    %v2287 = vsel %vm2285, %v186, 0
    %2289 = vmatprep.subr.mxu0 0.0
    %2290 = vmatpush1.msra.mxu0 0.0
    %2291 = vmatprep.subr.mxu0 0.0
    %2292 = vmatpush1.msra.mxu0 0.0
    %2293 = vmatprep.subr.mxu0 0.0
    %2294 = vmatpush1.msra.mxu0 0.0
    %2295 = vmatprep.subr.mxu0 0.0
    %2296 = vmatpush1.msra.mxu0 0.0
    %2297 = vmatprep.subr.mxu0 0.0
    %2298 = vmatpush1.msra.mxu0 0.0
    %2299 = vmatprep.subr.mxu0 0.0
    %2300 = vmatpush1.msra.mxu0 0.0
    %2301 = vmatprep.subr.mxu0 0.0
    %2302 = vmatpush1.msra.mxu0 0.0
    %2303 = vmatprep.subr.mxu0 0.0
    %2304 = vmatpush1.msra.mxu0 0.0
    %2305 = vmatprep.subr.mxu0 0.0
    %2306 = vmatpush1.msra.mxu0 0.0
    %2307 = vmatprep.subr.mxu0 0.0
    %2308 = vmatpush1.msra.mxu0 0.0
    %2309 = vmatprep.subr.mxu0 0.0
    %2310 = vmatpush1.msra.mxu0 0.0
    %2311 = vmatprep.subr.mxu0 0.0
    %2312 = vmatpush1.msra.mxu0 0.0
    %2313 = vmatprep.subr.mxu0 0.0
    %2314 = vmatpush1.msra.mxu0 0.0
    %2315 = vmatprep.subr.mxu0 0.0
    %2316 = vmatpush1.msra.mxu0 0.0
    %2317 = vmatprep.subr.mxu0 0.0
    %2318 = vmatpush1.msra.mxu0 0.0
    %2319 = vmatprep.subr.mxu0 0.0
    %2320 = vmatpush1.msra.mxu0 %v2287
    %2321 = vmatprep.subr.mxu0 0.0
    %2322 = vmatpush2.msra.mxu0 0.0
    %2323 = vmatprep.subr.mxu0 0.0
    %2324 = vmatpush2.msra.mxu0 0.0
    %2325 = vmatprep.subr.mxu0 0.0
    %2326 = vmatpush2.msra.mxu0 0.0
    %2327 = vmatprep.subr.mxu0 0.0
    %2328 = vmatpush2.msra.mxu0 0.0
    %2329 = vmatprep.subr.mxu0 0.0
    %2330 = vmatpush2.msra.mxu0 0.0
    %2331 = vmatprep.subr.mxu0 0.0
    %2332 = vmatpush2.msra.mxu0 0.0
    %2333 = vmatprep.subr.mxu0 0.0
    %2334 = vmatpush2.msra.mxu0 0.0
    %2335 = vmatprep.subr.mxu0 0.0
    %2336 = vmatpush2.msra.mxu0 0.0
    %2337 = vmatprep.subr.mxu0 0.0
    %2338 = vmatpush2.msra.mxu0 0.0
    %2339 = vmatprep.subr.mxu0 0.0
    %2340 = vmatpush2.msra.mxu0 0.0
    %2341 = vmatprep.subr.mxu0 0.0
    %2342 = vmatpush2.msra.mxu0 0.0
    %2343 = vmatprep.subr.mxu0 0.0
    %2344 = vmatpush2.msra.mxu0 0.0
    %2345 = vmatprep.subr.mxu0 0.0
    %2346 = vmatpush2.msra.mxu0 0.0
    %2347 = vmatprep.subr.mxu0 0.0
    %2348 = vmatpush2.msra.mxu0 0.0
    %2349 = vmatprep.subr.mxu0 0.0
    %2350 = vmatpush2.msra.mxu0 0.0
    %2351 = vmatprep.subr.mxu0 0.0
    %2352 = vmatpush2.msra.mxu0 0.0
    %2353 = vmatprep.mubr.f32.mxu0 0.0
    %2354 = vmatmul.mubr.f32.gmra.mxu0 %v2283
    %v2355 = vpop.f32.mrf.mxu0
    %v2356 = vadd.f32 %v187, %v2355
    %v2357 = vpop.f32.mrf.mxu0
    %2358 = vdwg.mxu0
    %v2359 = vsel %vm146, 1, 0
    %2360 = vset.pattern.permute.xlu0 0
    %2361 = vperm.xlu0 %2360, %v2359
    %v2362 = vpop.permute.xlu0 %2361
    %vm2363 = vcmp.eq.s32.totalorder %v2362, 1
    %v2364 = vlaneseq
    %v2365 = vshrl.u32 %v2364, 7
    %v2366 = vsub.s32 0, %v2365
    %v2367 = vrot.slane %v2356, %v2366
    %v2368 = vsel %vm2363, %v2367, %v2192
    %2369 = vst.msk [vmem:[%s59] sm:$0xff] %vm201, %v2368
    %s2370 = scalar_lea.vmem %s7, 8
    %v2371 = vld [vmem:[%s2370] sm:$0xff]
    %v2373 = vsel %vm201, %v2371, 0
    %2375 = vmatprep.subr.mxu0 0.0
    %2376 = vmatpush1.msra.mxu0 0.0
    %2377 = vmatprep.subr.mxu0 0.0
    %2378 = vmatpush1.msra.mxu0 0.0
    %2379 = vmatprep.subr.mxu0 0.0
    %2380 = vmatpush1.msra.mxu0 0.0
    %2381 = vmatprep.subr.mxu0 0.0
    %2382 = vmatpush1.msra.mxu0 0.0
    %2383 = vmatprep.subr.mxu0 0.0
    %2384 = vmatpush1.msra.mxu0 0.0
    %2385 = vmatprep.subr.mxu0 0.0
    %2386 = vmatpush1.msra.mxu0 0.0
    %2387 = vmatprep.subr.mxu0 0.0
    %2388 = vmatpush1.msra.mxu0 0.0
    %2389 = vmatprep.subr.mxu0 0.0
    %2390 = vmatpush1.msra.mxu0 0.0
    %2391 = vmatprep.subr.mxu0 0.0
    %2392 = vmatpush1.msra.mxu0 0.0
    %2393 = vmatprep.subr.mxu0 0.0
    %2394 = vmatpush1.msra.mxu0 0.0
    %2395 = vmatprep.subr.mxu0 0.0
    %2396 = vmatpush1.msra.mxu0 0.0
    %2397 = vmatprep.subr.mxu0 0.0
    %2398 = vmatpush1.msra.mxu0 0.0
    %2399 = vmatprep.subr.mxu0 0.0
    %2400 = vmatpush1.msra.mxu0 %v150
    %2401 = vmatprep.subr.mxu0 0.0
    %2402 = vmatpush1.msra.mxu0 %v149
    %2403 = vmatprep.subr.mxu0 0.0
    %2404 = vmatpush1.msra.mxu0 %v148
    %2405 = vmatprep.subr.mxu0 0.0
    %2406 = vmatpush1.msra.mxu0 %v147
    %2407 = vmatprep.subr.mxu0 0.0
    %2408 = vmatpush2.msra.mxu0 0.0
    %2409 = vmatprep.subr.mxu0 0.0
    %2410 = vmatpush2.msra.mxu0 0.0
    %2411 = vmatprep.subr.mxu0 0.0
    %2412 = vmatpush2.msra.mxu0 0.0
    %2413 = vmatprep.subr.mxu0 0.0
    %2414 = vmatpush2.msra.mxu0 0.0
    %2415 = vmatprep.subr.mxu0 0.0
    %2416 = vmatpush2.msra.mxu0 0.0
    %2417 = vmatprep.subr.mxu0 0.0
    %2418 = vmatpush2.msra.mxu0 0.0
    %2419 = vmatprep.subr.mxu0 0.0
    %2420 = vmatpush2.msra.mxu0 0.0
    %2421 = vmatprep.subr.mxu0 0.0
    %2422 = vmatpush2.msra.mxu0 0.0
    %2423 = vmatprep.subr.mxu0 0.0
    %2424 = vmatpush2.msra.mxu0 0.0
    %2425 = vmatprep.subr.mxu0 0.0
    %2426 = vmatpush2.msra.mxu0 0.0
    %2427 = vmatprep.subr.mxu0 0.0
    %2428 = vmatpush2.msra.mxu0 0.0
    %2429 = vmatprep.subr.mxu0 0.0
    %2430 = vmatpush2.msra.mxu0 0.0
    %2431 = vmatprep.subr.mxu0 0.0
    %2432 = vmatpush2.msra.mxu0 0.0
    %2433 = vmatprep.subr.mxu0 0.0
    %2434 = vmatpush2.msra.mxu0 0.0
    %2435 = vmatprep.subr.mxu0 0.0
    %2436 = vmatpush2.msra.mxu0 0.0
    %2437 = vmatprep.subr.mxu0 0.0
    %2438 = vmatpush2.msra.mxu0 0.0
    %2439 = vmatprep.mubr.f32.mxu0 0.0
    %2440 = vmatmul.mubr.f32.gmra.mxu0 %v2373
    %v2441 = vpop.f32.mrf.mxu0
    %v2442 = vadd.f32 %v199, %v2441
    %v2443 = vpop.f32.mrf.mxu0
    %2444 = vdwg.mxu0
    %2445 = vst.msk [vmem:[#allocation2] sm:$0xff] %vm275, %v2442
    %v2446 = vld [vmem:[#allocation2] sm:$0xff]
    %2448 = vrot.lane.b32.xlu0 %v2446, 96
    %v2449 = vpop.permute.xlu0 %2448
    %v2450 = vsel %vm281, %v2446, 0
    %v2452 = vsel %vm281, %v2449, 0
    %2454 = vmatprep.subr.mxu0 0.0
    %2455 = vmatpush1.xpose.msra.mxu0 0.0
    %2456 = vmatprep.subr.mxu0 0.0
    %2457 = vmatpush1.xpose.msra.mxu0 0.0
    %2458 = vmatprep.subr.mxu0 0.0
    %2459 = vmatpush1.xpose.msra.mxu0 0.0
    %2460 = vmatprep.subr.mxu0 0.0
    %2461 = vmatpush1.xpose.msra.mxu0 0.0
    %2462 = vmatprep.subr.mxu0 0.0
    %2463 = vmatpush1.xpose.msra.mxu0 0.0
    %2464 = vmatprep.subr.mxu0 0.0
    %2465 = vmatpush1.xpose.msra.mxu0 0.0
    %2466 = vmatprep.subr.mxu0 0.0
    %2467 = vmatpush1.xpose.msra.mxu0 0.0
    %2468 = vmatprep.subr.mxu0 0.0
    %2469 = vmatpush1.xpose.msra.mxu0 0.0
    %2470 = vmatprep.subr.mxu0 0.0
    %2471 = vmatpush1.xpose.msra.mxu0 0.0
    %2472 = vmatprep.subr.mxu0 0.0
    %2473 = vmatpush1.xpose.msra.mxu0 0.0
    %2474 = vmatprep.subr.mxu0 0.0
    %2475 = vmatpush1.xpose.msra.mxu0 0.0
    %2476 = vmatprep.subr.mxu0 0.0
    %2477 = vmatpush1.xpose.msra.mxu0 0.0
    %2478 = vmatprep.subr.mxu0 0.0
    %2479 = vmatpush1.xpose.msra.mxu0 0.0
    %2480 = vmatprep.subr.mxu0 0.0
    %2481 = vmatpush1.xpose.msra.mxu0 0.0
    %2482 = vmatprep.subr.mxu0 0.0
    %2483 = vmatpush1.xpose.msra.mxu0 0.0
    %2484 = vmatprep.subr.mxu0 0.0
    %2485 = vmatpush1.xpose.msra.mxu0 %v2452
    %2486 = vmatprep.subr.mxu0 0.0
    %2487 = vmatpush2.xpose.msra.mxu0 0.0
    %2488 = vmatprep.subr.mxu0 0.0
    %2489 = vmatpush2.xpose.msra.mxu0 0.0
    %2490 = vmatprep.subr.mxu0 0.0
    %2491 = vmatpush2.xpose.msra.mxu0 0.0
    %2492 = vmatprep.subr.mxu0 0.0
    %2493 = vmatpush2.xpose.msra.mxu0 0.0
    %2494 = vmatprep.subr.mxu0 0.0
    %2495 = vmatpush2.xpose.msra.mxu0 0.0
    %2496 = vmatprep.subr.mxu0 0.0
    %2497 = vmatpush2.xpose.msra.mxu0 0.0
    %2498 = vmatprep.subr.mxu0 0.0
    %2499 = vmatpush2.xpose.msra.mxu0 0.0
    %2500 = vmatprep.subr.mxu0 0.0
    %2501 = vmatpush2.xpose.msra.mxu0 0.0
    %2502 = vmatprep.subr.mxu0 0.0
    %2503 = vmatpush2.xpose.msra.mxu0 0.0
    %2504 = vmatprep.subr.mxu0 0.0
    %2505 = vmatpush2.xpose.msra.mxu0 0.0
    %2506 = vmatprep.subr.mxu0 0.0
    %2507 = vmatpush2.xpose.msra.mxu0 0.0
    %2508 = vmatprep.subr.mxu0 0.0
    %2509 = vmatpush2.xpose.msra.mxu0 0.0
    %2510 = vmatprep.subr.mxu0 0.0
    %2511 = vmatpush2.xpose.msra.mxu0 0.0
    %2512 = vmatprep.subr.mxu0 0.0
    %2513 = vmatpush2.xpose.msra.mxu0 0.0
    %2514 = vmatprep.subr.mxu0 0.0
    %2515 = vmatpush2.xpose.msra.mxu0 0.0
    %2516 = vmatprep.subr.mxu0 0.0
    %2517 = vmatpush2.xpose.msra.mxu0 0.0
    %2518 = vmatprep.mubr.f32.mxu0 0.0
    %2519 = vmatmul.mubr.f32.gmra.mxu0 %v2450
    %v2520 = vpop.f32.mrf.mxu0
    %v2521 = vadd.f32 0.0, %v2520
    %v2522 = vpop.f32.mrf.mxu0
    %2523 = vdwg.mxu0
    %v2524 = vmul.f32 %v2521, 0.35355338
    %v2525 = vsel %vm358, %v2524, -1e+30
    %v2526 = vsel %vm281, %v2525, -inf
    %2527 = vmax.xlane.f32.xlu0 %v2526
    %v2528 = vpop.xlane.xlu0 %2527
    %v2529 = vsub.f32 %v2525, %v2528
    %v2530 = vmul.f32 %v2529, 1.442695
    %v2531 = vpow.pop %v2530
    %v2532 = vsel %vm281, %v2531, 0.0
    %2533 = vadd.xlane.f32.xlu0 %v2532
    %v2534 = vpop.xlane.xlu0 %2533
    %v2535 = vrcp.pop %v2534
    %v2536 = vmul.f32 %v2531, %v2535
    %2537 = vrot.lane.b32.xlu0 %v2446, 64
    %v2538 = vpop.permute.xlu0 %2537
    %v2541 = vsel %vm281, %v2536, 0
    %2543 = vmatprep.subr.mxu0 0.0
    %2544 = vmatpush1.msra.mxu0 0.0
    %2545 = vmatprep.subr.mxu0 0.0
    %2546 = vmatpush1.msra.mxu0 0.0
    %2547 = vmatprep.subr.mxu0 0.0
    %2548 = vmatpush1.msra.mxu0 0.0
    %2549 = vmatprep.subr.mxu0 0.0
    %2550 = vmatpush1.msra.mxu0 0.0
    %2551 = vmatprep.subr.mxu0 0.0
    %2552 = vmatpush1.msra.mxu0 0.0
    %2553 = vmatprep.subr.mxu0 0.0
    %2554 = vmatpush1.msra.mxu0 0.0
    %2555 = vmatprep.subr.mxu0 0.0
    %2556 = vmatpush1.msra.mxu0 0.0
    %2557 = vmatprep.subr.mxu0 0.0
    %2558 = vmatpush1.msra.mxu0 0.0
    %2559 = vmatprep.subr.mxu0 0.0
    %2560 = vmatpush1.msra.mxu0 0.0
    %2561 = vmatprep.subr.mxu0 0.0
    %2562 = vmatpush1.msra.mxu0 0.0
    %2563 = vmatprep.subr.mxu0 0.0
    %2564 = vmatpush1.msra.mxu0 0.0
    %2565 = vmatprep.subr.mxu0 0.0
    %2566 = vmatpush1.msra.mxu0 0.0
    %2567 = vmatprep.subr.mxu0 0.0
    %2568 = vmatpush1.msra.mxu0 0.0
    %2569 = vmatprep.subr.mxu0 0.0
    %2570 = vmatpush1.msra.mxu0 0.0
    %2571 = vmatprep.subr.mxu0 0.0
    %2572 = vmatpush1.msra.mxu0 0.0
    %2573 = vmatprep.subr.mxu0 0.0
    %2574 = vmatpush1.msra.mxu0 %v2538
    %2575 = vmatprep.subr.mxu0 0.0
    %2576 = vmatpush2.msra.mxu0 0.0
    %2577 = vmatprep.subr.mxu0 0.0
    %2578 = vmatpush2.msra.mxu0 0.0
    %2579 = vmatprep.subr.mxu0 0.0
    %2580 = vmatpush2.msra.mxu0 0.0
    %2581 = vmatprep.subr.mxu0 0.0
    %2582 = vmatpush2.msra.mxu0 0.0
    %2583 = vmatprep.subr.mxu0 0.0
    %2584 = vmatpush2.msra.mxu0 0.0
    %2585 = vmatprep.subr.mxu0 0.0
    %2586 = vmatpush2.msra.mxu0 0.0
    %2587 = vmatprep.subr.mxu0 0.0
    %2588 = vmatpush2.msra.mxu0 0.0
    %2589 = vmatprep.subr.mxu0 0.0
    %2590 = vmatpush2.msra.mxu0 0.0
    %2591 = vmatprep.subr.mxu0 0.0
    %2592 = vmatpush2.msra.mxu0 0.0
    %2593 = vmatprep.subr.mxu0 0.0
    %2594 = vmatpush2.msra.mxu0 0.0
    %2595 = vmatprep.subr.mxu0 0.0
    %2596 = vmatpush2.msra.mxu0 0.0
    %2597 = vmatprep.subr.mxu0 0.0
    %2598 = vmatpush2.msra.mxu0 0.0
    %2599 = vmatprep.subr.mxu0 0.0
    %2600 = vmatpush2.msra.mxu0 0.0
    %2601 = vmatprep.subr.mxu0 0.0
    %2602 = vmatpush2.msra.mxu0 0.0
    %2603 = vmatprep.subr.mxu0 0.0
    %2604 = vmatpush2.msra.mxu0 0.0
    %2605 = vmatprep.subr.mxu0 0.0
    %2606 = vmatpush2.msra.mxu0 0.0
    %2607 = vmatprep.mubr.f32.mxu0 0.0
    %2608 = vmatmul.mubr.f32.gmra.mxu0 %v2541
    %v2609 = vpop.f32.mrf.mxu0
    %v2610 = vadd.f32 0.0, %v2609
    %v2611 = vpop.f32.mrf.mxu0
    %2612 = vdwg.mxu0
    %2613 = vst.msk [vmem:[#allocation3] sm:$0xff] %vm281, %v2610
    %v2614 = vld [vmem:[#allocation2] sm:$0xff]
    %2616 = vrot.lane.b32.xlu0 %v2614, 120
    %v2617 = vpop.permute.xlu0 %2616
    %2618 = vrot.lane.b32.xlu0 %v2614, 88
    %v2619 = vpop.permute.xlu0 %2618
    %v2620 = vsel %vm281, %v2617, 0
    %v2622 = vsel %vm281, %v2619, 0
    %2624 = vmatprep.subr.mxu0 0.0
    %2625 = vmatpush1.xpose.msra.mxu0 0.0
    %2626 = vmatprep.subr.mxu0 0.0
    %2627 = vmatpush1.xpose.msra.mxu0 0.0
    %2628 = vmatprep.subr.mxu0 0.0
    %2629 = vmatpush1.xpose.msra.mxu0 0.0
    %2630 = vmatprep.subr.mxu0 0.0
    %2631 = vmatpush1.xpose.msra.mxu0 0.0
    %2632 = vmatprep.subr.mxu0 0.0
    %2633 = vmatpush1.xpose.msra.mxu0 0.0
    %2634 = vmatprep.subr.mxu0 0.0
    %2635 = vmatpush1.xpose.msra.mxu0 0.0
    %2636 = vmatprep.subr.mxu0 0.0
    %2637 = vmatpush1.xpose.msra.mxu0 0.0
    %2638 = vmatprep.subr.mxu0 0.0
    %2639 = vmatpush1.xpose.msra.mxu0 0.0
    %2640 = vmatprep.subr.mxu0 0.0
    %2641 = vmatpush1.xpose.msra.mxu0 0.0
    %2642 = vmatprep.subr.mxu0 0.0
    %2643 = vmatpush1.xpose.msra.mxu0 0.0
    %2644 = vmatprep.subr.mxu0 0.0
    %2645 = vmatpush1.xpose.msra.mxu0 0.0
    %2646 = vmatprep.subr.mxu0 0.0
    %2647 = vmatpush1.xpose.msra.mxu0 0.0
    %2648 = vmatprep.subr.mxu0 0.0
    %2649 = vmatpush1.xpose.msra.mxu0 0.0
    %2650 = vmatprep.subr.mxu0 0.0
    %2651 = vmatpush1.xpose.msra.mxu0 0.0
    %2652 = vmatprep.subr.mxu0 0.0
    %2653 = vmatpush1.xpose.msra.mxu0 0.0
    %2654 = vmatprep.subr.mxu0 0.0
    %2655 = vmatpush1.xpose.msra.mxu0 %v2622
    %2656 = vmatprep.subr.mxu0 0.0
    %2657 = vmatpush2.xpose.msra.mxu0 0.0
    %2658 = vmatprep.subr.mxu0 0.0
    %2659 = vmatpush2.xpose.msra.mxu0 0.0
    %2660 = vmatprep.subr.mxu0 0.0
    %2661 = vmatpush2.xpose.msra.mxu0 0.0
    %2662 = vmatprep.subr.mxu0 0.0
    %2663 = vmatpush2.xpose.msra.mxu0 0.0
    %2664 = vmatprep.subr.mxu0 0.0
    %2665 = vmatpush2.xpose.msra.mxu0 0.0
    %2666 = vmatprep.subr.mxu0 0.0
    %2667 = vmatpush2.xpose.msra.mxu0 0.0
    %2668 = vmatprep.subr.mxu0 0.0
    %2669 = vmatpush2.xpose.msra.mxu0 0.0
    %2670 = vmatprep.subr.mxu0 0.0
    %2671 = vmatpush2.xpose.msra.mxu0 0.0
    %2672 = vmatprep.subr.mxu0 0.0
    %2673 = vmatpush2.xpose.msra.mxu0 0.0
    %2674 = vmatprep.subr.mxu0 0.0
    %2675 = vmatpush2.xpose.msra.mxu0 0.0
    %2676 = vmatprep.subr.mxu0 0.0
    %2677 = vmatpush2.xpose.msra.mxu0 0.0
    %2678 = vmatprep.subr.mxu0 0.0
    %2679 = vmatpush2.xpose.msra.mxu0 0.0
    %2680 = vmatprep.subr.mxu0 0.0
    %2681 = vmatpush2.xpose.msra.mxu0 0.0
    %2682 = vmatprep.subr.mxu0 0.0
    %2683 = vmatpush2.xpose.msra.mxu0 0.0
    %2684 = vmatprep.subr.mxu0 0.0
    %2685 = vmatpush2.xpose.msra.mxu0 0.0
    %2686 = vmatprep.subr.mxu0 0.0
    %2687 = vmatpush2.xpose.msra.mxu0 0.0
    %2688 = vmatprep.mubr.f32.mxu0 0.0
    %2689 = vmatmul.mubr.f32.gmra.mxu0 %v2620
    %v2690 = vpop.f32.mrf.mxu0
    %v2691 = vadd.f32 0.0, %v2690
    %v2692 = vpop.f32.mrf.mxu0
    %2693 = vdwg.mxu0
    %v2694 = vmul.f32 %v2691, 0.35355338
    %v2695 = vsel %vm358, %v2694, -1e+30
    %v2696 = vsel %vm281, %v2695, -inf
    %2697 = vmax.xlane.f32.xlu0 %v2696
    %v2698 = vpop.xlane.xlu0 %2697
    %v2699 = vsub.f32 %v2695, %v2698
    %v2700 = vmul.f32 %v2699, 1.442695
    %v2701 = vpow.pop %v2700
    %v2702 = vsel %vm281, %v2701, 0.0
    %2703 = vadd.xlane.f32.xlu0 %v2702
    %v2704 = vpop.xlane.xlu0 %2703
    %v2705 = vrcp.pop %v2704
    %v2706 = vmul.f32 %v2701, %v2705
    %2707 = vrot.lane.b32.xlu0 %v2614, 56
    %v2708 = vpop.permute.xlu0 %2707
    %v2711 = vsel %vm281, %v2706, 0
    %2713 = vmatprep.subr.mxu0 0.0
    %2714 = vmatpush1.msra.mxu0 0.0
    %2715 = vmatprep.subr.mxu0 0.0
    %2716 = vmatpush1.msra.mxu0 0.0
    %2717 = vmatprep.subr.mxu0 0.0
    %2718 = vmatpush1.msra.mxu0 0.0
    %2719 = vmatprep.subr.mxu0 0.0
    %2720 = vmatpush1.msra.mxu0 0.0
    %2721 = vmatprep.subr.mxu0 0.0
    %2722 = vmatpush1.msra.mxu0 0.0
    %2723 = vmatprep.subr.mxu0 0.0
    %2724 = vmatpush1.msra.mxu0 0.0
    %2725 = vmatprep.subr.mxu0 0.0
    %2726 = vmatpush1.msra.mxu0 0.0
    %2727 = vmatprep.subr.mxu0 0.0
    %2728 = vmatpush1.msra.mxu0 0.0
    %2729 = vmatprep.subr.mxu0 0.0
    %2730 = vmatpush1.msra.mxu0 0.0
    %2731 = vmatprep.subr.mxu0 0.0
    %2732 = vmatpush1.msra.mxu0 0.0
    %2733 = vmatprep.subr.mxu0 0.0
    %2734 = vmatpush1.msra.mxu0 0.0
    %2735 = vmatprep.subr.mxu0 0.0
    %2736 = vmatpush1.msra.mxu0 0.0
    %2737 = vmatprep.subr.mxu0 0.0
    %2738 = vmatpush1.msra.mxu0 0.0
    %2739 = vmatprep.subr.mxu0 0.0
    %2740 = vmatpush1.msra.mxu0 0.0
    %2741 = vmatprep.subr.mxu0 0.0
    %2742 = vmatpush1.msra.mxu0 0.0
    %2743 = vmatprep.subr.mxu0 0.0
    %2744 = vmatpush1.msra.mxu0 %v2708
    %2745 = vmatprep.subr.mxu0 0.0
    %2746 = vmatpush2.msra.mxu0 0.0
    %2747 = vmatprep.subr.mxu0 0.0
    %2748 = vmatpush2.msra.mxu0 0.0
    %2749 = vmatprep.subr.mxu0 0.0
    %2750 = vmatpush2.msra.mxu0 0.0
    %2751 = vmatprep.subr.mxu0 0.0
    %2752 = vmatpush2.msra.mxu0 0.0
    %2753 = vmatprep.subr.mxu0 0.0
    %2754 = vmatpush2.msra.mxu0 0.0
    %2755 = vmatprep.subr.mxu0 0.0
    %2756 = vmatpush2.msra.mxu0 0.0
    %2757 = vmatprep.subr.mxu0 0.0
    %2758 = vmatpush2.msra.mxu0 0.0
    %2759 = vmatprep.subr.mxu0 0.0
    %2760 = vmatpush2.msra.mxu0 0.0
    %2761 = vmatprep.subr.mxu0 0.0
    %2762 = vmatpush2.msra.mxu0 0.0
    %2763 = vmatprep.subr.mxu0 0.0
    %2764 = vmatpush2.msra.mxu0 0.0
    %2765 = vmatprep.subr.mxu0 0.0
    %2766 = vmatpush2.msra.mxu0 0.0
    %2767 = vmatprep.subr.mxu0 0.0
    %2768 = vmatpush2.msra.mxu0 0.0
    %2769 = vmatprep.subr.mxu0 0.0
    %2770 = vmatpush2.msra.mxu0 0.0
    %2771 = vmatprep.subr.mxu0 0.0
    %2772 = vmatpush2.msra.mxu0 0.0
    %2773 = vmatprep.subr.mxu0 0.0
    %2774 = vmatpush2.msra.mxu0 0.0
    %2775 = vmatprep.subr.mxu0 0.0
    %2776 = vmatpush2.msra.mxu0 0.0
    %2777 = vmatprep.mubr.f32.mxu0 0.0
    %2778 = vmatmul.mubr.f32.gmra.mxu0 %v2711
    %v2779 = vpop.f32.mrf.mxu0
    %v2780 = vadd.f32 0.0, %v2779
    %v2781 = vpop.f32.mrf.mxu0
    %2782 = vdwg.mxu0
    %2784 = vrot.lane.b32.xlu0 %v2780, 8
    %v2785 = vpop.permute.xlu0 %2784
    %2787 = vst.msk [vmem:[#allocation3] sm:$0xff] %vm621, %v2785
    %v2788 = vld [vmem:[#allocation2] sm:$0xff]
    %2790 = vrot.lane.b32.xlu0 %v2788, 112
    %v2791 = vpop.permute.xlu0 %2790
    %2792 = vrot.lane.b32.xlu0 %v2788, 80
    %v2793 = vpop.permute.xlu0 %2792
    %v2794 = vsel %vm281, %v2791, 0
    %v2796 = vsel %vm281, %v2793, 0
    %2798 = vmatprep.subr.mxu0 0.0
    %2799 = vmatpush1.xpose.msra.mxu0 0.0
    %2800 = vmatprep.subr.mxu0 0.0
    %2801 = vmatpush1.xpose.msra.mxu0 0.0
    %2802 = vmatprep.subr.mxu0 0.0
    %2803 = vmatpush1.xpose.msra.mxu0 0.0
    %2804 = vmatprep.subr.mxu0 0.0
    %2805 = vmatpush1.xpose.msra.mxu0 0.0
    %2806 = vmatprep.subr.mxu0 0.0
    %2807 = vmatpush1.xpose.msra.mxu0 0.0
    %2808 = vmatprep.subr.mxu0 0.0
    %2809 = vmatpush1.xpose.msra.mxu0 0.0
    %2810 = vmatprep.subr.mxu0 0.0
    %2811 = vmatpush1.xpose.msra.mxu0 0.0
    %2812 = vmatprep.subr.mxu0 0.0
    %2813 = vmatpush1.xpose.msra.mxu0 0.0
    %2814 = vmatprep.subr.mxu0 0.0
    %2815 = vmatpush1.xpose.msra.mxu0 0.0
    %2816 = vmatprep.subr.mxu0 0.0
    %2817 = vmatpush1.xpose.msra.mxu0 0.0
    %2818 = vmatprep.subr.mxu0 0.0
    %2819 = vmatpush1.xpose.msra.mxu0 0.0
    %2820 = vmatprep.subr.mxu0 0.0
    %2821 = vmatpush1.xpose.msra.mxu0 0.0
    %2822 = vmatprep.subr.mxu0 0.0
    %2823 = vmatpush1.xpose.msra.mxu0 0.0
    %2824 = vmatprep.subr.mxu0 0.0
    %2825 = vmatpush1.xpose.msra.mxu0 0.0
    %2826 = vmatprep.subr.mxu0 0.0
    %2827 = vmatpush1.xpose.msra.mxu0 0.0
    %2828 = vmatprep.subr.mxu0 0.0
    %2829 = vmatpush1.xpose.msra.mxu0 %v2796
    %2830 = vmatprep.subr.mxu0 0.0
    %2831 = vmatpush2.xpose.msra.mxu0 0.0
    %2832 = vmatprep.subr.mxu0 0.0
    %2833 = vmatpush2.xpose.msra.mxu0 0.0
    %2834 = vmatprep.subr.mxu0 0.0
    %2835 = vmatpush2.xpose.msra.mxu0 0.0
    %2836 = vmatprep.subr.mxu0 0.0
    %2837 = vmatpush2.xpose.msra.mxu0 0.0
    %2838 = vmatprep.subr.mxu0 0.0
    %2839 = vmatpush2.xpose.msra.mxu0 0.0
    %2840 = vmatprep.subr.mxu0 0.0
    %2841 = vmatpush2.xpose.msra.mxu0 0.0
    %2842 = vmatprep.subr.mxu0 0.0
    %2843 = vmatpush2.xpose.msra.mxu0 0.0
    %2844 = vmatprep.subr.mxu0 0.0
    %2845 = vmatpush2.xpose.msra.mxu0 0.0
    %2846 = vmatprep.subr.mxu0 0.0
    %2847 = vmatpush2.xpose.msra.mxu0 0.0
    %2848 = vmatprep.subr.mxu0 0.0
    %2849 = vmatpush2.xpose.msra.mxu0 0.0
    %2850 = vmatprep.subr.mxu0 0.0
    %2851 = vmatpush2.xpose.msra.mxu0 0.0
    %2852 = vmatprep.subr.mxu0 0.0
    %2853 = vmatpush2.xpose.msra.mxu0 0.0
    %2854 = vmatprep.subr.mxu0 0.0
    %2855 = vmatpush2.xpose.msra.mxu0 0.0
    %2856 = vmatprep.subr.mxu0 0.0
    %2857 = vmatpush2.xpose.msra.mxu0 0.0
    %2858 = vmatprep.subr.mxu0 0.0
    %2859 = vmatpush2.xpose.msra.mxu0 0.0
    %2860 = vmatprep.subr.mxu0 0.0
    %2861 = vmatpush2.xpose.msra.mxu0 0.0
    %2862 = vmatprep.mubr.f32.mxu0 0.0
    %2863 = vmatmul.mubr.f32.gmra.mxu0 %v2794
    %v2864 = vpop.f32.mrf.mxu0
    %v2865 = vadd.f32 0.0, %v2864
    %v2866 = vpop.f32.mrf.mxu0
    %2867 = vdwg.mxu0
    %v2868 = vmul.f32 %v2865, 0.35355338
    %v2869 = vsel %vm358, %v2868, -1e+30
    %v2870 = vsel %vm281, %v2869, -inf
    %2871 = vmax.xlane.f32.xlu0 %v2870
    %v2872 = vpop.xlane.xlu0 %2871
    %v2873 = vsub.f32 %v2869, %v2872
    %v2874 = vmul.f32 %v2873, 1.442695
    %v2875 = vpow.pop %v2874
    %v2876 = vsel %vm281, %v2875, 0.0
    %2877 = vadd.xlane.f32.xlu0 %v2876
    %v2878 = vpop.xlane.xlu0 %2877
    %v2879 = vrcp.pop %v2878
    %v2880 = vmul.f32 %v2875, %v2879
    %2881 = vrot.lane.b32.xlu0 %v2788, 48
    %v2882 = vpop.permute.xlu0 %2881
    %v2885 = vsel %vm281, %v2880, 0
    %2887 = vmatprep.subr.mxu0 0.0
    %2888 = vmatpush1.msra.mxu0 0.0
    %2889 = vmatprep.subr.mxu0 0.0
    %2890 = vmatpush1.msra.mxu0 0.0
    %2891 = vmatprep.subr.mxu0 0.0
    %2892 = vmatpush1.msra.mxu0 0.0
    %2893 = vmatprep.subr.mxu0 0.0
    %2894 = vmatpush1.msra.mxu0 0.0
    %2895 = vmatprep.subr.mxu0 0.0
    %2896 = vmatpush1.msra.mxu0 0.0
    %2897 = vmatprep.subr.mxu0 0.0
    %2898 = vmatpush1.msra.mxu0 0.0
    %2899 = vmatprep.subr.mxu0 0.0
    %2900 = vmatpush1.msra.mxu0 0.0
    %2901 = vmatprep.subr.mxu0 0.0
    %2902 = vmatpush1.msra.mxu0 0.0
    %2903 = vmatprep.subr.mxu0 0.0
    %2904 = vmatpush1.msra.mxu0 0.0
    %2905 = vmatprep.subr.mxu0 0.0
    %2906 = vmatpush1.msra.mxu0 0.0
    %2907 = vmatprep.subr.mxu0 0.0
    %2908 = vmatpush1.msra.mxu0 0.0
    %2909 = vmatprep.subr.mxu0 0.0
    %2910 = vmatpush1.msra.mxu0 0.0
    %2911 = vmatprep.subr.mxu0 0.0
    %2912 = vmatpush1.msra.mxu0 0.0
    %2913 = vmatprep.subr.mxu0 0.0
    %2914 = vmatpush1.msra.mxu0 0.0
    %2915 = vmatprep.subr.mxu0 0.0
    %2916 = vmatpush1.msra.mxu0 0.0
    %2917 = vmatprep.subr.mxu0 0.0
    %2918 = vmatpush1.msra.mxu0 %v2882
    %2919 = vmatprep.subr.mxu0 0.0
    %2920 = vmatpush2.msra.mxu0 0.0
    %2921 = vmatprep.subr.mxu0 0.0
    %2922 = vmatpush2.msra.mxu0 0.0
    %2923 = vmatprep.subr.mxu0 0.0
    %2924 = vmatpush2.msra.mxu0 0.0
    %2925 = vmatprep.subr.mxu0 0.0
    %2926 = vmatpush2.msra.mxu0 0.0
    %2927 = vmatprep.subr.mxu0 0.0
    %2928 = vmatpush2.msra.mxu0 0.0
    %2929 = vmatprep.subr.mxu0 0.0
    %2930 = vmatpush2.msra.mxu0 0.0
    %2931 = vmatprep.subr.mxu0 0.0
    %2932 = vmatpush2.msra.mxu0 0.0
    %2933 = vmatprep.subr.mxu0 0.0
    %2934 = vmatpush2.msra.mxu0 0.0
    %2935 = vmatprep.subr.mxu0 0.0
    %2936 = vmatpush2.msra.mxu0 0.0
    %2937 = vmatprep.subr.mxu0 0.0
    %2938 = vmatpush2.msra.mxu0 0.0
    %2939 = vmatprep.subr.mxu0 0.0
    %2940 = vmatpush2.msra.mxu0 0.0
    %2941 = vmatprep.subr.mxu0 0.0
    %2942 = vmatpush2.msra.mxu0 0.0
    %2943 = vmatprep.subr.mxu0 0.0
    %2944 = vmatpush2.msra.mxu0 0.0
    %2945 = vmatprep.subr.mxu0 0.0
    %2946 = vmatpush2.msra.mxu0 0.0
    %2947 = vmatprep.subr.mxu0 0.0
    %2948 = vmatpush2.msra.mxu0 0.0
    %2949 = vmatprep.subr.mxu0 0.0
    %2950 = vmatpush2.msra.mxu0 0.0
    %2951 = vmatprep.mubr.f32.mxu0 0.0
    %2952 = vmatmul.mubr.f32.gmra.mxu0 %v2885
    %v2953 = vpop.f32.mrf.mxu0
    %v2954 = vadd.f32 0.0, %v2953
    %v2955 = vpop.f32.mrf.mxu0
    %2956 = vdwg.mxu0
    %2958 = vrot.lane.b32.xlu0 %v2954, 16
    %v2959 = vpop.permute.xlu0 %2958
    %2961 = vst.msk [vmem:[#allocation3] sm:$0xff] %vm796, %v2959
    %v2962 = vld [vmem:[#allocation2] sm:$0xff]
    %2964 = vrot.lane.b32.xlu0 %v2962, 104
    %v2965 = vpop.permute.xlu0 %2964
    %2966 = vrot.lane.b32.xlu0 %v2962, 72
    %v2967 = vpop.permute.xlu0 %2966
    %v2968 = vsel %vm281, %v2965, 0
    %v2970 = vsel %vm281, %v2967, 0
    %2972 = vmatprep.subr.mxu0 0.0
    %2973 = vmatpush1.xpose.msra.mxu0 0.0
    %2974 = vmatprep.subr.mxu0 0.0
    %2975 = vmatpush1.xpose.msra.mxu0 0.0
    %2976 = vmatprep.subr.mxu0 0.0
    %2977 = vmatpush1.xpose.msra.mxu0 0.0
    %2978 = vmatprep.subr.mxu0 0.0
    %2979 = vmatpush1.xpose.msra.mxu0 0.0
    %2980 = vmatprep.subr.mxu0 0.0
    %2981 = vmatpush1.xpose.msra.mxu0 0.0
    %2982 = vmatprep.subr.mxu0 0.0
    %2983 = vmatpush1.xpose.msra.mxu0 0.0
    %2984 = vmatprep.subr.mxu0 0.0
    %2985 = vmatpush1.xpose.msra.mxu0 0.0
    %2986 = vmatprep.subr.mxu0 0.0
    %2987 = vmatpush1.xpose.msra.mxu0 0.0
    %2988 = vmatprep.subr.mxu0 0.0
    %2989 = vmatpush1.xpose.msra.mxu0 0.0
    %2990 = vmatprep.subr.mxu0 0.0
    %2991 = vmatpush1.xpose.msra.mxu0 0.0
    %2992 = vmatprep.subr.mxu0 0.0
    %2993 = vmatpush1.xpose.msra.mxu0 0.0
    %2994 = vmatprep.subr.mxu0 0.0
    %2995 = vmatpush1.xpose.msra.mxu0 0.0
    %2996 = vmatprep.subr.mxu0 0.0
    %2997 = vmatpush1.xpose.msra.mxu0 0.0
    %2998 = vmatprep.subr.mxu0 0.0
    %2999 = vmatpush1.xpose.msra.mxu0 0.0
    %3000 = vmatprep.subr.mxu0 0.0
    %3001 = vmatpush1.xpose.msra.mxu0 0.0
    %3002 = vmatprep.subr.mxu0 0.0
    %3003 = vmatpush1.xpose.msra.mxu0 %v2970
    %3004 = vmatprep.subr.mxu0 0.0
    %3005 = vmatpush2.xpose.msra.mxu0 0.0
    %3006 = vmatprep.subr.mxu0 0.0
    %3007 = vmatpush2.xpose.msra.mxu0 0.0
    %3008 = vmatprep.subr.mxu0 0.0
    %3009 = vmatpush2.xpose.msra.mxu0 0.0
    %3010 = vmatprep.subr.mxu0 0.0
    %3011 = vmatpush2.xpose.msra.mxu0 0.0
    %3012 = vmatprep.subr.mxu0 0.0
    %3013 = vmatpush2.xpose.msra.mxu0 0.0
    %3014 = vmatprep.subr.mxu0 0.0
    %3015 = vmatpush2.xpose.msra.mxu0 0.0
    %3016 = vmatprep.subr.mxu0 0.0
    %3017 = vmatpush2.xpose.msra.mxu0 0.0
    %3018 = vmatprep.subr.mxu0 0.0
    %3019 = vmatpush2.xpose.msra.mxu0 0.0
    %3020 = vmatprep.subr.mxu0 0.0
    %3021 = vmatpush2.xpose.msra.mxu0 0.0
    %3022 = vmatprep.subr.mxu0 0.0
    %3023 = vmatpush2.xpose.msra.mxu0 0.0
    %3024 = vmatprep.subr.mxu0 0.0
    %3025 = vmatpush2.xpose.msra.mxu0 0.0
    %3026 = vmatprep.subr.mxu0 0.0
    %3027 = vmatpush2.xpose.msra.mxu0 0.0
    %3028 = vmatprep.subr.mxu0 0.0
    %3029 = vmatpush2.xpose.msra.mxu0 0.0
    %3030 = vmatprep.subr.mxu0 0.0
    %3031 = vmatpush2.xpose.msra.mxu0 0.0
    %3032 = vmatprep.subr.mxu0 0.0
    %3033 = vmatpush2.xpose.msra.mxu0 0.0
    %3034 = vmatprep.subr.mxu0 0.0
    %3035 = vmatpush2.xpose.msra.mxu0 0.0
    %3036 = vmatprep.mubr.f32.mxu0 0.0
    %3037 = vmatmul.mubr.f32.gmra.mxu0 %v2968
    %v3038 = vpop.f32.mrf.mxu0
    %v3039 = vadd.f32 0.0, %v3038
    %v3040 = vpop.f32.mrf.mxu0
    %3041 = vdwg.mxu0
    %v3042 = vmul.f32 %v3039, 0.35355338
    %v3043 = vsel %vm358, %v3042, -1e+30
    %v3044 = vsel %vm281, %v3043, -inf
    %3045 = vmax.xlane.f32.xlu0 %v3044
    %v3046 = vpop.xlane.xlu0 %3045
    %v3047 = vsub.f32 %v3043, %v3046
    %v3048 = vmul.f32 %v3047, 1.442695
    %v3049 = vpow.pop %v3048
    %v3050 = vsel %vm281, %v3049, 0.0
    %3051 = vadd.xlane.f32.xlu0 %v3050
    %v3052 = vpop.xlane.xlu0 %3051
    %v3053 = vrcp.pop %v3052
    %v3054 = vmul.f32 %v3049, %v3053
    %3055 = vrot.lane.b32.xlu0 %v2962, 40
    %v3056 = vpop.permute.xlu0 %3055
    %v3059 = vsel %vm281, %v3054, 0
    %3061 = vmatprep.subr.mxu0 0.0
    %3062 = vmatpush1.msra.mxu0 0.0
    %3063 = vmatprep.subr.mxu0 0.0
    %3064 = vmatpush1.msra.mxu0 0.0
    %3065 = vmatprep.subr.mxu0 0.0
    %3066 = vmatpush1.msra.mxu0 0.0
    %3067 = vmatprep.subr.mxu0 0.0
    %3068 = vmatpush1.msra.mxu0 0.0
    %3069 = vmatprep.subr.mxu0 0.0
    %3070 = vmatpush1.msra.mxu0 0.0
    %3071 = vmatprep.subr.mxu0 0.0
    %3072 = vmatpush1.msra.mxu0 0.0
    %3073 = vmatprep.subr.mxu0 0.0
    %3074 = vmatpush1.msra.mxu0 0.0
    %3075 = vmatprep.subr.mxu0 0.0
    %3076 = vmatpush1.msra.mxu0 0.0
    %3077 = vmatprep.subr.mxu0 0.0
    %3078 = vmatpush1.msra.mxu0 0.0
    %3079 = vmatprep.subr.mxu0 0.0
    %3080 = vmatpush1.msra.mxu0 0.0
    %3081 = vmatprep.subr.mxu0 0.0
    %3082 = vmatpush1.msra.mxu0 0.0
    %3083 = vmatprep.subr.mxu0 0.0
    %3084 = vmatpush1.msra.mxu0 0.0
    %3085 = vmatprep.subr.mxu0 0.0
    %3086 = vmatpush1.msra.mxu0 0.0
    %3087 = vmatprep.subr.mxu0 0.0
    %3088 = vmatpush1.msra.mxu0 0.0
    %3089 = vmatprep.subr.mxu0 0.0
    %3090 = vmatpush1.msra.mxu0 0.0
    %3091 = vmatprep.subr.mxu0 0.0
    %3092 = vmatpush1.msra.mxu0 %v3056
    %3093 = vmatprep.subr.mxu0 0.0
    %3094 = vmatpush2.msra.mxu0 0.0
    %3095 = vmatprep.subr.mxu0 0.0
    %3096 = vmatpush2.msra.mxu0 0.0
    %3097 = vmatprep.subr.mxu0 0.0
    %3098 = vmatpush2.msra.mxu0 0.0
    %3099 = vmatprep.subr.mxu0 0.0
    %3100 = vmatpush2.msra.mxu0 0.0
    %3101 = vmatprep.subr.mxu0 0.0
    %3102 = vmatpush2.msra.mxu0 0.0
    %3103 = vmatprep.subr.mxu0 0.0
    %3104 = vmatpush2.msra.mxu0 0.0
    %3105 = vmatprep.subr.mxu0 0.0
    %3106 = vmatpush2.msra.mxu0 0.0
    %3107 = vmatprep.subr.mxu0 0.0
    %3108 = vmatpush2.msra.mxu0 0.0
    %3109 = vmatprep.subr.mxu0 0.0
    %3110 = vmatpush2.msra.mxu0 0.0
    %3111 = vmatprep.subr.mxu0 0.0
    %3112 = vmatpush2.msra.mxu0 0.0
    %3113 = vmatprep.subr.mxu0 0.0
    %3114 = vmatpush2.msra.mxu0 0.0
    %3115 = vmatprep.subr.mxu0 0.0
    %3116 = vmatpush2.msra.mxu0 0.0
    %3117 = vmatprep.subr.mxu0 0.0
    %3118 = vmatpush2.msra.mxu0 0.0
    %3119 = vmatprep.subr.mxu0 0.0
    %3120 = vmatpush2.msra.mxu0 0.0
    %3121 = vmatprep.subr.mxu0 0.0
    %3122 = vmatpush2.msra.mxu0 0.0
    %3123 = vmatprep.subr.mxu0 0.0
    %3124 = vmatpush2.msra.mxu0 0.0
    %3125 = vmatprep.mubr.f32.mxu0 0.0
    %3126 = vmatmul.mubr.f32.gmra.mxu0 %v3059
    %v3127 = vpop.f32.mrf.mxu0
    %v3128 = vadd.f32 0.0, %v3127
    %v3129 = vpop.f32.mrf.mxu0
    %3130 = vdwg.mxu0
    %3132 = vrot.lane.b32.xlu0 %v3128, 24
    %v3133 = vpop.permute.xlu0 %3132
    %3135 = vst.msk [vmem:[#allocation3] sm:$0xff] %vm971, %v3133
    %v3136 = vld [vmem:[#allocation3] sm:$0xff]
    %v3138 = vsel %vm201, %v3136, 0
    %3140 = vmatprep.subr.mxu0 0.0
    %3141 = vmatpush1.msra.mxu0 0.0
    %3142 = vmatprep.subr.mxu0 0.0
    %3143 = vmatpush1.msra.mxu0 0.0
    %3144 = vmatprep.subr.mxu0 0.0
    %3145 = vmatpush1.msra.mxu0 0.0
    %3146 = vmatprep.subr.mxu0 0.0
    %3147 = vmatpush1.msra.mxu0 0.0
    %3148 = vmatprep.subr.mxu0 0.0
    %3149 = vmatpush1.msra.mxu0 0.0
    %3150 = vmatprep.subr.mxu0 0.0
    %3151 = vmatpush1.msra.mxu0 0.0
    %3152 = vmatprep.subr.mxu0 0.0
    %3153 = vmatpush1.msra.mxu0 0.0
    %3154 = vmatprep.subr.mxu0 0.0
    %3155 = vmatpush1.msra.mxu0 0.0
    %3156 = vmatprep.subr.mxu0 0.0
    %3157 = vmatpush1.msra.mxu0 0.0
    %3158 = vmatprep.subr.mxu0 0.0
    %3159 = vmatpush1.msra.mxu0 0.0
    %3160 = vmatprep.subr.mxu0 0.0
    %3161 = vmatpush1.msra.mxu0 0.0
    %3162 = vmatprep.subr.mxu0 0.0
    %3163 = vmatpush1.msra.mxu0 0.0
    %3164 = vmatprep.subr.mxu0 0.0
    %3165 = vmatpush1.msra.mxu0 %v155
    %3166 = vmatprep.subr.mxu0 0.0
    %3167 = vmatpush1.msra.mxu0 %v154
    %3168 = vmatprep.subr.mxu0 0.0
    %3169 = vmatpush1.msra.mxu0 %v153
    %3170 = vmatprep.subr.mxu0 0.0
    %3171 = vmatpush1.msra.mxu0 %v152
    %3172 = vmatprep.subr.mxu0 0.0
    %3173 = vmatpush2.msra.mxu0 0.0
    %3174 = vmatprep.subr.mxu0 0.0
    %3175 = vmatpush2.msra.mxu0 0.0
    %3176 = vmatprep.subr.mxu0 0.0
    %3177 = vmatpush2.msra.mxu0 0.0
    %3178 = vmatprep.subr.mxu0 0.0
    %3179 = vmatpush2.msra.mxu0 0.0
    %3180 = vmatprep.subr.mxu0 0.0
    %3181 = vmatpush2.msra.mxu0 0.0
    %3182 = vmatprep.subr.mxu0 0.0
    %3183 = vmatpush2.msra.mxu0 0.0
    %3184 = vmatprep.subr.mxu0 0.0
    %3185 = vmatpush2.msra.mxu0 0.0
    %3186 = vmatprep.subr.mxu0 0.0
    %3187 = vmatpush2.msra.mxu0 0.0
    %3188 = vmatprep.subr.mxu0 0.0
    %3189 = vmatpush2.msra.mxu0 0.0
    %3190 = vmatprep.subr.mxu0 0.0
    %3191 = vmatpush2.msra.mxu0 0.0
    %3192 = vmatprep.subr.mxu0 0.0
    %3193 = vmatpush2.msra.mxu0 0.0
    %3194 = vmatprep.subr.mxu0 0.0
    %3195 = vmatpush2.msra.mxu0 0.0
    %3196 = vmatprep.subr.mxu0 0.0
    %3197 = vmatpush2.msra.mxu0 0.0
    %3198 = vmatprep.subr.mxu0 0.0
    %3199 = vmatpush2.msra.mxu0 0.0
    %3200 = vmatprep.subr.mxu0 0.0
    %3201 = vmatpush2.msra.mxu0 0.0
    %3202 = vmatprep.subr.mxu0 0.0
    %3203 = vmatpush2.msra.mxu0 0.0
    %3204 = vmatprep.mubr.f32.mxu0 0.0
    %3205 = vmatmul.mubr.f32.gmra.mxu0 %v3138
    %v3206 = vpop.f32.mrf.mxu0
    %v3207 = vadd.f32 %v978, %v3206
    %v3208 = vpop.f32.mrf.mxu0
    %3209 = vdwg.mxu0
    %v3210 = vadd.f32 %v2371, %v3207
    %v3211 = vsel %vm201, %v3210, 0.0
    %3212 = vadd.xlane.f32.xlu0 %v3211
    %v3213 = vpop.xlane.xlu0 %3212
    %v3214 = vmul.f32 %v3213, %v1057
    %v3215 = vsub.f32 %v3210, %v3214
    %v3216 = vmul.f32 %v3215, %v3215
    %v3217 = vsel %vm201, %v3216, 0.0
    %3218 = vadd.xlane.f32.xlu0 %v3217
    %v3219 = vpop.xlane.xlu0 %3218
    %v3220 = vmul.f32 %v3219, %v1057
    %v3221 = vadd.f32 %v3220, 1e-05
    %v3222 = vrsqrt.pop %v3221
    %v3223 = vmul.f32 %v3215, %v3222
    %v3224 = vmul.f32 %v3223, %v1072
    %v3225 = vadd.f32 %v3224, %v1079
    %v3227 = vsel %vm201, %v3225, 0
    %3229 = vmatprep.subr.mxu0 0.0
    %3230 = vmatpush1.msra.mxu0 0.0
    %3231 = vmatprep.subr.mxu0 0.0
    %3232 = vmatpush1.msra.mxu0 0.0
    %3233 = vmatprep.subr.mxu0 0.0
    %3234 = vmatpush1.msra.mxu0 0.0
    %3235 = vmatprep.subr.mxu0 0.0
    %3236 = vmatpush1.msra.mxu0 0.0
    %3237 = vmatprep.subr.mxu0 0.0
    %3238 = vmatpush1.msra.mxu0 0.0
    %3239 = vmatprep.subr.mxu0 0.0
    %3240 = vmatpush1.msra.mxu0 0.0
    %3241 = vmatprep.subr.mxu0 0.0
    %3242 = vmatpush1.msra.mxu0 0.0
    %3243 = vmatprep.subr.mxu0 0.0
    %3244 = vmatpush1.msra.mxu0 0.0
    %3245 = vmatprep.subr.mxu0 0.0
    %3246 = vmatpush1.msra.mxu0 0.0
    %3247 = vmatprep.subr.mxu0 0.0
    %3248 = vmatpush1.msra.mxu0 0.0
    %3249 = vmatprep.subr.mxu0 0.0
    %3250 = vmatpush1.msra.mxu0 0.0
    %3251 = vmatprep.subr.mxu0 0.0
    %3252 = vmatpush1.msra.mxu0 0.0
    %3253 = vmatprep.subr.mxu0 0.0
    %3254 = vmatpush1.msra.mxu0 %v160
    %3255 = vmatprep.subr.mxu0 0.0
    %3256 = vmatpush1.msra.mxu0 %v159
    %3257 = vmatprep.subr.mxu0 0.0
    %3258 = vmatpush1.msra.mxu0 %v158
    %3259 = vmatprep.subr.mxu0 0.0
    %3260 = vmatpush1.msra.mxu0 %v157
    %3261 = vmatprep.subr.mxu0 0.0
    %3262 = vmatpush2.msra.mxu0 0.0
    %3263 = vmatprep.subr.mxu0 0.0
    %3264 = vmatpush2.msra.mxu0 0.0
    %3265 = vmatprep.subr.mxu0 0.0
    %3266 = vmatpush2.msra.mxu0 0.0
    %3267 = vmatprep.subr.mxu0 0.0
    %3268 = vmatpush2.msra.mxu0 0.0
    %3269 = vmatprep.subr.mxu0 0.0
    %3270 = vmatpush2.msra.mxu0 0.0
    %3271 = vmatprep.subr.mxu0 0.0
    %3272 = vmatpush2.msra.mxu0 0.0
    %3273 = vmatprep.subr.mxu0 0.0
    %3274 = vmatpush2.msra.mxu0 0.0
    %3275 = vmatprep.subr.mxu0 0.0
    %3276 = vmatpush2.msra.mxu0 0.0
    %3277 = vmatprep.subr.mxu0 0.0
    %3278 = vmatpush2.msra.mxu0 0.0
    %3279 = vmatprep.subr.mxu0 0.0
    %3280 = vmatpush2.msra.mxu0 0.0
    %3281 = vmatprep.subr.mxu0 0.0
    %3282 = vmatpush2.msra.mxu0 0.0
    %3283 = vmatprep.subr.mxu0 0.0
    %3284 = vmatpush2.msra.mxu0 0.0
    %3285 = vmatprep.subr.mxu0 0.0
    %3286 = vmatpush2.msra.mxu0 0.0
    %3287 = vmatprep.subr.mxu0 0.0
    %3288 = vmatpush2.msra.mxu0 0.0
    %3289 = vmatprep.subr.mxu0 0.0
    %3290 = vmatpush2.msra.mxu0 0.0
    %3291 = vmatprep.subr.mxu0 0.0
    %3292 = vmatpush2.msra.mxu0 0.0
    %3293 = vmatprep.mubr.f32.mxu0 0.0
    %3294 = vmatmul.mubr.f32.gmra.mxu0 %v3227
    %v3295 = vpop.f32.mrf.mxu0
    %v3296 = vadd.f32 %v1086, %v3295
    %v3297 = vpop.f32.mrf.mxu0
    %3298 = vdwg.mxu0
    %3299 = vst.msk [vmem:[#allocation2] sm:$0xff] %vm201, %v3296
    %v3300 = vld [vmem:[#allocation2] sm:$0xff]
    %s3301 = scalar_lea.vmem %s9, 16
    %v3302 = vld [vmem:[%s3301] sm:$0xff]
    %v3303 = vld [vmem:[%s3301 + $0x8] sm:$0xff]
    %s3304 = scalar_lea.vmem %s11, 16
    %v3305 = vld [vmem:[%s3304] sm:$0xff]
    %v3306 = vld [vmem:[%s3304 + $0x8] sm:$0xff]
    %v3308 = vsel %vm281, %v3300, 0
    %v3311 = vsel %vm281, %v3302, 0
    %v3314 = vsel %vm281, %v3303, 0
    %3316 = vmatprep.subr.mxu0 0.0
    %3317 = vmatpush1.xpose.msra.mxu0 0.0
    %3318 = vmatprep.subr.mxu0 0.0
    %3319 = vmatpush1.xpose.msra.mxu0 0.0
    %3320 = vmatprep.subr.mxu0 0.0
    %3321 = vmatpush1.xpose.msra.mxu0 0.0
    %3322 = vmatprep.subr.mxu0 0.0
    %3323 = vmatpush1.xpose.msra.mxu0 0.0
    %3324 = vmatprep.subr.mxu0 0.0
    %3325 = vmatpush1.xpose.msra.mxu0 0.0
    %3326 = vmatprep.subr.mxu0 0.0
    %3327 = vmatpush1.xpose.msra.mxu0 0.0
    %3328 = vmatprep.subr.mxu0 0.0
    %3329 = vmatpush1.xpose.msra.mxu0 0.0
    %3330 = vmatprep.subr.mxu0 0.0
    %3331 = vmatpush1.xpose.msra.mxu0 0.0
    %3332 = vmatprep.subr.mxu0 0.0
    %3333 = vmatpush1.xpose.msra.mxu0 0.0
    %3334 = vmatprep.subr.mxu0 0.0
    %3335 = vmatpush1.xpose.msra.mxu0 0.0
    %3336 = vmatprep.subr.mxu0 0.0
    %3337 = vmatpush1.xpose.msra.mxu0 0.0
    %3338 = vmatprep.subr.mxu0 0.0
    %3339 = vmatpush1.xpose.msra.mxu0 0.0
    %3340 = vmatprep.subr.mxu0 0.0
    %3341 = vmatpush1.xpose.msra.mxu0 0.0
    %3342 = vmatprep.subr.mxu0 0.0
    %3343 = vmatpush1.xpose.msra.mxu0 0.0
    %3344 = vmatprep.subr.mxu0 0.0
    %3345 = vmatpush1.xpose.msra.mxu0 %v3314
    %3346 = vmatprep.subr.mxu0 0.0
    %3347 = vmatpush1.xpose.msra.mxu0 %v3311
    %3348 = vmatprep.subr.mxu0 0.0
    %3349 = vmatpush2.xpose.msra.mxu0 0.0
    %3350 = vmatprep.subr.mxu0 0.0
    %3351 = vmatpush2.xpose.msra.mxu0 0.0
    %3352 = vmatprep.subr.mxu0 0.0
    %3353 = vmatpush2.xpose.msra.mxu0 0.0
    %3354 = vmatprep.subr.mxu0 0.0
    %3355 = vmatpush2.xpose.msra.mxu0 0.0
    %3356 = vmatprep.subr.mxu0 0.0
    %3357 = vmatpush2.xpose.msra.mxu0 0.0
    %3358 = vmatprep.subr.mxu0 0.0
    %3359 = vmatpush2.xpose.msra.mxu0 0.0
    %3360 = vmatprep.subr.mxu0 0.0
    %3361 = vmatpush2.xpose.msra.mxu0 0.0
    %3362 = vmatprep.subr.mxu0 0.0
    %3363 = vmatpush2.xpose.msra.mxu0 0.0
    %3364 = vmatprep.subr.mxu0 0.0
    %3365 = vmatpush2.xpose.msra.mxu0 0.0
    %3366 = vmatprep.subr.mxu0 0.0
    %3367 = vmatpush2.xpose.msra.mxu0 0.0
    %3368 = vmatprep.subr.mxu0 0.0
    %3369 = vmatpush2.xpose.msra.mxu0 0.0
    %3370 = vmatprep.subr.mxu0 0.0
    %3371 = vmatpush2.xpose.msra.mxu0 0.0
    %3372 = vmatprep.subr.mxu0 0.0
    %3373 = vmatpush2.xpose.msra.mxu0 0.0
    %3374 = vmatprep.subr.mxu0 0.0
    %3375 = vmatpush2.xpose.msra.mxu0 0.0
    %3376 = vmatprep.subr.mxu0 0.0
    %3377 = vmatpush2.xpose.msra.mxu0 0.0
    %3378 = vmatprep.subr.mxu0 0.0
    %3379 = vmatpush2.xpose.msra.mxu0 0.0
    %3380 = vmatprep.mubr.f32.mxu0 0.0
    %3381 = vmatmul.mubr.f32.gmra.mxu0 %v3308
    %v3382 = vpop.f32.mrf.mxu0
    %v3383 = vadd.f32 0.0, %v3382
    %v3384 = vpop.f32.mrf.mxu0
    %3385 = vdwg.mxu0
    %v3386 = vmul.f32 %v3383, 0.35355338
    %v3387 = vsel %vm1247, %v3386, -inf
    %3388 = vmax.xlane.f32.xlu0 %v3387
    %v3389 = vpop.xlane.xlu0 %3388
    %v3390 = vsub.f32 %v3386, %v3389
    %v3391 = vmul.f32 %v3390, 1.442695
    %v3392 = vpow.pop %v3391
    %v3393 = vsel %vm1247, %v3392, 0.0
    %3394 = vadd.xlane.f32.xlu0 %v3393
    %v3395 = vpop.xlane.xlu0 %3394
    %v3396 = vrcp.pop %v3395
    %v3397 = vmul.f32 %v3392, %v3396
    %v3399 = vsel %vm1247, %v3397, 0
    %3401 = vmatprep.subr.mxu0 0.0
    %3402 = vmatpush1.msra.mxu0 0.0
    %3403 = vmatprep.subr.mxu0 0.0
    %3404 = vmatpush1.msra.mxu0 0.0
    %3405 = vmatprep.subr.mxu0 0.0
    %3406 = vmatpush1.msra.mxu0 0.0
    %3407 = vmatprep.subr.mxu0 0.0
    %3408 = vmatpush1.msra.mxu0 0.0
    %3409 = vmatprep.subr.mxu0 0.0
    %3410 = vmatpush1.msra.mxu0 0.0
    %3411 = vmatprep.subr.mxu0 0.0
    %3412 = vmatpush1.msra.mxu0 0.0
    %3413 = vmatprep.subr.mxu0 0.0
    %3414 = vmatpush1.msra.mxu0 0.0
    %3415 = vmatprep.subr.mxu0 0.0
    %3416 = vmatpush1.msra.mxu0 0.0
    %3417 = vmatprep.subr.mxu0 0.0
    %3418 = vmatpush1.msra.mxu0 0.0
    %3419 = vmatprep.subr.mxu0 0.0
    %3420 = vmatpush1.msra.mxu0 0.0
    %3421 = vmatprep.subr.mxu0 0.0
    %3422 = vmatpush1.msra.mxu0 0.0
    %3423 = vmatprep.subr.mxu0 0.0
    %3424 = vmatpush1.msra.mxu0 0.0
    %3425 = vmatprep.subr.mxu0 0.0
    %3426 = vmatpush1.msra.mxu0 0.0
    %3427 = vmatprep.subr.mxu0 0.0
    %3428 = vmatpush1.msra.mxu0 0.0
    %3429 = vmatprep.subr.mxu0 0.0
    %3430 = vmatpush1.msra.mxu0 %v3306
    %3431 = vmatprep.subr.mxu0 0.0
    %3432 = vmatpush1.msra.mxu0 %v3305
    %3433 = vmatprep.subr.mxu0 0.0
    %3434 = vmatpush2.msra.mxu0 0.0
    %3435 = vmatprep.subr.mxu0 0.0
    %3436 = vmatpush2.msra.mxu0 0.0
    %3437 = vmatprep.subr.mxu0 0.0
    %3438 = vmatpush2.msra.mxu0 0.0
    %3439 = vmatprep.subr.mxu0 0.0
    %3440 = vmatpush2.msra.mxu0 0.0
    %3441 = vmatprep.subr.mxu0 0.0
    %3442 = vmatpush2.msra.mxu0 0.0
    %3443 = vmatprep.subr.mxu0 0.0
    %3444 = vmatpush2.msra.mxu0 0.0
    %3445 = vmatprep.subr.mxu0 0.0
    %3446 = vmatpush2.msra.mxu0 0.0
    %3447 = vmatprep.subr.mxu0 0.0
    %3448 = vmatpush2.msra.mxu0 0.0
    %3449 = vmatprep.subr.mxu0 0.0
    %3450 = vmatpush2.msra.mxu0 0.0
    %3451 = vmatprep.subr.mxu0 0.0
    %3452 = vmatpush2.msra.mxu0 0.0
    %3453 = vmatprep.subr.mxu0 0.0
    %3454 = vmatpush2.msra.mxu0 0.0
    %3455 = vmatprep.subr.mxu0 0.0
    %3456 = vmatpush2.msra.mxu0 0.0
    %3457 = vmatprep.subr.mxu0 0.0
    %3458 = vmatpush2.msra.mxu0 0.0
    %3459 = vmatprep.subr.mxu0 0.0
    %3460 = vmatpush2.msra.mxu0 0.0
    %3461 = vmatprep.subr.mxu0 0.0
    %3462 = vmatpush2.msra.mxu0 0.0
    %3463 = vmatprep.subr.mxu0 0.0
    %3464 = vmatpush2.msra.mxu0 0.0
    %3465 = vmatprep.mubr.f32.mxu0 0.0
    %3466 = vmatmul.mubr.f32.gmra.mxu0 %v3399
    %v3467 = vpop.f32.mrf.mxu0
    %v3468 = vadd.f32 0.0, %v3467
    %v3469 = vpop.f32.mrf.mxu0
    %3470 = vdwg.mxu0
    %3471 = vst.msk [vmem:[#allocation3] sm:$0xff] %vm281, %v3468
    %v3472 = vld [vmem:[#allocation2] sm:$0xff]
    %v3473 = vld [vmem:[%s3301] sm:$0xff]
    %v3474 = vld [vmem:[%s3301 + $0x8] sm:$0xff]
    %v3475 = vld [vmem:[%s3304] sm:$0xff]
    %v3476 = vld [vmem:[%s3304 + $0x8] sm:$0xff]
    %3478 = vrot.lane.b32.xlu0 %v3472, 120
    %v3479 = vpop.permute.xlu0 %3478
    %3482 = vrot.lane.b32.xlu0 %v3473, 120
    %v3483 = vpop.permute.xlu0 %3482
    %3484 = vrot.lane.b32.xlu0 %v3474, 120
    %v3485 = vpop.permute.xlu0 %3484
    %v3486 = vsel %vm281, %v3479, 0
    %v3488 = vsel %vm281, %v3483, 0
    %v3490 = vsel %vm281, %v3485, 0
    %3492 = vmatprep.subr.mxu0 0.0
    %3493 = vmatpush1.xpose.msra.mxu0 0.0
    %3494 = vmatprep.subr.mxu0 0.0
    %3495 = vmatpush1.xpose.msra.mxu0 0.0
    %3496 = vmatprep.subr.mxu0 0.0
    %3497 = vmatpush1.xpose.msra.mxu0 0.0
    %3498 = vmatprep.subr.mxu0 0.0
    %3499 = vmatpush1.xpose.msra.mxu0 0.0
    %3500 = vmatprep.subr.mxu0 0.0
    %3501 = vmatpush1.xpose.msra.mxu0 0.0
    %3502 = vmatprep.subr.mxu0 0.0
    %3503 = vmatpush1.xpose.msra.mxu0 0.0
    %3504 = vmatprep.subr.mxu0 0.0
    %3505 = vmatpush1.xpose.msra.mxu0 0.0
    %3506 = vmatprep.subr.mxu0 0.0
    %3507 = vmatpush1.xpose.msra.mxu0 0.0
    %3508 = vmatprep.subr.mxu0 0.0
    %3509 = vmatpush1.xpose.msra.mxu0 0.0
    %3510 = vmatprep.subr.mxu0 0.0
    %3511 = vmatpush1.xpose.msra.mxu0 0.0
    %3512 = vmatprep.subr.mxu0 0.0
    %3513 = vmatpush1.xpose.msra.mxu0 0.0
    %3514 = vmatprep.subr.mxu0 0.0
    %3515 = vmatpush1.xpose.msra.mxu0 0.0
    %3516 = vmatprep.subr.mxu0 0.0
    %3517 = vmatpush1.xpose.msra.mxu0 0.0
    %3518 = vmatprep.subr.mxu0 0.0
    %3519 = vmatpush1.xpose.msra.mxu0 0.0
    %3520 = vmatprep.subr.mxu0 0.0
    %3521 = vmatpush1.xpose.msra.mxu0 %v3490
    %3522 = vmatprep.subr.mxu0 0.0
    %3523 = vmatpush1.xpose.msra.mxu0 %v3488
    %3524 = vmatprep.subr.mxu0 0.0
    %3525 = vmatpush2.xpose.msra.mxu0 0.0
    %3526 = vmatprep.subr.mxu0 0.0
    %3527 = vmatpush2.xpose.msra.mxu0 0.0
    %3528 = vmatprep.subr.mxu0 0.0
    %3529 = vmatpush2.xpose.msra.mxu0 0.0
    %3530 = vmatprep.subr.mxu0 0.0
    %3531 = vmatpush2.xpose.msra.mxu0 0.0
    %3532 = vmatprep.subr.mxu0 0.0
    %3533 = vmatpush2.xpose.msra.mxu0 0.0
    %3534 = vmatprep.subr.mxu0 0.0
    %3535 = vmatpush2.xpose.msra.mxu0 0.0
    %3536 = vmatprep.subr.mxu0 0.0
    %3537 = vmatpush2.xpose.msra.mxu0 0.0
    %3538 = vmatprep.subr.mxu0 0.0
    %3539 = vmatpush2.xpose.msra.mxu0 0.0
    %3540 = vmatprep.subr.mxu0 0.0
    %3541 = vmatpush2.xpose.msra.mxu0 0.0
    %3542 = vmatprep.subr.mxu0 0.0
    %3543 = vmatpush2.xpose.msra.mxu0 0.0
    %3544 = vmatprep.subr.mxu0 0.0
    %3545 = vmatpush2.xpose.msra.mxu0 0.0
    %3546 = vmatprep.subr.mxu0 0.0
    %3547 = vmatpush2.xpose.msra.mxu0 0.0
    %3548 = vmatprep.subr.mxu0 0.0
    %3549 = vmatpush2.xpose.msra.mxu0 0.0
    %3550 = vmatprep.subr.mxu0 0.0
    %3551 = vmatpush2.xpose.msra.mxu0 0.0
    %3552 = vmatprep.subr.mxu0 0.0
    %3553 = vmatpush2.xpose.msra.mxu0 0.0
    %3554 = vmatprep.subr.mxu0 0.0
    %3555 = vmatpush2.xpose.msra.mxu0 0.0
    %3556 = vmatprep.mubr.f32.mxu0 0.0
    %3557 = vmatmul.mubr.f32.gmra.mxu0 %v3486
    %v3558 = vpop.f32.mrf.mxu0
    %v3559 = vadd.f32 0.0, %v3558
    %v3560 = vpop.f32.mrf.mxu0
    %3561 = vdwg.mxu0
    %v3562 = vmul.f32 %v3559, 0.35355338
    %v3563 = vsel %vm1247, %v3562, -inf
    %3564 = vmax.xlane.f32.xlu0 %v3563
    %v3565 = vpop.xlane.xlu0 %3564
    %v3566 = vsub.f32 %v3562, %v3565
    %v3567 = vmul.f32 %v3566, 1.442695
    %v3568 = vpow.pop %v3567
    %v3569 = vsel %vm1247, %v3568, 0.0
    %3570 = vadd.xlane.f32.xlu0 %v3569
    %v3571 = vpop.xlane.xlu0 %3570
    %v3572 = vrcp.pop %v3571
    %v3573 = vmul.f32 %v3568, %v3572
    %3576 = vrot.lane.b32.xlu0 %v3475, 120
    %v3577 = vpop.permute.xlu0 %3576
    %3578 = vrot.lane.b32.xlu0 %v3476, 120
    %v3579 = vpop.permute.xlu0 %3578
    %v3583 = vsel %vm1247, %v3573, 0
    %3585 = vmatprep.subr.mxu0 0.0
    %3586 = vmatpush1.msra.mxu0 0.0
    %3587 = vmatprep.subr.mxu0 0.0
    %3588 = vmatpush1.msra.mxu0 0.0
    %3589 = vmatprep.subr.mxu0 0.0
    %3590 = vmatpush1.msra.mxu0 0.0
    %3591 = vmatprep.subr.mxu0 0.0
    %3592 = vmatpush1.msra.mxu0 0.0
    %3593 = vmatprep.subr.mxu0 0.0
    %3594 = vmatpush1.msra.mxu0 0.0
    %3595 = vmatprep.subr.mxu0 0.0
    %3596 = vmatpush1.msra.mxu0 0.0
    %3597 = vmatprep.subr.mxu0 0.0
    %3598 = vmatpush1.msra.mxu0 0.0
    %3599 = vmatprep.subr.mxu0 0.0
    %3600 = vmatpush1.msra.mxu0 0.0
    %3601 = vmatprep.subr.mxu0 0.0
    %3602 = vmatpush1.msra.mxu0 0.0
    %3603 = vmatprep.subr.mxu0 0.0
    %3604 = vmatpush1.msra.mxu0 0.0
    %3605 = vmatprep.subr.mxu0 0.0
    %3606 = vmatpush1.msra.mxu0 0.0
    %3607 = vmatprep.subr.mxu0 0.0
    %3608 = vmatpush1.msra.mxu0 0.0
    %3609 = vmatprep.subr.mxu0 0.0
    %3610 = vmatpush1.msra.mxu0 0.0
    %3611 = vmatprep.subr.mxu0 0.0
    %3612 = vmatpush1.msra.mxu0 0.0
    %3613 = vmatprep.subr.mxu0 0.0
    %3614 = vmatpush1.msra.mxu0 %v3579
    %3615 = vmatprep.subr.mxu0 0.0
    %3616 = vmatpush1.msra.mxu0 %v3577
    %3617 = vmatprep.subr.mxu0 0.0
    %3618 = vmatpush2.msra.mxu0 0.0
    %3619 = vmatprep.subr.mxu0 0.0
    %3620 = vmatpush2.msra.mxu0 0.0
    %3621 = vmatprep.subr.mxu0 0.0
    %3622 = vmatpush2.msra.mxu0 0.0
    %3623 = vmatprep.subr.mxu0 0.0
    %3624 = vmatpush2.msra.mxu0 0.0
    %3625 = vmatprep.subr.mxu0 0.0
    %3626 = vmatpush2.msra.mxu0 0.0
    %3627 = vmatprep.subr.mxu0 0.0
    %3628 = vmatpush2.msra.mxu0 0.0
    %3629 = vmatprep.subr.mxu0 0.0
    %3630 = vmatpush2.msra.mxu0 0.0
    %3631 = vmatprep.subr.mxu0 0.0
    %3632 = vmatpush2.msra.mxu0 0.0
    %3633 = vmatprep.subr.mxu0 0.0
    %3634 = vmatpush2.msra.mxu0 0.0
    %3635 = vmatprep.subr.mxu0 0.0
    %3636 = vmatpush2.msra.mxu0 0.0
    %3637 = vmatprep.subr.mxu0 0.0
    %3638 = vmatpush2.msra.mxu0 0.0
    %3639 = vmatprep.subr.mxu0 0.0
    %3640 = vmatpush2.msra.mxu0 0.0
    %3641 = vmatprep.subr.mxu0 0.0
    %3642 = vmatpush2.msra.mxu0 0.0
    %3643 = vmatprep.subr.mxu0 0.0
    %3644 = vmatpush2.msra.mxu0 0.0
    %3645 = vmatprep.subr.mxu0 0.0
    %3646 = vmatpush2.msra.mxu0 0.0
    %3647 = vmatprep.subr.mxu0 0.0
    %3648 = vmatpush2.msra.mxu0 0.0
    %3649 = vmatprep.mubr.f32.mxu0 0.0
    %3650 = vmatmul.mubr.f32.gmra.mxu0 %v3583
    %v3651 = vpop.f32.mrf.mxu0
    %v3652 = vadd.f32 0.0, %v3651
    %v3653 = vpop.f32.mrf.mxu0
    %3654 = vdwg.mxu0
    %3656 = vrot.lane.b32.xlu0 %v3652, 8
    %v3657 = vpop.permute.xlu0 %3656
    %3659 = vst.msk [vmem:[#allocation3] sm:$0xff] %vm621, %v3657
    %v3660 = vld [vmem:[#allocation2] sm:$0xff]
    %v3661 = vld [vmem:[%s3301] sm:$0xff]
    %v3662 = vld [vmem:[%s3301 + $0x8] sm:$0xff]
    %v3663 = vld [vmem:[%s3304] sm:$0xff]
    %v3664 = vld [vmem:[%s3304 + $0x8] sm:$0xff]
    %3666 = vrot.lane.b32.xlu0 %v3660, 112
    %v3667 = vpop.permute.xlu0 %3666
    %3670 = vrot.lane.b32.xlu0 %v3661, 112
    %v3671 = vpop.permute.xlu0 %3670
    %3672 = vrot.lane.b32.xlu0 %v3662, 112
    %v3673 = vpop.permute.xlu0 %3672
    %v3674 = vsel %vm281, %v3667, 0
    %v3676 = vsel %vm281, %v3671, 0
    %v3678 = vsel %vm281, %v3673, 0
    %3680 = vmatprep.subr.mxu0 0.0
    %3681 = vmatpush1.xpose.msra.mxu0 0.0
    %3682 = vmatprep.subr.mxu0 0.0
    %3683 = vmatpush1.xpose.msra.mxu0 0.0
    %3684 = vmatprep.subr.mxu0 0.0
    %3685 = vmatpush1.xpose.msra.mxu0 0.0
    %3686 = vmatprep.subr.mxu0 0.0
    %3687 = vmatpush1.xpose.msra.mxu0 0.0
    %3688 = vmatprep.subr.mxu0 0.0
    %3689 = vmatpush1.xpose.msra.mxu0 0.0
    %3690 = vmatprep.subr.mxu0 0.0
    %3691 = vmatpush1.xpose.msra.mxu0 0.0
    %3692 = vmatprep.subr.mxu0 0.0
    %3693 = vmatpush1.xpose.msra.mxu0 0.0
    %3694 = vmatprep.subr.mxu0 0.0
    %3695 = vmatpush1.xpose.msra.mxu0 0.0
    %3696 = vmatprep.subr.mxu0 0.0
    %3697 = vmatpush1.xpose.msra.mxu0 0.0
    %3698 = vmatprep.subr.mxu0 0.0
    %3699 = vmatpush1.xpose.msra.mxu0 0.0
    %3700 = vmatprep.subr.mxu0 0.0
    %3701 = vmatpush1.xpose.msra.mxu0 0.0
    %3702 = vmatprep.subr.mxu0 0.0
    %3703 = vmatpush1.xpose.msra.mxu0 0.0
    %3704 = vmatprep.subr.mxu0 0.0
    %3705 = vmatpush1.xpose.msra.mxu0 0.0
    %3706 = vmatprep.subr.mxu0 0.0
    %3707 = vmatpush1.xpose.msra.mxu0 0.0
    %3708 = vmatprep.subr.mxu0 0.0
    %3709 = vmatpush1.xpose.msra.mxu0 %v3678
    %3710 = vmatprep.subr.mxu0 0.0
    %3711 = vmatpush1.xpose.msra.mxu0 %v3676
    %3712 = vmatprep.subr.mxu0 0.0
    %3713 = vmatpush2.xpose.msra.mxu0 0.0
    %3714 = vmatprep.subr.mxu0 0.0
    %3715 = vmatpush2.xpose.msra.mxu0 0.0
    %3716 = vmatprep.subr.mxu0 0.0
    %3717 = vmatpush2.xpose.msra.mxu0 0.0
    %3718 = vmatprep.subr.mxu0 0.0
    %3719 = vmatpush2.xpose.msra.mxu0 0.0
    %3720 = vmatprep.subr.mxu0 0.0
    %3721 = vmatpush2.xpose.msra.mxu0 0.0
    %3722 = vmatprep.subr.mxu0 0.0
    %3723 = vmatpush2.xpose.msra.mxu0 0.0
    %3724 = vmatprep.subr.mxu0 0.0
    %3725 = vmatpush2.xpose.msra.mxu0 0.0
    %3726 = vmatprep.subr.mxu0 0.0
    %3727 = vmatpush2.xpose.msra.mxu0 0.0
    %3728 = vmatprep.subr.mxu0 0.0
    %3729 = vmatpush2.xpose.msra.mxu0 0.0
    %3730 = vmatprep.subr.mxu0 0.0
    %3731 = vmatpush2.xpose.msra.mxu0 0.0
    %3732 = vmatprep.subr.mxu0 0.0
    %3733 = vmatpush2.xpose.msra.mxu0 0.0
    %3734 = vmatprep.subr.mxu0 0.0
    %3735 = vmatpush2.xpose.msra.mxu0 0.0
    %3736 = vmatprep.subr.mxu0 0.0
    %3737 = vmatpush2.xpose.msra.mxu0 0.0
    %3738 = vmatprep.subr.mxu0 0.0
    %3739 = vmatpush2.xpose.msra.mxu0 0.0
    %3740 = vmatprep.subr.mxu0 0.0
    %3741 = vmatpush2.xpose.msra.mxu0 0.0
    %3742 = vmatprep.subr.mxu0 0.0
    %3743 = vmatpush2.xpose.msra.mxu0 0.0
    %3744 = vmatprep.mubr.f32.mxu0 0.0
    %3745 = vmatmul.mubr.f32.gmra.mxu0 %v3674
    %v3746 = vpop.f32.mrf.mxu0
    %v3747 = vadd.f32 0.0, %v3746
    %v3748 = vpop.f32.mrf.mxu0
    %3749 = vdwg.mxu0
    %v3750 = vmul.f32 %v3747, 0.35355338
    %v3751 = vsel %vm1247, %v3750, -inf
    %3752 = vmax.xlane.f32.xlu0 %v3751
    %v3753 = vpop.xlane.xlu0 %3752
    %v3754 = vsub.f32 %v3750, %v3753
    %v3755 = vmul.f32 %v3754, 1.442695
    %v3756 = vpow.pop %v3755
    %v3757 = vsel %vm1247, %v3756, 0.0
    %3758 = vadd.xlane.f32.xlu0 %v3757
    %v3759 = vpop.xlane.xlu0 %3758
    %v3760 = vrcp.pop %v3759
    %v3761 = vmul.f32 %v3756, %v3760
    %3764 = vrot.lane.b32.xlu0 %v3663, 112
    %v3765 = vpop.permute.xlu0 %3764
    %3766 = vrot.lane.b32.xlu0 %v3664, 112
    %v3767 = vpop.permute.xlu0 %3766
    %v3771 = vsel %vm1247, %v3761, 0
    %3773 = vmatprep.subr.mxu0 0.0
    %3774 = vmatpush1.msra.mxu0 0.0
    %3775 = vmatprep.subr.mxu0 0.0
    %3776 = vmatpush1.msra.mxu0 0.0
    %3777 = vmatprep.subr.mxu0 0.0
    %3778 = vmatpush1.msra.mxu0 0.0
    %3779 = vmatprep.subr.mxu0 0.0
    %3780 = vmatpush1.msra.mxu0 0.0
    %3781 = vmatprep.subr.mxu0 0.0
    %3782 = vmatpush1.msra.mxu0 0.0
    %3783 = vmatprep.subr.mxu0 0.0
    %3784 = vmatpush1.msra.mxu0 0.0
    %3785 = vmatprep.subr.mxu0 0.0
    %3786 = vmatpush1.msra.mxu0 0.0
    %3787 = vmatprep.subr.mxu0 0.0
    %3788 = vmatpush1.msra.mxu0 0.0
    %3789 = vmatprep.subr.mxu0 0.0
    %3790 = vmatpush1.msra.mxu0 0.0
    %3791 = vmatprep.subr.mxu0 0.0
    %3792 = vmatpush1.msra.mxu0 0.0
    %3793 = vmatprep.subr.mxu0 0.0
    %3794 = vmatpush1.msra.mxu0 0.0
    %3795 = vmatprep.subr.mxu0 0.0
    %3796 = vmatpush1.msra.mxu0 0.0
    %3797 = vmatprep.subr.mxu0 0.0
    %3798 = vmatpush1.msra.mxu0 0.0
    %3799 = vmatprep.subr.mxu0 0.0
    %3800 = vmatpush1.msra.mxu0 0.0
    %3801 = vmatprep.subr.mxu0 0.0
    %3802 = vmatpush1.msra.mxu0 %v3767
    %3803 = vmatprep.subr.mxu0 0.0
    %3804 = vmatpush1.msra.mxu0 %v3765
    %3805 = vmatprep.subr.mxu0 0.0
    %3806 = vmatpush2.msra.mxu0 0.0
    %3807 = vmatprep.subr.mxu0 0.0
    %3808 = vmatpush2.msra.mxu0 0.0
    %3809 = vmatprep.subr.mxu0 0.0
    %3810 = vmatpush2.msra.mxu0 0.0
    %3811 = vmatprep.subr.mxu0 0.0
    %3812 = vmatpush2.msra.mxu0 0.0
    %3813 = vmatprep.subr.mxu0 0.0
    %3814 = vmatpush2.msra.mxu0 0.0
    %3815 = vmatprep.subr.mxu0 0.0
    %3816 = vmatpush2.msra.mxu0 0.0
    %3817 = vmatprep.subr.mxu0 0.0
    %3818 = vmatpush2.msra.mxu0 0.0
    %3819 = vmatprep.subr.mxu0 0.0
    %3820 = vmatpush2.msra.mxu0 0.0
    %3821 = vmatprep.subr.mxu0 0.0
    %3822 = vmatpush2.msra.mxu0 0.0
    %3823 = vmatprep.subr.mxu0 0.0
    %3824 = vmatpush2.msra.mxu0 0.0
    %3825 = vmatprep.subr.mxu0 0.0
    %3826 = vmatpush2.msra.mxu0 0.0
    %3827 = vmatprep.subr.mxu0 0.0
    %3828 = vmatpush2.msra.mxu0 0.0
    %3829 = vmatprep.subr.mxu0 0.0
    %3830 = vmatpush2.msra.mxu0 0.0
    %3831 = vmatprep.subr.mxu0 0.0
    %3832 = vmatpush2.msra.mxu0 0.0
    %3833 = vmatprep.subr.mxu0 0.0
    %3834 = vmatpush2.msra.mxu0 0.0
    %3835 = vmatprep.subr.mxu0 0.0
    %3836 = vmatpush2.msra.mxu0 0.0
    %3837 = vmatprep.mubr.f32.mxu0 0.0
    %3838 = vmatmul.mubr.f32.gmra.mxu0 %v3771
    %v3839 = vpop.f32.mrf.mxu0
    %v3840 = vadd.f32 0.0, %v3839
    %v3841 = vpop.f32.mrf.mxu0
    %3842 = vdwg.mxu0
    %3844 = vrot.lane.b32.xlu0 %v3840, 16
    %v3845 = vpop.permute.xlu0 %3844
    %3847 = vst.msk [vmem:[#allocation3] sm:$0xff] %vm796, %v3845
    %v3848 = vld [vmem:[#allocation2] sm:$0xff]
    %v3849 = vld [vmem:[%s3301] sm:$0xff]
    %v3850 = vld [vmem:[%s3301 + $0x8] sm:$0xff]
    %v3851 = vld [vmem:[%s3304] sm:$0xff]
    %v3852 = vld [vmem:[%s3304 + $0x8] sm:$0xff]
    %3854 = vrot.lane.b32.xlu0 %v3848, 104
    %v3855 = vpop.permute.xlu0 %3854
    %3858 = vrot.lane.b32.xlu0 %v3849, 104
    %v3859 = vpop.permute.xlu0 %3858
    %3860 = vrot.lane.b32.xlu0 %v3850, 104
    %v3861 = vpop.permute.xlu0 %3860
    %v3862 = vsel %vm281, %v3855, 0
    %v3864 = vsel %vm281, %v3859, 0
    %v3866 = vsel %vm281, %v3861, 0
    %3868 = vmatprep.subr.mxu0 0.0
    %3869 = vmatpush1.xpose.msra.mxu0 0.0
    %3870 = vmatprep.subr.mxu0 0.0
    %3871 = vmatpush1.xpose.msra.mxu0 0.0
    %3872 = vmatprep.subr.mxu0 0.0
    %3873 = vmatpush1.xpose.msra.mxu0 0.0
    %3874 = vmatprep.subr.mxu0 0.0
    %3875 = vmatpush1.xpose.msra.mxu0 0.0
    %3876 = vmatprep.subr.mxu0 0.0
    %3877 = vmatpush1.xpose.msra.mxu0 0.0
    %3878 = vmatprep.subr.mxu0 0.0
    %3879 = vmatpush1.xpose.msra.mxu0 0.0
    %3880 = vmatprep.subr.mxu0 0.0
    %3881 = vmatpush1.xpose.msra.mxu0 0.0
    %3882 = vmatprep.subr.mxu0 0.0
    %3883 = vmatpush1.xpose.msra.mxu0 0.0
    %3884 = vmatprep.subr.mxu0 0.0
    %3885 = vmatpush1.xpose.msra.mxu0 0.0
    %3886 = vmatprep.subr.mxu0 0.0
    %3887 = vmatpush1.xpose.msra.mxu0 0.0
    %3888 = vmatprep.subr.mxu0 0.0
    %3889 = vmatpush1.xpose.msra.mxu0 0.0
    %3890 = vmatprep.subr.mxu0 0.0
    %3891 = vmatpush1.xpose.msra.mxu0 0.0
    %3892 = vmatprep.subr.mxu0 0.0
    %3893 = vmatpush1.xpose.msra.mxu0 0.0
    %3894 = vmatprep.subr.mxu0 0.0
    %3895 = vmatpush1.xpose.msra.mxu0 0.0
    %3896 = vmatprep.subr.mxu0 0.0
    %3897 = vmatpush1.xpose.msra.mxu0 %v3866
    %3898 = vmatprep.subr.mxu0 0.0
    %3899 = vmatpush1.xpose.msra.mxu0 %v3864
    %3900 = vmatprep.subr.mxu0 0.0
    %3901 = vmatpush2.xpose.msra.mxu0 0.0
    %3902 = vmatprep.subr.mxu0 0.0
    %3903 = vmatpush2.xpose.msra.mxu0 0.0
    %3904 = vmatprep.subr.mxu0 0.0
    %3905 = vmatpush2.xpose.msra.mxu0 0.0
    %3906 = vmatprep.subr.mxu0 0.0
    %3907 = vmatpush2.xpose.msra.mxu0 0.0
    %3908 = vmatprep.subr.mxu0 0.0
    %3909 = vmatpush2.xpose.msra.mxu0 0.0
    %3910 = vmatprep.subr.mxu0 0.0
    %3911 = vmatpush2.xpose.msra.mxu0 0.0
    %3912 = vmatprep.subr.mxu0 0.0
    %3913 = vmatpush2.xpose.msra.mxu0 0.0
    %3914 = vmatprep.subr.mxu0 0.0
    %3915 = vmatpush2.xpose.msra.mxu0 0.0
    %3916 = vmatprep.subr.mxu0 0.0
    %3917 = vmatpush2.xpose.msra.mxu0 0.0
    %3918 = vmatprep.subr.mxu0 0.0
    %3919 = vmatpush2.xpose.msra.mxu0 0.0
    %3920 = vmatprep.subr.mxu0 0.0
    %3921 = vmatpush2.xpose.msra.mxu0 0.0
    %3922 = vmatprep.subr.mxu0 0.0
    %3923 = vmatpush2.xpose.msra.mxu0 0.0
    %3924 = vmatprep.subr.mxu0 0.0
    %3925 = vmatpush2.xpose.msra.mxu0 0.0
    %3926 = vmatprep.subr.mxu0 0.0
    %3927 = vmatpush2.xpose.msra.mxu0 0.0
    %3928 = vmatprep.subr.mxu0 0.0
    %3929 = vmatpush2.xpose.msra.mxu0 0.0
    %3930 = vmatprep.subr.mxu0 0.0
    %3931 = vmatpush2.xpose.msra.mxu0 0.0
    %3932 = vmatprep.mubr.f32.mxu0 0.0
    %3933 = vmatmul.mubr.f32.gmra.mxu0 %v3862
    %v3934 = vpop.f32.mrf.mxu0
    %v3935 = vadd.f32 0.0, %v3934
    %v3936 = vpop.f32.mrf.mxu0
    %3937 = vdwg.mxu0
    %v3938 = vmul.f32 %v3935, 0.35355338
    %v3939 = vsel %vm1247, %v3938, -inf
    %3940 = vmax.xlane.f32.xlu0 %v3939
    %v3941 = vpop.xlane.xlu0 %3940
    %v3942 = vsub.f32 %v3938, %v3941
    %v3943 = vmul.f32 %v3942, 1.442695
    %v3944 = vpow.pop %v3943
    %v3945 = vsel %vm1247, %v3944, 0.0
    %3946 = vadd.xlane.f32.xlu0 %v3945
    %v3947 = vpop.xlane.xlu0 %3946
    %v3948 = vrcp.pop %v3947
    %v3949 = vmul.f32 %v3944, %v3948
    %3952 = vrot.lane.b32.xlu0 %v3851, 104
    %v3953 = vpop.permute.xlu0 %3952
    %3954 = vrot.lane.b32.xlu0 %v3852, 104
    %v3955 = vpop.permute.xlu0 %3954
    %v3959 = vsel %vm1247, %v3949, 0
    %3961 = vmatprep.subr.mxu0 0.0
    %3962 = vmatpush1.msra.mxu0 0.0
    %3963 = vmatprep.subr.mxu0 0.0
    %3964 = vmatpush1.msra.mxu0 0.0
    %3965 = vmatprep.subr.mxu0 0.0
    %3966 = vmatpush1.msra.mxu0 0.0
    %3967 = vmatprep.subr.mxu0 0.0
    %3968 = vmatpush1.msra.mxu0 0.0
    %3969 = vmatprep.subr.mxu0 0.0
    %3970 = vmatpush1.msra.mxu0 0.0
    %3971 = vmatprep.subr.mxu0 0.0
    %3972 = vmatpush1.msra.mxu0 0.0
    %3973 = vmatprep.subr.mxu0 0.0
    %3974 = vmatpush1.msra.mxu0 0.0
    %3975 = vmatprep.subr.mxu0 0.0
    %3976 = vmatpush1.msra.mxu0 0.0
    %3977 = vmatprep.subr.mxu0 0.0
    %3978 = vmatpush1.msra.mxu0 0.0
    %3979 = vmatprep.subr.mxu0 0.0
    %3980 = vmatpush1.msra.mxu0 0.0
    %3981 = vmatprep.subr.mxu0 0.0
    %3982 = vmatpush1.msra.mxu0 0.0
    %3983 = vmatprep.subr.mxu0 0.0
    %3984 = vmatpush1.msra.mxu0 0.0
    %3985 = vmatprep.subr.mxu0 0.0
    %3986 = vmatpush1.msra.mxu0 0.0
    %3987 = vmatprep.subr.mxu0 0.0
    %3988 = vmatpush1.msra.mxu0 0.0
    %3989 = vmatprep.subr.mxu0 0.0
    %3990 = vmatpush1.msra.mxu0 %v3955
    %3991 = vmatprep.subr.mxu0 0.0
    %3992 = vmatpush1.msra.mxu0 %v3953
    %3993 = vmatprep.subr.mxu0 0.0
    %3994 = vmatpush2.msra.mxu0 0.0
    %3995 = vmatprep.subr.mxu0 0.0
    %3996 = vmatpush2.msra.mxu0 0.0
    %3997 = vmatprep.subr.mxu0 0.0
    %3998 = vmatpush2.msra.mxu0 0.0
    %3999 = vmatprep.subr.mxu0 0.0
    %4000 = vmatpush2.msra.mxu0 0.0
    %4001 = vmatprep.subr.mxu0 0.0
    %4002 = vmatpush2.msra.mxu0 0.0
    %4003 = vmatprep.subr.mxu0 0.0
    %4004 = vmatpush2.msra.mxu0 0.0
    %4005 = vmatprep.subr.mxu0 0.0
    %4006 = vmatpush2.msra.mxu0 0.0
    %4007 = vmatprep.subr.mxu0 0.0
    %4008 = vmatpush2.msra.mxu0 0.0
    %4009 = vmatprep.subr.mxu0 0.0
    %4010 = vmatpush2.msra.mxu0 0.0
    %4011 = vmatprep.subr.mxu0 0.0
    %4012 = vmatpush2.msra.mxu0 0.0
    %4013 = vmatprep.subr.mxu0 0.0
    %4014 = vmatpush2.msra.mxu0 0.0
    %4015 = vmatprep.subr.mxu0 0.0
    %4016 = vmatpush2.msra.mxu0 0.0
    %4017 = vmatprep.subr.mxu0 0.0
    %4018 = vmatpush2.msra.mxu0 0.0
    %4019 = vmatprep.subr.mxu0 0.0
    %4020 = vmatpush2.msra.mxu0 0.0
    %4021 = vmatprep.subr.mxu0 0.0
    %4022 = vmatpush2.msra.mxu0 0.0
    %4023 = vmatprep.subr.mxu0 0.0
    %4024 = vmatpush2.msra.mxu0 0.0
    %4025 = vmatprep.mubr.f32.mxu0 0.0
    %4026 = vmatmul.mubr.f32.gmra.mxu0 %v3959
    %v4027 = vpop.f32.mrf.mxu0
    %v4028 = vadd.f32 0.0, %v4027
    %v4029 = vpop.f32.mrf.mxu0
    %4030 = vdwg.mxu0
    %4032 = vrot.lane.b32.xlu0 %v4028, 24
    %v4033 = vpop.permute.xlu0 %4032
    %4035 = vst.msk [vmem:[#allocation3] sm:$0xff] %vm971, %v4033
    %v4036 = vld [vmem:[#allocation3] sm:$0xff]
    %v4038 = vsel %vm201, %v4036, 0
    %4040 = vmatprep.subr.mxu0 0.0
    %4041 = vmatpush1.msra.mxu0 0.0
    %4042 = vmatprep.subr.mxu0 0.0
    %4043 = vmatpush1.msra.mxu0 0.0
    %4044 = vmatprep.subr.mxu0 0.0
    %4045 = vmatpush1.msra.mxu0 0.0
    %4046 = vmatprep.subr.mxu0 0.0
    %4047 = vmatpush1.msra.mxu0 0.0
    %4048 = vmatprep.subr.mxu0 0.0
    %4049 = vmatpush1.msra.mxu0 0.0
    %4050 = vmatprep.subr.mxu0 0.0
    %4051 = vmatpush1.msra.mxu0 0.0
    %4052 = vmatprep.subr.mxu0 0.0
    %4053 = vmatpush1.msra.mxu0 0.0
    %4054 = vmatprep.subr.mxu0 0.0
    %4055 = vmatpush1.msra.mxu0 0.0
    %4056 = vmatprep.subr.mxu0 0.0
    %4057 = vmatpush1.msra.mxu0 0.0
    %4058 = vmatprep.subr.mxu0 0.0
    %4059 = vmatpush1.msra.mxu0 0.0
    %4060 = vmatprep.subr.mxu0 0.0
    %4061 = vmatpush1.msra.mxu0 0.0
    %4062 = vmatprep.subr.mxu0 0.0
    %4063 = vmatpush1.msra.mxu0 0.0
    %4064 = vmatprep.subr.mxu0 0.0
    %4065 = vmatpush1.msra.mxu0 %v165
    %4066 = vmatprep.subr.mxu0 0.0
    %4067 = vmatpush1.msra.mxu0 %v164
    %4068 = vmatprep.subr.mxu0 0.0
    %4069 = vmatpush1.msra.mxu0 %v163
    %4070 = vmatprep.subr.mxu0 0.0
    %4071 = vmatpush1.msra.mxu0 %v162
    %4072 = vmatprep.subr.mxu0 0.0
    %4073 = vmatpush2.msra.mxu0 0.0
    %4074 = vmatprep.subr.mxu0 0.0
    %4075 = vmatpush2.msra.mxu0 0.0
    %4076 = vmatprep.subr.mxu0 0.0
    %4077 = vmatpush2.msra.mxu0 0.0
    %4078 = vmatprep.subr.mxu0 0.0
    %4079 = vmatpush2.msra.mxu0 0.0
    %4080 = vmatprep.subr.mxu0 0.0
    %4081 = vmatpush2.msra.mxu0 0.0
    %4082 = vmatprep.subr.mxu0 0.0
    %4083 = vmatpush2.msra.mxu0 0.0
    %4084 = vmatprep.subr.mxu0 0.0
    %4085 = vmatpush2.msra.mxu0 0.0
    %4086 = vmatprep.subr.mxu0 0.0
    %4087 = vmatpush2.msra.mxu0 0.0
    %4088 = vmatprep.subr.mxu0 0.0
    %4089 = vmatpush2.msra.mxu0 0.0
    %4090 = vmatprep.subr.mxu0 0.0
    %4091 = vmatpush2.msra.mxu0 0.0
    %4092 = vmatprep.subr.mxu0 0.0
    %4093 = vmatpush2.msra.mxu0 0.0
    %4094 = vmatprep.subr.mxu0 0.0
    %4095 = vmatpush2.msra.mxu0 0.0
    %4096 = vmatprep.subr.mxu0 0.0
    %4097 = vmatpush2.msra.mxu0 0.0
    %4098 = vmatprep.subr.mxu0 0.0
    %4099 = vmatpush2.msra.mxu0 0.0
    %4100 = vmatprep.subr.mxu0 0.0
    %4101 = vmatpush2.msra.mxu0 0.0
    %4102 = vmatprep.subr.mxu0 0.0
    %4103 = vmatpush2.msra.mxu0 0.0
    %4104 = vmatprep.mubr.f32.mxu0 0.0
    %4105 = vmatmul.mubr.f32.gmra.mxu0 %v4038
    %v4106 = vpop.f32.mrf.mxu0
    %v4107 = vadd.f32 %v1902, %v4106
    %v4108 = vpop.f32.mrf.mxu0
    %4109 = vdwg.mxu0
    %v4110 = vadd.f32 %v3225, %v4107
    %v4111 = vsel %vm201, %v4110, 0.0
    %4112 = vadd.xlane.f32.xlu0 %v4111
    %v4113 = vpop.xlane.xlu0 %4112
    %v4114 = vmul.f32 %v4113, %v1057
    %v4115 = vsub.f32 %v4110, %v4114
    %v4116 = vmul.f32 %v4115, %v4115
    %v4117 = vsel %vm201, %v4116, 0.0
    %4118 = vadd.xlane.f32.xlu0 %v4117
    %v4119 = vpop.xlane.xlu0 %4118
    %v4120 = vmul.f32 %v4119, %v1057
    %v4121 = vadd.f32 %v4120, 1e-05
    %v4122 = vrsqrt.pop %v4121
    %v4123 = vmul.f32 %v4115, %v4122
    %v4124 = vmul.f32 %v4123, %v1995
    %v4125 = vadd.f32 %v4124, %v2002
    %v4127 = vsel %vm201, %v4125, 0
    %4129 = vmatprep.subr.mxu0 0.0
    %4130 = vmatpush1.msra.mxu0 0.0
    %4131 = vmatprep.subr.mxu0 0.0
    %4132 = vmatpush1.msra.mxu0 0.0
    %4133 = vmatprep.subr.mxu0 0.0
    %4134 = vmatpush1.msra.mxu0 0.0
    %4135 = vmatprep.subr.mxu0 0.0
    %4136 = vmatpush1.msra.mxu0 0.0
    %4137 = vmatprep.subr.mxu0 0.0
    %4138 = vmatpush1.msra.mxu0 0.0
    %4139 = vmatprep.subr.mxu0 0.0
    %4140 = vmatpush1.msra.mxu0 0.0
    %4141 = vmatprep.subr.mxu0 0.0
    %4142 = vmatpush1.msra.mxu0 0.0
    %4143 = vmatprep.subr.mxu0 0.0
    %4144 = vmatpush1.msra.mxu0 0.0
    %4145 = vmatprep.subr.mxu0 0.0
    %4146 = vmatpush1.msra.mxu0 0.0
    %4147 = vmatprep.subr.mxu0 0.0
    %4148 = vmatpush1.msra.mxu0 0.0
    %4149 = vmatprep.subr.mxu0 0.0
    %4150 = vmatpush1.msra.mxu0 0.0
    %4151 = vmatprep.subr.mxu0 0.0
    %4152 = vmatpush1.msra.mxu0 0.0
    %4153 = vmatprep.subr.mxu0 0.0
    %4154 = vmatpush1.msra.mxu0 %v170
    %4155 = vmatprep.subr.mxu0 0.0
    %4156 = vmatpush1.msra.mxu0 %v169
    %4157 = vmatprep.subr.mxu0 0.0
    %4158 = vmatpush1.msra.mxu0 %v168
    %4159 = vmatprep.subr.mxu0 0.0
    %4160 = vmatpush1.msra.mxu0 %v167
    %4161 = vmatprep.subr.mxu0 0.0
    %4162 = vmatpush2.msra.mxu0 0.0
    %4163 = vmatprep.subr.mxu0 0.0
    %4164 = vmatpush2.msra.mxu0 0.0
    %4165 = vmatprep.subr.mxu0 0.0
    %4166 = vmatpush2.msra.mxu0 0.0
    %4167 = vmatprep.subr.mxu0 0.0
    %4168 = vmatpush2.msra.mxu0 0.0
    %4169 = vmatprep.subr.mxu0 0.0
    %4170 = vmatpush2.msra.mxu0 0.0
    %4171 = vmatprep.subr.mxu0 0.0
    %4172 = vmatpush2.msra.mxu0 0.0
    %4173 = vmatprep.subr.mxu0 0.0
    %4174 = vmatpush2.msra.mxu0 0.0
    %4175 = vmatprep.subr.mxu0 0.0
    %4176 = vmatpush2.msra.mxu0 0.0
    %4177 = vmatprep.subr.mxu0 0.0
    %4178 = vmatpush2.msra.mxu0 0.0
    %4179 = vmatprep.subr.mxu0 0.0
    %4180 = vmatpush2.msra.mxu0 0.0
    %4181 = vmatprep.subr.mxu0 0.0
    %4182 = vmatpush2.msra.mxu0 0.0
    %4183 = vmatprep.subr.mxu0 0.0
    %4184 = vmatpush2.msra.mxu0 0.0
    %4185 = vmatprep.subr.mxu0 0.0
    %4186 = vmatpush2.msra.mxu0 0.0
    %4187 = vmatprep.subr.mxu0 0.0
    %4188 = vmatpush2.msra.mxu0 0.0
    %4189 = vmatprep.subr.mxu0 0.0
    %4190 = vmatpush2.msra.mxu0 0.0
    %4191 = vmatprep.subr.mxu0 0.0
    %4192 = vmatpush2.msra.mxu0 0.0
    %4193 = vmatprep.mubr.f32.mxu0 0.0
    %4194 = vmatmul.mubr.f32.gmra.mxu0 %v4127
    %v4195 = vpop.f32.mrf.mxu0
    %v4196 = vadd.f32 %v2009, %v4195
    %v4197 = vpop.f32.mrf.mxu0
    %4198 = vdwg.mxu0
    %v4199 = vmax.f32 %v4196, 0.0
    %v4201 = vsel %vm2091, %v4199, 0
    %4203 = vmatprep.subr.mxu0 0.0
    %4204 = vmatpush1.msra.mxu0 0.0
    %4205 = vmatprep.subr.mxu0 0.0
    %4206 = vmatpush1.msra.mxu0 0.0
    %4207 = vmatprep.subr.mxu0 0.0
    %4208 = vmatpush1.msra.mxu0 0.0
    %4209 = vmatprep.subr.mxu0 0.0
    %4210 = vmatpush1.msra.mxu0 0.0
    %4211 = vmatprep.subr.mxu0 0.0
    %4212 = vmatpush1.msra.mxu0 0.0
    %4213 = vmatprep.subr.mxu0 0.0
    %4214 = vmatpush1.msra.mxu0 0.0
    %4215 = vmatprep.subr.mxu0 0.0
    %4216 = vmatpush1.msra.mxu0 0.0
    %4217 = vmatprep.subr.mxu0 0.0
    %4218 = vmatpush1.msra.mxu0 0.0
    %4219 = vmatprep.subr.mxu0 0.0
    %4220 = vmatpush1.msra.mxu0 %v179
    %4221 = vmatprep.subr.mxu0 0.0
    %4222 = vmatpush1.msra.mxu0 %v178
    %4223 = vmatprep.subr.mxu0 0.0
    %4224 = vmatpush1.msra.mxu0 %v177
    %4225 = vmatprep.subr.mxu0 0.0
    %4226 = vmatpush1.msra.mxu0 %v176
    %4227 = vmatprep.subr.mxu0 0.0
    %4228 = vmatpush1.msra.mxu0 %v175
    %4229 = vmatprep.subr.mxu0 0.0
    %4230 = vmatpush1.msra.mxu0 %v174
    %4231 = vmatprep.subr.mxu0 0.0
    %4232 = vmatpush1.msra.mxu0 %v173
    %4233 = vmatprep.subr.mxu0 0.0
    %4234 = vmatpush1.msra.mxu0 %v172
    %4235 = vmatprep.subr.mxu0 0.0
    %4236 = vmatpush2.msra.mxu0 0.0
    %4237 = vmatprep.subr.mxu0 0.0
    %4238 = vmatpush2.msra.mxu0 0.0
    %4239 = vmatprep.subr.mxu0 0.0
    %4240 = vmatpush2.msra.mxu0 0.0
    %4241 = vmatprep.subr.mxu0 0.0
    %4242 = vmatpush2.msra.mxu0 0.0
    %4243 = vmatprep.subr.mxu0 0.0
    %4244 = vmatpush2.msra.mxu0 0.0
    %4245 = vmatprep.subr.mxu0 0.0
    %4246 = vmatpush2.msra.mxu0 0.0
    %4247 = vmatprep.subr.mxu0 0.0
    %4248 = vmatpush2.msra.mxu0 0.0
    %4249 = vmatprep.subr.mxu0 0.0
    %4250 = vmatpush2.msra.mxu0 0.0
    %4251 = vmatprep.subr.mxu0 0.0
    %4252 = vmatpush2.msra.mxu0 0.0
    %4253 = vmatprep.subr.mxu0 0.0
    %4254 = vmatpush2.msra.mxu0 0.0
    %4255 = vmatprep.subr.mxu0 0.0
    %4256 = vmatpush2.msra.mxu0 0.0
    %4257 = vmatprep.subr.mxu0 0.0
    %4258 = vmatpush2.msra.mxu0 0.0
    %4259 = vmatprep.subr.mxu0 0.0
    %4260 = vmatpush2.msra.mxu0 0.0
    %4261 = vmatprep.subr.mxu0 0.0
    %4262 = vmatpush2.msra.mxu0 0.0
    %4263 = vmatprep.subr.mxu0 0.0
    %4264 = vmatpush2.msra.mxu0 0.0
    %4265 = vmatprep.subr.mxu0 0.0
    %4266 = vmatpush2.msra.mxu0 0.0
    %4267 = vmatprep.mubr.f32.mxu0 0.0
    %4268 = vmatmul.mubr.f32.gmra.mxu0 %v4201
    %v4269 = vpop.f32.mrf.mxu0
    %v4270 = vadd.f32 %v2089, %v4269
    %v4271 = vpop.f32.mrf.mxu0
    %4272 = vdwg.mxu0
    %v4273 = vadd.f32 %v4125, %v4270
    %v4274 = vsel %vm201, %v4273, 0.0
    %4275 = vadd.xlane.f32.xlu0 %v4274
    %v4276 = vpop.xlane.xlu0 %4275
    %v4277 = vmul.f32 %v4276, %v1057
    %v4278 = vsub.f32 %v4273, %v4277
    %v4279 = vmul.f32 %v4278, %v4278
    %v4280 = vsel %vm201, %v4279, 0.0
    %4281 = vadd.xlane.f32.xlu0 %v4280
    %v4282 = vpop.xlane.xlu0 %4281
    %v4283 = vmul.f32 %v4282, %v1057
    %v4284 = vadd.f32 %v4283, 1e-05
    %v4285 = vrsqrt.pop %v4284
    %v4286 = vmul.f32 %v4278, %v4285
    %v4287 = vmul.f32 %v4286, %v2183
    %v4288 = vadd.f32 %v4287, %v2190
    %v4289 = vmul.f32 %v4288, %v2196
    %v4290 = vsel %vm201, %v4289, 0.0
    %v4291 = vrot.slane %v4290, 4
    %v4292 = vadd.f32 %v4290, %v4291
    %v4293 = vrot.slane %v4292, 2
    %v4294 = vadd.f32 %v4292, %v4293
    %v4295 = vrot.slane %v4294, 1
    %v4296 = vadd.f32 %v4294, %v4295
    %v4298 = vsel %vm201, %v4296, 0
    %4300 = vmatprep.subr.mxu0 0.0
    %4301 = vmatpush1.msra.mxu0 0.0
    %4302 = vmatprep.subr.mxu0 0.0
    %4303 = vmatpush1.msra.mxu0 0.0
    %4304 = vmatprep.subr.mxu0 0.0
    %4305 = vmatpush1.msra.mxu0 0.0
    %4306 = vmatprep.subr.mxu0 0.0
    %4307 = vmatpush1.msra.mxu0 0.0
    %4308 = vmatprep.subr.mxu0 0.0
    %4309 = vmatpush1.msra.mxu0 0.0
    %4310 = vmatprep.subr.mxu0 0.0
    %4311 = vmatpush1.msra.mxu0 0.0
    %4312 = vmatprep.subr.mxu0 0.0
    %4313 = vmatpush1.msra.mxu0 0.0
    %4314 = vmatprep.subr.mxu0 0.0
    %4315 = vmatpush1.msra.mxu0 0.0
    %4316 = vmatprep.subr.mxu0 0.0
    %4317 = vmatpush1.msra.mxu0 0.0
    %4318 = vmatprep.subr.mxu0 0.0
    %4319 = vmatpush1.msra.mxu0 0.0
    %4320 = vmatprep.subr.mxu0 0.0
    %4321 = vmatpush1.msra.mxu0 0.0
    %4322 = vmatprep.subr.mxu0 0.0
    %4323 = vmatpush1.msra.mxu0 0.0
    %4324 = vmatprep.subr.mxu0 0.0
    %4325 = vmatpush1.msra.mxu0 %v184
    %4326 = vmatprep.subr.mxu0 0.0
    %4327 = vmatpush1.msra.mxu0 %v183
    %4328 = vmatprep.subr.mxu0 0.0
    %4329 = vmatpush1.msra.mxu0 %v182
    %4330 = vmatprep.subr.mxu0 0.0
    %4331 = vmatpush1.msra.mxu0 %v181
    %4332 = vmatprep.subr.mxu0 0.0
    %4333 = vmatpush2.msra.mxu0 0.0
    %4334 = vmatprep.subr.mxu0 0.0
    %4335 = vmatpush2.msra.mxu0 0.0
    %4336 = vmatprep.subr.mxu0 0.0
    %4337 = vmatpush2.msra.mxu0 0.0
    %4338 = vmatprep.subr.mxu0 0.0
    %4339 = vmatpush2.msra.mxu0 0.0
    %4340 = vmatprep.subr.mxu0 0.0
    %4341 = vmatpush2.msra.mxu0 0.0
    %4342 = vmatprep.subr.mxu0 0.0
    %4343 = vmatpush2.msra.mxu0 0.0
    %4344 = vmatprep.subr.mxu0 0.0
    %4345 = vmatpush2.msra.mxu0 0.0
    %4346 = vmatprep.subr.mxu0 0.0
    %4347 = vmatpush2.msra.mxu0 0.0
    %4348 = vmatprep.subr.mxu0 0.0
    %4349 = vmatpush2.msra.mxu0 0.0
    %4350 = vmatprep.subr.mxu0 0.0
    %4351 = vmatpush2.msra.mxu0 0.0
    %4352 = vmatprep.subr.mxu0 0.0
    %4353 = vmatpush2.msra.mxu0 0.0
    %4354 = vmatprep.subr.mxu0 0.0
    %4355 = vmatpush2.msra.mxu0 0.0
    %4356 = vmatprep.subr.mxu0 0.0
    %4357 = vmatpush2.msra.mxu0 0.0
    %4358 = vmatprep.subr.mxu0 0.0
    %4359 = vmatpush2.msra.mxu0 0.0
    %4360 = vmatprep.subr.mxu0 0.0
    %4361 = vmatpush2.msra.mxu0 0.0
    %4362 = vmatprep.subr.mxu0 0.0
    %4363 = vmatpush2.msra.mxu0 0.0
    %4364 = vmatprep.mubr.f32.mxu0 0.0
    %4365 = vmatmul.mubr.f32.gmra.mxu0 %v4298
    %v4366 = vpop.f32.mrf.mxu0
    %v4367 = vadd.f32 %v185, %v4366
    %v4368 = vpop.f32.mrf.mxu0
    %4369 = vdwg.mxu0
    %4370 = vst.msk [vmem:[#allocation5 + $0x1] sm:$0x1] %vm2279, %v4367
    %v4372 = vsel %vm2281, %v4367, 0
    %4374 = vmatprep.subr.mxu0 0.0
    %4375 = vmatpush1.msra.mxu0 0.0
    %4376 = vmatprep.subr.mxu0 0.0
    %4377 = vmatpush1.msra.mxu0 0.0
    %4378 = vmatprep.subr.mxu0 0.0
    %4379 = vmatpush1.msra.mxu0 0.0
    %4380 = vmatprep.subr.mxu0 0.0
    %4381 = vmatpush1.msra.mxu0 0.0
    %4382 = vmatprep.subr.mxu0 0.0
    %4383 = vmatpush1.msra.mxu0 0.0
    %4384 = vmatprep.subr.mxu0 0.0
    %4385 = vmatpush1.msra.mxu0 0.0
    %4386 = vmatprep.subr.mxu0 0.0
    %4387 = vmatpush1.msra.mxu0 0.0
    %4388 = vmatprep.subr.mxu0 0.0
    %4389 = vmatpush1.msra.mxu0 0.0
    %4390 = vmatprep.subr.mxu0 0.0
    %4391 = vmatpush1.msra.mxu0 0.0
    %4392 = vmatprep.subr.mxu0 0.0
    %4393 = vmatpush1.msra.mxu0 0.0
    %4394 = vmatprep.subr.mxu0 0.0
    %4395 = vmatpush1.msra.mxu0 0.0
    %4396 = vmatprep.subr.mxu0 0.0
    %4397 = vmatpush1.msra.mxu0 0.0
    %4398 = vmatprep.subr.mxu0 0.0
    %4399 = vmatpush1.msra.mxu0 0.0
    %4400 = vmatprep.subr.mxu0 0.0
    %4401 = vmatpush1.msra.mxu0 0.0
    %4402 = vmatprep.subr.mxu0 0.0
    %4403 = vmatpush1.msra.mxu0 0.0
    %4404 = vmatprep.subr.mxu0 0.0
    %4405 = vmatpush1.msra.mxu0 %v2287
    %4406 = vmatprep.subr.mxu0 0.0
    %4407 = vmatpush2.msra.mxu0 0.0
    %4408 = vmatprep.subr.mxu0 0.0
    %4409 = vmatpush2.msra.mxu0 0.0
    %4410 = vmatprep.subr.mxu0 0.0
    %4411 = vmatpush2.msra.mxu0 0.0
    %4412 = vmatprep.subr.mxu0 0.0
    %4413 = vmatpush2.msra.mxu0 0.0
    %4414 = vmatprep.subr.mxu0 0.0
    %4415 = vmatpush2.msra.mxu0 0.0
    %4416 = vmatprep.subr.mxu0 0.0
    %4417 = vmatpush2.msra.mxu0 0.0
    %4418 = vmatprep.subr.mxu0 0.0
    %4419 = vmatpush2.msra.mxu0 0.0
    %4420 = vmatprep.subr.mxu0 0.0
    %4421 = vmatpush2.msra.mxu0 0.0
    %4422 = vmatprep.subr.mxu0 0.0
    %4423 = vmatpush2.msra.mxu0 0.0
    %4424 = vmatprep.subr.mxu0 0.0
    %4425 = vmatpush2.msra.mxu0 0.0
    %4426 = vmatprep.subr.mxu0 0.0
    %4427 = vmatpush2.msra.mxu0 0.0
    %4428 = vmatprep.subr.mxu0 0.0
    %4429 = vmatpush2.msra.mxu0 0.0
    %4430 = vmatprep.subr.mxu0 0.0
    %4431 = vmatpush2.msra.mxu0 0.0
    %4432 = vmatprep.subr.mxu0 0.0
    %4433 = vmatpush2.msra.mxu0 0.0
    %4434 = vmatprep.subr.mxu0 0.0
    %4435 = vmatpush2.msra.mxu0 0.0
    %4436 = vmatprep.subr.mxu0 0.0
    %4437 = vmatpush2.msra.mxu0 0.0
    %4438 = vmatprep.mubr.f32.mxu0 0.0
    %4439 = vmatmul.mubr.f32.gmra.mxu0 %v4372
    %v4440 = vpop.f32.mrf.mxu0
    %v4441 = vadd.f32 %v187, %v4440
    %v4442 = vpop.f32.mrf.mxu0
    %4443 = vdwg.mxu0
    %v4444 = vlaneseq
    %v4445 = vshrl.u32 %v4444, 7
    %v4446 = vsub.s32 0, %v4445
    %v4447 = vrot.slane %v4441, %v4446
    %v4448 = vsel %vm2363, %v4447, %v4288
    %s4449 = scalar_lea.vmem %s59, 8
    %4450 = vst.msk [vmem:[%s4449] sm:$0xff] %vm201, %v4448
    // Predicated region
    $region106: #{closed_call.13} parent=1 // pred_check
      _
    $region107: #{closed_call.13} parent=1 // pred_check_branch
      %4452 = sbr.rel (0) target = $region109
    $region108: #{closed_call.13} parent=1 // pred_region
      _
    $region109: #{closed_call.13} parent=1 // pred_fallthru
      _
    // Predicated region
    $region110: #{closed_call.13} parent=1 // pred_check
      _
    $region111: #{closed_call.13} parent=1 // pred_check_branch
      %4454 = sbr.rel (0) target = $region113
    $region112: #{closed_call.13} parent=1 // pred_region
      // Predicated region
      $region114: #{closed_call.13} parent=112 // pred_check
        _
      $region115: #{closed_call.13} parent=112 // pred_check_branch
        %4456 = sbr.rel (0) target = $region117
      $region116: #{closed_call.13} parent=112 // pred_region
        // Predicated region
        $region118: #{closed_call.13} parent=116 // pred_check
          _
        $region119: #{closed_call.13} parent=116 // pred_check_branch
          %4458 = sbr.rel target = $region121
        $region120: #{closed_call.13} parent=116 // pred_region
          // Predicated region
          $region133: #{closed_call.13} parent=120 // pred_check
            _
          $region134: #{closed_call.13} parent=120 // pred_check_branch
            %4474 = sbr.rel (0) target = $region136
          $region135: #{closed_call.13} parent=120 // pred_region
            %s4476 = ssub.s32 4, 1
            loop: start=0, step=1, limit=1
            $region137: #{closed_call.13} parent=135 // loop_pre_header
              _
            $region138: #{closed_call.13} parent=135 // loop_header
              %s4478 = sphi 0, %s4482
              %p4479 = scmp.ge.s32.totalorder %s4478, 1
              %s4483 = sphi [#allocation5], [#allocation5]
              %s4484 = sphi %s62, %s62
            $region139: #{closed_call.13} parent=135 // loop_header_branch
              %4481 = sbr.rel (%p4479) target = $region143
            $region140: #{closed_call.13} parent=135 // loop_body
              %v4485 = vld [vmem:[%s4483] sm:%s4476]
              %4486 = vst [vmem:[%s4484] sm:%s4476] %v4485
            $region141: #{closed_call.13} parent=135 // loop_footer
              %s4482 = sadd.s32 1, %s4478
            $region142: #{closed_call.13} parent=135 // loop_footer_branch
              %4477 = sbr.rel target = $region138
            $region143: #{closed_call.13} parent=135 // loop_exit
              _
          $region136: #{closed_call.13} parent=120 // pred_fallthru
            _
        $region121: #{closed_call.13} parent=116 // pred_fallthru
          _
        // Predicated region
        $region122: #{closed_call.13} parent=116 // pred_check
          _
        $region123: #{closed_call.13} parent=116 // pred_check_branch
          %4460 = sbr.rel (0) target = $region125
        $region124: #{closed_call.13} parent=116 // pred_region
          %s4462 = ssub.s32 4, 1
          loop: start=0, step=1, limit=1
          $region126: #{closed_call.13} parent=124 // loop_pre_header
            _
          $region127: #{closed_call.13} parent=124 // loop_header
            %s4464 = sphi 0, %s4468
            %p4465 = scmp.ge.s32.totalorder %s4464, 1
            %s4469 = sphi [#allocation5], [#allocation5]
            %s4470 = sphi %s62, %s62
          $region128: #{closed_call.13} parent=124 // loop_header_branch
            %4467 = sbr.rel (%p4465) target = $region132
          $region129: #{closed_call.13} parent=124 // loop_body
            %v4471 = vld [vmem:[%s4469] sm:%s4462]
            %4472 = vst [vmem:[%s4470] sm:%s4462] %v4471
          $region130: #{closed_call.13} parent=124 // loop_footer
            %s4468 = sadd.s32 1, %s4464
          $region131: #{closed_call.13} parent=124 // loop_footer_branch
            %4463 = sbr.rel target = $region127
          $region132: #{closed_call.13} parent=124 // loop_exit
            _
        $region125: #{closed_call.13} parent=116 // pred_fallthru
          _
      $region117: #{closed_call.13} parent=112 // pred_fallthru
        _
      %4487 = vnop
    $region113: #{closed_call.13} parent=1 // pred_fallthru
      _
    // Predicated region
    $region144: #{closed_call.13} parent=1 // pred_check
      _
    $region145: #{closed_call.13} parent=1 // pred_check_branch
      %4489 = sbr.rel (0) target = $region147
    $region146: #{closed_call.13} parent=1 // pred_region
      _
    $region147: #{closed_call.13} parent=1 // pred_fallthru
      _
    // Predicated region
    $region148: #{closed_call.13} parent=1 // pred_check
      _
    $region149: #{closed_call.13} parent=1 // pred_check_branch
      %4491 = sbr.rel (0) target = $region151
    $region150: #{closed_call.13} parent=1 // pred_region
      _
    $region151: #{closed_call.13} parent=1 // pred_fallthru
      _

</llo_original>
